<compile_context>
chip_gen: v7x
topology: tpu7x:2x2x1
jax: 0.10.0
libtpu: 0.0.40
codegen_flags: <defaults>
</compile_context>

<pallas_src>
import jax
import jax.numpy as jnp
from jax.experimental import pallas as pl
from jax.experimental.pallas import tpu as pltpu


def _critic_kernel(x_ref, w1_ref, b1_ref, w2_ref, b2_ref,
                   w3_ref, b3_ref, w4t_ref, b4_ref, o_ref):
    """4-layer MLP: 3 bf16 MXU matmuls + LeakyReLU(0.2); final layer on the VPU."""
    def leaky_relu(h):
        return jnp.where(h > 0, h, 0.2 * h)

    # Cast the f32 input tile to bf16 in-kernel (f32 accumulation on the MXU).
    x = x_ref[...].astype(jnp.bfloat16)                           # (bt, d_in)
    h = jnp.dot(x, w1_ref[...], preferred_element_type=jnp.float32) + b1_ref[...]
    h = leaky_relu(h).astype(jnp.bfloat16)                        # (bt, 1024)
    h = jnp.dot(h, w2_ref[...], preferred_element_type=jnp.float32) + b2_ref[...]
    h = leaky_relu(h).astype(jnp.bfloat16)                        # (bt, 512)
    h = jnp.dot(h, w3_ref[...], preferred_element_type=jnp.float32) + b3_ref[...]
    h = leaky_relu(h)                                             # (bt, 256) f32
    # Final Linear(256, 1): broadcast-multiply + lane reduction (VPU/XLU)
    # instead of a degenerate N=1 MXU matmul.
    v = jnp.sum(h * w4t_ref[...], axis=-1, keepdims=True) + b4_ref[...]
    o_ref[...] = v.astype(o_ref.dtype)                            # (bt, 1)


def prepare_critic_params(params):
    """One-time prep (per init / optimizer step, NOT per forward):
    bf16 matmul weights, f32 biases, w4 transposed to a (1, 256) row."""
    w1, b1, w2, b2, w3, b3, w4, b4 = params
    return (w1.astype(jnp.bfloat16), b1.astype(jnp.float32),
            w2.astype(jnp.bfloat16), b2.astype(jnp.float32),
            w3.astype(jnp.bfloat16), b3.astype(jnp.float32),
            w4.reshape(1, -1).astype(jnp.float32), b4.astype(jnp.float32))


def critic_forward(img, prepared_params):
    """img: (B, C, H, W) float32. prepared_params: output of prepare_critic_params.
    Returns validity: (B, 1) float32."""
    w1b, b1, w2b, b2, w3b, b3, w4t, b4 = prepared_params
    B = img.shape[0]
    d_in = img.shape[1] * img.shape[2] * img.shape[3]
    x = img.reshape(B, d_in)                      # stays f32; cast happens in-kernel

    # Batch tile: multiple of 16 (bf16 sublane packing of intermediates), up to
    # 512 rows to amortize the ~0.35 us/step pipeline overhead.
    bt = min(512, max(16, ((B + 15) // 16) * 16))
    Bp = ((B + bt - 1) // bt) * bt
    if Bp != B:                                   # pad only when actually needed
        x = jnp.pad(x, ((0, Bp - B), (0, 0)))
    n_tiles = Bp // bt

    weights = (w1b, b1, w2b, b2, w3b, b3, w4t, b4)

    # ---- Size the scoped VMEM limit from the actual working set. ----
    weight_bytes = sum(a.size * a.dtype.itemsize for a in weights)
    x_tile_bytes = bt * d_in * 4                  # f32 input tile
    act_bytes = bt * (1024 + 512 + 256) * (4 + 2) # rough f32 + bf16 temporaries
    out_tile_bytes = bt * 4

    def vmem_limit(weight_buffers):
        need = (2 * x_tile_bytes + weight_buffers * weight_bytes
                + 2 * out_tile_bytes + act_bytes)
        # 1.5x headroom + 4 MiB slack, clamped to [16 MiB, 56 MiB]
        # (v7x physical VMEM is 64 MiB; v5e/v6e have 128 MiB).
        return int(min(max(need * 3 // 2 + (4 << 20), 16 << 20), 56 << 20))

    flops = 2 * Bp * (d_in * 1024 + 1024 * 512 + 512 * 256 + 256 * 1)
    bytes_accessed = x.size * 4 + weight_bytes + Bp * 4

    def build_call(weight_buffers):
        if weight_buffers == 1:
            # Constant block index -> weights stay VMEM-resident; single buffer.
            def w_spec(shape):
                return pl.BlockSpec(shape, lambda i: (0, 0),
                                    pipeline_mode=pl.Buffered(1))
        else:
            def w_spec(shape):
                return pl.BlockSpec(shape, lambda i: (0, 0))
        return pl.pallas_call(
            _critic_kernel,
            out_shape=jax.ShapeDtypeStruct((Bp, 1), jnp.float32),
            grid=(n_tiles,),
            in_specs=[pl.BlockSpec((bt, d_in), lambda i: (i, 0))]
                     + [w_spec(a.shape) for a in weights],
            out_specs=pl.BlockSpec((bt, 1), lambda i: (i, 0)),
            compiler_params=pltpu.CompilerParams(
                dimension_semantics=("parallel",),
                vmem_limit_bytes=vmem_limit(weight_buffers)),
            cost_estimate=pl.CostEstimate(
                flops=flops, transcendentals=0, bytes_accessed=bytes_accessed),
        )

    try:
        out = build_call(1)(x, *weights)
    except Exception:
        # pl.Buffered(1) unsupported on this jax/libtpu -> default double buffering.
        out = build_call(2)(x, *weights)

    return out[:B]


def init_params(key, d_in):
    """Deterministic init mimicking nn.Linear default (uniform +-1/sqrt(fan_in))."""
    dims = [d_in, 1024, 512, 256, 1]
    params = []
    for i in range(4):
        key, kw, kb = jax.random.split(key, 3)
        fan_in, fan_out = dims[i], dims[i + 1]
        bound = 1.0 / jnp.sqrt(fan_in)
        w = jax.random.uniform(kw, (fan_in, fan_out), jnp.float32, -bound, bound)
        b = jax.random.uniform(kb, (1, fan_out), jnp.float32, -bound, bound)
        params += [w, b]
    return tuple(params)


def _reference(img, params):
    """Mirrors the kernel's bf16 weight/activation casts so tolerances stay tight."""
    w1, b1, w2, b2, w3, b3, w4, b4 = params
    x = img.reshape(img.shape[0], -1).astype(jnp.bfloat16)
    lrelu = lambda h: jnp.where(h > 0, h, 0.2 * h)
    h = lrelu(jnp.dot(x, w1.astype(jnp.bfloat16),
                      preferred_element_type=jnp.float32) + b1).astype(jnp.bfloat16)
    h = lrelu(jnp.dot(h, w2.astype(jnp.bfloat16),
                      preferred_element_type=jnp.float32) + b2).astype(jnp.bfloat16)
    h = lrelu(jnp.dot(h, w3.astype(jnp.bfloat16),
                      preferred_element_type=jnp.float32) + b3)
    w4t = w4.reshape(1, -1).astype(jnp.float32)
    return jnp.sum(h * w4t, axis=-1, keepdims=True) + b4


if __name__ == "__main__":
    # Small shapes consistent with the module: channels=4, img_size=16 -> d_in=1024
    B, C, H, W = 2, 4, 16, 16
    key = jax.random.PRNGKey(0)
    k_img, k_par = jax.random.split(key)

    img = jax.random.normal(k_img, (B, C, H, W), jnp.float32)
    params = init_params(k_par, C * H * W)
    prepared = prepare_critic_params(params)   # one-time bf16 cast, off the hot path

    out = jax.block_until_ready(critic_forward(img, prepared))
    ref = _reference(img, params)

    assert out.shape == (B, 1), out.shape
    assert jnp.allclose(out, ref, atol=1e-3, rtol=1e-3), (out, ref)
    print("KERNEL_OK")
</pallas_src>

<mosaic_0001>
module attributes {stable_mosaic.version = 11 : i64} {
  func.func @_critic_kernel(%arg0: i32, %arg1: memref<16x1024xf32, #tpu.memory_space<vmem>>, %arg2: memref<1024x1024xbf16, #tpu.memory_space<vmem>>, %arg3: memref<1x1024xf32, #tpu.memory_space<vmem>>, %arg4: memref<1024x512xbf16, #tpu.memory_space<vmem>>, %arg5: memref<1x512xf32, #tpu.memory_space<vmem>>, %arg6: memref<512x256xbf16, #tpu.memory_space<vmem>>, %arg7: memref<1x256xf32, #tpu.memory_space<vmem>>, %arg8: memref<1x256xf32, #tpu.memory_space<vmem>>, %arg9: memref<1x1xf32, #tpu.memory_space<vmem>>, %arg10: memref<16x1xf32, #tpu.memory_space<vmem>>) attributes {dimension_semantics = [#tpu.dimension_semantics<parallel>], iteration_bounds = array<i64: 1>, scalar_prefetch = 0 : i64, scratch_operands = 0 : i64, tpu.core_type = #tpu.core_type<tc>, window_params = [{transform_indices = @transform_0, window_bounds = array<i64: 16, 1024>}, {pipeline_mode = #tpu.pipeline_mode<synchronous>, transform_indices = @transform_1, window_bounds = array<i64: 1024, 1024>}, {pipeline_mode = #tpu.pipeline_mode<synchronous>, transform_indices = @transform_2, window_bounds = array<i64: 1, 1024>}, {pipeline_mode = #tpu.pipeline_mode<synchronous>, transform_indices = @transform_3, window_bounds = array<i64: 1024, 512>}, {pipeline_mode = #tpu.pipeline_mode<synchronous>, transform_indices = @transform_4, window_bounds = array<i64: 1, 512>}, {pipeline_mode = #tpu.pipeline_mode<synchronous>, transform_indices = @transform_5, window_bounds = array<i64: 512, 256>}, {pipeline_mode = #tpu.pipeline_mode<synchronous>, transform_indices = @transform_6, window_bounds = array<i64: 1, 256>}, {pipeline_mode = #tpu.pipeline_mode<synchronous>, transform_indices = @transform_7, window_bounds = array<i64: 1, 256>}, {pipeline_mode = #tpu.pipeline_mode<synchronous>, transform_indices = @transform_8, window_bounds = array<i64: 1, 1>}, {transform_indices = @transform_9, window_bounds = array<i64: 16, 1>}]} {
    %c0 = arith.constant 0 : index
    %c0_0 = arith.constant 0 : index
    %0 = vector.load %arg1[%c0, %c0_0] : memref<16x1024xf32, #tpu.memory_space<vmem>>, vector<16x1024xf32>
    %1 = arith.truncf %0 : vector<16x1024xf32> to vector<16x1024xbf16>
    %c0_1 = arith.constant 0 : index
    %c0_2 = arith.constant 0 : index
    %2 = vector.load %arg2[%c0_1, %c0_2] : memref<1024x1024xbf16, #tpu.memory_space<vmem>>, vector<1024x1024xbf16>
    %cst = arith.constant dense<0.000000e+00> : vector<16x1024xf32>
    %3 = tpu.matmul %1, %2, %cst {dimension_numbers = #tpu.dot_dimension_numbers<[1], [0], [0], [1], [0, 0, 1, 1], [], []>} : vector<16x1024xbf16>, vector<1024x1024xbf16>, vector<16x1024xf32> -> vector<16x1024xf32>
    %c0_3 = arith.constant 0 : index
    %c0_4 = arith.constant 0 : index
    %4 = vector.load %arg3[%c0_3, %c0_4] : memref<1x1024xf32, #tpu.memory_space<vmem>>, vector<1x1024xf32>
    %5 = vector.broadcast %4 : vector<1x1024xf32> to vector<16x1024xf32>
    %6 = arith.addf %3, %5 : vector<16x1024xf32>
    %cst_5 = arith.constant 0.000000e+00 : f32
    %7 = vector.broadcast %cst_5 : f32 to vector<16x1024xf32>
    %8 = arith.cmpf ogt, %6, %7 : vector<16x1024xf32>
    %cst_6 = arith.constant 2.000000e-01 : f32
    %9 = vector.broadcast %cst_6 : f32 to vector<16x1024xf32>
    %10 = arith.mulf %9, %6 : vector<16x1024xf32>
    %11 = arith.select %8, %6, %10 : vector<16x1024xi1>, vector<16x1024xf32>
    %12 = arith.truncf %11 : vector<16x1024xf32> to vector<16x1024xbf16>
    %c0_7 = arith.constant 0 : index
    %c0_8 = arith.constant 0 : index
    %13 = vector.load %arg4[%c0_7, %c0_8] : memref<1024x512xbf16, #tpu.memory_space<vmem>>, vector<1024x512xbf16>
    %cst_9 = arith.constant dense<0.000000e+00> : vector<16x512xf32>
    %14 = tpu.matmul %12, %13, %cst_9 {dimension_numbers = #tpu.dot_dimension_numbers<[1], [0], [0], [1], [0, 0, 1, 1], [], []>} : vector<16x1024xbf16>, vector<1024x512xbf16>, vector<16x512xf32> -> vector<16x512xf32>
    %c0_10 = arith.constant 0 : index
    %c0_11 = arith.constant 0 : index
    %15 = vector.load %arg5[%c0_10, %c0_11] : memref<1x512xf32, #tpu.memory_space<vmem>>, vector<1x512xf32>
    %16 = vector.broadcast %15 : vector<1x512xf32> to vector<16x512xf32>
    %17 = arith.addf %14, %16 : vector<16x512xf32>
    %cst_12 = arith.constant 0.000000e+00 : f32
    %18 = vector.broadcast %cst_12 : f32 to vector<16x512xf32>
    %19 = arith.cmpf ogt, %17, %18 : vector<16x512xf32>
    %cst_13 = arith.constant 2.000000e-01 : f32
    %20 = vector.broadcast %cst_13 : f32 to vector<16x512xf32>
    %21 = arith.mulf %20, %17 : vector<16x512xf32>
    %22 = arith.select %19, %17, %21 : vector<16x512xi1>, vector<16x512xf32>
    %23 = arith.truncf %22 : vector<16x512xf32> to vector<16x512xbf16>
    %c0_14 = arith.constant 0 : index
    %c0_15 = arith.constant 0 : index
    %24 = vector.load %arg6[%c0_14, %c0_15] : memref<512x256xbf16, #tpu.memory_space<vmem>>, vector<512x256xbf16>
    %cst_16 = arith.constant dense<0.000000e+00> : vector<16x256xf32>
    %25 = tpu.matmul %23, %24, %cst_16 {dimension_numbers = #tpu.dot_dimension_numbers<[1], [0], [0], [1], [0, 0, 1, 1], [], []>} : vector<16x512xbf16>, vector<512x256xbf16>, vector<16x256xf32> -> vector<16x256xf32>
    %c0_17 = arith.constant 0 : index
    %c0_18 = arith.constant 0 : index
    %26 = vector.load %arg7[%c0_17, %c0_18] : memref<1x256xf32, #tpu.memory_space<vmem>>, vector<1x256xf32>
    %27 = vector.broadcast %26 : vector<1x256xf32> to vector<16x256xf32>
    %28 = arith.addf %25, %27 : vector<16x256xf32>
    %cst_19 = arith.constant 0.000000e+00 : f32
    %29 = vector.broadcast %cst_19 : f32 to vector<16x256xf32>
    %30 = arith.cmpf ogt, %28, %29 : vector<16x256xf32>
    %cst_20 = arith.constant 2.000000e-01 : f32
    %31 = vector.broadcast %cst_20 : f32 to vector<16x256xf32>
    %32 = arith.mulf %31, %28 : vector<16x256xf32>
    %33 = arith.select %30, %28, %32 : vector<16x256xi1>, vector<16x256xf32>
    %c0_21 = arith.constant 0 : index
    %c0_22 = arith.constant 0 : index
    %34 = vector.load %arg8[%c0_21, %c0_22] : memref<1x256xf32, #tpu.memory_space<vmem>>, vector<1x256xf32>
    %35 = vector.broadcast %34 : vector<1x256xf32> to vector<16x256xf32>
    %36 = arith.mulf %33, %35 : vector<16x256xf32>
    %cst_23 = arith.constant dense<0.000000e+00> : vector<16xf32>
    %37 = vector.multi_reduction <add>, %36, %cst_23 [1] : vector<16x256xf32> to vector<16xf32>
    %38 = vector.shape_cast %37 : vector<16xf32> to vector<16x1xf32>
    %c0_24 = arith.constant 0 : index
    %c0_25 = arith.constant 0 : index
    %39 = vector.load %arg9[%c0_24, %c0_25] : memref<1x1xf32, #tpu.memory_space<vmem>>, vector<1x1xf32>
    %40 = vector.broadcast %39 : vector<1x1xf32> to vector<16x1xf32>
    %41 = arith.addf %38, %40 : vector<16x1xf32>
    %c0_26 = arith.constant 0 : index
    %c0_27 = arith.constant 0 : index
    %42 = vector.load %arg10[%c0_26, %c0_27] : memref<16x1xf32, #tpu.memory_space<vmem>>, vector<16x1xf32>
    tpu.vector_store %arg10[%c0_26, %c0_27], %41 {strides = array<i32>} : memref<16x1xf32, #tpu.memory_space<vmem>>, vector<16x1xf32>,
    return
  }
  func.func @transform_0(%arg0: i32) -> (i32, i32) {
    %c0_i32 = arith.constant 0 : i32
    %c0_i32_0 = arith.constant 0 : i32
    return %arg0, %c0_i32 : i32, i32
  }
  func.func @transform_1(%arg0: i32) -> (i32, i32) {
    %c0_i32 = arith.constant 0 : i32
    %c0_i32_0 = arith.constant 0 : i32
    %c0_i32_1 = arith.constant 0 : i32
    return %c0_i32, %c0_i32_0 : i32, i32
  }
  func.func @transform_2(%arg0: i32) -> (i32, i32) {
    %c0_i32 = arith.constant 0 : i32
    %c0_i32_0 = arith.constant 0 : i32
    %c0_i32_1 = arith.constant 0 : i32
    return %c0_i32, %c0_i32_0 : i32, i32
  }
  func.func @transform_3(%arg0: i32) -> (i32, i32) {
    %c0_i32 = arith.constant 0 : i32
    %c0_i32_0 = arith.constant 0 : i32
    %c0_i32_1 = arith.constant 0 : i32
    return %c0_i32, %c0_i32_0 : i32, i32
  }
  func.func @transform_4(%arg0: i32) -> (i32, i32) {
    %c0_i32 = arith.constant 0 : i32
    %c0_i32_0 = arith.constant 0 : i32
    %c0_i32_1 = arith.constant 0 : i32
    return %c0_i32, %c0_i32_0 : i32, i32
  }
  func.func @transform_5(%arg0: i32) -> (i32, i32) {
    %c0_i32 = arith.constant 0 : i32
    %c0_i32_0 = arith.constant 0 : i32
    %c0_i32_1 = arith.constant 0 : i32
    return %c0_i32, %c0_i32_0 : i32, i32
  }
  func.func @transform_6(%arg0: i32) -> (i32, i32) {
    %c0_i32 = arith.constant 0 : i32
    %c0_i32_0 = arith.constant 0 : i32
    %c0_i32_1 = arith.constant 0 : i32
    return %c0_i32, %c0_i32_0 : i32, i32
  }
  func.func @transform_7(%arg0: i32) -> (i32, i32) {
    %c0_i32 = arith.constant 0 : i32
    %c0_i32_0 = arith.constant 0 : i32
    %c0_i32_1 = arith.constant 0 : i32
    return %c0_i32, %c0_i32_0 : i32, i32
  }
  func.func @transform_8(%arg0: i32) -> (i32, i32) {
    %c0_i32 = arith.constant 0 : i32
    %c0_i32_0 = arith.constant 0 : i32
    %c0_i32_1 = arith.constant 0 : i32
    return %c0_i32, %c0_i32_0 : i32, i32
  }
  func.func @transform_9(%arg0: i32) -> (i32, i32) {
    %c0_i32 = arith.constant 0 : i32
    %c0_i32_0 = arith.constant 0 : i32
    return %arg0, %c0_i32 : i32, i32
  }
}

module attributes {stable_mosaic.version = 11 : i64} {
  func.func @_critic_kernel(%arg0: i32, %arg1: memref<16x1024xf32, #tpu.memory_space<vmem>>, %arg2: memref<1024x1024xbf16, #tpu.memory_space<vmem>>, %arg3: memref<1x1024xf32, #tpu.memory_space<vmem>>, %arg4: memref<1024x512xbf16, #tpu.memory_space<vmem>>, %arg5: memref<1x512xf32, #tpu.memory_space<vmem>>, %arg6: memref<512x256xbf16, #tpu.memory_space<vmem>>, %arg7: memref<1x256xf32, #tpu.memory_space<vmem>>, %arg8: memref<1x256xf32, #tpu.memory_space<vmem>>, %arg9: memref<1x1xf32, #tpu.memory_space<vmem>>, %arg10: memref<16x1xf32, #tpu.memory_space<vmem>>) attributes {dimension_semantics = [#tpu.dimension_semantics<parallel>], iteration_bounds = array<i64: 1>, scalar_prefetch = 0 : i64, scratch_operands = 0 : i64, tpu.core_type = #tpu.core_type<tc>, window_params = [{transform_indices = @transform_0, window_bounds = array<i64: 16, 1024>}, {pipeline_mode = #tpu.pipeline_mode<synchronous>, transform_indices = @transform_1, window_bounds = array<i64: 1024, 1024>}, {pipeline_mode = #tpu.pipeline_mode<synchronous>, transform_indices = @transform_2, window_bounds = array<i64: 1, 1024>}, {pipeline_mode = #tpu.pipeline_mode<synchronous>, transform_indices = @transform_3, window_bounds = array<i64: 1024, 512>}, {pipeline_mode = #tpu.pipeline_mode<synchronous>, transform_indices = @transform_4, window_bounds = array<i64: 1, 512>}, {pipeline_mode = #tpu.pipeline_mode<synchronous>, transform_indices = @transform_5, window_bounds = array<i64: 512, 256>}, {pipeline_mode = #tpu.pipeline_mode<synchronous>, transform_indices = @transform_6, window_bounds = array<i64: 1, 256>}, {pipeline_mode = #tpu.pipeline_mode<synchronous>, transform_indices = @transform_7, window_bounds = array<i64: 1, 256>}, {pipeline_mode = #tpu.pipeline_mode<synchronous>, transform_indices = @transform_8, window_bounds = array<i64: 1, 1>}, {transform_indices = @transform_9, window_bounds = array<i64: 16, 1>}]} {
    %c0 = arith.constant 0 : index
    %c0_0 = arith.constant 0 : index
    %0 = vector.load %arg1[%c0, %c0_0] : memref<16x1024xf32, #tpu.memory_space<vmem>>, vector<16x1024xf32>
    %1 = arith.truncf %0 : vector<16x1024xf32> to vector<16x1024xbf16>
    %c0_1 = arith.constant 0 : index
    %c0_2 = arith.constant 0 : index
    %2 = vector.load %arg2[%c0_1, %c0_2] : memref<1024x1024xbf16, #tpu.memory_space<vmem>>, vector<1024x1024xbf16>
    %cst = arith.constant dense<0.000000e+00> : vector<16x1024xf32>
    %3 = tpu.matmul %1, %2, %cst {dimension_numbers = #tpu.dot_dimension_numbers<[1], [0], [0], [1], [0, 0, 1, 1], [], []>} : vector<16x1024xbf16>, vector<1024x1024xbf16>, vector<16x1024xf32> -> vector<16x1024xf32>
    %c0_3 = arith.constant 0 : index
    %c0_4 = arith.constant 0 : index
    %4 = vector.load %arg3[%c0_3, %c0_4] : memref<1x1024xf32, #tpu.memory_space<vmem>>, vector<1x1024xf32>
    %5 = vector.broadcast %4 : vector<1x1024xf32> to vector<16x1024xf32>
    %6 = arith.addf %3, %5 : vector<16x1024xf32>
    %cst_5 = arith.constant 0.000000e+00 : f32
    %7 = vector.broadcast %cst_5 : f32 to vector<16x1024xf32>
    %8 = arith.cmpf ogt, %6, %7 : vector<16x1024xf32>
    %cst_6 = arith.constant 2.000000e-01 : f32
    %9 = vector.broadcast %cst_6 : f32 to vector<16x1024xf32>
    %10 = arith.mulf %9, %6 : vector<16x1024xf32>
    %11 = arith.select %8, %6, %10 : vector<16x1024xi1>, vector<16x1024xf32>
    %12 = arith.truncf %11 : vector<16x1024xf32> to vector<16x1024xbf16>
    %c0_7 = arith.constant 0 : index
    %c0_8 = arith.constant 0 : index
    %13 = vector.load %arg4[%c0_7, %c0_8] : memref<1024x512xbf16, #tpu.memory_space<vmem>>, vector<1024x512xbf16>
    %cst_9 = arith.constant dense<0.000000e+00> : vector<16x512xf32>
    %14 = tpu.matmul %12, %13, %cst_9 {dimension_numbers = #tpu.dot_dimension_numbers<[1], [0], [0], [1], [0, 0, 1, 1], [], []>} : vector<16x1024xbf16>, vector<1024x512xbf16>, vector<16x512xf32> -> vector<16x512xf32>
    %c0_10 = arith.constant 0 : index
    %c0_11 = arith.constant 0 : index
    %15 = vector.load %arg5[%c0_10, %c0_11] : memref<1x512xf32, #tpu.memory_space<vmem>>, vector<1x512xf32>
    %16 = vector.broadcast %15 : vector<1x512xf32> to vector<16x512xf32>
    %17 = arith.addf %14, %16 : vector<16x512xf32>
    %cst_12 = arith.constant 0.000000e+00 : f32
    %18 = vector.broadcast %cst_12 : f32 to vector<16x512xf32>
    %19 = arith.cmpf ogt, %17, %18 : vector<16x512xf32>
    %cst_13 = arith.constant 2.000000e-01 : f32
    %20 = vector.broadcast %cst_13 : f32 to vector<16x512xf32>
    %21 = arith.mulf %20, %17 : vector<16x512xf32>
    %22 = arith.select %19, %17, %21 : vector<16x512xi1>, vector<16x512xf32>
    %23 = arith.truncf %22 : vector<16x512xf32> to vector<16x512xbf16>
    %c0_14 = arith.constant 0 : index
    %c0_15 = arith.constant 0 : index
    %24 = vector.load %arg6[%c0_14, %c0_15] : memref<512x256xbf16, #tpu.memory_space<vmem>>, vector<512x256xbf16>
    %cst_16 = arith.constant dense<0.000000e+00> : vector<16x256xf32>
    %25 = tpu.matmul %23, %24, %cst_16 {dimension_numbers = #tpu.dot_dimension_numbers<[1], [0], [0], [1], [0, 0, 1, 1], [], []>} : vector<16x512xbf16>, vector<512x256xbf16>, vector<16x256xf32> -> vector<16x256xf32>
    %c0_17 = arith.constant 0 : index
    %c0_18 = arith.constant 0 : index
    %26 = vector.load %arg7[%c0_17, %c0_18] : memref<1x256xf32, #tpu.memory_space<vmem>>, vector<1x256xf32>
    %27 = vector.broadcast %26 : vector<1x256xf32> to vector<16x256xf32>
    %28 = arith.addf %25, %27 : vector<16x256xf32>
    %cst_19 = arith.constant 0.000000e+00 : f32
    %29 = vector.broadcast %cst_19 : f32 to vector<16x256xf32>
    %30 = arith.cmpf ogt, %28, %29 : vector<16x256xf32>
    %cst_20 = arith.constant 2.000000e-01 : f32
    %31 = vector.broadcast %cst_20 : f32 to vector<16x256xf32>
    %32 = arith.mulf %31, %28 : vector<16x256xf32>
    %33 = arith.select %30, %28, %32 : vector<16x256xi1>, vector<16x256xf32>
    %c0_21 = arith.constant 0 : index
    %c0_22 = arith.constant 0 : index
    %34 = vector.load %arg8[%c0_21, %c0_22] : memref<1x256xf32, #tpu.memory_space<vmem>>, vector<1x256xf32>
    %35 = vector.broadcast %34 : vector<1x256xf32> to vector<16x256xf32>
    %36 = arith.mulf %33, %35 : vector<16x256xf32>
    %cst_23 = arith.constant dense<0.000000e+00> : vector<16xf32>
    %37 = vector.multi_reduction <add>, %36, %cst_23 [1] : vector<16x256xf32> to vector<16xf32>
    %38 = vector.shape_cast %37 : vector<16xf32> to vector<16x1xf32>
    %c0_24 = arith.constant 0 : index
    %c0_25 = arith.constant 0 : index
    %39 = vector.load %arg9[%c0_24, %c0_25] : memref<1x1xf32, #tpu.memory_space<vmem>>, vector<1x1xf32>
    %40 = vector.broadcast %39 : vector<1x1xf32> to vector<16x1xf32>
    %41 = arith.addf %38, %40 : vector<16x1xf32>
    %c0_26 = arith.constant 0 : index
    %c0_27 = arith.constant 0 : index
    %42 = vector.load %arg10[%c0_26, %c0_27] : memref<16x1xf32, #tpu.memory_space<vmem>>, vector<16x1xf32>
    tpu.vector_store %arg10[%c0_26, %c0_27], %41 {strides = array<i32>} : memref<16x1xf32, #tpu.memory_space<vmem>>, vector<16x1xf32>,
    return
  }
  func.func @transform_0(%arg0: i32) -> (i32, i32) {
    %c0_i32 = arith.constant 0 : i32
    %c0_i32_0 = arith.constant 0 : i32
    return %arg0, %c0_i32 : i32, i32
  }
  func.func @transform_1(%arg0: i32) -> (i32, i32) {
    %c0_i32 = arith.constant 0 : i32
    %c0_i32_0 = arith.constant 0 : i32
    %c0_i32_1 = arith.constant 0 : i32
    return %c0_i32, %c0_i32_0 : i32, i32
  }
  func.func @transform_2(%arg0: i32) -> (i32, i32) {
    %c0_i32 = arith.constant 0 : i32
    %c0_i32_0 = arith.constant 0 : i32
    %c0_i32_1 = arith.constant 0 : i32
    return %c0_i32, %c0_i32_0 : i32, i32
  }
  func.func @transform_3(%arg0: i32) -> (i32, i32) {
    %c0_i32 = arith.constant 0 : i32
    %c0_i32_0 = arith.constant 0 : i32
    %c0_i32_1 = arith.constant 0 : i32
    return %c0_i32, %c0_i32_0 : i32, i32
  }
  func.func @transform_4(%arg0: i32) -> (i32, i32) {
    %c0_i32 = arith.constant 0 : i32
    %c0_i32_0 = arith.constant 0 : i32
    %c0_i32_1 = arith.constant 0 : i32
    return %c0_i32, %c0_i32_0 : i32, i32
  }
  func.func @transform_5(%arg0: i32) -> (i32, i32) {
    %c0_i32 = arith.constant 0 : i32
    %c0_i32_0 = arith.constant 0 : i32
    %c0_i32_1 = arith.constant 0 : i32
    return %c0_i32, %c0_i32_0 : i32, i32
  }
  func.func @transform_6(%arg0: i32) -> (i32, i32) {
    %c0_i32 = arith.constant 0 : i32
    %c0_i32_0 = arith.constant 0 : i32
    %c0_i32_1 = arith.constant 0 : i32
    return %c0_i32, %c0_i32_0 : i32, i32
  }
  func.func @transform_7(%arg0: i32) -> (i32, i32) {
    %c0_i32 = arith.constant 0 : i32
    %c0_i32_0 = arith.constant 0 : i32
    %c0_i32_1 = arith.constant 0 : i32
    return %c0_i32, %c0_i32_0 : i32, i32
  }
  func.func @transform_8(%arg0: i32) -> (i32, i32) {
    %c0_i32 = arith.constant 0 : i32
    %c0_i32_0 = arith.constant 0 : i32
    %c0_i32_1 = arith.constant 0 : i32
    return %c0_i32, %c0_i32_0 : i32, i32
  }
  func.func @transform_9(%arg0: i32) -> (i32, i32) {
    %c0_i32 = arith.constant 0 : i32
    %c0_i32_0 = arith.constant 0 : i32
    return %arg0, %c0_i32 : i32, i32
  }
}

</mosaic_0001>

<llo_original>
// kernel: tpu_custom_call.1
$region0: #{tpu_custom_call.1}
  #allocation0 [shape = 'u32[]', space=smem, size = 0x4, offset = 0x4, fixed_abs, tag = 'smem constant byte address 0x4 - core index']
  #allocation1 [shape = 'u32[144,128]{1,0:T(1,128)}', space=vmem, size = 0x12000, scoped, tag = 'internal scratch']
  #allocation2 [shape = 'f32[1,1]{1,0:T(1,128)S(1)}', space=vmem, size = 0x200, scoped, tag = 'scoped memory for tpu_custom_call.1']
  %s0 = inlined_call_operand.hbm [shape: f32[16,1024], index: 0, kind: input, shape index: {}]
  %s1 = inlined_call_operand.hbm [shape: bf16[1024,1024], index: 1, kind: input, shape index: {}]
  %s2 = inlined_call_operand.hbm [shape: f32[1,1024], index: 2, kind: input, shape index: {}]
  %s3 = inlined_call_operand.hbm [shape: bf16[1024,512], index: 3, kind: input, shape index: {}]
  %s4 = inlined_call_operand.hbm [shape: f32[1,512], index: 4, kind: input, shape index: {}]
  %s5 = inlined_call_operand.hbm [shape: bf16[512,256], index: 5, kind: input, shape index: {}]
  %s6 = inlined_call_operand.hbm [shape: f32[1,256], index: 6, kind: input, shape index: {}]
  %s7 = inlined_call_operand.hbm [shape: f32[1,256], index: 7, kind: input, shape index: {}]
  %s8 = inlined_call_operand.<no memory space> [shape: f32[1,1], index: 8, kind: input, shape index: {}]
  %s9 = inlined_call_operand.vmem [shape: f32[16,1], index: 9, kind: output, shape index: {}]
  %s10 = sld [smem:[#allocation0]]
  $region78: #{tpu_custom_call.1} parent=0
    _
  %s12 = ssub.s32 1, %s10
  %s13 = scalar_select 0, %s12, %s10
  %v14 = vstv %s8
  %15 = vst [vmem:[#allocation2] sm:$0x1] %v14
  $region1: #{tpu_custom_call.1} parent=0
    #allocation3 [shape = 'u8[65536]{0}', space=vmem, size = 0x10000, scoped, tag = 'input window, operand 0, single buffered']
    #allocation4 [shape = 's32[1]{0}', space=sflag, size = 0x4, scoped, tag = 'scoped memory for tpu_custom_call.1']
    #allocation5 [shape = 'u8[2097152]{0}', space=vmem, size = 0x200000, scoped, tag = 'input window, operand 1, single buffered']
    #allocation6 [shape = 's32[1]{0}', space=sflag, size = 0x4, scoped, tag = 'scoped memory for tpu_custom_call.1']
    #allocation7 [shape = 'u8[4096]{0}', space=vmem, size = 0x1000, scoped, tag = 'input window, operand 2, single buffered']
    #allocation8 [shape = 'u8[1048576]{0}', space=vmem, size = 0x100000, scoped, tag = 'input window, operand 3, single buffered']
    #allocation9 [shape = 's32[1]{0}', space=sflag, size = 0x4, scoped, tag = 'scoped memory for tpu_custom_call.1']
    #allocation10 [shape = 'u8[2048]{0}', space=vmem, size = 0x800, scoped, tag = 'input window, operand 4, single buffered']
    #allocation11 [shape = 'u8[262144]{0}', space=vmem, size = 0x40000, scoped, tag = 'input window, operand 5, single buffered']
    #allocation12 [shape = 's32[1]{0}', space=sflag, size = 0x4, scoped, tag = 'scoped memory for tpu_custom_call.1']
    #allocation13 [shape = 'u8[1024]{0}', space=vmem, size = 0x400, scoped, tag = 'input window, operand 6, single buffered']
    #allocation14 [shape = 'u8[1024]{0}', space=vmem, size = 0x400, scoped, tag = 'input window, operand 7, single buffered']
    #allocation15 [shape = 's32[1]{0}', space=sflag, size = 0x4, scoped, tag = 'scoped memory for tpu_custom_call.1']
    %16 = vsyncpa [#allocation4], 0
    %17 = vsyncpa [#allocation6], 0
    %18 = vsyncpa [#allocation9], 0
    %19 = vsyncpa [#allocation12], 0
    %20 = vsyncpa [#allocation15], 0
    // Predicated region
    $region2: #{tpu_custom_call.1} parent=1 // pred_check
      _
    $region3: #{tpu_custom_call.1} parent=1 // pred_check_branch
      %22 = sbr.rel (0) target = $region5
    $region4: #{tpu_custom_call.1} parent=1 // pred_region
      %s24 = ssub.s32 2048, 2048
      %25 = vsyncadd [#allocation4], %s24
      %s26 = sshll.u32 [#allocation3], 4
      %s27 = int_to_ptr.vmem [resolvable:$true] %s26
      %32 = dma.hbm_to_vmem [thread:$0]  %s0, 2048, %s27, [#allocation4], 1024, 1024, 64
    $region5: #{tpu_custom_call.1} parent=1 // pred_fallthru
      _
    // Predicated region
    $region6: #{tpu_custom_call.1} parent=1 // pred_check
      _
    $region7: #{tpu_custom_call.1} parent=1 // pred_check_branch
      %34 = sbr.rel (0) target = $region9
    $region8: #{tpu_custom_call.1} parent=1 // pred_region
      %s36 = ssub.s32 65536, 65536
      %37 = vsyncadd [#allocation6], %s36
      %s38 = sshll.u32 [#allocation5], 4
      %s39 = int_to_ptr.vmem [resolvable:$true] %s38
      %44 = dma.hbm_to_vmem [thread:$0]  %s1, 65536, %s39, [#allocation6], 512, 512, 32
    $region9: #{tpu_custom_call.1} parent=1 // pred_fallthru
      _
    // Predicated region
    $region10: #{tpu_custom_call.1} parent=1 // pred_check
      _
    $region11: #{tpu_custom_call.1} parent=1 // pred_check_branch
      %46 = sbr.rel (0) target = $region13
    $region12: #{tpu_custom_call.1} parent=1 // pred_region
      %s48 = ssub.s32 128, 128
      %49 = vsyncadd [#allocation6], %s48
      %s51 = sshll.u32 [#allocation7], 4
      %s52 = int_to_ptr.vmem [resolvable:$true] %s51
      %54 = dma.hbm_to_vmem [thread:$0]  %s2, 128, %s52, [#allocation6]
    $region13: #{tpu_custom_call.1} parent=1 // pred_fallthru
      _
    // Predicated region
    $region14: #{tpu_custom_call.1} parent=1 // pred_check
      _
    $region15: #{tpu_custom_call.1} parent=1 // pred_check_branch
      %56 = sbr.rel (0) target = $region17
    $region16: #{tpu_custom_call.1} parent=1 // pred_region
      %s58 = ssub.s32 32768, 32768
      %59 = vsyncadd [#allocation9], %s58
      %s60 = sshll.u32 [#allocation8], 4
      %s61 = int_to_ptr.vmem [resolvable:$true] %s60
      %66 = dma.hbm_to_vmem [thread:$0]  %s3, 32768, %s61, [#allocation9], 256, 256, 16
    $region17: #{tpu_custom_call.1} parent=1 // pred_fallthru
      _
    // Predicated region
    $region18: #{tpu_custom_call.1} parent=1 // pred_check
      _
    $region19: #{tpu_custom_call.1} parent=1 // pred_check_branch
      %68 = sbr.rel (0) target = $region21
    $region20: #{tpu_custom_call.1} parent=1 // pred_region
      %s70 = ssub.s32 64, 64
      %71 = vsyncadd [#allocation9], %s70
      %s73 = sshll.u32 [#allocation10], 4
      %s74 = int_to_ptr.vmem [resolvable:$true] %s73
      %76 = dma.hbm_to_vmem [thread:$0]  %s4, 64, %s74, [#allocation9]
    $region21: #{tpu_custom_call.1} parent=1 // pred_fallthru
      _
    // Predicated region
    $region22: #{tpu_custom_call.1} parent=1 // pred_check
      _
    $region23: #{tpu_custom_call.1} parent=1 // pred_check_branch
      %78 = sbr.rel (0) target = $region25
    $region24: #{tpu_custom_call.1} parent=1 // pred_region
      %s80 = ssub.s32 8192, 8192
      %81 = vsyncadd [#allocation12], %s80
      %s82 = sshll.u32 [#allocation11], 4
      %s83 = int_to_ptr.vmem [resolvable:$true] %s82
      %88 = dma.hbm_to_vmem [thread:$0]  %s5, 8192, %s83, [#allocation12], 128, 128, 8
    $region25: #{tpu_custom_call.1} parent=1 // pred_fallthru
      _
    // Predicated region
    $region26: #{tpu_custom_call.1} parent=1 // pred_check
      _
    $region27: #{tpu_custom_call.1} parent=1 // pred_check_branch
      %90 = sbr.rel (0) target = $region29
    $region28: #{tpu_custom_call.1} parent=1 // pred_region
      %s92 = ssub.s32 32, 32
      %93 = vsyncadd [#allocation12], %s92
      %s95 = sshll.u32 [#allocation13], 4
      %s96 = int_to_ptr.vmem [resolvable:$true] %s95
      %98 = dma.hbm_to_vmem [thread:$0]  %s6, 32, %s96, [#allocation12]
    $region29: #{tpu_custom_call.1} parent=1 // pred_fallthru
      _
    // Predicated region
    $region30: #{tpu_custom_call.1} parent=1 // pred_check
      _
    $region31: #{tpu_custom_call.1} parent=1 // pred_check_branch
      %100 = sbr.rel (0) target = $region33
    $region32: #{tpu_custom_call.1} parent=1 // pred_region
      %s102 = ssub.s32 32, 32
      %103 = vsyncadd [#allocation15], %s102
      %s105 = sshll.u32 [#allocation14], 4
      %s106 = int_to_ptr.vmem [resolvable:$true] %s105
      %108 = dma.hbm_to_vmem [thread:$0]  %s7, 32, %s106, [#allocation15]
    $region33: #{tpu_custom_call.1} parent=1 // pred_fallthru
      _
    // Predicated region
    $region34: #{tpu_custom_call.1} parent=1 // pred_check
      _
    $region35: #{tpu_custom_call.1} parent=1 // pred_check_branch
      %110 = sbr.rel (0) target = $region37
    $region36: #{tpu_custom_call.1} parent=1 // pred_region
      _
    $region37: #{tpu_custom_call.1} parent=1 // pred_fallthru
      _
    // Predicated region
    $region38: #{tpu_custom_call.1} parent=1 // pred_check
      _
    $region39: #{tpu_custom_call.1} parent=1 // pred_check_branch
      %112 = sbr.rel (0) target = $region41
    $region40: #{tpu_custom_call.1} parent=1 // pred_region
      %113 = dma.done [#allocation4], 2048
    $region41: #{tpu_custom_call.1} parent=1 // pred_fallthru
      _
    // Predicated region
    $region42: #{tpu_custom_call.1} parent=1 // pred_check
      _
    $region43: #{tpu_custom_call.1} parent=1 // pred_check_branch
      %115 = sbr.rel (0) target = $region45
    $region44: #{tpu_custom_call.1} parent=1 // pred_region
      %116 = dma.done [#allocation6], 65536
    $region45: #{tpu_custom_call.1} parent=1 // pred_fallthru
      _
    // Predicated region
    $region46: #{tpu_custom_call.1} parent=1 // pred_check
      _
    $region47: #{tpu_custom_call.1} parent=1 // pred_check_branch
      %118 = sbr.rel (0) target = $region49
    $region48: #{tpu_custom_call.1} parent=1 // pred_region
      %119 = dma.done [#allocation6], 128
    $region49: #{tpu_custom_call.1} parent=1 // pred_fallthru
      _
    // Predicated region
    $region50: #{tpu_custom_call.1} parent=1 // pred_check
      _
    $region51: #{tpu_custom_call.1} parent=1 // pred_check_branch
      %121 = sbr.rel (0) target = $region53
    $region52: #{tpu_custom_call.1} parent=1 // pred_region
      %122 = dma.done [#allocation9], 32768
    $region53: #{tpu_custom_call.1} parent=1 // pred_fallthru
      _
    // Predicated region
    $region54: #{tpu_custom_call.1} parent=1 // pred_check
      _
    $region55: #{tpu_custom_call.1} parent=1 // pred_check_branch
      %124 = sbr.rel (0) target = $region57
    $region56: #{tpu_custom_call.1} parent=1 // pred_region
      %125 = dma.done [#allocation9], 64
    $region57: #{tpu_custom_call.1} parent=1 // pred_fallthru
      _
    // Predicated region
    $region58: #{tpu_custom_call.1} parent=1 // pred_check
      _
    $region59: #{tpu_custom_call.1} parent=1 // pred_check_branch
      %127 = sbr.rel (0) target = $region61
    $region60: #{tpu_custom_call.1} parent=1 // pred_region
      %128 = dma.done [#allocation12], 8192
    $region61: #{tpu_custom_call.1} parent=1 // pred_fallthru
      _
    // Predicated region
    $region62: #{tpu_custom_call.1} parent=1 // pred_check
      _
    $region63: #{tpu_custom_call.1} parent=1 // pred_check_branch
      %130 = sbr.rel (0) target = $region65
    $region64: #{tpu_custom_call.1} parent=1 // pred_region
      %131 = dma.done [#allocation12], 32
    $region65: #{tpu_custom_call.1} parent=1 // pred_fallthru
      _
    // Predicated region
    $region66: #{tpu_custom_call.1} parent=1 // pred_check
      _
    $region67: #{tpu_custom_call.1} parent=1 // pred_check_branch
      %133 = sbr.rel (0) target = $region69
    $region68: #{tpu_custom_call.1} parent=1 // pred_region
      %134 = dma.done [#allocation15], 32
    $region69: #{tpu_custom_call.1} parent=1 // pred_fallthru
      _
    %v135 = vld [vmem:[#allocation3] sm:$0xff]
    %v136 = vld [vmem:[#allocation3 + $0x8] sm:$0xff]
    %v137 = vld [vmem:[#allocation3 + $0x10] sm:$0xff]
    %v138 = vld [vmem:[#allocation3 + $0x18] sm:$0xff]
    %v139 = vld [vmem:[#allocation3 + $0x20] sm:$0xff]
    %v140 = vld [vmem:[#allocation3 + $0x28] sm:$0xff]
    %v141 = vld [vmem:[#allocation3 + $0x30] sm:$0xff]
    %v142 = vld [vmem:[#allocation3 + $0x38] sm:$0xff]
    %v143 = vld [vmem:[#allocation3 + $0x40] sm:$0xff]
    %v144 = vld [vmem:[#allocation3 + $0x48] sm:$0xff]
    %v145 = vld [vmem:[#allocation3 + $0x50] sm:$0xff]
    %v146 = vld [vmem:[#allocation3 + $0x58] sm:$0xff]
    %v147 = vld [vmem:[#allocation3 + $0x60] sm:$0xff]
    %v148 = vld [vmem:[#allocation3 + $0x68] sm:$0xff]
    %v149 = vld [vmem:[#allocation3 + $0x70] sm:$0xff]
    %v150 = vld [vmem:[#allocation3 + $0x78] sm:$0xff]
    %v151 = vpack.c.bf16 %v143, %v135
    %v152 = vpack.c.bf16 %v144, %v136
    %v153 = vpack.c.bf16 %v145, %v137
    %v154 = vpack.c.bf16 %v146, %v138
    %v155 = vpack.c.bf16 %v147, %v139
    %v156 = vpack.c.bf16 %v148, %v140
    %v157 = vpack.c.bf16 %v149, %v141
    %v158 = vpack.c.bf16 %v150, %v142
    %v159 = vld [vmem:[#allocation5] sm:$0xff]
    %v160 = vld [vmem:[#allocation5 + $0x8] sm:$0xff]
    %v161 = vld [vmem:[#allocation5 + $0x10] sm:$0xff]
    %v162 = vld [vmem:[#allocation5 + $0x18] sm:$0xff]
    %v163 = vld [vmem:[#allocation5 + $0x20] sm:$0xff]
    %v164 = vld [vmem:[#allocation5 + $0x28] sm:$0xff]
    %v165 = vld [vmem:[#allocation5 + $0x30] sm:$0xff]
    %v166 = vld [vmem:[#allocation5 + $0x38] sm:$0xff]
    %v167 = vld [vmem:[#allocation5 + $0x40] sm:$0xff]
    %v168 = vld [vmem:[#allocation5 + $0x48] sm:$0xff]
    %v169 = vld [vmem:[#allocation5 + $0x50] sm:$0xff]
    %v170 = vld [vmem:[#allocation5 + $0x58] sm:$0xff]
    %v171 = vld [vmem:[#allocation5 + $0x60] sm:$0xff]
    %v172 = vld [vmem:[#allocation5 + $0x68] sm:$0xff]
    %v173 = vld [vmem:[#allocation5 + $0x70] sm:$0xff]
    %v174 = vld [vmem:[#allocation5 + $0x78] sm:$0xff]
    %v175 = vld [vmem:[#allocation5 + $0x80] sm:$0xff]
    %v176 = vld [vmem:[#allocation5 + $0x88] sm:$0xff]
    %v177 = vld [vmem:[#allocation5 + $0x90] sm:$0xff]
    %v178 = vld [vmem:[#allocation5 + $0x98] sm:$0xff]
    %v179 = vld [vmem:[#allocation5 + $0xa0] sm:$0xff]
    %v180 = vld [vmem:[#allocation5 + $0xa8] sm:$0xff]
    %v181 = vld [vmem:[#allocation5 + $0xb0] sm:$0xff]
    %v182 = vld [vmem:[#allocation5 + $0xb8] sm:$0xff]
    %v183 = vld [vmem:[#allocation5 + $0xc0] sm:$0xff]
    %v184 = vld [vmem:[#allocation5 + $0xc8] sm:$0xff]
    %v185 = vld [vmem:[#allocation5 + $0xd0] sm:$0xff]
    %v186 = vld [vmem:[#allocation5 + $0xd8] sm:$0xff]
    %v187 = vld [vmem:[#allocation5 + $0xe0] sm:$0xff]
    %v188 = vld [vmem:[#allocation5 + $0xe8] sm:$0xff]
    %v189 = vld [vmem:[#allocation5 + $0xf0] sm:$0xff]
    %v190 = vld [vmem:[#allocation5 + $0xf8] sm:$0xff]
    %v191 = vld [vmem:[#allocation5 + $0x100] sm:$0xff]
    %v192 = vld [vmem:[#allocation5 + $0x108] sm:$0xff]
    %v193 = vld [vmem:[#allocation5 + $0x110] sm:$0xff]
    %v194 = vld [vmem:[#allocation5 + $0x118] sm:$0xff]
    %v195 = vld [vmem:[#allocation5 + $0x120] sm:$0xff]
    %v196 = vld [vmem:[#allocation5 + $0x128] sm:$0xff]
    %v197 = vld [vmem:[#allocation5 + $0x130] sm:$0xff]
    %v198 = vld [vmem:[#allocation5 + $0x138] sm:$0xff]
    %v199 = vld [vmem:[#allocation5 + $0x140] sm:$0xff]
    %v200 = vld [vmem:[#allocation5 + $0x148] sm:$0xff]
    %v201 = vld [vmem:[#allocation5 + $0x150] sm:$0xff]
    %v202 = vld [vmem:[#allocation5 + $0x158] sm:$0xff]
    %v203 = vld [vmem:[#allocation5 + $0x160] sm:$0xff]
    %v204 = vld [vmem:[#allocation5 + $0x168] sm:$0xff]
    %v205 = vld [vmem:[#allocation5 + $0x170] sm:$0xff]
    %v206 = vld [vmem:[#allocation5 + $0x178] sm:$0xff]
    %v207 = vld [vmem:[#allocation5 + $0x180] sm:$0xff]
    %v208 = vld [vmem:[#allocation5 + $0x188] sm:$0xff]
    %v209 = vld [vmem:[#allocation5 + $0x190] sm:$0xff]
    %v210 = vld [vmem:[#allocation5 + $0x198] sm:$0xff]
    %v211 = vld [vmem:[#allocation5 + $0x1a0] sm:$0xff]
    %v212 = vld [vmem:[#allocation5 + $0x1a8] sm:$0xff]
    %v213 = vld [vmem:[#allocation5 + $0x1b0] sm:$0xff]
    %v214 = vld [vmem:[#allocation5 + $0x1b8] sm:$0xff]
    %v215 = vld [vmem:[#allocation5 + $0x1c0] sm:$0xff]
    %v216 = vld [vmem:[#allocation5 + $0x1c8] sm:$0xff]
    %v217 = vld [vmem:[#allocation5 + $0x1d0] sm:$0xff]
    %v218 = vld [vmem:[#allocation5 + $0x1d8] sm:$0xff]
    %v219 = vld [vmem:[#allocation5 + $0x1e0] sm:$0xff]
    %v220 = vld [vmem:[#allocation5 + $0x1e8] sm:$0xff]
    %v221 = vld [vmem:[#allocation5 + $0x1f0] sm:$0xff]
    %v222 = vld [vmem:[#allocation5 + $0x1f8] sm:$0xff]
    %v223 = vld [vmem:[#allocation5 + $0x200] sm:$0xff]
    %v224 = vld [vmem:[#allocation5 + $0x208] sm:$0xff]
    %v225 = vld [vmem:[#allocation5 + $0x210] sm:$0xff]
    %v226 = vld [vmem:[#allocation5 + $0x218] sm:$0xff]
    %v227 = vld [vmem:[#allocation5 + $0x220] sm:$0xff]
    %v228 = vld [vmem:[#allocation5 + $0x228] sm:$0xff]
    %v229 = vld [vmem:[#allocation5 + $0x230] sm:$0xff]
    %v230 = vld [vmem:[#allocation5 + $0x238] sm:$0xff]
    %v231 = vld [vmem:[#allocation5 + $0x240] sm:$0xff]
    %v232 = vld [vmem:[#allocation5 + $0x248] sm:$0xff]
    %v233 = vld [vmem:[#allocation5 + $0x250] sm:$0xff]
    %v234 = vld [vmem:[#allocation5 + $0x258] sm:$0xff]
    %v235 = vld [vmem:[#allocation5 + $0x260] sm:$0xff]
    %v236 = vld [vmem:[#allocation5 + $0x268] sm:$0xff]
    %v237 = vld [vmem:[#allocation5 + $0x270] sm:$0xff]
    %v238 = vld [vmem:[#allocation5 + $0x278] sm:$0xff]
    %v239 = vld [vmem:[#allocation5 + $0x280] sm:$0xff]
    %v240 = vld [vmem:[#allocation5 + $0x288] sm:$0xff]
    %v241 = vld [vmem:[#allocation5 + $0x290] sm:$0xff]
    %v242 = vld [vmem:[#allocation5 + $0x298] sm:$0xff]
    %v243 = vld [vmem:[#allocation5 + $0x2a0] sm:$0xff]
    %v244 = vld [vmem:[#allocation5 + $0x2a8] sm:$0xff]
    %v245 = vld [vmem:[#allocation5 + $0x2b0] sm:$0xff]
    %v246 = vld [vmem:[#allocation5 + $0x2b8] sm:$0xff]
    %v247 = vld [vmem:[#allocation5 + $0x2c0] sm:$0xff]
    %v248 = vld [vmem:[#allocation5 + $0x2c8] sm:$0xff]
    %v249 = vld [vmem:[#allocation5 + $0x2d0] sm:$0xff]
    %v250 = vld [vmem:[#allocation5 + $0x2d8] sm:$0xff]
    %v251 = vld [vmem:[#allocation5 + $0x2e0] sm:$0xff]
    %v252 = vld [vmem:[#allocation5 + $0x2e8] sm:$0xff]
    %v253 = vld [vmem:[#allocation5 + $0x2f0] sm:$0xff]
    %v254 = vld [vmem:[#allocation5 + $0x2f8] sm:$0xff]
    %v255 = vld [vmem:[#allocation5 + $0x300] sm:$0xff]
    %v256 = vld [vmem:[#allocation5 + $0x308] sm:$0xff]
    %v257 = vld [vmem:[#allocation5 + $0x310] sm:$0xff]
    %v258 = vld [vmem:[#allocation5 + $0x318] sm:$0xff]
    %v259 = vld [vmem:[#allocation5 + $0x320] sm:$0xff]
    %v260 = vld [vmem:[#allocation5 + $0x328] sm:$0xff]
    %v261 = vld [vmem:[#allocation5 + $0x330] sm:$0xff]
    %v262 = vld [vmem:[#allocation5 + $0x338] sm:$0xff]
    %v263 = vld [vmem:[#allocation5 + $0x340] sm:$0xff]
    %v264 = vld [vmem:[#allocation5 + $0x348] sm:$0xff]
    %v265 = vld [vmem:[#allocation5 + $0x350] sm:$0xff]
    %v266 = vld [vmem:[#allocation5 + $0x358] sm:$0xff]
    %v267 = vld [vmem:[#allocation5 + $0x360] sm:$0xff]
    %v268 = vld [vmem:[#allocation5 + $0x368] sm:$0xff]
    %v269 = vld [vmem:[#allocation5 + $0x370] sm:$0xff]
    %v270 = vld [vmem:[#allocation5 + $0x378] sm:$0xff]
    %v271 = vld [vmem:[#allocation5 + $0x380] sm:$0xff]
    %v272 = vld [vmem:[#allocation5 + $0x388] sm:$0xff]
    %v273 = vld [vmem:[#allocation5 + $0x390] sm:$0xff]
    %v274 = vld [vmem:[#allocation5 + $0x398] sm:$0xff]
    %v275 = vld [vmem:[#allocation5 + $0x3a0] sm:$0xff]
    %v276 = vld [vmem:[#allocation5 + $0x3a8] sm:$0xff]
    %v277 = vld [vmem:[#allocation5 + $0x3b0] sm:$0xff]
    %v278 = vld [vmem:[#allocation5 + $0x3b8] sm:$0xff]
    %v279 = vld [vmem:[#allocation5 + $0x3c0] sm:$0xff]
    %v280 = vld [vmem:[#allocation5 + $0x3c8] sm:$0xff]
    %v281 = vld [vmem:[#allocation5 + $0x3d0] sm:$0xff]
    %v282 = vld [vmem:[#allocation5 + $0x3d8] sm:$0xff]
    %v283 = vld [vmem:[#allocation5 + $0x3e0] sm:$0xff]
    %v284 = vld [vmem:[#allocation5 + $0x3e8] sm:$0xff]
    %v285 = vld [vmem:[#allocation5 + $0x3f0] sm:$0xff]
    %v286 = vld [vmem:[#allocation5 + $0x3f8] sm:$0xff]
    %v287 = vld [vmem:[#allocation5 + $0x400] sm:$0xff]
    %v288 = vld [vmem:[#allocation5 + $0x408] sm:$0xff]
    %v289 = vld [vmem:[#allocation5 + $0x410] sm:$0xff]
    %v290 = vld [vmem:[#allocation5 + $0x418] sm:$0xff]
    %v291 = vld [vmem:[#allocation5 + $0x420] sm:$0xff]
    %v292 = vld [vmem:[#allocation5 + $0x428] sm:$0xff]
    %v293 = vld [vmem:[#allocation5 + $0x430] sm:$0xff]
    %v294 = vld [vmem:[#allocation5 + $0x438] sm:$0xff]
    %v295 = vld [vmem:[#allocation5 + $0x440] sm:$0xff]
    %v296 = vld [vmem:[#allocation5 + $0x448] sm:$0xff]
    %v297 = vld [vmem:[#allocation5 + $0x450] sm:$0xff]
    %v298 = vld [vmem:[#allocation5 + $0x458] sm:$0xff]
    %v299 = vld [vmem:[#allocation5 + $0x460] sm:$0xff]
    %v300 = vld [vmem:[#allocation5 + $0x468] sm:$0xff]
    %v301 = vld [vmem:[#allocation5 + $0x470] sm:$0xff]
    %v302 = vld [vmem:[#allocation5 + $0x478] sm:$0xff]
    %v303 = vld [vmem:[#allocation5 + $0x480] sm:$0xff]
    %v304 = vld [vmem:[#allocation5 + $0x488] sm:$0xff]
    %v305 = vld [vmem:[#allocation5 + $0x490] sm:$0xff]
    %v306 = vld [vmem:[#allocation5 + $0x498] sm:$0xff]
    %v307 = vld [vmem:[#allocation5 + $0x4a0] sm:$0xff]
    %v308 = vld [vmem:[#allocation5 + $0x4a8] sm:$0xff]
    %v309 = vld [vmem:[#allocation5 + $0x4b0] sm:$0xff]
    %v310 = vld [vmem:[#allocation5 + $0x4b8] sm:$0xff]
    %v311 = vld [vmem:[#allocation5 + $0x4c0] sm:$0xff]
    %v312 = vld [vmem:[#allocation5 + $0x4c8] sm:$0xff]
    %v313 = vld [vmem:[#allocation5 + $0x4d0] sm:$0xff]
    %v314 = vld [vmem:[#allocation5 + $0x4d8] sm:$0xff]
    %v315 = vld [vmem:[#allocation5 + $0x4e0] sm:$0xff]
    %v316 = vld [vmem:[#allocation5 + $0x4e8] sm:$0xff]
    %v317 = vld [vmem:[#allocation5 + $0x4f0] sm:$0xff]
    %v318 = vld [vmem:[#allocation5 + $0x4f8] sm:$0xff]
    %v319 = vld [vmem:[#allocation5 + $0x500] sm:$0xff]
    %v320 = vld [vmem:[#allocation5 + $0x508] sm:$0xff]
    %v321 = vld [vmem:[#allocation5 + $0x510] sm:$0xff]
    %v322 = vld [vmem:[#allocation5 + $0x518] sm:$0xff]
    %v323 = vld [vmem:[#allocation5 + $0x520] sm:$0xff]
    %v324 = vld [vmem:[#allocation5 + $0x528] sm:$0xff]
    %v325 = vld [vmem:[#allocation5 + $0x530] sm:$0xff]
    %v326 = vld [vmem:[#allocation5 + $0x538] sm:$0xff]
    %v327 = vld [vmem:[#allocation5 + $0x540] sm:$0xff]
    %v328 = vld [vmem:[#allocation5 + $0x548] sm:$0xff]
    %v329 = vld [vmem:[#allocation5 + $0x550] sm:$0xff]
    %v330 = vld [vmem:[#allocation5 + $0x558] sm:$0xff]
    %v331 = vld [vmem:[#allocation5 + $0x560] sm:$0xff]
    %v332 = vld [vmem:[#allocation5 + $0x568] sm:$0xff]
    %v333 = vld [vmem:[#allocation5 + $0x570] sm:$0xff]
    %v334 = vld [vmem:[#allocation5 + $0x578] sm:$0xff]
    %v335 = vld [vmem:[#allocation5 + $0x580] sm:$0xff]
    %v336 = vld [vmem:[#allocation5 + $0x588] sm:$0xff]
    %v337 = vld [vmem:[#allocation5 + $0x590] sm:$0xff]
    %v338 = vld [vmem:[#allocation5 + $0x598] sm:$0xff]
    %v339 = vld [vmem:[#allocation5 + $0x5a0] sm:$0xff]
    %v340 = vld [vmem:[#allocation5 + $0x5a8] sm:$0xff]
    %v341 = vld [vmem:[#allocation5 + $0x5b0] sm:$0xff]
    %v342 = vld [vmem:[#allocation5 + $0x5b8] sm:$0xff]
    %v343 = vld [vmem:[#allocation5 + $0x5c0] sm:$0xff]
    %v344 = vld [vmem:[#allocation5 + $0x5c8] sm:$0xff]
    %v345 = vld [vmem:[#allocation5 + $0x5d0] sm:$0xff]
    %v346 = vld [vmem:[#allocation5 + $0x5d8] sm:$0xff]
    %v347 = vld [vmem:[#allocation5 + $0x5e0] sm:$0xff]
    %v348 = vld [vmem:[#allocation5 + $0x5e8] sm:$0xff]
    %v349 = vld [vmem:[#allocation5 + $0x5f0] sm:$0xff]
    %v350 = vld [vmem:[#allocation5 + $0x5f8] sm:$0xff]
    %v351 = vld [vmem:[#allocation5 + $0x600] sm:$0xff]
    %v352 = vld [vmem:[#allocation5 + $0x608] sm:$0xff]
    %v353 = vld [vmem:[#allocation5 + $0x610] sm:$0xff]
    %v354 = vld [vmem:[#allocation5 + $0x618] sm:$0xff]
    %v355 = vld [vmem:[#allocation5 + $0x620] sm:$0xff]
    %v356 = vld [vmem:[#allocation5 + $0x628] sm:$0xff]
    %v357 = vld [vmem:[#allocation5 + $0x630] sm:$0xff]
    %v358 = vld [vmem:[#allocation5 + $0x638] sm:$0xff]
    %v359 = vld [vmem:[#allocation5 + $0x640] sm:$0xff]
    %v360 = vld [vmem:[#allocation5 + $0x648] sm:$0xff]
    %v361 = vld [vmem:[#allocation5 + $0x650] sm:$0xff]
    %v362 = vld [vmem:[#allocation5 + $0x658] sm:$0xff]
    %v363 = vld [vmem:[#allocation5 + $0x660] sm:$0xff]
    %v364 = vld [vmem:[#allocation5 + $0x668] sm:$0xff]
    %v365 = vld [vmem:[#allocation5 + $0x670] sm:$0xff]
    %v366 = vld [vmem:[#allocation5 + $0x678] sm:$0xff]
    %v367 = vld [vmem:[#allocation5 + $0x680] sm:$0xff]
    %v368 = vld [vmem:[#allocation5 + $0x688] sm:$0xff]
    %v369 = vld [vmem:[#allocation5 + $0x690] sm:$0xff]
    %v370 = vld [vmem:[#allocation5 + $0x698] sm:$0xff]
    %v371 = vld [vmem:[#allocation5 + $0x6a0] sm:$0xff]
    %v372 = vld [vmem:[#allocation5 + $0x6a8] sm:$0xff]
    %v373 = vld [vmem:[#allocation5 + $0x6b0] sm:$0xff]
    %v374 = vld [vmem:[#allocation5 + $0x6b8] sm:$0xff]
    %v375 = vld [vmem:[#allocation5 + $0x6c0] sm:$0xff]
    %v376 = vld [vmem:[#allocation5 + $0x6c8] sm:$0xff]
    %v377 = vld [vmem:[#allocation5 + $0x6d0] sm:$0xff]
    %v378 = vld [vmem:[#allocation5 + $0x6d8] sm:$0xff]
    %v379 = vld [vmem:[#allocation5 + $0x6e0] sm:$0xff]
    %v380 = vld [vmem:[#allocation5 + $0x6e8] sm:$0xff]
    %v381 = vld [vmem:[#allocation5 + $0x6f0] sm:$0xff]
    %v382 = vld [vmem:[#allocation5 + $0x6f8] sm:$0xff]
    %v383 = vld [vmem:[#allocation5 + $0x700] sm:$0xff]
    %v384 = vld [vmem:[#allocation5 + $0x708] sm:$0xff]
    %v385 = vld [vmem:[#allocation5 + $0x710] sm:$0xff]
    %v386 = vld [vmem:[#allocation5 + $0x718] sm:$0xff]
    %v387 = vld [vmem:[#allocation5 + $0x720] sm:$0xff]
    %v388 = vld [vmem:[#allocation5 + $0x728] sm:$0xff]
    %v389 = vld [vmem:[#allocation5 + $0x730] sm:$0xff]
    %v390 = vld [vmem:[#allocation5 + $0x738] sm:$0xff]
    %v391 = vld [vmem:[#allocation5 + $0x740] sm:$0xff]
    %v392 = vld [vmem:[#allocation5 + $0x748] sm:$0xff]
    %v393 = vld [vmem:[#allocation5 + $0x750] sm:$0xff]
    %v394 = vld [vmem:[#allocation5 + $0x758] sm:$0xff]
    %v395 = vld [vmem:[#allocation5 + $0x760] sm:$0xff]
    %v396 = vld [vmem:[#allocation5 + $0x768] sm:$0xff]
    %v397 = vld [vmem:[#allocation5 + $0x770] sm:$0xff]
    %v398 = vld [vmem:[#allocation5 + $0x778] sm:$0xff]
    %v399 = vld [vmem:[#allocation5 + $0x780] sm:$0xff]
    %v400 = vld [vmem:[#allocation5 + $0x788] sm:$0xff]
    %v401 = vld [vmem:[#allocation5 + $0x790] sm:$0xff]
    %v402 = vld [vmem:[#allocation5 + $0x798] sm:$0xff]
    %v403 = vld [vmem:[#allocation5 + $0x7a0] sm:$0xff]
    %v404 = vld [vmem:[#allocation5 + $0x7a8] sm:$0xff]
    %v405 = vld [vmem:[#allocation5 + $0x7b0] sm:$0xff]
    %v406 = vld [vmem:[#allocation5 + $0x7b8] sm:$0xff]
    %v407 = vld [vmem:[#allocation5 + $0x7c0] sm:$0xff]
    %v408 = vld [vmem:[#allocation5 + $0x7c8] sm:$0xff]
    %v409 = vld [vmem:[#allocation5 + $0x7d0] sm:$0xff]
    %v410 = vld [vmem:[#allocation5 + $0x7d8] sm:$0xff]
    %v411 = vld [vmem:[#allocation5 + $0x7e0] sm:$0xff]
    %v412 = vld [vmem:[#allocation5 + $0x7e8] sm:$0xff]
    %v413 = vld [vmem:[#allocation5 + $0x7f0] sm:$0xff]
    %v414 = vld [vmem:[#allocation5 + $0x7f8] sm:$0xff]
    %v415 = vld [vmem:[#allocation5 + $0x800] sm:$0xff]
    %v416 = vld [vmem:[#allocation5 + $0x808] sm:$0xff]
    %v417 = vld [vmem:[#allocation5 + $0x810] sm:$0xff]
    %v418 = vld [vmem:[#allocation5 + $0x818] sm:$0xff]
    %v419 = vld [vmem:[#allocation5 + $0x820] sm:$0xff]
    %v420 = vld [vmem:[#allocation5 + $0x828] sm:$0xff]
    %v421 = vld [vmem:[#allocation5 + $0x830] sm:$0xff]
    %v422 = vld [vmem:[#allocation5 + $0x838] sm:$0xff]
    %v423 = vld [vmem:[#allocation5 + $0x840] sm:$0xff]
    %v424 = vld [vmem:[#allocation5 + $0x848] sm:$0xff]
    %v425 = vld [vmem:[#allocation5 + $0x850] sm:$0xff]
    %v426 = vld [vmem:[#allocation5 + $0x858] sm:$0xff]
    %v427 = vld [vmem:[#allocation5 + $0x860] sm:$0xff]
    %v428 = vld [vmem:[#allocation5 + $0x868] sm:$0xff]
    %v429 = vld [vmem:[#allocation5 + $0x870] sm:$0xff]
    %v430 = vld [vmem:[#allocation5 + $0x878] sm:$0xff]
    %v431 = vld [vmem:[#allocation5 + $0x880] sm:$0xff]
    %v432 = vld [vmem:[#allocation5 + $0x888] sm:$0xff]
    %v433 = vld [vmem:[#allocation5 + $0x890] sm:$0xff]
    %v434 = vld [vmem:[#allocation5 + $0x898] sm:$0xff]
    %v435 = vld [vmem:[#allocation5 + $0x8a0] sm:$0xff]
    %v436 = vld [vmem:[#allocation5 + $0x8a8] sm:$0xff]
    %v437 = vld [vmem:[#allocation5 + $0x8b0] sm:$0xff]
    %v438 = vld [vmem:[#allocation5 + $0x8b8] sm:$0xff]
    %v439 = vld [vmem:[#allocation5 + $0x8c0] sm:$0xff]
    %v440 = vld [vmem:[#allocation5 + $0x8c8] sm:$0xff]
    %v441 = vld [vmem:[#allocation5 + $0x8d0] sm:$0xff]
    %v442 = vld [vmem:[#allocation5 + $0x8d8] sm:$0xff]
    %v443 = vld [vmem:[#allocation5 + $0x8e0] sm:$0xff]
    %v444 = vld [vmem:[#allocation5 + $0x8e8] sm:$0xff]
    %v445 = vld [vmem:[#allocation5 + $0x8f0] sm:$0xff]
    %v446 = vld [vmem:[#allocation5 + $0x8f8] sm:$0xff]
    %v447 = vld [vmem:[#allocation5 + $0x900] sm:$0xff]
    %v448 = vld [vmem:[#allocation5 + $0x908] sm:$0xff]
    %v449 = vld [vmem:[#allocation5 + $0x910] sm:$0xff]
    %v450 = vld [vmem:[#allocation5 + $0x918] sm:$0xff]
    %v451 = vld [vmem:[#allocation5 + $0x920] sm:$0xff]
    %v452 = vld [vmem:[#allocation5 + $0x928] sm:$0xff]
    %v453 = vld [vmem:[#allocation5 + $0x930] sm:$0xff]
    %v454 = vld [vmem:[#allocation5 + $0x938] sm:$0xff]
    %v455 = vld [vmem:[#allocation5 + $0x940] sm:$0xff]
    %v456 = vld [vmem:[#allocation5 + $0x948] sm:$0xff]
    %v457 = vld [vmem:[#allocation5 + $0x950] sm:$0xff]
    %v458 = vld [vmem:[#allocation5 + $0x958] sm:$0xff]
    %v459 = vld [vmem:[#allocation5 + $0x960] sm:$0xff]
    %v460 = vld [vmem:[#allocation5 + $0x968] sm:$0xff]
    %v461 = vld [vmem:[#allocation5 + $0x970] sm:$0xff]
    %v462 = vld [vmem:[#allocation5 + $0x978] sm:$0xff]
    %v463 = vld [vmem:[#allocation5 + $0x980] sm:$0xff]
    %v464 = vld [vmem:[#allocation5 + $0x988] sm:$0xff]
    %v465 = vld [vmem:[#allocation5 + $0x990] sm:$0xff]
    %v466 = vld [vmem:[#allocation5 + $0x998] sm:$0xff]
    %v467 = vld [vmem:[#allocation5 + $0x9a0] sm:$0xff]
    %v468 = vld [vmem:[#allocation5 + $0x9a8] sm:$0xff]
    %v469 = vld [vmem:[#allocation5 + $0x9b0] sm:$0xff]
    %v470 = vld [vmem:[#allocation5 + $0x9b8] sm:$0xff]
    %v471 = vld [vmem:[#allocation5 + $0x9c0] sm:$0xff]
    %v472 = vld [vmem:[#allocation5 + $0x9c8] sm:$0xff]
    %v473 = vld [vmem:[#allocation5 + $0x9d0] sm:$0xff]
    %v474 = vld [vmem:[#allocation5 + $0x9d8] sm:$0xff]
    %v475 = vld [vmem:[#allocation5 + $0x9e0] sm:$0xff]
    %v476 = vld [vmem:[#allocation5 + $0x9e8] sm:$0xff]
    %v477 = vld [vmem:[#allocation5 + $0x9f0] sm:$0xff]
    %v478 = vld [vmem:[#allocation5 + $0x9f8] sm:$0xff]
    %v479 = vld [vmem:[#allocation5 + $0xa00] sm:$0xff]
    %v480 = vld [vmem:[#allocation5 + $0xa08] sm:$0xff]
    %v481 = vld [vmem:[#allocation5 + $0xa10] sm:$0xff]
    %v482 = vld [vmem:[#allocation5 + $0xa18] sm:$0xff]
    %v483 = vld [vmem:[#allocation5 + $0xa20] sm:$0xff]
    %v484 = vld [vmem:[#allocation5 + $0xa28] sm:$0xff]
    %v485 = vld [vmem:[#allocation5 + $0xa30] sm:$0xff]
    %v486 = vld [vmem:[#allocation5 + $0xa38] sm:$0xff]
    %v487 = vld [vmem:[#allocation5 + $0xa40] sm:$0xff]
    %v488 = vld [vmem:[#allocation5 + $0xa48] sm:$0xff]
    %v489 = vld [vmem:[#allocation5 + $0xa50] sm:$0xff]
    %v490 = vld [vmem:[#allocation5 + $0xa58] sm:$0xff]
    %v491 = vld [vmem:[#allocation5 + $0xa60] sm:$0xff]
    %v492 = vld [vmem:[#allocation5 + $0xa68] sm:$0xff]
    %v493 = vld [vmem:[#allocation5 + $0xa70] sm:$0xff]
    %v494 = vld [vmem:[#allocation5 + $0xa78] sm:$0xff]
    %v495 = vld [vmem:[#allocation5 + $0xa80] sm:$0xff]
    %v496 = vld [vmem:[#allocation5 + $0xa88] sm:$0xff]
    %v497 = vld [vmem:[#allocation5 + $0xa90] sm:$0xff]
    %v498 = vld [vmem:[#allocation5 + $0xa98] sm:$0xff]
    %v499 = vld [vmem:[#allocation5 + $0xaa0] sm:$0xff]
    %v500 = vld [vmem:[#allocation5 + $0xaa8] sm:$0xff]
    %v501 = vld [vmem:[#allocation5 + $0xab0] sm:$0xff]
    %v502 = vld [vmem:[#allocation5 + $0xab8] sm:$0xff]
    %v503 = vld [vmem:[#allocation5 + $0xac0] sm:$0xff]
    %v504 = vld [vmem:[#allocation5 + $0xac8] sm:$0xff]
    %v505 = vld [vmem:[#allocation5 + $0xad0] sm:$0xff]
    %v506 = vld [vmem:[#allocation5 + $0xad8] sm:$0xff]
    %v507 = vld [vmem:[#allocation5 + $0xae0] sm:$0xff]
    %v508 = vld [vmem:[#allocation5 + $0xae8] sm:$0xff]
    %v509 = vld [vmem:[#allocation5 + $0xaf0] sm:$0xff]
    %v510 = vld [vmem:[#allocation5 + $0xaf8] sm:$0xff]
    %v511 = vld [vmem:[#allocation5 + $0xb00] sm:$0xff]
    %v512 = vld [vmem:[#allocation5 + $0xb08] sm:$0xff]
    %v513 = vld [vmem:[#allocation5 + $0xb10] sm:$0xff]
    %v514 = vld [vmem:[#allocation5 + $0xb18] sm:$0xff]
    %v515 = vld [vmem:[#allocation5 + $0xb20] sm:$0xff]
    %v516 = vld [vmem:[#allocation5 + $0xb28] sm:$0xff]
    %v517 = vld [vmem:[#allocation5 + $0xb30] sm:$0xff]
    %v518 = vld [vmem:[#allocation5 + $0xb38] sm:$0xff]
    %v519 = vld [vmem:[#allocation5 + $0xb40] sm:$0xff]
    %v520 = vld [vmem:[#allocation5 + $0xb48] sm:$0xff]
    %v521 = vld [vmem:[#allocation5 + $0xb50] sm:$0xff]
    %v522 = vld [vmem:[#allocation5 + $0xb58] sm:$0xff]
    %v523 = vld [vmem:[#allocation5 + $0xb60] sm:$0xff]
    %v524 = vld [vmem:[#allocation5 + $0xb68] sm:$0xff]
    %v525 = vld [vmem:[#allocation5 + $0xb70] sm:$0xff]
    %v526 = vld [vmem:[#allocation5 + $0xb78] sm:$0xff]
    %v527 = vld [vmem:[#allocation5 + $0xb80] sm:$0xff]
    %v528 = vld [vmem:[#allocation5 + $0xb88] sm:$0xff]
    %v529 = vld [vmem:[#allocation5 + $0xb90] sm:$0xff]
    %v530 = vld [vmem:[#allocation5 + $0xb98] sm:$0xff]
    %v531 = vld [vmem:[#allocation5 + $0xba0] sm:$0xff]
    %v532 = vld [vmem:[#allocation5 + $0xba8] sm:$0xff]
    %v533 = vld [vmem:[#allocation5 + $0xbb0] sm:$0xff]
    %v534 = vld [vmem:[#allocation5 + $0xbb8] sm:$0xff]
    %v535 = vld [vmem:[#allocation5 + $0xbc0] sm:$0xff]
    %v536 = vld [vmem:[#allocation5 + $0xbc8] sm:$0xff]
    %v537 = vld [vmem:[#allocation5 + $0xbd0] sm:$0xff]
    %v538 = vld [vmem:[#allocation5 + $0xbd8] sm:$0xff]
    %v539 = vld [vmem:[#allocation5 + $0xbe0] sm:$0xff]
    %v540 = vld [vmem:[#allocation5 + $0xbe8] sm:$0xff]
    %v541 = vld [vmem:[#allocation5 + $0xbf0] sm:$0xff]
    %v542 = vld [vmem:[#allocation5 + $0xbf8] sm:$0xff]
    %v543 = vld [vmem:[#allocation5 + $0xc00] sm:$0xff]
    %v544 = vld [vmem:[#allocation5 + $0xc08] sm:$0xff]
    %v545 = vld [vmem:[#allocation5 + $0xc10] sm:$0xff]
    %v546 = vld [vmem:[#allocation5 + $0xc18] sm:$0xff]
    %v547 = vld [vmem:[#allocation5 + $0xc20] sm:$0xff]
    %v548 = vld [vmem:[#allocation5 + $0xc28] sm:$0xff]
    %v549 = vld [vmem:[#allocation5 + $0xc30] sm:$0xff]
    %v550 = vld [vmem:[#allocation5 + $0xc38] sm:$0xff]
    %v551 = vld [vmem:[#allocation5 + $0xc40] sm:$0xff]
    %v552 = vld [vmem:[#allocation5 + $0xc48] sm:$0xff]
    %v553 = vld [vmem:[#allocation5 + $0xc50] sm:$0xff]
    %v554 = vld [vmem:[#allocation5 + $0xc58] sm:$0xff]
    %v555 = vld [vmem:[#allocation5 + $0xc60] sm:$0xff]
    %v556 = vld [vmem:[#allocation5 + $0xc68] sm:$0xff]
    %v557 = vld [vmem:[#allocation5 + $0xc70] sm:$0xff]
    %v558 = vld [vmem:[#allocation5 + $0xc78] sm:$0xff]
    %v559 = vld [vmem:[#allocation5 + $0xc80] sm:$0xff]
    %v560 = vld [vmem:[#allocation5 + $0xc88] sm:$0xff]
    %v561 = vld [vmem:[#allocation5 + $0xc90] sm:$0xff]
    %v562 = vld [vmem:[#allocation5 + $0xc98] sm:$0xff]
    %v563 = vld [vmem:[#allocation5 + $0xca0] sm:$0xff]
    %v564 = vld [vmem:[#allocation5 + $0xca8] sm:$0xff]
    %v565 = vld [vmem:[#allocation5 + $0xcb0] sm:$0xff]
    %v566 = vld [vmem:[#allocation5 + $0xcb8] sm:$0xff]
    %v567 = vld [vmem:[#allocation5 + $0xcc0] sm:$0xff]
    %v568 = vld [vmem:[#allocation5 + $0xcc8] sm:$0xff]
    %v569 = vld [vmem:[#allocation5 + $0xcd0] sm:$0xff]
    %v570 = vld [vmem:[#allocation5 + $0xcd8] sm:$0xff]
    %v571 = vld [vmem:[#allocation5 + $0xce0] sm:$0xff]
    %v572 = vld [vmem:[#allocation5 + $0xce8] sm:$0xff]
    %v573 = vld [vmem:[#allocation5 + $0xcf0] sm:$0xff]
    %v574 = vld [vmem:[#allocation5 + $0xcf8] sm:$0xff]
    %v575 = vld [vmem:[#allocation5 + $0xd00] sm:$0xff]
    %v576 = vld [vmem:[#allocation5 + $0xd08] sm:$0xff]
    %v577 = vld [vmem:[#allocation5 + $0xd10] sm:$0xff]
    %v578 = vld [vmem:[#allocation5 + $0xd18] sm:$0xff]
    %v579 = vld [vmem:[#allocation5 + $0xd20] sm:$0xff]
    %v580 = vld [vmem:[#allocation5 + $0xd28] sm:$0xff]
    %v581 = vld [vmem:[#allocation5 + $0xd30] sm:$0xff]
    %v582 = vld [vmem:[#allocation5 + $0xd38] sm:$0xff]
    %v583 = vld [vmem:[#allocation5 + $0xd40] sm:$0xff]
    %v584 = vld [vmem:[#allocation5 + $0xd48] sm:$0xff]
    %v585 = vld [vmem:[#allocation5 + $0xd50] sm:$0xff]
    %v586 = vld [vmem:[#allocation5 + $0xd58] sm:$0xff]
    %v587 = vld [vmem:[#allocation5 + $0xd60] sm:$0xff]
    %v588 = vld [vmem:[#allocation5 + $0xd68] sm:$0xff]
    %v589 = vld [vmem:[#allocation5 + $0xd70] sm:$0xff]
    %v590 = vld [vmem:[#allocation5 + $0xd78] sm:$0xff]
    %v591 = vld [vmem:[#allocation5 + $0xd80] sm:$0xff]
    %v592 = vld [vmem:[#allocation5 + $0xd88] sm:$0xff]
    %v593 = vld [vmem:[#allocation5 + $0xd90] sm:$0xff]
    %v594 = vld [vmem:[#allocation5 + $0xd98] sm:$0xff]
    %v595 = vld [vmem:[#allocation5 + $0xda0] sm:$0xff]
    %v596 = vld [vmem:[#allocation5 + $0xda8] sm:$0xff]
    %v597 = vld [vmem:[#allocation5 + $0xdb0] sm:$0xff]
    %v598 = vld [vmem:[#allocation5 + $0xdb8] sm:$0xff]
    %v599 = vld [vmem:[#allocation5 + $0xdc0] sm:$0xff]
    %v600 = vld [vmem:[#allocation5 + $0xdc8] sm:$0xff]
    %v601 = vld [vmem:[#allocation5 + $0xdd0] sm:$0xff]
    %v602 = vld [vmem:[#allocation5 + $0xdd8] sm:$0xff]
    %v603 = vld [vmem:[#allocation5 + $0xde0] sm:$0xff]
    %v604 = vld [vmem:[#allocation5 + $0xde8] sm:$0xff]
    %v605 = vld [vmem:[#allocation5 + $0xdf0] sm:$0xff]
    %v606 = vld [vmem:[#allocation5 + $0xdf8] sm:$0xff]
    %v607 = vld [vmem:[#allocation5 + $0xe00] sm:$0xff]
    %v608 = vld [vmem:[#allocation5 + $0xe08] sm:$0xff]
    %v609 = vld [vmem:[#allocation5 + $0xe10] sm:$0xff]
    %v610 = vld [vmem:[#allocation5 + $0xe18] sm:$0xff]
    %v611 = vld [vmem:[#allocation5 + $0xe20] sm:$0xff]
    %v612 = vld [vmem:[#allocation5 + $0xe28] sm:$0xff]
    %v613 = vld [vmem:[#allocation5 + $0xe30] sm:$0xff]
    %v614 = vld [vmem:[#allocation5 + $0xe38] sm:$0xff]
    %v615 = vld [vmem:[#allocation5 + $0xe40] sm:$0xff]
    %v616 = vld [vmem:[#allocation5 + $0xe48] sm:$0xff]
    %v617 = vld [vmem:[#allocation5 + $0xe50] sm:$0xff]
    %v618 = vld [vmem:[#allocation5 + $0xe58] sm:$0xff]
    %v619 = vld [vmem:[#allocation5 + $0xe60] sm:$0xff]
    %v620 = vld [vmem:[#allocation5 + $0xe68] sm:$0xff]
    %v621 = vld [vmem:[#allocation5 + $0xe70] sm:$0xff]
    %v622 = vld [vmem:[#allocation5 + $0xe78] sm:$0xff]
    %v623 = vld [vmem:[#allocation5 + $0xe80] sm:$0xff]
    %v624 = vld [vmem:[#allocation5 + $0xe88] sm:$0xff]
    %v625 = vld [vmem:[#allocation5 + $0xe90] sm:$0xff]
    %v626 = vld [vmem:[#allocation5 + $0xe98] sm:$0xff]
    %v627 = vld [vmem:[#allocation5 + $0xea0] sm:$0xff]
    %v628 = vld [vmem:[#allocation5 + $0xea8] sm:$0xff]
    %v629 = vld [vmem:[#allocation5 + $0xeb0] sm:$0xff]
    %v630 = vld [vmem:[#allocation5 + $0xeb8] sm:$0xff]
    %v631 = vld [vmem:[#allocation5 + $0xec0] sm:$0xff]
    %v632 = vld [vmem:[#allocation5 + $0xec8] sm:$0xff]
    %v633 = vld [vmem:[#allocation5 + $0xed0] sm:$0xff]
    %v634 = vld [vmem:[#allocation5 + $0xed8] sm:$0xff]
    %v635 = vld [vmem:[#allocation5 + $0xee0] sm:$0xff]
    %v636 = vld [vmem:[#allocation5 + $0xee8] sm:$0xff]
    %v637 = vld [vmem:[#allocation5 + $0xef0] sm:$0xff]
    %v638 = vld [vmem:[#allocation5 + $0xef8] sm:$0xff]
    %v639 = vld [vmem:[#allocation5 + $0xf00] sm:$0xff]
    %v640 = vld [vmem:[#allocation5 + $0xf08] sm:$0xff]
    %v641 = vld [vmem:[#allocation5 + $0xf10] sm:$0xff]
    %v642 = vld [vmem:[#allocation5 + $0xf18] sm:$0xff]
    %v643 = vld [vmem:[#allocation5 + $0xf20] sm:$0xff]
    %v644 = vld [vmem:[#allocation5 + $0xf28] sm:$0xff]
    %v645 = vld [vmem:[#allocation5 + $0xf30] sm:$0xff]
    %v646 = vld [vmem:[#allocation5 + $0xf38] sm:$0xff]
    %v647 = vld [vmem:[#allocation5 + $0xf40] sm:$0xff]
    %v648 = vld [vmem:[#allocation5 + $0xf48] sm:$0xff]
    %v649 = vld [vmem:[#allocation5 + $0xf50] sm:$0xff]
    %v650 = vld [vmem:[#allocation5 + $0xf58] sm:$0xff]
    %v651 = vld [vmem:[#allocation5 + $0xf60] sm:$0xff]
    %v652 = vld [vmem:[#allocation5 + $0xf68] sm:$0xff]
    %v653 = vld [vmem:[#allocation5 + $0xf70] sm:$0xff]
    %v654 = vld [vmem:[#allocation5 + $0xf78] sm:$0xff]
    %v655 = vld [vmem:[#allocation5 + $0xf80] sm:$0xff]
    %v656 = vld [vmem:[#allocation5 + $0xf88] sm:$0xff]
    %v657 = vld [vmem:[#allocation5 + $0xf90] sm:$0xff]
    %v658 = vld [vmem:[#allocation5 + $0xf98] sm:$0xff]
    %v659 = vld [vmem:[#allocation5 + $0xfa0] sm:$0xff]
    %v660 = vld [vmem:[#allocation5 + $0xfa8] sm:$0xff]
    %v661 = vld [vmem:[#allocation5 + $0xfb0] sm:$0xff]
    %v662 = vld [vmem:[#allocation5 + $0xfb8] sm:$0xff]
    %v663 = vld [vmem:[#allocation5 + $0xfc0] sm:$0xff]
    %v664 = vld [vmem:[#allocation5 + $0xfc8] sm:$0xff]
    %v665 = vld [vmem:[#allocation5 + $0xfd0] sm:$0xff]
    %v666 = vld [vmem:[#allocation5 + $0xfd8] sm:$0xff]
    %v667 = vld [vmem:[#allocation5 + $0xfe0] sm:$0xff]
    %v668 = vld [vmem:[#allocation5 + $0xfe8] sm:$0xff]
    %v669 = vld [vmem:[#allocation5 + $0xff0] sm:$0xff]
    %v670 = vld [vmem:[#allocation5 + $0xff8] sm:$0xff]
    %v671 = vld [vmem:[#allocation7] sm:$0xff]
    %v673 = vlaneseq
    %v674 = vshrl.u32 %v673, 7
    %v675 = vsub.s32 0, %v674
    %v676 = vrot.slane %v671, %v675
    %v677 = vlaneseq
    %v678 = vshrl.u32 %v677, 7
    %v679 = vsub.s32 1, %v678
    %v680 = vrot.slane %v671, %v679
    %v681 = vlaneseq
    %v682 = vshrl.u32 %v681, 7
    %v683 = vsub.s32 2, %v682
    %v684 = vrot.slane %v671, %v683
    %v685 = vlaneseq
    %v686 = vshrl.u32 %v685, 7
    %v687 = vsub.s32 3, %v686
    %v688 = vrot.slane %v671, %v687
    %v689 = vlaneseq
    %v690 = vshrl.u32 %v689, 7
    %v691 = vsub.s32 4, %v690
    %v692 = vrot.slane %v671, %v691
    %v693 = vlaneseq
    %v694 = vshrl.u32 %v693, 7
    %v695 = vsub.s32 5, %v694
    %v696 = vrot.slane %v671, %v695
    %v697 = vlaneseq
    %v698 = vshrl.u32 %v697, 7
    %v699 = vsub.s32 6, %v698
    %v700 = vrot.slane %v671, %v699
    %v701 = vlaneseq
    %v702 = vshrl.u32 %v701, 7
    %v703 = vsub.s32 7, %v702
    %v704 = vrot.slane %v671, %v703
    %v1225 = vunpack.c.l.b16 %v159
    %v1226 = vunpack.c.h.b16 %v159
    %v1227 = vunpack.c.l.b16 %v160
    %v1228 = vunpack.c.h.b16 %v160
    %v1229 = vunpack.c.l.b16 %v161
    %v1230 = vunpack.c.h.b16 %v161
    %v1231 = vunpack.c.l.b16 %v162
    %v1232 = vunpack.c.h.b16 %v162
    %v1233 = vunpack.c.l.b16 %v163
    %v1234 = vunpack.c.h.b16 %v163
    %v1235 = vunpack.c.l.b16 %v164
    %v1236 = vunpack.c.h.b16 %v164
    %v1237 = vunpack.c.l.b16 %v165
    %v1238 = vunpack.c.h.b16 %v165
    %v1239 = vunpack.c.l.b16 %v166
    %v1240 = vunpack.c.h.b16 %v166
    %v1241 = vunpack.c.l.b16 %v167
    %v1242 = vunpack.c.h.b16 %v167
    %v1243 = vunpack.c.l.b16 %v168
    %v1244 = vunpack.c.h.b16 %v168
    %v1245 = vunpack.c.l.b16 %v169
    %v1246 = vunpack.c.h.b16 %v169
    %v1247 = vunpack.c.l.b16 %v170
    %v1248 = vunpack.c.h.b16 %v170
    %v1249 = vunpack.c.l.b16 %v171
    %v1250 = vunpack.c.h.b16 %v171
    %v1251 = vunpack.c.l.b16 %v172
    %v1252 = vunpack.c.h.b16 %v172
    %v1253 = vunpack.c.l.b16 %v173
    %v1254 = vunpack.c.h.b16 %v173
    %v1255 = vunpack.c.l.b16 %v174
    %v1256 = vunpack.c.h.b16 %v174
    %v1257 = vunpack.c.l.b16 %v175
    %v1258 = vunpack.c.h.b16 %v175
    %v1259 = vunpack.c.l.b16 %v176
    %v1260 = vunpack.c.h.b16 %v176
    %v1261 = vunpack.c.l.b16 %v177
    %v1262 = vunpack.c.h.b16 %v177
    %v1263 = vunpack.c.l.b16 %v178
    %v1264 = vunpack.c.h.b16 %v178
    %v1265 = vunpack.c.l.b16 %v179
    %v1266 = vunpack.c.h.b16 %v179
    %v1267 = vunpack.c.l.b16 %v180
    %v1268 = vunpack.c.h.b16 %v180
    %v1269 = vunpack.c.l.b16 %v181
    %v1270 = vunpack.c.h.b16 %v181
    %v1271 = vunpack.c.l.b16 %v182
    %v1272 = vunpack.c.h.b16 %v182
    %v1273 = vunpack.c.l.b16 %v183
    %v1274 = vunpack.c.h.b16 %v183
    %v1275 = vunpack.c.l.b16 %v184
    %v1276 = vunpack.c.h.b16 %v184
    %v1277 = vunpack.c.l.b16 %v185
    %v1278 = vunpack.c.h.b16 %v185
    %v1279 = vunpack.c.l.b16 %v186
    %v1280 = vunpack.c.h.b16 %v186
    %v1281 = vunpack.c.l.b16 %v187
    %v1282 = vunpack.c.h.b16 %v187
    %v1283 = vunpack.c.l.b16 %v188
    %v1284 = vunpack.c.h.b16 %v188
    %v1285 = vunpack.c.l.b16 %v189
    %v1286 = vunpack.c.h.b16 %v189
    %v1287 = vunpack.c.l.b16 %v190
    %v1288 = vunpack.c.h.b16 %v190
    %v1289 = vunpack.c.l.b16 %v191
    %v1290 = vunpack.c.h.b16 %v191
    %v1291 = vunpack.c.l.b16 %v192
    %v1292 = vunpack.c.h.b16 %v192
    %v1293 = vunpack.c.l.b16 %v193
    %v1294 = vunpack.c.h.b16 %v193
    %v1295 = vunpack.c.l.b16 %v194
    %v1296 = vunpack.c.h.b16 %v194
    %v1297 = vunpack.c.l.b16 %v195
    %v1298 = vunpack.c.h.b16 %v195
    %v1299 = vunpack.c.l.b16 %v196
    %v1300 = vunpack.c.h.b16 %v196
    %v1301 = vunpack.c.l.b16 %v197
    %v1302 = vunpack.c.h.b16 %v197
    %v1303 = vunpack.c.l.b16 %v198
    %v1304 = vunpack.c.h.b16 %v198
    %v1305 = vunpack.c.l.b16 %v199
    %v1306 = vunpack.c.h.b16 %v199
    %v1307 = vunpack.c.l.b16 %v200
    %v1308 = vunpack.c.h.b16 %v200
    %v1309 = vunpack.c.l.b16 %v201
    %v1310 = vunpack.c.h.b16 %v201
    %v1311 = vunpack.c.l.b16 %v202
    %v1312 = vunpack.c.h.b16 %v202
    %v1313 = vunpack.c.l.b16 %v203
    %v1314 = vunpack.c.h.b16 %v203
    %v1315 = vunpack.c.l.b16 %v204
    %v1316 = vunpack.c.h.b16 %v204
    %v1317 = vunpack.c.l.b16 %v205
    %v1318 = vunpack.c.h.b16 %v205
    %v1319 = vunpack.c.l.b16 %v206
    %v1320 = vunpack.c.h.b16 %v206
    %v1321 = vunpack.c.l.b16 %v207
    %v1322 = vunpack.c.h.b16 %v207
    %v1323 = vunpack.c.l.b16 %v208
    %v1324 = vunpack.c.h.b16 %v208
    %v1325 = vunpack.c.l.b16 %v209
    %v1326 = vunpack.c.h.b16 %v209
    %v1327 = vunpack.c.l.b16 %v210
    %v1328 = vunpack.c.h.b16 %v210
    %v1329 = vunpack.c.l.b16 %v211
    %v1330 = vunpack.c.h.b16 %v211
    %v1331 = vunpack.c.l.b16 %v212
    %v1332 = vunpack.c.h.b16 %v212
    %v1333 = vunpack.c.l.b16 %v213
    %v1334 = vunpack.c.h.b16 %v213
    %v1335 = vunpack.c.l.b16 %v214
    %v1336 = vunpack.c.h.b16 %v214
    %v1337 = vunpack.c.l.b16 %v215
    %v1338 = vunpack.c.h.b16 %v215
    %v1339 = vunpack.c.l.b16 %v216
    %v1340 = vunpack.c.h.b16 %v216
    %v1341 = vunpack.c.l.b16 %v217
    %v1342 = vunpack.c.h.b16 %v217
    %v1343 = vunpack.c.l.b16 %v218
    %v1344 = vunpack.c.h.b16 %v218
    %v1345 = vunpack.c.l.b16 %v219
    %v1346 = vunpack.c.h.b16 %v219
    %v1347 = vunpack.c.l.b16 %v220
    %v1348 = vunpack.c.h.b16 %v220
    %v1349 = vunpack.c.l.b16 %v221
    %v1350 = vunpack.c.h.b16 %v221
    %v1351 = vunpack.c.l.b16 %v222
    %v1352 = vunpack.c.h.b16 %v222
    %v1353 = vunpack.c.l.b16 %v223
    %v1354 = vunpack.c.h.b16 %v223
    %v1355 = vunpack.c.l.b16 %v224
    %v1356 = vunpack.c.h.b16 %v224
    %v1357 = vunpack.c.l.b16 %v225
    %v1358 = vunpack.c.h.b16 %v225
    %v1359 = vunpack.c.l.b16 %v226
    %v1360 = vunpack.c.h.b16 %v226
    %v1361 = vunpack.c.l.b16 %v227
    %v1362 = vunpack.c.h.b16 %v227
    %v1363 = vunpack.c.l.b16 %v228
    %v1364 = vunpack.c.h.b16 %v228
    %v1365 = vunpack.c.l.b16 %v229
    %v1366 = vunpack.c.h.b16 %v229
    %v1367 = vunpack.c.l.b16 %v230
    %v1368 = vunpack.c.h.b16 %v230
    %v1369 = vunpack.c.l.b16 %v231
    %v1370 = vunpack.c.h.b16 %v231
    %v1371 = vunpack.c.l.b16 %v232
    %v1372 = vunpack.c.h.b16 %v232
    %v1373 = vunpack.c.l.b16 %v233
    %v1374 = vunpack.c.h.b16 %v233
    %v1375 = vunpack.c.l.b16 %v234
    %v1376 = vunpack.c.h.b16 %v234
    %v1377 = vunpack.c.l.b16 %v235
    %v1378 = vunpack.c.h.b16 %v235
    %v1379 = vunpack.c.l.b16 %v236
    %v1380 = vunpack.c.h.b16 %v236
    %v1381 = vunpack.c.l.b16 %v237
    %v1382 = vunpack.c.h.b16 %v237
    %v1383 = vunpack.c.l.b16 %v238
    %v1384 = vunpack.c.h.b16 %v238
    %v1385 = vunpack.c.l.b16 %v239
    %v1386 = vunpack.c.h.b16 %v239
    %v1387 = vunpack.c.l.b16 %v240
    %v1388 = vunpack.c.h.b16 %v240
    %v1389 = vunpack.c.l.b16 %v241
    %v1390 = vunpack.c.h.b16 %v241
    %v1391 = vunpack.c.l.b16 %v242
    %v1392 = vunpack.c.h.b16 %v242
    %v1393 = vunpack.c.l.b16 %v243
    %v1394 = vunpack.c.h.b16 %v243
    %v1395 = vunpack.c.l.b16 %v244
    %v1396 = vunpack.c.h.b16 %v244
    %v1397 = vunpack.c.l.b16 %v245
    %v1398 = vunpack.c.h.b16 %v245
    %v1399 = vunpack.c.l.b16 %v246
    %v1400 = vunpack.c.h.b16 %v246
    %v1401 = vunpack.c.l.b16 %v247
    %v1402 = vunpack.c.h.b16 %v247
    %v1403 = vunpack.c.l.b16 %v248
    %v1404 = vunpack.c.h.b16 %v248
    %v1405 = vunpack.c.l.b16 %v249
    %v1406 = vunpack.c.h.b16 %v249
    %v1407 = vunpack.c.l.b16 %v250
    %v1408 = vunpack.c.h.b16 %v250
    %v1409 = vunpack.c.l.b16 %v251
    %v1410 = vunpack.c.h.b16 %v251
    %v1411 = vunpack.c.l.b16 %v252
    %v1412 = vunpack.c.h.b16 %v252
    %v1413 = vunpack.c.l.b16 %v253
    %v1414 = vunpack.c.h.b16 %v253
    %v1415 = vunpack.c.l.b16 %v254
    %v1416 = vunpack.c.h.b16 %v254
    %v1417 = vunpack.c.l.b16 %v255
    %v1418 = vunpack.c.h.b16 %v255
    %v1419 = vunpack.c.l.b16 %v256
    %v1420 = vunpack.c.h.b16 %v256
    %v1421 = vunpack.c.l.b16 %v257
    %v1422 = vunpack.c.h.b16 %v257
    %v1423 = vunpack.c.l.b16 %v258
    %v1424 = vunpack.c.h.b16 %v258
    %v1425 = vunpack.c.l.b16 %v259
    %v1426 = vunpack.c.h.b16 %v259
    %v1427 = vunpack.c.l.b16 %v260
    %v1428 = vunpack.c.h.b16 %v260
    %v1429 = vunpack.c.l.b16 %v261
    %v1430 = vunpack.c.h.b16 %v261
    %v1431 = vunpack.c.l.b16 %v262
    %v1432 = vunpack.c.h.b16 %v262
    %v1433 = vunpack.c.l.b16 %v263
    %v1434 = vunpack.c.h.b16 %v263
    %v1435 = vunpack.c.l.b16 %v264
    %v1436 = vunpack.c.h.b16 %v264
    %v1437 = vunpack.c.l.b16 %v265
    %v1438 = vunpack.c.h.b16 %v265
    %v1439 = vunpack.c.l.b16 %v266
    %v1440 = vunpack.c.h.b16 %v266
    %v1441 = vunpack.c.l.b16 %v267
    %v1442 = vunpack.c.h.b16 %v267
    %v1443 = vunpack.c.l.b16 %v268
    %v1444 = vunpack.c.h.b16 %v268
    %v1445 = vunpack.c.l.b16 %v269
    %v1446 = vunpack.c.h.b16 %v269
    %v1447 = vunpack.c.l.b16 %v270
    %v1448 = vunpack.c.h.b16 %v270
    %v1449 = vunpack.c.l.b16 %v271
    %v1450 = vunpack.c.h.b16 %v271
    %v1451 = vunpack.c.l.b16 %v272
    %v1452 = vunpack.c.h.b16 %v272
    %v1453 = vunpack.c.l.b16 %v273
    %v1454 = vunpack.c.h.b16 %v273
    %v1455 = vunpack.c.l.b16 %v274
    %v1456 = vunpack.c.h.b16 %v274
    %v1457 = vunpack.c.l.b16 %v275
    %v1458 = vunpack.c.h.b16 %v275
    %v1459 = vunpack.c.l.b16 %v276
    %v1460 = vunpack.c.h.b16 %v276
    %v1461 = vunpack.c.l.b16 %v277
    %v1462 = vunpack.c.h.b16 %v277
    %v1463 = vunpack.c.l.b16 %v278
    %v1464 = vunpack.c.h.b16 %v278
    %v1465 = vunpack.c.l.b16 %v279
    %v1466 = vunpack.c.h.b16 %v279
    %v1467 = vunpack.c.l.b16 %v280
    %v1468 = vunpack.c.h.b16 %v280
    %v1469 = vunpack.c.l.b16 %v281
    %v1470 = vunpack.c.h.b16 %v281
    %v1471 = vunpack.c.l.b16 %v282
    %v1472 = vunpack.c.h.b16 %v282
    %v1473 = vunpack.c.l.b16 %v283
    %v1474 = vunpack.c.h.b16 %v283
    %v1475 = vunpack.c.l.b16 %v284
    %v1476 = vunpack.c.h.b16 %v284
    %v1477 = vunpack.c.l.b16 %v285
    %v1478 = vunpack.c.h.b16 %v285
    %v1479 = vunpack.c.l.b16 %v286
    %v1480 = vunpack.c.h.b16 %v286
    %v1481 = vunpack.c.l.b16 %v287
    %v1482 = vunpack.c.h.b16 %v287
    %v1483 = vunpack.c.l.b16 %v288
    %v1484 = vunpack.c.h.b16 %v288
    %v1485 = vunpack.c.l.b16 %v289
    %v1486 = vunpack.c.h.b16 %v289
    %v1487 = vunpack.c.l.b16 %v290
    %v1488 = vunpack.c.h.b16 %v290
    %v1489 = vunpack.c.l.b16 %v291
    %v1490 = vunpack.c.h.b16 %v291
    %v1491 = vunpack.c.l.b16 %v292
    %v1492 = vunpack.c.h.b16 %v292
    %v1493 = vunpack.c.l.b16 %v293
    %v1494 = vunpack.c.h.b16 %v293
    %v1495 = vunpack.c.l.b16 %v294
    %v1496 = vunpack.c.h.b16 %v294
    %v1497 = vunpack.c.l.b16 %v295
    %v1498 = vunpack.c.h.b16 %v295
    %v1499 = vunpack.c.l.b16 %v296
    %v1500 = vunpack.c.h.b16 %v296
    %v1501 = vunpack.c.l.b16 %v297
    %v1502 = vunpack.c.h.b16 %v297
    %v1503 = vunpack.c.l.b16 %v298
    %v1504 = vunpack.c.h.b16 %v298
    %v1505 = vunpack.c.l.b16 %v299
    %v1506 = vunpack.c.h.b16 %v299
    %v1507 = vunpack.c.l.b16 %v300
    %v1508 = vunpack.c.h.b16 %v300
    %v1509 = vunpack.c.l.b16 %v301
    %v1510 = vunpack.c.h.b16 %v301
    %v1511 = vunpack.c.l.b16 %v302
    %v1512 = vunpack.c.h.b16 %v302
    %v1513 = vunpack.c.l.b16 %v303
    %v1514 = vunpack.c.h.b16 %v303
    %v1515 = vunpack.c.l.b16 %v304
    %v1516 = vunpack.c.h.b16 %v304
    %v1517 = vunpack.c.l.b16 %v305
    %v1518 = vunpack.c.h.b16 %v305
    %v1519 = vunpack.c.l.b16 %v306
    %v1520 = vunpack.c.h.b16 %v306
    %v1521 = vunpack.c.l.b16 %v307
    %v1522 = vunpack.c.h.b16 %v307
    %v1523 = vunpack.c.l.b16 %v308
    %v1524 = vunpack.c.h.b16 %v308
    %v1525 = vunpack.c.l.b16 %v309
    %v1526 = vunpack.c.h.b16 %v309
    %v1527 = vunpack.c.l.b16 %v310
    %v1528 = vunpack.c.h.b16 %v310
    %v1529 = vunpack.c.l.b16 %v311
    %v1530 = vunpack.c.h.b16 %v311
    %v1531 = vunpack.c.l.b16 %v312
    %v1532 = vunpack.c.h.b16 %v312
    %v1533 = vunpack.c.l.b16 %v313
    %v1534 = vunpack.c.h.b16 %v313
    %v1535 = vunpack.c.l.b16 %v314
    %v1536 = vunpack.c.h.b16 %v314
    %v1537 = vunpack.c.l.b16 %v315
    %v1538 = vunpack.c.h.b16 %v315
    %v1539 = vunpack.c.l.b16 %v316
    %v1540 = vunpack.c.h.b16 %v316
    %v1541 = vunpack.c.l.b16 %v317
    %v1542 = vunpack.c.h.b16 %v317
    %v1543 = vunpack.c.l.b16 %v318
    %v1544 = vunpack.c.h.b16 %v318
    %v1545 = vunpack.c.l.b16 %v319
    %v1546 = vunpack.c.h.b16 %v319
    %v1547 = vunpack.c.l.b16 %v320
    %v1548 = vunpack.c.h.b16 %v320
    %v1549 = vunpack.c.l.b16 %v321
    %v1550 = vunpack.c.h.b16 %v321
    %v1551 = vunpack.c.l.b16 %v322
    %v1552 = vunpack.c.h.b16 %v322
    %v1553 = vunpack.c.l.b16 %v323
    %v1554 = vunpack.c.h.b16 %v323
    %v1555 = vunpack.c.l.b16 %v324
    %v1556 = vunpack.c.h.b16 %v324
    %v1557 = vunpack.c.l.b16 %v325
    %v1558 = vunpack.c.h.b16 %v325
    %v1559 = vunpack.c.l.b16 %v326
    %v1560 = vunpack.c.h.b16 %v326
    %v1561 = vunpack.c.l.b16 %v327
    %v1562 = vunpack.c.h.b16 %v327
    %v1563 = vunpack.c.l.b16 %v328
    %v1564 = vunpack.c.h.b16 %v328
    %v1565 = vunpack.c.l.b16 %v329
    %v1566 = vunpack.c.h.b16 %v329
    %v1567 = vunpack.c.l.b16 %v330
    %v1568 = vunpack.c.h.b16 %v330
    %v1569 = vunpack.c.l.b16 %v331
    %v1570 = vunpack.c.h.b16 %v331
    %v1571 = vunpack.c.l.b16 %v332
    %v1572 = vunpack.c.h.b16 %v332
    %v1573 = vunpack.c.l.b16 %v333
    %v1574 = vunpack.c.h.b16 %v333
    %v1575 = vunpack.c.l.b16 %v334
    %v1576 = vunpack.c.h.b16 %v334
    %v1577 = vunpack.c.l.b16 %v335
    %v1578 = vunpack.c.h.b16 %v335
    %v1579 = vunpack.c.l.b16 %v336
    %v1580 = vunpack.c.h.b16 %v336
    %v1581 = vunpack.c.l.b16 %v337
    %v1582 = vunpack.c.h.b16 %v337
    %v1583 = vunpack.c.l.b16 %v338
    %v1584 = vunpack.c.h.b16 %v338
    %v1585 = vunpack.c.l.b16 %v339
    %v1586 = vunpack.c.h.b16 %v339
    %v1587 = vunpack.c.l.b16 %v340
    %v1588 = vunpack.c.h.b16 %v340
    %v1589 = vunpack.c.l.b16 %v341
    %v1590 = vunpack.c.h.b16 %v341
    %v1591 = vunpack.c.l.b16 %v342
    %v1592 = vunpack.c.h.b16 %v342
    %v1593 = vunpack.c.l.b16 %v343
    %v1594 = vunpack.c.h.b16 %v343
    %v1595 = vunpack.c.l.b16 %v344
    %v1596 = vunpack.c.h.b16 %v344
    %v1597 = vunpack.c.l.b16 %v345
    %v1598 = vunpack.c.h.b16 %v345
    %v1599 = vunpack.c.l.b16 %v346
    %v1600 = vunpack.c.h.b16 %v346
    %v1601 = vunpack.c.l.b16 %v347
    %v1602 = vunpack.c.h.b16 %v347
    %v1603 = vunpack.c.l.b16 %v348
    %v1604 = vunpack.c.h.b16 %v348
    %v1605 = vunpack.c.l.b16 %v349
    %v1606 = vunpack.c.h.b16 %v349
    %v1607 = vunpack.c.l.b16 %v350
    %v1608 = vunpack.c.h.b16 %v350
    %v1609 = vunpack.c.l.b16 %v351
    %v1610 = vunpack.c.h.b16 %v351
    %v1611 = vunpack.c.l.b16 %v352
    %v1612 = vunpack.c.h.b16 %v352
    %v1613 = vunpack.c.l.b16 %v353
    %v1614 = vunpack.c.h.b16 %v353
    %v1615 = vunpack.c.l.b16 %v354
    %v1616 = vunpack.c.h.b16 %v354
    %v1617 = vunpack.c.l.b16 %v355
    %v1618 = vunpack.c.h.b16 %v355
    %v1619 = vunpack.c.l.b16 %v356
    %v1620 = vunpack.c.h.b16 %v356
    %v1621 = vunpack.c.l.b16 %v357
    %v1622 = vunpack.c.h.b16 %v357
    %v1623 = vunpack.c.l.b16 %v358
    %v1624 = vunpack.c.h.b16 %v358
    %v1625 = vunpack.c.l.b16 %v359
    %v1626 = vunpack.c.h.b16 %v359
    %v1627 = vunpack.c.l.b16 %v360
    %v1628 = vunpack.c.h.b16 %v360
    %v1629 = vunpack.c.l.b16 %v361
    %v1630 = vunpack.c.h.b16 %v361
    %v1631 = vunpack.c.l.b16 %v362
    %v1632 = vunpack.c.h.b16 %v362
    %v1633 = vunpack.c.l.b16 %v363
    %v1634 = vunpack.c.h.b16 %v363
    %v1635 = vunpack.c.l.b16 %v364
    %v1636 = vunpack.c.h.b16 %v364
    %v1637 = vunpack.c.l.b16 %v365
    %v1638 = vunpack.c.h.b16 %v365
    %v1639 = vunpack.c.l.b16 %v366
    %v1640 = vunpack.c.h.b16 %v366
    %v1641 = vunpack.c.l.b16 %v367
    %v1642 = vunpack.c.h.b16 %v367
    %v1643 = vunpack.c.l.b16 %v368
    %v1644 = vunpack.c.h.b16 %v368
    %v1645 = vunpack.c.l.b16 %v369
    %v1646 = vunpack.c.h.b16 %v369
    %v1647 = vunpack.c.l.b16 %v370
    %v1648 = vunpack.c.h.b16 %v370
    %v1649 = vunpack.c.l.b16 %v371
    %v1650 = vunpack.c.h.b16 %v371
    %v1651 = vunpack.c.l.b16 %v372
    %v1652 = vunpack.c.h.b16 %v372
    %v1653 = vunpack.c.l.b16 %v373
    %v1654 = vunpack.c.h.b16 %v373
    %v1655 = vunpack.c.l.b16 %v374
    %v1656 = vunpack.c.h.b16 %v374
    %v1657 = vunpack.c.l.b16 %v375
    %v1658 = vunpack.c.h.b16 %v375
    %v1659 = vunpack.c.l.b16 %v376
    %v1660 = vunpack.c.h.b16 %v376
    %v1661 = vunpack.c.l.b16 %v377
    %v1662 = vunpack.c.h.b16 %v377
    %v1663 = vunpack.c.l.b16 %v378
    %v1664 = vunpack.c.h.b16 %v378
    %v1665 = vunpack.c.l.b16 %v379
    %v1666 = vunpack.c.h.b16 %v379
    %v1667 = vunpack.c.l.b16 %v380
    %v1668 = vunpack.c.h.b16 %v380
    %v1669 = vunpack.c.l.b16 %v381
    %v1670 = vunpack.c.h.b16 %v381
    %v1671 = vunpack.c.l.b16 %v382
    %v1672 = vunpack.c.h.b16 %v382
    %v1673 = vunpack.c.l.b16 %v383
    %v1674 = vunpack.c.h.b16 %v383
    %v1675 = vunpack.c.l.b16 %v384
    %v1676 = vunpack.c.h.b16 %v384
    %v1677 = vunpack.c.l.b16 %v385
    %v1678 = vunpack.c.h.b16 %v385
    %v1679 = vunpack.c.l.b16 %v386
    %v1680 = vunpack.c.h.b16 %v386
    %v1681 = vunpack.c.l.b16 %v387
    %v1682 = vunpack.c.h.b16 %v387
    %v1683 = vunpack.c.l.b16 %v388
    %v1684 = vunpack.c.h.b16 %v388
    %v1685 = vunpack.c.l.b16 %v389
    %v1686 = vunpack.c.h.b16 %v389
    %v1687 = vunpack.c.l.b16 %v390
    %v1688 = vunpack.c.h.b16 %v390
    %v1689 = vunpack.c.l.b16 %v391
    %v1690 = vunpack.c.h.b16 %v391
    %v1691 = vunpack.c.l.b16 %v392
    %v1692 = vunpack.c.h.b16 %v392
    %v1693 = vunpack.c.l.b16 %v393
    %v1694 = vunpack.c.h.b16 %v393
    %v1695 = vunpack.c.l.b16 %v394
    %v1696 = vunpack.c.h.b16 %v394
    %v1697 = vunpack.c.l.b16 %v395
    %v1698 = vunpack.c.h.b16 %v395
    %v1699 = vunpack.c.l.b16 %v396
    %v1700 = vunpack.c.h.b16 %v396
    %v1701 = vunpack.c.l.b16 %v397
    %v1702 = vunpack.c.h.b16 %v397
    %v1703 = vunpack.c.l.b16 %v398
    %v1704 = vunpack.c.h.b16 %v398
    %v1705 = vunpack.c.l.b16 %v399
    %v1706 = vunpack.c.h.b16 %v399
    %v1707 = vunpack.c.l.b16 %v400
    %v1708 = vunpack.c.h.b16 %v400
    %v1709 = vunpack.c.l.b16 %v401
    %v1710 = vunpack.c.h.b16 %v401
    %v1711 = vunpack.c.l.b16 %v402
    %v1712 = vunpack.c.h.b16 %v402
    %v1713 = vunpack.c.l.b16 %v403
    %v1714 = vunpack.c.h.b16 %v403
    %v1715 = vunpack.c.l.b16 %v404
    %v1716 = vunpack.c.h.b16 %v404
    %v1717 = vunpack.c.l.b16 %v405
    %v1718 = vunpack.c.h.b16 %v405
    %v1719 = vunpack.c.l.b16 %v406
    %v1720 = vunpack.c.h.b16 %v406
    %v1721 = vunpack.c.l.b16 %v407
    %v1722 = vunpack.c.h.b16 %v407
    %v1723 = vunpack.c.l.b16 %v408
    %v1724 = vunpack.c.h.b16 %v408
    %v1725 = vunpack.c.l.b16 %v409
    %v1726 = vunpack.c.h.b16 %v409
    %v1727 = vunpack.c.l.b16 %v410
    %v1728 = vunpack.c.h.b16 %v410
    %v1729 = vunpack.c.l.b16 %v411
    %v1730 = vunpack.c.h.b16 %v411
    %v1731 = vunpack.c.l.b16 %v412
    %v1732 = vunpack.c.h.b16 %v412
    %v1733 = vunpack.c.l.b16 %v413
    %v1734 = vunpack.c.h.b16 %v413
    %v1735 = vunpack.c.l.b16 %v414
    %v1736 = vunpack.c.h.b16 %v414
    %v1737 = vunpack.c.l.b16 %v415
    %v1738 = vunpack.c.h.b16 %v415
    %v1739 = vunpack.c.l.b16 %v416
    %v1740 = vunpack.c.h.b16 %v416
    %v1741 = vunpack.c.l.b16 %v417
    %v1742 = vunpack.c.h.b16 %v417
    %v1743 = vunpack.c.l.b16 %v418
    %v1744 = vunpack.c.h.b16 %v418
    %v1745 = vunpack.c.l.b16 %v419
    %v1746 = vunpack.c.h.b16 %v419
    %v1747 = vunpack.c.l.b16 %v420
    %v1748 = vunpack.c.h.b16 %v420
    %v1749 = vunpack.c.l.b16 %v421
    %v1750 = vunpack.c.h.b16 %v421
    %v1751 = vunpack.c.l.b16 %v422
    %v1752 = vunpack.c.h.b16 %v422
    %v1753 = vunpack.c.l.b16 %v423
    %v1754 = vunpack.c.h.b16 %v423
    %v1755 = vunpack.c.l.b16 %v424
    %v1756 = vunpack.c.h.b16 %v424
    %v1757 = vunpack.c.l.b16 %v425
    %v1758 = vunpack.c.h.b16 %v425
    %v1759 = vunpack.c.l.b16 %v426
    %v1760 = vunpack.c.h.b16 %v426
    %v1761 = vunpack.c.l.b16 %v427
    %v1762 = vunpack.c.h.b16 %v427
    %v1763 = vunpack.c.l.b16 %v428
    %v1764 = vunpack.c.h.b16 %v428
    %v1765 = vunpack.c.l.b16 %v429
    %v1766 = vunpack.c.h.b16 %v429
    %v1767 = vunpack.c.l.b16 %v430
    %v1768 = vunpack.c.h.b16 %v430
    %v1769 = vunpack.c.l.b16 %v431
    %v1770 = vunpack.c.h.b16 %v431
    %v1771 = vunpack.c.l.b16 %v432
    %v1772 = vunpack.c.h.b16 %v432
    %v1773 = vunpack.c.l.b16 %v433
    %v1774 = vunpack.c.h.b16 %v433
    %v1775 = vunpack.c.l.b16 %v434
    %v1776 = vunpack.c.h.b16 %v434
    %v1777 = vunpack.c.l.b16 %v435
    %v1778 = vunpack.c.h.b16 %v435
    %v1779 = vunpack.c.l.b16 %v436
    %v1780 = vunpack.c.h.b16 %v436
    %v1781 = vunpack.c.l.b16 %v437
    %v1782 = vunpack.c.h.b16 %v437
    %v1783 = vunpack.c.l.b16 %v438
    %v1784 = vunpack.c.h.b16 %v438
    %v1785 = vunpack.c.l.b16 %v439
    %v1786 = vunpack.c.h.b16 %v439
    %v1787 = vunpack.c.l.b16 %v440
    %v1788 = vunpack.c.h.b16 %v440
    %v1789 = vunpack.c.l.b16 %v441
    %v1790 = vunpack.c.h.b16 %v441
    %v1791 = vunpack.c.l.b16 %v442
    %v1792 = vunpack.c.h.b16 %v442
    %v1793 = vunpack.c.l.b16 %v443
    %v1794 = vunpack.c.h.b16 %v443
    %v1795 = vunpack.c.l.b16 %v444
    %v1796 = vunpack.c.h.b16 %v444
    %v1797 = vunpack.c.l.b16 %v445
    %v1798 = vunpack.c.h.b16 %v445
    %v1799 = vunpack.c.l.b16 %v446
    %v1800 = vunpack.c.h.b16 %v446
    %v1801 = vunpack.c.l.b16 %v447
    %v1802 = vunpack.c.h.b16 %v447
    %v1803 = vunpack.c.l.b16 %v448
    %v1804 = vunpack.c.h.b16 %v448
    %v1805 = vunpack.c.l.b16 %v449
    %v1806 = vunpack.c.h.b16 %v449
    %v1807 = vunpack.c.l.b16 %v450
    %v1808 = vunpack.c.h.b16 %v450
    %v1809 = vunpack.c.l.b16 %v451
    %v1810 = vunpack.c.h.b16 %v451
    %v1811 = vunpack.c.l.b16 %v452
    %v1812 = vunpack.c.h.b16 %v452
    %v1813 = vunpack.c.l.b16 %v453
    %v1814 = vunpack.c.h.b16 %v453
    %v1815 = vunpack.c.l.b16 %v454
    %v1816 = vunpack.c.h.b16 %v454
    %v1817 = vunpack.c.l.b16 %v455
    %v1818 = vunpack.c.h.b16 %v455
    %v1819 = vunpack.c.l.b16 %v456
    %v1820 = vunpack.c.h.b16 %v456
    %v1821 = vunpack.c.l.b16 %v457
    %v1822 = vunpack.c.h.b16 %v457
    %v1823 = vunpack.c.l.b16 %v458
    %v1824 = vunpack.c.h.b16 %v458
    %v1825 = vunpack.c.l.b16 %v459
    %v1826 = vunpack.c.h.b16 %v459
    %v1827 = vunpack.c.l.b16 %v460
    %v1828 = vunpack.c.h.b16 %v460
    %v1829 = vunpack.c.l.b16 %v461
    %v1830 = vunpack.c.h.b16 %v461
    %v1831 = vunpack.c.l.b16 %v462
    %v1832 = vunpack.c.h.b16 %v462
    %v1833 = vunpack.c.l.b16 %v463
    %v1834 = vunpack.c.h.b16 %v463
    %v1835 = vunpack.c.l.b16 %v464
    %v1836 = vunpack.c.h.b16 %v464
    %v1837 = vunpack.c.l.b16 %v465
    %v1838 = vunpack.c.h.b16 %v465
    %v1839 = vunpack.c.l.b16 %v466
    %v1840 = vunpack.c.h.b16 %v466
    %v1841 = vunpack.c.l.b16 %v467
    %v1842 = vunpack.c.h.b16 %v467
    %v1843 = vunpack.c.l.b16 %v468
    %v1844 = vunpack.c.h.b16 %v468
    %v1845 = vunpack.c.l.b16 %v469
    %v1846 = vunpack.c.h.b16 %v469
    %v1847 = vunpack.c.l.b16 %v470
    %v1848 = vunpack.c.h.b16 %v470
    %v1849 = vunpack.c.l.b16 %v471
    %v1850 = vunpack.c.h.b16 %v471
    %v1851 = vunpack.c.l.b16 %v472
    %v1852 = vunpack.c.h.b16 %v472
    %v1853 = vunpack.c.l.b16 %v473
    %v1854 = vunpack.c.h.b16 %v473
    %v1855 = vunpack.c.l.b16 %v474
    %v1856 = vunpack.c.h.b16 %v474
    %v1857 = vunpack.c.l.b16 %v475
    %v1858 = vunpack.c.h.b16 %v475
    %v1859 = vunpack.c.l.b16 %v476
    %v1860 = vunpack.c.h.b16 %v476
    %v1861 = vunpack.c.l.b16 %v477
    %v1862 = vunpack.c.h.b16 %v477
    %v1863 = vunpack.c.l.b16 %v478
    %v1864 = vunpack.c.h.b16 %v478
    %v1865 = vunpack.c.l.b16 %v479
    %v1866 = vunpack.c.h.b16 %v479
    %v1867 = vunpack.c.l.b16 %v480
    %v1868 = vunpack.c.h.b16 %v480
    %v1869 = vunpack.c.l.b16 %v481
    %v1870 = vunpack.c.h.b16 %v481
    %v1871 = vunpack.c.l.b16 %v482
    %v1872 = vunpack.c.h.b16 %v482
    %v1873 = vunpack.c.l.b16 %v483
    %v1874 = vunpack.c.h.b16 %v483
    %v1875 = vunpack.c.l.b16 %v484
    %v1876 = vunpack.c.h.b16 %v484
    %v1877 = vunpack.c.l.b16 %v485
    %v1878 = vunpack.c.h.b16 %v485
    %v1879 = vunpack.c.l.b16 %v486
    %v1880 = vunpack.c.h.b16 %v486
    %v1881 = vunpack.c.l.b16 %v487
    %v1882 = vunpack.c.h.b16 %v487
    %v1883 = vunpack.c.l.b16 %v488
    %v1884 = vunpack.c.h.b16 %v488
    %v1885 = vunpack.c.l.b16 %v489
    %v1886 = vunpack.c.h.b16 %v489
    %v1887 = vunpack.c.l.b16 %v490
    %v1888 = vunpack.c.h.b16 %v490
    %v1889 = vunpack.c.l.b16 %v491
    %v1890 = vunpack.c.h.b16 %v491
    %v1891 = vunpack.c.l.b16 %v492
    %v1892 = vunpack.c.h.b16 %v492
    %v1893 = vunpack.c.l.b16 %v493
    %v1894 = vunpack.c.h.b16 %v493
    %v1895 = vunpack.c.l.b16 %v494
    %v1896 = vunpack.c.h.b16 %v494
    %v1897 = vunpack.c.l.b16 %v495
    %v1898 = vunpack.c.h.b16 %v495
    %v1899 = vunpack.c.l.b16 %v496
    %v1900 = vunpack.c.h.b16 %v496
    %v1901 = vunpack.c.l.b16 %v497
    %v1902 = vunpack.c.h.b16 %v497
    %v1903 = vunpack.c.l.b16 %v498
    %v1904 = vunpack.c.h.b16 %v498
    %v1905 = vunpack.c.l.b16 %v499
    %v1906 = vunpack.c.h.b16 %v499
    %v1907 = vunpack.c.l.b16 %v500
    %v1908 = vunpack.c.h.b16 %v500
    %v1909 = vunpack.c.l.b16 %v501
    %v1910 = vunpack.c.h.b16 %v501
    %v1911 = vunpack.c.l.b16 %v502
    %v1912 = vunpack.c.h.b16 %v502
    %v1913 = vunpack.c.l.b16 %v503
    %v1914 = vunpack.c.h.b16 %v503
    %v1915 = vunpack.c.l.b16 %v504
    %v1916 = vunpack.c.h.b16 %v504
    %v1917 = vunpack.c.l.b16 %v505
    %v1918 = vunpack.c.h.b16 %v505
    %v1919 = vunpack.c.l.b16 %v506
    %v1920 = vunpack.c.h.b16 %v506
    %v1921 = vunpack.c.l.b16 %v507
    %v1922 = vunpack.c.h.b16 %v507
    %v1923 = vunpack.c.l.b16 %v508
    %v1924 = vunpack.c.h.b16 %v508
    %v1925 = vunpack.c.l.b16 %v509
    %v1926 = vunpack.c.h.b16 %v509
    %v1927 = vunpack.c.l.b16 %v510
    %v1928 = vunpack.c.h.b16 %v510
    %v1929 = vunpack.c.l.b16 %v511
    %v1930 = vunpack.c.h.b16 %v511
    %v1931 = vunpack.c.l.b16 %v512
    %v1932 = vunpack.c.h.b16 %v512
    %v1933 = vunpack.c.l.b16 %v513
    %v1934 = vunpack.c.h.b16 %v513
    %v1935 = vunpack.c.l.b16 %v514
    %v1936 = vunpack.c.h.b16 %v514
    %v1937 = vunpack.c.l.b16 %v515
    %v1938 = vunpack.c.h.b16 %v515
    %v1939 = vunpack.c.l.b16 %v516
    %v1940 = vunpack.c.h.b16 %v516
    %v1941 = vunpack.c.l.b16 %v517
    %v1942 = vunpack.c.h.b16 %v517
    %v1943 = vunpack.c.l.b16 %v518
    %v1944 = vunpack.c.h.b16 %v518
    %v1945 = vunpack.c.l.b16 %v519
    %v1946 = vunpack.c.h.b16 %v519
    %v1947 = vunpack.c.l.b16 %v520
    %v1948 = vunpack.c.h.b16 %v520
    %v1949 = vunpack.c.l.b16 %v521
    %v1950 = vunpack.c.h.b16 %v521
    %v1951 = vunpack.c.l.b16 %v522
    %v1952 = vunpack.c.h.b16 %v522
    %v1953 = vunpack.c.l.b16 %v523
    %v1954 = vunpack.c.h.b16 %v523
    %v1955 = vunpack.c.l.b16 %v524
    %v1956 = vunpack.c.h.b16 %v524
    %v1957 = vunpack.c.l.b16 %v525
    %v1958 = vunpack.c.h.b16 %v525
    %v1959 = vunpack.c.l.b16 %v526
    %v1960 = vunpack.c.h.b16 %v526
    %v1961 = vunpack.c.l.b16 %v527
    %v1962 = vunpack.c.h.b16 %v527
    %v1963 = vunpack.c.l.b16 %v528
    %v1964 = vunpack.c.h.b16 %v528
    %v1965 = vunpack.c.l.b16 %v529
    %v1966 = vunpack.c.h.b16 %v529
    %v1967 = vunpack.c.l.b16 %v530
    %v1968 = vunpack.c.h.b16 %v530
    %v1969 = vunpack.c.l.b16 %v531
    %v1970 = vunpack.c.h.b16 %v531
    %v1971 = vunpack.c.l.b16 %v532
    %v1972 = vunpack.c.h.b16 %v532
    %v1973 = vunpack.c.l.b16 %v533
    %v1974 = vunpack.c.h.b16 %v533
    %v1975 = vunpack.c.l.b16 %v534
    %v1976 = vunpack.c.h.b16 %v534
    %v1977 = vunpack.c.l.b16 %v535
    %v1978 = vunpack.c.h.b16 %v535
    %v1979 = vunpack.c.l.b16 %v536
    %v1980 = vunpack.c.h.b16 %v536
    %v1981 = vunpack.c.l.b16 %v537
    %v1982 = vunpack.c.h.b16 %v537
    %v1983 = vunpack.c.l.b16 %v538
    %v1984 = vunpack.c.h.b16 %v538
    %v1985 = vunpack.c.l.b16 %v539
    %v1986 = vunpack.c.h.b16 %v539
    %v1987 = vunpack.c.l.b16 %v540
    %v1988 = vunpack.c.h.b16 %v540
    %v1989 = vunpack.c.l.b16 %v541
    %v1990 = vunpack.c.h.b16 %v541
    %v1991 = vunpack.c.l.b16 %v542
    %v1992 = vunpack.c.h.b16 %v542
    %v1993 = vunpack.c.l.b16 %v543
    %v1994 = vunpack.c.h.b16 %v543
    %v1995 = vunpack.c.l.b16 %v544
    %v1996 = vunpack.c.h.b16 %v544
    %v1997 = vunpack.c.l.b16 %v545
    %v1998 = vunpack.c.h.b16 %v545
    %v1999 = vunpack.c.l.b16 %v546
    %v2000 = vunpack.c.h.b16 %v546
    %v2001 = vunpack.c.l.b16 %v547
    %v2002 = vunpack.c.h.b16 %v547
    %v2003 = vunpack.c.l.b16 %v548
    %v2004 = vunpack.c.h.b16 %v548
    %v2005 = vunpack.c.l.b16 %v549
    %v2006 = vunpack.c.h.b16 %v549
    %v2007 = vunpack.c.l.b16 %v550
    %v2008 = vunpack.c.h.b16 %v550
    %v2009 = vunpack.c.l.b16 %v551
    %v2010 = vunpack.c.h.b16 %v551
    %v2011 = vunpack.c.l.b16 %v552
    %v2012 = vunpack.c.h.b16 %v552
    %v2013 = vunpack.c.l.b16 %v553
    %v2014 = vunpack.c.h.b16 %v553
    %v2015 = vunpack.c.l.b16 %v554
    %v2016 = vunpack.c.h.b16 %v554
    %v2017 = vunpack.c.l.b16 %v555
    %v2018 = vunpack.c.h.b16 %v555
    %v2019 = vunpack.c.l.b16 %v556
    %v2020 = vunpack.c.h.b16 %v556
    %v2021 = vunpack.c.l.b16 %v557
    %v2022 = vunpack.c.h.b16 %v557
    %v2023 = vunpack.c.l.b16 %v558
    %v2024 = vunpack.c.h.b16 %v558
    %v2025 = vunpack.c.l.b16 %v559
    %v2026 = vunpack.c.h.b16 %v559
    %v2027 = vunpack.c.l.b16 %v560
    %v2028 = vunpack.c.h.b16 %v560
    %v2029 = vunpack.c.l.b16 %v561
    %v2030 = vunpack.c.h.b16 %v561
    %v2031 = vunpack.c.l.b16 %v562
    %v2032 = vunpack.c.h.b16 %v562
    %v2033 = vunpack.c.l.b16 %v563
    %v2034 = vunpack.c.h.b16 %v563
    %v2035 = vunpack.c.l.b16 %v564
    %v2036 = vunpack.c.h.b16 %v564
    %v2037 = vunpack.c.l.b16 %v565
    %v2038 = vunpack.c.h.b16 %v565
    %v2039 = vunpack.c.l.b16 %v566
    %v2040 = vunpack.c.h.b16 %v566
    %v2041 = vunpack.c.l.b16 %v567
    %v2042 = vunpack.c.h.b16 %v567
    %v2043 = vunpack.c.l.b16 %v568
    %v2044 = vunpack.c.h.b16 %v568
    %v2045 = vunpack.c.l.b16 %v569
    %v2046 = vunpack.c.h.b16 %v569
    %v2047 = vunpack.c.l.b16 %v570
    %v2048 = vunpack.c.h.b16 %v570
    %v2049 = vunpack.c.l.b16 %v571
    %v2050 = vunpack.c.h.b16 %v571
    %v2051 = vunpack.c.l.b16 %v572
    %v2052 = vunpack.c.h.b16 %v572
    %v2053 = vunpack.c.l.b16 %v573
    %v2054 = vunpack.c.h.b16 %v573
    %v2055 = vunpack.c.l.b16 %v574
    %v2056 = vunpack.c.h.b16 %v574
    %v2057 = vunpack.c.l.b16 %v575
    %v2058 = vunpack.c.h.b16 %v575
    %v2059 = vunpack.c.l.b16 %v576
    %v2060 = vunpack.c.h.b16 %v576
    %v2061 = vunpack.c.l.b16 %v577
    %v2062 = vunpack.c.h.b16 %v577
    %v2063 = vunpack.c.l.b16 %v578
    %v2064 = vunpack.c.h.b16 %v578
    %v2065 = vunpack.c.l.b16 %v579
    %v2066 = vunpack.c.h.b16 %v579
    %v2067 = vunpack.c.l.b16 %v580
    %v2068 = vunpack.c.h.b16 %v580
    %v2069 = vunpack.c.l.b16 %v581
    %v2070 = vunpack.c.h.b16 %v581
    %v2071 = vunpack.c.l.b16 %v582
    %v2072 = vunpack.c.h.b16 %v582
    %v2073 = vunpack.c.l.b16 %v583
    %v2074 = vunpack.c.h.b16 %v583
    %v2075 = vunpack.c.l.b16 %v584
    %v2076 = vunpack.c.h.b16 %v584
    %v2077 = vunpack.c.l.b16 %v585
    %v2078 = vunpack.c.h.b16 %v585
    %v2079 = vunpack.c.l.b16 %v586
    %v2080 = vunpack.c.h.b16 %v586
    %v2081 = vunpack.c.l.b16 %v587
    %v2082 = vunpack.c.h.b16 %v587
    %v2083 = vunpack.c.l.b16 %v588
    %v2084 = vunpack.c.h.b16 %v588
    %v2085 = vunpack.c.l.b16 %v589
    %v2086 = vunpack.c.h.b16 %v589
    %v2087 = vunpack.c.l.b16 %v590
    %v2088 = vunpack.c.h.b16 %v590
    %v2089 = vunpack.c.l.b16 %v591
    %v2090 = vunpack.c.h.b16 %v591
    %v2091 = vunpack.c.l.b16 %v592
    %v2092 = vunpack.c.h.b16 %v592
    %v2093 = vunpack.c.l.b16 %v593
    %v2094 = vunpack.c.h.b16 %v593
    %v2095 = vunpack.c.l.b16 %v594
    %v2096 = vunpack.c.h.b16 %v594
    %v2097 = vunpack.c.l.b16 %v595
    %v2098 = vunpack.c.h.b16 %v595
    %v2099 = vunpack.c.l.b16 %v596
    %v2100 = vunpack.c.h.b16 %v596
    %v2101 = vunpack.c.l.b16 %v597
    %v2102 = vunpack.c.h.b16 %v597
    %v2103 = vunpack.c.l.b16 %v598
    %v2104 = vunpack.c.h.b16 %v598
    %v2105 = vunpack.c.l.b16 %v599
    %v2106 = vunpack.c.h.b16 %v599
    %v2107 = vunpack.c.l.b16 %v600
    %v2108 = vunpack.c.h.b16 %v600
    %v2109 = vunpack.c.l.b16 %v601
    %v2110 = vunpack.c.h.b16 %v601
    %v2111 = vunpack.c.l.b16 %v602
    %v2112 = vunpack.c.h.b16 %v602
    %v2113 = vunpack.c.l.b16 %v603
    %v2114 = vunpack.c.h.b16 %v603
    %v2115 = vunpack.c.l.b16 %v604
    %v2116 = vunpack.c.h.b16 %v604
    %v2117 = vunpack.c.l.b16 %v605
    %v2118 = vunpack.c.h.b16 %v605
    %v2119 = vunpack.c.l.b16 %v606
    %v2120 = vunpack.c.h.b16 %v606
    %v2121 = vunpack.c.l.b16 %v607
    %v2122 = vunpack.c.h.b16 %v607
    %v2123 = vunpack.c.l.b16 %v608
    %v2124 = vunpack.c.h.b16 %v608
    %v2125 = vunpack.c.l.b16 %v609
    %v2126 = vunpack.c.h.b16 %v609
    %v2127 = vunpack.c.l.b16 %v610
    %v2128 = vunpack.c.h.b16 %v610
    %v2129 = vunpack.c.l.b16 %v611
    %v2130 = vunpack.c.h.b16 %v611
    %v2131 = vunpack.c.l.b16 %v612
    %v2132 = vunpack.c.h.b16 %v612
    %v2133 = vunpack.c.l.b16 %v613
    %v2134 = vunpack.c.h.b16 %v613
    %v2135 = vunpack.c.l.b16 %v614
    %v2136 = vunpack.c.h.b16 %v614
    %v2137 = vunpack.c.l.b16 %v615
    %v2138 = vunpack.c.h.b16 %v615
    %v2139 = vunpack.c.l.b16 %v616
    %v2140 = vunpack.c.h.b16 %v616
    %v2141 = vunpack.c.l.b16 %v617
    %v2142 = vunpack.c.h.b16 %v617
    %v2143 = vunpack.c.l.b16 %v618
    %v2144 = vunpack.c.h.b16 %v618
    %v2145 = vunpack.c.l.b16 %v619
    %v2146 = vunpack.c.h.b16 %v619
    %v2147 = vunpack.c.l.b16 %v620
    %v2148 = vunpack.c.h.b16 %v620
    %v2149 = vunpack.c.l.b16 %v621
    %v2150 = vunpack.c.h.b16 %v621
    %v2151 = vunpack.c.l.b16 %v622
    %v2152 = vunpack.c.h.b16 %v622
    %v2153 = vunpack.c.l.b16 %v623
    %v2154 = vunpack.c.h.b16 %v623
    %v2155 = vunpack.c.l.b16 %v624
    %v2156 = vunpack.c.h.b16 %v624
    %v2157 = vunpack.c.l.b16 %v625
    %v2158 = vunpack.c.h.b16 %v625
    %v2159 = vunpack.c.l.b16 %v626
    %v2160 = vunpack.c.h.b16 %v626
    %v2161 = vunpack.c.l.b16 %v627
    %v2162 = vunpack.c.h.b16 %v627
    %v2163 = vunpack.c.l.b16 %v628
    %v2164 = vunpack.c.h.b16 %v628
    %v2165 = vunpack.c.l.b16 %v629
    %v2166 = vunpack.c.h.b16 %v629
    %v2167 = vunpack.c.l.b16 %v630
    %v2168 = vunpack.c.h.b16 %v630
    %v2169 = vunpack.c.l.b16 %v631
    %v2170 = vunpack.c.h.b16 %v631
    %v2171 = vunpack.c.l.b16 %v632
    %v2172 = vunpack.c.h.b16 %v632
    %v2173 = vunpack.c.l.b16 %v633
    %v2174 = vunpack.c.h.b16 %v633
    %v2175 = vunpack.c.l.b16 %v634
    %v2176 = vunpack.c.h.b16 %v634
    %v2177 = vunpack.c.l.b16 %v635
    %v2178 = vunpack.c.h.b16 %v635
    %v2179 = vunpack.c.l.b16 %v636
    %v2180 = vunpack.c.h.b16 %v636
    %v2181 = vunpack.c.l.b16 %v637
    %v2182 = vunpack.c.h.b16 %v637
    %v2183 = vunpack.c.l.b16 %v638
    %v2184 = vunpack.c.h.b16 %v638
    %v2185 = vunpack.c.l.b16 %v639
    %v2186 = vunpack.c.h.b16 %v639
    %v2187 = vunpack.c.l.b16 %v640
    %v2188 = vunpack.c.h.b16 %v640
    %v2189 = vunpack.c.l.b16 %v641
    %v2190 = vunpack.c.h.b16 %v641
    %v2191 = vunpack.c.l.b16 %v642
    %v2192 = vunpack.c.h.b16 %v642
    %v2193 = vunpack.c.l.b16 %v643
    %v2194 = vunpack.c.h.b16 %v643
    %v2195 = vunpack.c.l.b16 %v644
    %v2196 = vunpack.c.h.b16 %v644
    %v2197 = vunpack.c.l.b16 %v645
    %v2198 = vunpack.c.h.b16 %v645
    %v2199 = vunpack.c.l.b16 %v646
    %v2200 = vunpack.c.h.b16 %v646
    %v2201 = vunpack.c.l.b16 %v647
    %v2202 = vunpack.c.h.b16 %v647
    %v2203 = vunpack.c.l.b16 %v648
    %v2204 = vunpack.c.h.b16 %v648
    %v2205 = vunpack.c.l.b16 %v649
    %v2206 = vunpack.c.h.b16 %v649
    %v2207 = vunpack.c.l.b16 %v650
    %v2208 = vunpack.c.h.b16 %v650
    %v2209 = vunpack.c.l.b16 %v651
    %v2210 = vunpack.c.h.b16 %v651
    %v2211 = vunpack.c.l.b16 %v652
    %v2212 = vunpack.c.h.b16 %v652
    %v2213 = vunpack.c.l.b16 %v653
    %v2214 = vunpack.c.h.b16 %v653
    %v2215 = vunpack.c.l.b16 %v654
    %v2216 = vunpack.c.h.b16 %v654
    %v2217 = vunpack.c.l.b16 %v655
    %v2218 = vunpack.c.h.b16 %v655
    %v2219 = vunpack.c.l.b16 %v656
    %v2220 = vunpack.c.h.b16 %v656
    %v2221 = vunpack.c.l.b16 %v657
    %v2222 = vunpack.c.h.b16 %v657
    %v2223 = vunpack.c.l.b16 %v658
    %v2224 = vunpack.c.h.b16 %v658
    %v2225 = vunpack.c.l.b16 %v659
    %v2226 = vunpack.c.h.b16 %v659
    %v2227 = vunpack.c.l.b16 %v660
    %v2228 = vunpack.c.h.b16 %v660
    %v2229 = vunpack.c.l.b16 %v661
    %v2230 = vunpack.c.h.b16 %v661
    %v2231 = vunpack.c.l.b16 %v662
    %v2232 = vunpack.c.h.b16 %v662
    %v2233 = vunpack.c.l.b16 %v663
    %v2234 = vunpack.c.h.b16 %v663
    %v2235 = vunpack.c.l.b16 %v664
    %v2236 = vunpack.c.h.b16 %v664
    %v2237 = vunpack.c.l.b16 %v665
    %v2238 = vunpack.c.h.b16 %v665
    %v2239 = vunpack.c.l.b16 %v666
    %v2240 = vunpack.c.h.b16 %v666
    %v2241 = vunpack.c.l.b16 %v667
    %v2242 = vunpack.c.h.b16 %v667
    %v2243 = vunpack.c.l.b16 %v668
    %v2244 = vunpack.c.h.b16 %v668
    %v2245 = vunpack.c.l.b16 %v669
    %v2246 = vunpack.c.h.b16 %v669
    %v2247 = vunpack.c.l.b16 %v670
    %v2248 = vunpack.c.h.b16 %v670
    %v2249 = vpack.c.b16 %v1233, %v1225
    %v2250 = vpack.c.b16 %v1234, %v1226
    %v2251 = vpack.c.b16 %v1235, %v1227
    %v2252 = vpack.c.b16 %v1236, %v1228
    %v2253 = vpack.c.b16 %v1237, %v1229
    %v2254 = vpack.c.b16 %v1238, %v1230
    %v2255 = vpack.c.b16 %v1239, %v1231
    %v2256 = vpack.c.b16 %v1240, %v1232
    %v2257 = vpack.c.b16 %v1249, %v1241
    %v2258 = vpack.c.b16 %v1250, %v1242
    %v2259 = vpack.c.b16 %v1251, %v1243
    %v2260 = vpack.c.b16 %v1252, %v1244
    %v2261 = vpack.c.b16 %v1253, %v1245
    %v2262 = vpack.c.b16 %v1254, %v1246
    %v2263 = vpack.c.b16 %v1255, %v1247
    %v2264 = vpack.c.b16 %v1256, %v1248
    %v2265 = vpack.c.b16 %v1265, %v1257
    %v2266 = vpack.c.b16 %v1266, %v1258
    %v2267 = vpack.c.b16 %v1267, %v1259
    %v2268 = vpack.c.b16 %v1268, %v1260
    %v2269 = vpack.c.b16 %v1269, %v1261
    %v2270 = vpack.c.b16 %v1270, %v1262
    %v2271 = vpack.c.b16 %v1271, %v1263
    %v2272 = vpack.c.b16 %v1272, %v1264
    %v2273 = vpack.c.b16 %v1281, %v1273
    %v2274 = vpack.c.b16 %v1282, %v1274
    %v2275 = vpack.c.b16 %v1283, %v1275
    %v2276 = vpack.c.b16 %v1284, %v1276
    %v2277 = vpack.c.b16 %v1285, %v1277
    %v2278 = vpack.c.b16 %v1286, %v1278
    %v2279 = vpack.c.b16 %v1287, %v1279
    %v2280 = vpack.c.b16 %v1288, %v1280
    %v2281 = vpack.c.b16 %v1297, %v1289
    %v2282 = vpack.c.b16 %v1298, %v1290
    %v2283 = vpack.c.b16 %v1299, %v1291
    %v2284 = vpack.c.b16 %v1300, %v1292
    %v2285 = vpack.c.b16 %v1301, %v1293
    %v2286 = vpack.c.b16 %v1302, %v1294
    %v2287 = vpack.c.b16 %v1303, %v1295
    %v2288 = vpack.c.b16 %v1304, %v1296
    %v2289 = vpack.c.b16 %v1313, %v1305
    %v2290 = vpack.c.b16 %v1314, %v1306
    %v2291 = vpack.c.b16 %v1315, %v1307
    %v2292 = vpack.c.b16 %v1316, %v1308
    %v2293 = vpack.c.b16 %v1317, %v1309
    %v2294 = vpack.c.b16 %v1318, %v1310
    %v2295 = vpack.c.b16 %v1319, %v1311
    %v2296 = vpack.c.b16 %v1320, %v1312
    %v2297 = vpack.c.b16 %v1329, %v1321
    %v2298 = vpack.c.b16 %v1330, %v1322
    %v2299 = vpack.c.b16 %v1331, %v1323
    %v2300 = vpack.c.b16 %v1332, %v1324
    %v2301 = vpack.c.b16 %v1333, %v1325
    %v2302 = vpack.c.b16 %v1334, %v1326
    %v2303 = vpack.c.b16 %v1335, %v1327
    %v2304 = vpack.c.b16 %v1336, %v1328
    %v2305 = vpack.c.b16 %v1345, %v1337
    %v2306 = vpack.c.b16 %v1346, %v1338
    %v2307 = vpack.c.b16 %v1347, %v1339
    %v2308 = vpack.c.b16 %v1348, %v1340
    %v2309 = vpack.c.b16 %v1349, %v1341
    %v2310 = vpack.c.b16 %v1350, %v1342
    %v2311 = vpack.c.b16 %v1351, %v1343
    %v2312 = vpack.c.b16 %v1352, %v1344
    %v2313 = vpack.c.b16 %v1361, %v1353
    %v2314 = vpack.c.b16 %v1362, %v1354
    %v2315 = vpack.c.b16 %v1363, %v1355
    %v2316 = vpack.c.b16 %v1364, %v1356
    %v2317 = vpack.c.b16 %v1365, %v1357
    %v2318 = vpack.c.b16 %v1366, %v1358
    %v2319 = vpack.c.b16 %v1367, %v1359
    %v2320 = vpack.c.b16 %v1368, %v1360
    %v2321 = vpack.c.b16 %v1377, %v1369
    %v2322 = vpack.c.b16 %v1378, %v1370
    %v2323 = vpack.c.b16 %v1379, %v1371
    %v2324 = vpack.c.b16 %v1380, %v1372
    %v2325 = vpack.c.b16 %v1381, %v1373
    %v2326 = vpack.c.b16 %v1382, %v1374
    %v2327 = vpack.c.b16 %v1383, %v1375
    %v2328 = vpack.c.b16 %v1384, %v1376
    %v2329 = vpack.c.b16 %v1393, %v1385
    %v2330 = vpack.c.b16 %v1394, %v1386
    %v2331 = vpack.c.b16 %v1395, %v1387
    %v2332 = vpack.c.b16 %v1396, %v1388
    %v2333 = vpack.c.b16 %v1397, %v1389
    %v2334 = vpack.c.b16 %v1398, %v1390
    %v2335 = vpack.c.b16 %v1399, %v1391
    %v2336 = vpack.c.b16 %v1400, %v1392
    %v2337 = vpack.c.b16 %v1409, %v1401
    %v2338 = vpack.c.b16 %v1410, %v1402
    %v2339 = vpack.c.b16 %v1411, %v1403
    %v2340 = vpack.c.b16 %v1412, %v1404
    %v2341 = vpack.c.b16 %v1413, %v1405
    %v2342 = vpack.c.b16 %v1414, %v1406
    %v2343 = vpack.c.b16 %v1415, %v1407
    %v2344 = vpack.c.b16 %v1416, %v1408
    %v2345 = vpack.c.b16 %v1425, %v1417
    %v2346 = vpack.c.b16 %v1426, %v1418
    %v2347 = vpack.c.b16 %v1427, %v1419
    %v2348 = vpack.c.b16 %v1428, %v1420
    %v2349 = vpack.c.b16 %v1429, %v1421
    %v2350 = vpack.c.b16 %v1430, %v1422
    %v2351 = vpack.c.b16 %v1431, %v1423
    %v2352 = vpack.c.b16 %v1432, %v1424
    %v2353 = vpack.c.b16 %v1441, %v1433
    %v2354 = vpack.c.b16 %v1442, %v1434
    %v2355 = vpack.c.b16 %v1443, %v1435
    %v2356 = vpack.c.b16 %v1444, %v1436
    %v2357 = vpack.c.b16 %v1445, %v1437
    %v2358 = vpack.c.b16 %v1446, %v1438
    %v2359 = vpack.c.b16 %v1447, %v1439
    %v2360 = vpack.c.b16 %v1448, %v1440
    %v2361 = vpack.c.b16 %v1457, %v1449
    %v2362 = vpack.c.b16 %v1458, %v1450
    %v2363 = vpack.c.b16 %v1459, %v1451
    %v2364 = vpack.c.b16 %v1460, %v1452
    %v2365 = vpack.c.b16 %v1461, %v1453
    %v2366 = vpack.c.b16 %v1462, %v1454
    %v2367 = vpack.c.b16 %v1463, %v1455
    %v2368 = vpack.c.b16 %v1464, %v1456
    %v2369 = vpack.c.b16 %v1473, %v1465
    %v2370 = vpack.c.b16 %v1474, %v1466
    %v2371 = vpack.c.b16 %v1475, %v1467
    %v2372 = vpack.c.b16 %v1476, %v1468
    %v2373 = vpack.c.b16 %v1477, %v1469
    %v2374 = vpack.c.b16 %v1478, %v1470
    %v2375 = vpack.c.b16 %v1479, %v1471
    %v2376 = vpack.c.b16 %v1480, %v1472
    %v2377 = vpack.c.b16 %v1489, %v1481
    %v2378 = vpack.c.b16 %v1490, %v1482
    %v2379 = vpack.c.b16 %v1491, %v1483
    %v2380 = vpack.c.b16 %v1492, %v1484
    %v2381 = vpack.c.b16 %v1493, %v1485
    %v2382 = vpack.c.b16 %v1494, %v1486
    %v2383 = vpack.c.b16 %v1495, %v1487
    %v2384 = vpack.c.b16 %v1496, %v1488
    %v2385 = vpack.c.b16 %v1505, %v1497
    %v2386 = vpack.c.b16 %v1506, %v1498
    %v2387 = vpack.c.b16 %v1507, %v1499
    %v2388 = vpack.c.b16 %v1508, %v1500
    %v2389 = vpack.c.b16 %v1509, %v1501
    %v2390 = vpack.c.b16 %v1510, %v1502
    %v2391 = vpack.c.b16 %v1511, %v1503
    %v2392 = vpack.c.b16 %v1512, %v1504
    %v2393 = vpack.c.b16 %v1521, %v1513
    %v2394 = vpack.c.b16 %v1522, %v1514
    %v2395 = vpack.c.b16 %v1523, %v1515
    %v2396 = vpack.c.b16 %v1524, %v1516
    %v2397 = vpack.c.b16 %v1525, %v1517
    %v2398 = vpack.c.b16 %v1526, %v1518
    %v2399 = vpack.c.b16 %v1527, %v1519
    %v2400 = vpack.c.b16 %v1528, %v1520
    %v2401 = vpack.c.b16 %v1537, %v1529
    %v2402 = vpack.c.b16 %v1538, %v1530
    %v2403 = vpack.c.b16 %v1539, %v1531
    %v2404 = vpack.c.b16 %v1540, %v1532
    %v2405 = vpack.c.b16 %v1541, %v1533
    %v2406 = vpack.c.b16 %v1542, %v1534
    %v2407 = vpack.c.b16 %v1543, %v1535
    %v2408 = vpack.c.b16 %v1544, %v1536
    %v2409 = vpack.c.b16 %v1553, %v1545
    %v2410 = vpack.c.b16 %v1554, %v1546
    %v2411 = vpack.c.b16 %v1555, %v1547
    %v2412 = vpack.c.b16 %v1556, %v1548
    %v2413 = vpack.c.b16 %v1557, %v1549
    %v2414 = vpack.c.b16 %v1558, %v1550
    %v2415 = vpack.c.b16 %v1559, %v1551
    %v2416 = vpack.c.b16 %v1560, %v1552
    %v2417 = vpack.c.b16 %v1569, %v1561
    %v2418 = vpack.c.b16 %v1570, %v1562
    %v2419 = vpack.c.b16 %v1571, %v1563
    %v2420 = vpack.c.b16 %v1572, %v1564
    %v2421 = vpack.c.b16 %v1573, %v1565
    %v2422 = vpack.c.b16 %v1574, %v1566
    %v2423 = vpack.c.b16 %v1575, %v1567
    %v2424 = vpack.c.b16 %v1576, %v1568
    %v2425 = vpack.c.b16 %v1585, %v1577
    %v2426 = vpack.c.b16 %v1586, %v1578
    %v2427 = vpack.c.b16 %v1587, %v1579
    %v2428 = vpack.c.b16 %v1588, %v1580
    %v2429 = vpack.c.b16 %v1589, %v1581
    %v2430 = vpack.c.b16 %v1590, %v1582
    %v2431 = vpack.c.b16 %v1591, %v1583
    %v2432 = vpack.c.b16 %v1592, %v1584
    %v2433 = vpack.c.b16 %v1601, %v1593
    %v2434 = vpack.c.b16 %v1602, %v1594
    %v2435 = vpack.c.b16 %v1603, %v1595
    %v2436 = vpack.c.b16 %v1604, %v1596
    %v2437 = vpack.c.b16 %v1605, %v1597
    %v2438 = vpack.c.b16 %v1606, %v1598
    %v2439 = vpack.c.b16 %v1607, %v1599
    %v2440 = vpack.c.b16 %v1608, %v1600
    %v2441 = vpack.c.b16 %v1617, %v1609
    %v2442 = vpack.c.b16 %v1618, %v1610
    %v2443 = vpack.c.b16 %v1619, %v1611
    %v2444 = vpack.c.b16 %v1620, %v1612
    %v2445 = vpack.c.b16 %v1621, %v1613
    %v2446 = vpack.c.b16 %v1622, %v1614
    %v2447 = vpack.c.b16 %v1623, %v1615
    %v2448 = vpack.c.b16 %v1624, %v1616
    %v2449 = vpack.c.b16 %v1633, %v1625
    %v2450 = vpack.c.b16 %v1634, %v1626
    %v2451 = vpack.c.b16 %v1635, %v1627
    %v2452 = vpack.c.b16 %v1636, %v1628
    %v2453 = vpack.c.b16 %v1637, %v1629
    %v2454 = vpack.c.b16 %v1638, %v1630
    %v2455 = vpack.c.b16 %v1639, %v1631
    %v2456 = vpack.c.b16 %v1640, %v1632
    %v2457 = vpack.c.b16 %v1649, %v1641
    %v2458 = vpack.c.b16 %v1650, %v1642
    %v2459 = vpack.c.b16 %v1651, %v1643
    %v2460 = vpack.c.b16 %v1652, %v1644
    %v2461 = vpack.c.b16 %v1653, %v1645
    %v2462 = vpack.c.b16 %v1654, %v1646
    %v2463 = vpack.c.b16 %v1655, %v1647
    %v2464 = vpack.c.b16 %v1656, %v1648
    %v2465 = vpack.c.b16 %v1665, %v1657
    %v2466 = vpack.c.b16 %v1666, %v1658
    %v2467 = vpack.c.b16 %v1667, %v1659
    %v2468 = vpack.c.b16 %v1668, %v1660
    %v2469 = vpack.c.b16 %v1669, %v1661
    %v2470 = vpack.c.b16 %v1670, %v1662
    %v2471 = vpack.c.b16 %v1671, %v1663
    %v2472 = vpack.c.b16 %v1672, %v1664
    %v2473 = vpack.c.b16 %v1681, %v1673
    %v2474 = vpack.c.b16 %v1682, %v1674
    %v2475 = vpack.c.b16 %v1683, %v1675
    %v2476 = vpack.c.b16 %v1684, %v1676
    %v2477 = vpack.c.b16 %v1685, %v1677
    %v2478 = vpack.c.b16 %v1686, %v1678
    %v2479 = vpack.c.b16 %v1687, %v1679
    %v2480 = vpack.c.b16 %v1688, %v1680
    %v2481 = vpack.c.b16 %v1697, %v1689
    %v2482 = vpack.c.b16 %v1698, %v1690
    %v2483 = vpack.c.b16 %v1699, %v1691
    %v2484 = vpack.c.b16 %v1700, %v1692
    %v2485 = vpack.c.b16 %v1701, %v1693
    %v2486 = vpack.c.b16 %v1702, %v1694
    %v2487 = vpack.c.b16 %v1703, %v1695
    %v2488 = vpack.c.b16 %v1704, %v1696
    %v2489 = vpack.c.b16 %v1713, %v1705
    %v2490 = vpack.c.b16 %v1714, %v1706
    %v2491 = vpack.c.b16 %v1715, %v1707
    %v2492 = vpack.c.b16 %v1716, %v1708
    %v2493 = vpack.c.b16 %v1717, %v1709
    %v2494 = vpack.c.b16 %v1718, %v1710
    %v2495 = vpack.c.b16 %v1719, %v1711
    %v2496 = vpack.c.b16 %v1720, %v1712
    %v2497 = vpack.c.b16 %v1729, %v1721
    %v2498 = vpack.c.b16 %v1730, %v1722
    %v2499 = vpack.c.b16 %v1731, %v1723
    %v2500 = vpack.c.b16 %v1732, %v1724
    %v2501 = vpack.c.b16 %v1733, %v1725
    %v2502 = vpack.c.b16 %v1734, %v1726
    %v2503 = vpack.c.b16 %v1735, %v1727
    %v2504 = vpack.c.b16 %v1736, %v1728
    %v2505 = vpack.c.b16 %v1745, %v1737
    %v2506 = vpack.c.b16 %v1746, %v1738
    %v2507 = vpack.c.b16 %v1747, %v1739
    %v2508 = vpack.c.b16 %v1748, %v1740
    %v2509 = vpack.c.b16 %v1749, %v1741
    %v2510 = vpack.c.b16 %v1750, %v1742
    %v2511 = vpack.c.b16 %v1751, %v1743
    %v2512 = vpack.c.b16 %v1752, %v1744
    %v2513 = vpack.c.b16 %v1761, %v1753
    %v2514 = vpack.c.b16 %v1762, %v1754
    %v2515 = vpack.c.b16 %v1763, %v1755
    %v2516 = vpack.c.b16 %v1764, %v1756
    %v2517 = vpack.c.b16 %v1765, %v1757
    %v2518 = vpack.c.b16 %v1766, %v1758
    %v2519 = vpack.c.b16 %v1767, %v1759
    %v2520 = vpack.c.b16 %v1768, %v1760
    %v2521 = vpack.c.b16 %v1777, %v1769
    %v2522 = vpack.c.b16 %v1778, %v1770
    %v2523 = vpack.c.b16 %v1779, %v1771
    %v2524 = vpack.c.b16 %v1780, %v1772
    %v2525 = vpack.c.b16 %v1781, %v1773
    %v2526 = vpack.c.b16 %v1782, %v1774
    %v2527 = vpack.c.b16 %v1783, %v1775
    %v2528 = vpack.c.b16 %v1784, %v1776
    %v2529 = vpack.c.b16 %v1793, %v1785
    %v2530 = vpack.c.b16 %v1794, %v1786
    %v2531 = vpack.c.b16 %v1795, %v1787
    %v2532 = vpack.c.b16 %v1796, %v1788
    %v2533 = vpack.c.b16 %v1797, %v1789
    %v2534 = vpack.c.b16 %v1798, %v1790
    %v2535 = vpack.c.b16 %v1799, %v1791
    %v2536 = vpack.c.b16 %v1800, %v1792
    %v2537 = vpack.c.b16 %v1809, %v1801
    %v2538 = vpack.c.b16 %v1810, %v1802
    %v2539 = vpack.c.b16 %v1811, %v1803
    %v2540 = vpack.c.b16 %v1812, %v1804
    %v2541 = vpack.c.b16 %v1813, %v1805
    %v2542 = vpack.c.b16 %v1814, %v1806
    %v2543 = vpack.c.b16 %v1815, %v1807
    %v2544 = vpack.c.b16 %v1816, %v1808
    %v2545 = vpack.c.b16 %v1825, %v1817
    %v2546 = vpack.c.b16 %v1826, %v1818
    %v2547 = vpack.c.b16 %v1827, %v1819
    %v2548 = vpack.c.b16 %v1828, %v1820
    %v2549 = vpack.c.b16 %v1829, %v1821
    %v2550 = vpack.c.b16 %v1830, %v1822
    %v2551 = vpack.c.b16 %v1831, %v1823
    %v2552 = vpack.c.b16 %v1832, %v1824
    %v2553 = vpack.c.b16 %v1841, %v1833
    %v2554 = vpack.c.b16 %v1842, %v1834
    %v2555 = vpack.c.b16 %v1843, %v1835
    %v2556 = vpack.c.b16 %v1844, %v1836
    %v2557 = vpack.c.b16 %v1845, %v1837
    %v2558 = vpack.c.b16 %v1846, %v1838
    %v2559 = vpack.c.b16 %v1847, %v1839
    %v2560 = vpack.c.b16 %v1848, %v1840
    %v2561 = vpack.c.b16 %v1857, %v1849
    %v2562 = vpack.c.b16 %v1858, %v1850
    %v2563 = vpack.c.b16 %v1859, %v1851
    %v2564 = vpack.c.b16 %v1860, %v1852
    %v2565 = vpack.c.b16 %v1861, %v1853
    %v2566 = vpack.c.b16 %v1862, %v1854
    %v2567 = vpack.c.b16 %v1863, %v1855
    %v2568 = vpack.c.b16 %v1864, %v1856
    %v2569 = vpack.c.b16 %v1873, %v1865
    %v2570 = vpack.c.b16 %v1874, %v1866
    %v2571 = vpack.c.b16 %v1875, %v1867
    %v2572 = vpack.c.b16 %v1876, %v1868
    %v2573 = vpack.c.b16 %v1877, %v1869
    %v2574 = vpack.c.b16 %v1878, %v1870
    %v2575 = vpack.c.b16 %v1879, %v1871
    %v2576 = vpack.c.b16 %v1880, %v1872
    %v2577 = vpack.c.b16 %v1889, %v1881
    %v2578 = vpack.c.b16 %v1890, %v1882
    %v2579 = vpack.c.b16 %v1891, %v1883
    %v2580 = vpack.c.b16 %v1892, %v1884
    %v2581 = vpack.c.b16 %v1893, %v1885
    %v2582 = vpack.c.b16 %v1894, %v1886
    %v2583 = vpack.c.b16 %v1895, %v1887
    %v2584 = vpack.c.b16 %v1896, %v1888
    %v2585 = vpack.c.b16 %v1905, %v1897
    %v2586 = vpack.c.b16 %v1906, %v1898
    %v2587 = vpack.c.b16 %v1907, %v1899
    %v2588 = vpack.c.b16 %v1908, %v1900
    %v2589 = vpack.c.b16 %v1909, %v1901
    %v2590 = vpack.c.b16 %v1910, %v1902
    %v2591 = vpack.c.b16 %v1911, %v1903
    %v2592 = vpack.c.b16 %v1912, %v1904
    %v2593 = vpack.c.b16 %v1921, %v1913
    %v2594 = vpack.c.b16 %v1922, %v1914
    %v2595 = vpack.c.b16 %v1923, %v1915
    %v2596 = vpack.c.b16 %v1924, %v1916
    %v2597 = vpack.c.b16 %v1925, %v1917
    %v2598 = vpack.c.b16 %v1926, %v1918
    %v2599 = vpack.c.b16 %v1927, %v1919
    %v2600 = vpack.c.b16 %v1928, %v1920
    %v2601 = vpack.c.b16 %v1937, %v1929
    %v2602 = vpack.c.b16 %v1938, %v1930
    %v2603 = vpack.c.b16 %v1939, %v1931
    %v2604 = vpack.c.b16 %v1940, %v1932
    %v2605 = vpack.c.b16 %v1941, %v1933
    %v2606 = vpack.c.b16 %v1942, %v1934
    %v2607 = vpack.c.b16 %v1943, %v1935
    %v2608 = vpack.c.b16 %v1944, %v1936
    %v2609 = vpack.c.b16 %v1953, %v1945
    %v2610 = vpack.c.b16 %v1954, %v1946
    %v2611 = vpack.c.b16 %v1955, %v1947
    %v2612 = vpack.c.b16 %v1956, %v1948
    %v2613 = vpack.c.b16 %v1957, %v1949
    %v2614 = vpack.c.b16 %v1958, %v1950
    %v2615 = vpack.c.b16 %v1959, %v1951
    %v2616 = vpack.c.b16 %v1960, %v1952
    %v2617 = vpack.c.b16 %v1969, %v1961
    %v2618 = vpack.c.b16 %v1970, %v1962
    %v2619 = vpack.c.b16 %v1971, %v1963
    %v2620 = vpack.c.b16 %v1972, %v1964
    %v2621 = vpack.c.b16 %v1973, %v1965
    %v2622 = vpack.c.b16 %v1974, %v1966
    %v2623 = vpack.c.b16 %v1975, %v1967
    %v2624 = vpack.c.b16 %v1976, %v1968
    %v2625 = vpack.c.b16 %v1985, %v1977
    %v2626 = vpack.c.b16 %v1986, %v1978
    %v2627 = vpack.c.b16 %v1987, %v1979
    %v2628 = vpack.c.b16 %v1988, %v1980
    %v2629 = vpack.c.b16 %v1989, %v1981
    %v2630 = vpack.c.b16 %v1990, %v1982
    %v2631 = vpack.c.b16 %v1991, %v1983
    %v2632 = vpack.c.b16 %v1992, %v1984
    %v2633 = vpack.c.b16 %v2001, %v1993
    %v2634 = vpack.c.b16 %v2002, %v1994
    %v2635 = vpack.c.b16 %v2003, %v1995
    %v2636 = vpack.c.b16 %v2004, %v1996
    %v2637 = vpack.c.b16 %v2005, %v1997
    %v2638 = vpack.c.b16 %v2006, %v1998
    %v2639 = vpack.c.b16 %v2007, %v1999
    %v2640 = vpack.c.b16 %v2008, %v2000
    %v2641 = vpack.c.b16 %v2017, %v2009
    %v2642 = vpack.c.b16 %v2018, %v2010
    %v2643 = vpack.c.b16 %v2019, %v2011
    %v2644 = vpack.c.b16 %v2020, %v2012
    %v2645 = vpack.c.b16 %v2021, %v2013
    %v2646 = vpack.c.b16 %v2022, %v2014
    %v2647 = vpack.c.b16 %v2023, %v2015
    %v2648 = vpack.c.b16 %v2024, %v2016
    %v2649 = vpack.c.b16 %v2033, %v2025
    %v2650 = vpack.c.b16 %v2034, %v2026
    %v2651 = vpack.c.b16 %v2035, %v2027
    %v2652 = vpack.c.b16 %v2036, %v2028
    %v2653 = vpack.c.b16 %v2037, %v2029
    %v2654 = vpack.c.b16 %v2038, %v2030
    %v2655 = vpack.c.b16 %v2039, %v2031
    %v2656 = vpack.c.b16 %v2040, %v2032
    %v2657 = vpack.c.b16 %v2049, %v2041
    %v2658 = vpack.c.b16 %v2050, %v2042
    %v2659 = vpack.c.b16 %v2051, %v2043
    %v2660 = vpack.c.b16 %v2052, %v2044
    %v2661 = vpack.c.b16 %v2053, %v2045
    %v2662 = vpack.c.b16 %v2054, %v2046
    %v2663 = vpack.c.b16 %v2055, %v2047
    %v2664 = vpack.c.b16 %v2056, %v2048
    %v2665 = vpack.c.b16 %v2065, %v2057
    %v2666 = vpack.c.b16 %v2066, %v2058
    %v2667 = vpack.c.b16 %v2067, %v2059
    %v2668 = vpack.c.b16 %v2068, %v2060
    %v2669 = vpack.c.b16 %v2069, %v2061
    %v2670 = vpack.c.b16 %v2070, %v2062
    %v2671 = vpack.c.b16 %v2071, %v2063
    %v2672 = vpack.c.b16 %v2072, %v2064
    %v2673 = vpack.c.b16 %v2081, %v2073
    %v2674 = vpack.c.b16 %v2082, %v2074
    %v2675 = vpack.c.b16 %v2083, %v2075
    %v2676 = vpack.c.b16 %v2084, %v2076
    %v2677 = vpack.c.b16 %v2085, %v2077
    %v2678 = vpack.c.b16 %v2086, %v2078
    %v2679 = vpack.c.b16 %v2087, %v2079
    %v2680 = vpack.c.b16 %v2088, %v2080
    %v2681 = vpack.c.b16 %v2097, %v2089
    %v2682 = vpack.c.b16 %v2098, %v2090
    %v2683 = vpack.c.b16 %v2099, %v2091
    %v2684 = vpack.c.b16 %v2100, %v2092
    %v2685 = vpack.c.b16 %v2101, %v2093
    %v2686 = vpack.c.b16 %v2102, %v2094
    %v2687 = vpack.c.b16 %v2103, %v2095
    %v2688 = vpack.c.b16 %v2104, %v2096
    %v2689 = vpack.c.b16 %v2113, %v2105
    %v2690 = vpack.c.b16 %v2114, %v2106
    %v2691 = vpack.c.b16 %v2115, %v2107
    %v2692 = vpack.c.b16 %v2116, %v2108
    %v2693 = vpack.c.b16 %v2117, %v2109
    %v2694 = vpack.c.b16 %v2118, %v2110
    %v2695 = vpack.c.b16 %v2119, %v2111
    %v2696 = vpack.c.b16 %v2120, %v2112
    %v2697 = vpack.c.b16 %v2129, %v2121
    %v2698 = vpack.c.b16 %v2130, %v2122
    %v2699 = vpack.c.b16 %v2131, %v2123
    %v2700 = vpack.c.b16 %v2132, %v2124
    %v2701 = vpack.c.b16 %v2133, %v2125
    %v2702 = vpack.c.b16 %v2134, %v2126
    %v2703 = vpack.c.b16 %v2135, %v2127
    %v2704 = vpack.c.b16 %v2136, %v2128
    %v2705 = vpack.c.b16 %v2145, %v2137
    %v2706 = vpack.c.b16 %v2146, %v2138
    %v2707 = vpack.c.b16 %v2147, %v2139
    %v2708 = vpack.c.b16 %v2148, %v2140
    %v2709 = vpack.c.b16 %v2149, %v2141
    %v2710 = vpack.c.b16 %v2150, %v2142
    %v2711 = vpack.c.b16 %v2151, %v2143
    %v2712 = vpack.c.b16 %v2152, %v2144
    %v2713 = vpack.c.b16 %v2161, %v2153
    %v2714 = vpack.c.b16 %v2162, %v2154
    %v2715 = vpack.c.b16 %v2163, %v2155
    %v2716 = vpack.c.b16 %v2164, %v2156
    %v2717 = vpack.c.b16 %v2165, %v2157
    %v2718 = vpack.c.b16 %v2166, %v2158
    %v2719 = vpack.c.b16 %v2167, %v2159
    %v2720 = vpack.c.b16 %v2168, %v2160
    %v2721 = vpack.c.b16 %v2177, %v2169
    %v2722 = vpack.c.b16 %v2178, %v2170
    %v2723 = vpack.c.b16 %v2179, %v2171
    %v2724 = vpack.c.b16 %v2180, %v2172
    %v2725 = vpack.c.b16 %v2181, %v2173
    %v2726 = vpack.c.b16 %v2182, %v2174
    %v2727 = vpack.c.b16 %v2183, %v2175
    %v2728 = vpack.c.b16 %v2184, %v2176
    %v2729 = vpack.c.b16 %v2193, %v2185
    %v2730 = vpack.c.b16 %v2194, %v2186
    %v2731 = vpack.c.b16 %v2195, %v2187
    %v2732 = vpack.c.b16 %v2196, %v2188
    %v2733 = vpack.c.b16 %v2197, %v2189
    %v2734 = vpack.c.b16 %v2198, %v2190
    %v2735 = vpack.c.b16 %v2199, %v2191
    %v2736 = vpack.c.b16 %v2200, %v2192
    %v2737 = vpack.c.b16 %v2209, %v2201
    %v2738 = vpack.c.b16 %v2210, %v2202
    %v2739 = vpack.c.b16 %v2211, %v2203
    %v2740 = vpack.c.b16 %v2212, %v2204
    %v2741 = vpack.c.b16 %v2213, %v2205
    %v2742 = vpack.c.b16 %v2214, %v2206
    %v2743 = vpack.c.b16 %v2215, %v2207
    %v2744 = vpack.c.b16 %v2216, %v2208
    %v2745 = vpack.c.b16 %v2225, %v2217
    %v2746 = vpack.c.b16 %v2226, %v2218
    %v2747 = vpack.c.b16 %v2227, %v2219
    %v2748 = vpack.c.b16 %v2228, %v2220
    %v2749 = vpack.c.b16 %v2229, %v2221
    %v2750 = vpack.c.b16 %v2230, %v2222
    %v2751 = vpack.c.b16 %v2231, %v2223
    %v2752 = vpack.c.b16 %v2232, %v2224
    %v2753 = vpack.c.b16 %v2241, %v2233
    %v2754 = vpack.c.b16 %v2242, %v2234
    %v2755 = vpack.c.b16 %v2243, %v2235
    %v2756 = vpack.c.b16 %v2244, %v2236
    %v2757 = vpack.c.b16 %v2245, %v2237
    %v2758 = vpack.c.b16 %v2246, %v2238
    %v2759 = vpack.c.b16 %v2247, %v2239
    %v2760 = vpack.c.b16 %v2248, %v2240
    %3273 = vmatprep.subr.bf16.mxu0 %v2250
    %3274 = vmatpush1.bf16.msra.mxu0 %v2249
    %3275 = vmatprep.subr.bf16.mxu0 %v2258
    %3276 = vmatpush1.bf16.msra.mxu0 %v2257
    %3277 = vmatprep.subr.bf16.mxu0 %v2266
    %3278 = vmatpush1.bf16.msra.mxu0 %v2265
    %3279 = vmatprep.subr.bf16.mxu0 %v2274
    %3280 = vmatpush1.bf16.msra.mxu0 %v2273
    %3281 = vmatprep.subr.bf16.mxu0 %v2282
    %3282 = vmatpush1.bf16.msra.mxu0 %v2281
    %3283 = vmatprep.subr.bf16.mxu0 %v2290
    %3284 = vmatpush1.bf16.msra.mxu0 %v2289
    %3285 = vmatprep.subr.bf16.mxu0 %v2298
    %3286 = vmatpush1.bf16.msra.mxu0 %v2297
    %3287 = vmatprep.subr.bf16.mxu0 %v2306
    %3288 = vmatpush1.bf16.msra.mxu0 %v2305
    %3289 = vmatprep.subr.bf16.mxu0 %v2314
    %3290 = vmatpush1.bf16.msra.mxu0 %v2313
    %3291 = vmatprep.subr.bf16.mxu0 %v2322
    %3292 = vmatpush1.bf16.msra.mxu0 %v2321
    %3293 = vmatprep.subr.bf16.mxu0 %v2330
    %3294 = vmatpush1.bf16.msra.mxu0 %v2329
    %3295 = vmatprep.subr.bf16.mxu0 %v2338
    %3296 = vmatpush1.bf16.msra.mxu0 %v2337
    %3297 = vmatprep.subr.bf16.mxu0 %v2346
    %3298 = vmatpush1.bf16.msra.mxu0 %v2345
    %3299 = vmatprep.subr.bf16.mxu0 %v2354
    %3300 = vmatpush1.bf16.msra.mxu0 %v2353
    %3301 = vmatprep.subr.bf16.mxu0 %v2362
    %3302 = vmatpush1.bf16.msra.mxu0 %v2361
    %3303 = vmatprep.subr.bf16.mxu0 %v2370
    %3304 = vmatpush1.bf16.msra.mxu0 %v2369
    %3305 = vmatprep.mubr.bf16.mxu0 %v152
    %3306 = vmatmul.mubr.bf16.gmra.mrb[0].mxu0 %v151
    %v3307 = vpop.f32.mrb[0].mxu0
    %v3308 = vadd.f32 %v676, %v3307
    %v3309 = vpop.f32.mrb[0].mxu0
    %v3310 = vadd.f32 %v680, %v3309
    %v3311 = vpop.f32.mrb[0].mxu0
    %v3312 = vadd.f32 %v676, %v3311
    %v3313 = vpop.f32.mrb[0].mxu0
    %v3314 = vadd.f32 %v680, %v3313
    %3315 = vdwg.mxu0
    %3316 = vmatprep.subr.bf16.mxu0 %v2378
    %3317 = vmatpush1.bf16.msra.mxu0 %v2377
    %3318 = vmatprep.subr.bf16.mxu0 %v2386
    %3319 = vmatpush1.bf16.msra.mxu0 %v2385
    %3320 = vmatprep.subr.bf16.mxu0 %v2394
    %3321 = vmatpush1.bf16.msra.mxu0 %v2393
    %3322 = vmatprep.subr.bf16.mxu0 %v2402
    %3323 = vmatpush1.bf16.msra.mxu0 %v2401
    %3324 = vmatprep.subr.bf16.mxu0 %v2410
    %3325 = vmatpush1.bf16.msra.mxu0 %v2409
    %3326 = vmatprep.subr.bf16.mxu0 %v2418
    %3327 = vmatpush1.bf16.msra.mxu0 %v2417
    %3328 = vmatprep.subr.bf16.mxu0 %v2426
    %3329 = vmatpush1.bf16.msra.mxu0 %v2425
    %3330 = vmatprep.subr.bf16.mxu0 %v2434
    %3331 = vmatpush1.bf16.msra.mxu0 %v2433
    %3332 = vmatprep.subr.bf16.mxu0 %v2442
    %3333 = vmatpush1.bf16.msra.mxu0 %v2441
    %3334 = vmatprep.subr.bf16.mxu0 %v2450
    %3335 = vmatpush1.bf16.msra.mxu0 %v2449
    %3336 = vmatprep.subr.bf16.mxu0 %v2458
    %3337 = vmatpush1.bf16.msra.mxu0 %v2457
    %3338 = vmatprep.subr.bf16.mxu0 %v2466
    %3339 = vmatpush1.bf16.msra.mxu0 %v2465
    %3340 = vmatprep.subr.bf16.mxu0 %v2474
    %3341 = vmatpush1.bf16.msra.mxu0 %v2473
    %3342 = vmatprep.subr.bf16.mxu0 %v2482
    %3343 = vmatpush1.bf16.msra.mxu0 %v2481
    %3344 = vmatprep.subr.bf16.mxu0 %v2490
    %3345 = vmatpush1.bf16.msra.mxu0 %v2489
    %3346 = vmatprep.subr.bf16.mxu0 %v2498
    %3347 = vmatpush1.bf16.msra.mxu0 %v2497
    %3348 = vmatprep.mubr.bf16.mxu0 %v154
    %3349 = vmatmul.mubr.bf16.gmra.mrb[0].mxu0 %v153
    %v3350 = vpop.f32.mrb[0].mxu0
    %v3351 = vadd.f32 %v3308, %v3350
    %v3352 = vpop.f32.mrb[0].mxu0
    %v3353 = vadd.f32 %v3310, %v3352
    %v3354 = vpop.f32.mrb[0].mxu0
    %v3355 = vadd.f32 %v3312, %v3354
    %v3356 = vpop.f32.mrb[0].mxu0
    %v3357 = vadd.f32 %v3314, %v3356
    %3358 = vdwg.mxu0
    %3359 = vmatprep.subr.bf16.mxu0 %v2506
    %3360 = vmatpush1.bf16.msra.mxu0 %v2505
    %3361 = vmatprep.subr.bf16.mxu0 %v2514
    %3362 = vmatpush1.bf16.msra.mxu0 %v2513
    %3363 = vmatprep.subr.bf16.mxu0 %v2522
    %3364 = vmatpush1.bf16.msra.mxu0 %v2521
    %3365 = vmatprep.subr.bf16.mxu0 %v2530
    %3366 = vmatpush1.bf16.msra.mxu0 %v2529
    %3367 = vmatprep.subr.bf16.mxu0 %v2538
    %3368 = vmatpush1.bf16.msra.mxu0 %v2537
    %3369 = vmatprep.subr.bf16.mxu0 %v2546
    %3370 = vmatpush1.bf16.msra.mxu0 %v2545
    %3371 = vmatprep.subr.bf16.mxu0 %v2554
    %3372 = vmatpush1.bf16.msra.mxu0 %v2553
    %3373 = vmatprep.subr.bf16.mxu0 %v2562
    %3374 = vmatpush1.bf16.msra.mxu0 %v2561
    %3375 = vmatprep.subr.bf16.mxu0 %v2570
    %3376 = vmatpush1.bf16.msra.mxu0 %v2569
    %3377 = vmatprep.subr.bf16.mxu0 %v2578
    %3378 = vmatpush1.bf16.msra.mxu0 %v2577
    %3379 = vmatprep.subr.bf16.mxu0 %v2586
    %3380 = vmatpush1.bf16.msra.mxu0 %v2585
    %3381 = vmatprep.subr.bf16.mxu0 %v2594
    %3382 = vmatpush1.bf16.msra.mxu0 %v2593
    %3383 = vmatprep.subr.bf16.mxu0 %v2602
    %3384 = vmatpush1.bf16.msra.mxu0 %v2601
    %3385 = vmatprep.subr.bf16.mxu0 %v2610
    %3386 = vmatpush1.bf16.msra.mxu0 %v2609
    %3387 = vmatprep.subr.bf16.mxu0 %v2618
    %3388 = vmatpush1.bf16.msra.mxu0 %v2617
    %3389 = vmatprep.subr.bf16.mxu0 %v2626
    %3390 = vmatpush1.bf16.msra.mxu0 %v2625
    %3391 = vmatprep.mubr.bf16.mxu0 %v156
    %3392 = vmatmul.mubr.bf16.gmra.mrb[0].mxu0 %v155
    %v3393 = vpop.f32.mrb[0].mxu0
    %v3394 = vadd.f32 %v3351, %v3393
    %v3395 = vpop.f32.mrb[0].mxu0
    %v3396 = vadd.f32 %v3353, %v3395
    %v3397 = vpop.f32.mrb[0].mxu0
    %v3398 = vadd.f32 %v3355, %v3397
    %v3399 = vpop.f32.mrb[0].mxu0
    %v3400 = vadd.f32 %v3357, %v3399
    %3401 = vdwg.mxu0
    %3402 = vmatprep.subr.bf16.mxu0 %v2634
    %3403 = vmatpush1.bf16.msra.mxu0 %v2633
    %3404 = vmatprep.subr.bf16.mxu0 %v2642
    %3405 = vmatpush1.bf16.msra.mxu0 %v2641
    %3406 = vmatprep.subr.bf16.mxu0 %v2650
    %3407 = vmatpush1.bf16.msra.mxu0 %v2649
    %3408 = vmatprep.subr.bf16.mxu0 %v2658
    %3409 = vmatpush1.bf16.msra.mxu0 %v2657
    %3410 = vmatprep.subr.bf16.mxu0 %v2666
    %3411 = vmatpush1.bf16.msra.mxu0 %v2665
    %3412 = vmatprep.subr.bf16.mxu0 %v2674
    %3413 = vmatpush1.bf16.msra.mxu0 %v2673
    %3414 = vmatprep.subr.bf16.mxu0 %v2682
    %3415 = vmatpush1.bf16.msra.mxu0 %v2681
    %3416 = vmatprep.subr.bf16.mxu0 %v2690
    %3417 = vmatpush1.bf16.msra.mxu0 %v2689
    %3418 = vmatprep.subr.bf16.mxu0 %v2698
    %3419 = vmatpush1.bf16.msra.mxu0 %v2697
    %3420 = vmatprep.subr.bf16.mxu0 %v2706
    %3421 = vmatpush1.bf16.msra.mxu0 %v2705
    %3422 = vmatprep.subr.bf16.mxu0 %v2714
    %3423 = vmatpush1.bf16.msra.mxu0 %v2713
    %3424 = vmatprep.subr.bf16.mxu0 %v2722
    %3425 = vmatpush1.bf16.msra.mxu0 %v2721
    %3426 = vmatprep.subr.bf16.mxu0 %v2730
    %3427 = vmatpush1.bf16.msra.mxu0 %v2729
    %3428 = vmatprep.subr.bf16.mxu0 %v2738
    %3429 = vmatpush1.bf16.msra.mxu0 %v2737
    %3430 = vmatprep.subr.bf16.mxu0 %v2746
    %3431 = vmatpush1.bf16.msra.mxu0 %v2745
    %3432 = vmatprep.subr.bf16.mxu0 %v2754
    %3433 = vmatpush1.bf16.msra.mxu0 %v2753
    %3434 = vmatprep.mubr.bf16.mxu0 %v158
    %3435 = vmatmul.mubr.bf16.gmra.mrb[0].mxu0 %v157
    %v3436 = vpop.f32.mrb[0].mxu0
    %v3437 = vadd.f32 %v3394, %v3436
    %v3438 = vpop.f32.mrb[0].mxu0
    %v3439 = vadd.f32 %v3396, %v3438
    %v3440 = vpop.f32.mrb[0].mxu0
    %v3441 = vadd.f32 %v3398, %v3440
    %v3442 = vpop.f32.mrb[0].mxu0
    %v3443 = vadd.f32 %v3400, %v3442
    %3444 = vdwg.mxu0
    %3445 = vmatprep.subr.bf16.mxu0 %v2252
    %3446 = vmatpush1.bf16.msra.mxu0 %v2251
    %3447 = vmatprep.subr.bf16.mxu0 %v2260
    %3448 = vmatpush1.bf16.msra.mxu0 %v2259
    %3449 = vmatprep.subr.bf16.mxu0 %v2268
    %3450 = vmatpush1.bf16.msra.mxu0 %v2267
    %3451 = vmatprep.subr.bf16.mxu0 %v2276
    %3452 = vmatpush1.bf16.msra.mxu0 %v2275
    %3453 = vmatprep.subr.bf16.mxu0 %v2284
    %3454 = vmatpush1.bf16.msra.mxu0 %v2283
    %3455 = vmatprep.subr.bf16.mxu0 %v2292
    %3456 = vmatpush1.bf16.msra.mxu0 %v2291
    %3457 = vmatprep.subr.bf16.mxu0 %v2300
    %3458 = vmatpush1.bf16.msra.mxu0 %v2299
    %3459 = vmatprep.subr.bf16.mxu0 %v2308
    %3460 = vmatpush1.bf16.msra.mxu0 %v2307
    %3461 = vmatprep.subr.bf16.mxu0 %v2316
    %3462 = vmatpush1.bf16.msra.mxu0 %v2315
    %3463 = vmatprep.subr.bf16.mxu0 %v2324
    %3464 = vmatpush1.bf16.msra.mxu0 %v2323
    %3465 = vmatprep.subr.bf16.mxu0 %v2332
    %3466 = vmatpush1.bf16.msra.mxu0 %v2331
    %3467 = vmatprep.subr.bf16.mxu0 %v2340
    %3468 = vmatpush1.bf16.msra.mxu0 %v2339
    %3469 = vmatprep.subr.bf16.mxu0 %v2348
    %3470 = vmatpush1.bf16.msra.mxu0 %v2347
    %3471 = vmatprep.subr.bf16.mxu0 %v2356
    %3472 = vmatpush1.bf16.msra.mxu0 %v2355
    %3473 = vmatprep.subr.bf16.mxu0 %v2364
    %3474 = vmatpush1.bf16.msra.mxu0 %v2363
    %3475 = vmatprep.subr.bf16.mxu0 %v2372
    %3476 = vmatpush1.bf16.msra.mxu0 %v2371
    %3477 = vmatprep.mubr.bf16.mxu0 %v152
    %3478 = vmatmul.mubr.bf16.gmra.mrb[0].mxu0 %v151
    %v3479 = vpop.f32.mrb[0].mxu0
    %v3480 = vadd.f32 %v684, %v3479
    %v3481 = vpop.f32.mrb[0].mxu0
    %v3482 = vadd.f32 %v688, %v3481
    %v3483 = vpop.f32.mrb[0].mxu0
    %v3484 = vadd.f32 %v684, %v3483
    %v3485 = vpop.f32.mrb[0].mxu0
    %v3486 = vadd.f32 %v688, %v3485
    %3487 = vdwg.mxu0
    %3488 = vmatprep.subr.bf16.mxu0 %v2380
    %3489 = vmatpush1.bf16.msra.mxu0 %v2379
    %3490 = vmatprep.subr.bf16.mxu0 %v2388
    %3491 = vmatpush1.bf16.msra.mxu0 %v2387
    %3492 = vmatprep.subr.bf16.mxu0 %v2396
    %3493 = vmatpush1.bf16.msra.mxu0 %v2395
    %3494 = vmatprep.subr.bf16.mxu0 %v2404
    %3495 = vmatpush1.bf16.msra.mxu0 %v2403
    %3496 = vmatprep.subr.bf16.mxu0 %v2412
    %3497 = vmatpush1.bf16.msra.mxu0 %v2411
    %3498 = vmatprep.subr.bf16.mxu0 %v2420
    %3499 = vmatpush1.bf16.msra.mxu0 %v2419
    %3500 = vmatprep.subr.bf16.mxu0 %v2428
    %3501 = vmatpush1.bf16.msra.mxu0 %v2427
    %3502 = vmatprep.subr.bf16.mxu0 %v2436
    %3503 = vmatpush1.bf16.msra.mxu0 %v2435
    %3504 = vmatprep.subr.bf16.mxu0 %v2444
    %3505 = vmatpush1.bf16.msra.mxu0 %v2443
    %3506 = vmatprep.subr.bf16.mxu0 %v2452
    %3507 = vmatpush1.bf16.msra.mxu0 %v2451
    %3508 = vmatprep.subr.bf16.mxu0 %v2460
    %3509 = vmatpush1.bf16.msra.mxu0 %v2459
    %3510 = vmatprep.subr.bf16.mxu0 %v2468
    %3511 = vmatpush1.bf16.msra.mxu0 %v2467
    %3512 = vmatprep.subr.bf16.mxu0 %v2476
    %3513 = vmatpush1.bf16.msra.mxu0 %v2475
    %3514 = vmatprep.subr.bf16.mxu0 %v2484
    %3515 = vmatpush1.bf16.msra.mxu0 %v2483
    %3516 = vmatprep.subr.bf16.mxu0 %v2492
    %3517 = vmatpush1.bf16.msra.mxu0 %v2491
    %3518 = vmatprep.subr.bf16.mxu0 %v2500
    %3519 = vmatpush1.bf16.msra.mxu0 %v2499
    %3520 = vmatprep.mubr.bf16.mxu0 %v154
    %3521 = vmatmul.mubr.bf16.gmra.mrb[0].mxu0 %v153
    %v3522 = vpop.f32.mrb[0].mxu0
    %v3523 = vadd.f32 %v3480, %v3522
    %v3524 = vpop.f32.mrb[0].mxu0
    %v3525 = vadd.f32 %v3482, %v3524
    %v3526 = vpop.f32.mrb[0].mxu0
    %v3527 = vadd.f32 %v3484, %v3526
    %v3528 = vpop.f32.mrb[0].mxu0
    %v3529 = vadd.f32 %v3486, %v3528
    %3530 = vdwg.mxu0
    %3531 = vmatprep.subr.bf16.mxu0 %v2508
    %3532 = vmatpush1.bf16.msra.mxu0 %v2507
    %3533 = vmatprep.subr.bf16.mxu0 %v2516
    %3534 = vmatpush1.bf16.msra.mxu0 %v2515
    %3535 = vmatprep.subr.bf16.mxu0 %v2524
    %3536 = vmatpush1.bf16.msra.mxu0 %v2523
    %3537 = vmatprep.subr.bf16.mxu0 %v2532
    %3538 = vmatpush1.bf16.msra.mxu0 %v2531
    %3539 = vmatprep.subr.bf16.mxu0 %v2540
    %3540 = vmatpush1.bf16.msra.mxu0 %v2539
    %3541 = vmatprep.subr.bf16.mxu0 %v2548
    %3542 = vmatpush1.bf16.msra.mxu0 %v2547
    %3543 = vmatprep.subr.bf16.mxu0 %v2556
    %3544 = vmatpush1.bf16.msra.mxu0 %v2555
    %3545 = vmatprep.subr.bf16.mxu0 %v2564
    %3546 = vmatpush1.bf16.msra.mxu0 %v2563
    %3547 = vmatprep.subr.bf16.mxu0 %v2572
    %3548 = vmatpush1.bf16.msra.mxu0 %v2571
    %3549 = vmatprep.subr.bf16.mxu0 %v2580
    %3550 = vmatpush1.bf16.msra.mxu0 %v2579
    %3551 = vmatprep.subr.bf16.mxu0 %v2588
    %3552 = vmatpush1.bf16.msra.mxu0 %v2587
    %3553 = vmatprep.subr.bf16.mxu0 %v2596
    %3554 = vmatpush1.bf16.msra.mxu0 %v2595
    %3555 = vmatprep.subr.bf16.mxu0 %v2604
    %3556 = vmatpush1.bf16.msra.mxu0 %v2603
    %3557 = vmatprep.subr.bf16.mxu0 %v2612
    %3558 = vmatpush1.bf16.msra.mxu0 %v2611
    %3559 = vmatprep.subr.bf16.mxu0 %v2620
    %3560 = vmatpush1.bf16.msra.mxu0 %v2619
    %3561 = vmatprep.subr.bf16.mxu0 %v2628
    %3562 = vmatpush1.bf16.msra.mxu0 %v2627
    %3563 = vmatprep.mubr.bf16.mxu0 %v156
    %3564 = vmatmul.mubr.bf16.gmra.mrb[0].mxu0 %v155
    %v3565 = vpop.f32.mrb[0].mxu0
    %v3566 = vadd.f32 %v3523, %v3565
    %v3567 = vpop.f32.mrb[0].mxu0
    %v3568 = vadd.f32 %v3525, %v3567
    %v3569 = vpop.f32.mrb[0].mxu0
    %v3570 = vadd.f32 %v3527, %v3569
    %v3571 = vpop.f32.mrb[0].mxu0
    %v3572 = vadd.f32 %v3529, %v3571
    %3573 = vdwg.mxu0
    %3574 = vmatprep.subr.bf16.mxu0 %v2636
    %3575 = vmatpush1.bf16.msra.mxu0 %v2635
    %3576 = vmatprep.subr.bf16.mxu0 %v2644
    %3577 = vmatpush1.bf16.msra.mxu0 %v2643
    %3578 = vmatprep.subr.bf16.mxu0 %v2652
    %3579 = vmatpush1.bf16.msra.mxu0 %v2651
    %3580 = vmatprep.subr.bf16.mxu0 %v2660
    %3581 = vmatpush1.bf16.msra.mxu0 %v2659
    %3582 = vmatprep.subr.bf16.mxu0 %v2668
    %3583 = vmatpush1.bf16.msra.mxu0 %v2667
    %3584 = vmatprep.subr.bf16.mxu0 %v2676
    %3585 = vmatpush1.bf16.msra.mxu0 %v2675
    %3586 = vmatprep.subr.bf16.mxu0 %v2684
    %3587 = vmatpush1.bf16.msra.mxu0 %v2683
    %3588 = vmatprep.subr.bf16.mxu0 %v2692
    %3589 = vmatpush1.bf16.msra.mxu0 %v2691
    %3590 = vmatprep.subr.bf16.mxu0 %v2700
    %3591 = vmatpush1.bf16.msra.mxu0 %v2699
    %3592 = vmatprep.subr.bf16.mxu0 %v2708
    %3593 = vmatpush1.bf16.msra.mxu0 %v2707
    %3594 = vmatprep.subr.bf16.mxu0 %v2716
    %3595 = vmatpush1.bf16.msra.mxu0 %v2715
    %3596 = vmatprep.subr.bf16.mxu0 %v2724
    %3597 = vmatpush1.bf16.msra.mxu0 %v2723
    %3598 = vmatprep.subr.bf16.mxu0 %v2732
    %3599 = vmatpush1.bf16.msra.mxu0 %v2731
    %3600 = vmatprep.subr.bf16.mxu0 %v2740
    %3601 = vmatpush1.bf16.msra.mxu0 %v2739
    %3602 = vmatprep.subr.bf16.mxu0 %v2748
    %3603 = vmatpush1.bf16.msra.mxu0 %v2747
    %3604 = vmatprep.subr.bf16.mxu0 %v2756
    %3605 = vmatpush1.bf16.msra.mxu0 %v2755
    %3606 = vmatprep.mubr.bf16.mxu0 %v158
    %3607 = vmatmul.mubr.bf16.gmra.mrb[0].mxu0 %v157
    %v3608 = vpop.f32.mrb[0].mxu0
    %v3609 = vadd.f32 %v3566, %v3608
    %v3610 = vpop.f32.mrb[0].mxu0
    %v3611 = vadd.f32 %v3568, %v3610
    %v3612 = vpop.f32.mrb[0].mxu0
    %v3613 = vadd.f32 %v3570, %v3612
    %v3614 = vpop.f32.mrb[0].mxu0
    %v3615 = vadd.f32 %v3572, %v3614
    %3616 = vdwg.mxu0
    %3617 = vmatprep.subr.bf16.mxu0 %v2254
    %3618 = vmatpush1.bf16.msra.mxu0 %v2253
    %3619 = vmatprep.subr.bf16.mxu0 %v2262
    %3620 = vmatpush1.bf16.msra.mxu0 %v2261
    %3621 = vmatprep.subr.bf16.mxu0 %v2270
    %3622 = vmatpush1.bf16.msra.mxu0 %v2269
    %3623 = vmatprep.subr.bf16.mxu0 %v2278
    %3624 = vmatpush1.bf16.msra.mxu0 %v2277
    %3625 = vmatprep.subr.bf16.mxu0 %v2286
    %3626 = vmatpush1.bf16.msra.mxu0 %v2285
    %3627 = vmatprep.subr.bf16.mxu0 %v2294
    %3628 = vmatpush1.bf16.msra.mxu0 %v2293
    %3629 = vmatprep.subr.bf16.mxu0 %v2302
    %3630 = vmatpush1.bf16.msra.mxu0 %v2301
    %3631 = vmatprep.subr.bf16.mxu0 %v2310
    %3632 = vmatpush1.bf16.msra.mxu0 %v2309
    %3633 = vmatprep.subr.bf16.mxu0 %v2318
    %3634 = vmatpush1.bf16.msra.mxu0 %v2317
    %3635 = vmatprep.subr.bf16.mxu0 %v2326
    %3636 = vmatpush1.bf16.msra.mxu0 %v2325
    %3637 = vmatprep.subr.bf16.mxu0 %v2334
    %3638 = vmatpush1.bf16.msra.mxu0 %v2333
    %3639 = vmatprep.subr.bf16.mxu0 %v2342
    %3640 = vmatpush1.bf16.msra.mxu0 %v2341
    %3641 = vmatprep.subr.bf16.mxu0 %v2350
    %3642 = vmatpush1.bf16.msra.mxu0 %v2349
    %3643 = vmatprep.subr.bf16.mxu0 %v2358
    %3644 = vmatpush1.bf16.msra.mxu0 %v2357
    %3645 = vmatprep.subr.bf16.mxu0 %v2366
    %3646 = vmatpush1.bf16.msra.mxu0 %v2365
    %3647 = vmatprep.subr.bf16.mxu0 %v2374
    %3648 = vmatpush1.bf16.msra.mxu0 %v2373
    %3649 = vmatprep.mubr.bf16.mxu0 %v152
    %3650 = vmatmul.mubr.bf16.gmra.mrb[0].mxu0 %v151
    %v3651 = vpop.f32.mrb[0].mxu0
    %v3652 = vadd.f32 %v692, %v3651
    %v3653 = vpop.f32.mrb[0].mxu0
    %v3654 = vadd.f32 %v696, %v3653
    %v3655 = vpop.f32.mrb[0].mxu0
    %v3656 = vadd.f32 %v692, %v3655
    %v3657 = vpop.f32.mrb[0].mxu0
    %v3658 = vadd.f32 %v696, %v3657
    %3659 = vdwg.mxu0
    %3660 = vmatprep.subr.bf16.mxu0 %v2382
    %3661 = vmatpush1.bf16.msra.mxu0 %v2381
    %3662 = vmatprep.subr.bf16.mxu0 %v2390
    %3663 = vmatpush1.bf16.msra.mxu0 %v2389
    %3664 = vmatprep.subr.bf16.mxu0 %v2398
    %3665 = vmatpush1.bf16.msra.mxu0 %v2397
    %3666 = vmatprep.subr.bf16.mxu0 %v2406
    %3667 = vmatpush1.bf16.msra.mxu0 %v2405
    %3668 = vmatprep.subr.bf16.mxu0 %v2414
    %3669 = vmatpush1.bf16.msra.mxu0 %v2413
    %3670 = vmatprep.subr.bf16.mxu0 %v2422
    %3671 = vmatpush1.bf16.msra.mxu0 %v2421
    %3672 = vmatprep.subr.bf16.mxu0 %v2430
    %3673 = vmatpush1.bf16.msra.mxu0 %v2429
    %3674 = vmatprep.subr.bf16.mxu0 %v2438
    %3675 = vmatpush1.bf16.msra.mxu0 %v2437
    %3676 = vmatprep.subr.bf16.mxu0 %v2446
    %3677 = vmatpush1.bf16.msra.mxu0 %v2445
    %3678 = vmatprep.subr.bf16.mxu0 %v2454
    %3679 = vmatpush1.bf16.msra.mxu0 %v2453
    %3680 = vmatprep.subr.bf16.mxu0 %v2462
    %3681 = vmatpush1.bf16.msra.mxu0 %v2461
    %3682 = vmatprep.subr.bf16.mxu0 %v2470
    %3683 = vmatpush1.bf16.msra.mxu0 %v2469
    %3684 = vmatprep.subr.bf16.mxu0 %v2478
    %3685 = vmatpush1.bf16.msra.mxu0 %v2477
    %3686 = vmatprep.subr.bf16.mxu0 %v2486
    %3687 = vmatpush1.bf16.msra.mxu0 %v2485
    %3688 = vmatprep.subr.bf16.mxu0 %v2494
    %3689 = vmatpush1.bf16.msra.mxu0 %v2493
    %3690 = vmatprep.subr.bf16.mxu0 %v2502
    %3691 = vmatpush1.bf16.msra.mxu0 %v2501
    %3692 = vmatprep.mubr.bf16.mxu0 %v154
    %3693 = vmatmul.mubr.bf16.gmra.mrb[0].mxu0 %v153
    %v3694 = vpop.f32.mrb[0].mxu0
    %v3695 = vadd.f32 %v3652, %v3694
    %v3696 = vpop.f32.mrb[0].mxu0
    %v3697 = vadd.f32 %v3654, %v3696
    %v3698 = vpop.f32.mrb[0].mxu0
    %v3699 = vadd.f32 %v3656, %v3698
    %v3700 = vpop.f32.mrb[0].mxu0
    %v3701 = vadd.f32 %v3658, %v3700
    %3702 = vdwg.mxu0
    %3703 = vmatprep.subr.bf16.mxu0 %v2510
    %3704 = vmatpush1.bf16.msra.mxu0 %v2509
    %3705 = vmatprep.subr.bf16.mxu0 %v2518
    %3706 = vmatpush1.bf16.msra.mxu0 %v2517
    %3707 = vmatprep.subr.bf16.mxu0 %v2526
    %3708 = vmatpush1.bf16.msra.mxu0 %v2525
    %3709 = vmatprep.subr.bf16.mxu0 %v2534
    %3710 = vmatpush1.bf16.msra.mxu0 %v2533
    %3711 = vmatprep.subr.bf16.mxu0 %v2542
    %3712 = vmatpush1.bf16.msra.mxu0 %v2541
    %3713 = vmatprep.subr.bf16.mxu0 %v2550
    %3714 = vmatpush1.bf16.msra.mxu0 %v2549
    %3715 = vmatprep.subr.bf16.mxu0 %v2558
    %3716 = vmatpush1.bf16.msra.mxu0 %v2557
    %3717 = vmatprep.subr.bf16.mxu0 %v2566
    %3718 = vmatpush1.bf16.msra.mxu0 %v2565
    %3719 = vmatprep.subr.bf16.mxu0 %v2574
    %3720 = vmatpush1.bf16.msra.mxu0 %v2573
    %3721 = vmatprep.subr.bf16.mxu0 %v2582
    %3722 = vmatpush1.bf16.msra.mxu0 %v2581
    %3723 = vmatprep.subr.bf16.mxu0 %v2590
    %3724 = vmatpush1.bf16.msra.mxu0 %v2589
    %3725 = vmatprep.subr.bf16.mxu0 %v2598
    %3726 = vmatpush1.bf16.msra.mxu0 %v2597
    %3727 = vmatprep.subr.bf16.mxu0 %v2606
    %3728 = vmatpush1.bf16.msra.mxu0 %v2605
    %3729 = vmatprep.subr.bf16.mxu0 %v2614
    %3730 = vmatpush1.bf16.msra.mxu0 %v2613
    %3731 = vmatprep.subr.bf16.mxu0 %v2622
    %3732 = vmatpush1.bf16.msra.mxu0 %v2621
    %3733 = vmatprep.subr.bf16.mxu0 %v2630
    %3734 = vmatpush1.bf16.msra.mxu0 %v2629
    %3735 = vmatprep.mubr.bf16.mxu0 %v156
    %3736 = vmatmul.mubr.bf16.gmra.mrb[0].mxu0 %v155
    %v3737 = vpop.f32.mrb[0].mxu0
    %v3738 = vadd.f32 %v3695, %v3737
    %v3739 = vpop.f32.mrb[0].mxu0
    %v3740 = vadd.f32 %v3697, %v3739
    %v3741 = vpop.f32.mrb[0].mxu0
    %v3742 = vadd.f32 %v3699, %v3741
    %v3743 = vpop.f32.mrb[0].mxu0
    %v3744 = vadd.f32 %v3701, %v3743
    %3745 = vdwg.mxu0
    %3746 = vmatprep.subr.bf16.mxu0 %v2638
    %3747 = vmatpush1.bf16.msra.mxu0 %v2637
    %3748 = vmatprep.subr.bf16.mxu0 %v2646
    %3749 = vmatpush1.bf16.msra.mxu0 %v2645
    %3750 = vmatprep.subr.bf16.mxu0 %v2654
    %3751 = vmatpush1.bf16.msra.mxu0 %v2653
    %3752 = vmatprep.subr.bf16.mxu0 %v2662
    %3753 = vmatpush1.bf16.msra.mxu0 %v2661
    %3754 = vmatprep.subr.bf16.mxu0 %v2670
    %3755 = vmatpush1.bf16.msra.mxu0 %v2669
    %3756 = vmatprep.subr.bf16.mxu0 %v2678
    %3757 = vmatpush1.bf16.msra.mxu0 %v2677
    %3758 = vmatprep.subr.bf16.mxu0 %v2686
    %3759 = vmatpush1.bf16.msra.mxu0 %v2685
    %3760 = vmatprep.subr.bf16.mxu0 %v2694
    %3761 = vmatpush1.bf16.msra.mxu0 %v2693
    %3762 = vmatprep.subr.bf16.mxu0 %v2702
    %3763 = vmatpush1.bf16.msra.mxu0 %v2701
    %3764 = vmatprep.subr.bf16.mxu0 %v2710
    %3765 = vmatpush1.bf16.msra.mxu0 %v2709
    %3766 = vmatprep.subr.bf16.mxu0 %v2718
    %3767 = vmatpush1.bf16.msra.mxu0 %v2717
    %3768 = vmatprep.subr.bf16.mxu0 %v2726
    %3769 = vmatpush1.bf16.msra.mxu0 %v2725
    %3770 = vmatprep.subr.bf16.mxu0 %v2734
    %3771 = vmatpush1.bf16.msra.mxu0 %v2733
    %3772 = vmatprep.subr.bf16.mxu0 %v2742
    %3773 = vmatpush1.bf16.msra.mxu0 %v2741
    %3774 = vmatprep.subr.bf16.mxu0 %v2750
    %3775 = vmatpush1.bf16.msra.mxu0 %v2749
    %3776 = vmatprep.subr.bf16.mxu0 %v2758
    %3777 = vmatpush1.bf16.msra.mxu0 %v2757
    %3778 = vmatprep.mubr.bf16.mxu0 %v158
    %3779 = vmatmul.mubr.bf16.gmra.mrb[0].mxu0 %v157
    %v3780 = vpop.f32.mrb[0].mxu0
    %v3781 = vadd.f32 %v3738, %v3780
    %v3782 = vpop.f32.mrb[0].mxu0
    %v3783 = vadd.f32 %v3740, %v3782
    %v3784 = vpop.f32.mrb[0].mxu0
    %v3785 = vadd.f32 %v3742, %v3784
    %v3786 = vpop.f32.mrb[0].mxu0
    %v3787 = vadd.f32 %v3744, %v3786
    %3788 = vdwg.mxu0
    %3789 = vmatprep.subr.bf16.mxu0 %v2256
    %3790 = vmatpush1.bf16.msra.mxu0 %v2255
    %3791 = vmatprep.subr.bf16.mxu0 %v2264
    %3792 = vmatpush1.bf16.msra.mxu0 %v2263
    %3793 = vmatprep.subr.bf16.mxu0 %v2272
    %3794 = vmatpush1.bf16.msra.mxu0 %v2271
    %3795 = vmatprep.subr.bf16.mxu0 %v2280
    %3796 = vmatpush1.bf16.msra.mxu0 %v2279
    %3797 = vmatprep.subr.bf16.mxu0 %v2288
    %3798 = vmatpush1.bf16.msra.mxu0 %v2287
    %3799 = vmatprep.subr.bf16.mxu0 %v2296
    %3800 = vmatpush1.bf16.msra.mxu0 %v2295
    %3801 = vmatprep.subr.bf16.mxu0 %v2304
    %3802 = vmatpush1.bf16.msra.mxu0 %v2303
    %3803 = vmatprep.subr.bf16.mxu0 %v2312
    %3804 = vmatpush1.bf16.msra.mxu0 %v2311
    %3805 = vmatprep.subr.bf16.mxu0 %v2320
    %3806 = vmatpush1.bf16.msra.mxu0 %v2319
    %3807 = vmatprep.subr.bf16.mxu0 %v2328
    %3808 = vmatpush1.bf16.msra.mxu0 %v2327
    %3809 = vmatprep.subr.bf16.mxu0 %v2336
    %3810 = vmatpush1.bf16.msra.mxu0 %v2335
    %3811 = vmatprep.subr.bf16.mxu0 %v2344
    %3812 = vmatpush1.bf16.msra.mxu0 %v2343
    %3813 = vmatprep.subr.bf16.mxu0 %v2352
    %3814 = vmatpush1.bf16.msra.mxu0 %v2351
    %3815 = vmatprep.subr.bf16.mxu0 %v2360
    %3816 = vmatpush1.bf16.msra.mxu0 %v2359
    %3817 = vmatprep.subr.bf16.mxu0 %v2368
    %3818 = vmatpush1.bf16.msra.mxu0 %v2367
    %3819 = vmatprep.subr.bf16.mxu0 %v2376
    %3820 = vmatpush1.bf16.msra.mxu0 %v2375
    %3821 = vmatprep.mubr.bf16.mxu0 %v152
    %3822 = vmatmul.mubr.bf16.gmra.mrb[0].mxu0 %v151
    %v3823 = vpop.f32.mrb[0].mxu0
    %v3824 = vadd.f32 %v700, %v3823
    %v3825 = vpop.f32.mrb[0].mxu0
    %v3826 = vadd.f32 %v704, %v3825
    %v3827 = vpop.f32.mrb[0].mxu0
    %v3828 = vadd.f32 %v700, %v3827
    %v3829 = vpop.f32.mrb[0].mxu0
    %v3830 = vadd.f32 %v704, %v3829
    %3831 = vdwg.mxu0
    %3832 = vmatprep.subr.bf16.mxu0 %v2384
    %3833 = vmatpush1.bf16.msra.mxu0 %v2383
    %3834 = vmatprep.subr.bf16.mxu0 %v2392
    %3835 = vmatpush1.bf16.msra.mxu0 %v2391
    %3836 = vmatprep.subr.bf16.mxu0 %v2400
    %3837 = vmatpush1.bf16.msra.mxu0 %v2399
    %3838 = vmatprep.subr.bf16.mxu0 %v2408
    %3839 = vmatpush1.bf16.msra.mxu0 %v2407
    %3840 = vmatprep.subr.bf16.mxu0 %v2416
    %3841 = vmatpush1.bf16.msra.mxu0 %v2415
    %3842 = vmatprep.subr.bf16.mxu0 %v2424
    %3843 = vmatpush1.bf16.msra.mxu0 %v2423
    %3844 = vmatprep.subr.bf16.mxu0 %v2432
    %3845 = vmatpush1.bf16.msra.mxu0 %v2431
    %3846 = vmatprep.subr.bf16.mxu0 %v2440
    %3847 = vmatpush1.bf16.msra.mxu0 %v2439
    %3848 = vmatprep.subr.bf16.mxu0 %v2448
    %3849 = vmatpush1.bf16.msra.mxu0 %v2447
    %3850 = vmatprep.subr.bf16.mxu0 %v2456
    %3851 = vmatpush1.bf16.msra.mxu0 %v2455
    %3852 = vmatprep.subr.bf16.mxu0 %v2464
    %3853 = vmatpush1.bf16.msra.mxu0 %v2463
    %3854 = vmatprep.subr.bf16.mxu0 %v2472
    %3855 = vmatpush1.bf16.msra.mxu0 %v2471
    %3856 = vmatprep.subr.bf16.mxu0 %v2480
    %3857 = vmatpush1.bf16.msra.mxu0 %v2479
    %3858 = vmatprep.subr.bf16.mxu0 %v2488
    %3859 = vmatpush1.bf16.msra.mxu0 %v2487
    %3860 = vmatprep.subr.bf16.mxu0 %v2496
    %3861 = vmatpush1.bf16.msra.mxu0 %v2495
    %3862 = vmatprep.subr.bf16.mxu0 %v2504
    %3863 = vmatpush1.bf16.msra.mxu0 %v2503
    %3864 = vmatprep.mubr.bf16.mxu0 %v154
    %3865 = vmatmul.mubr.bf16.gmra.mrb[0].mxu0 %v153
    %v3866 = vpop.f32.mrb[0].mxu0
    %v3867 = vadd.f32 %v3824, %v3866
    %v3868 = vpop.f32.mrb[0].mxu0
    %v3869 = vadd.f32 %v3826, %v3868
    %v3870 = vpop.f32.mrb[0].mxu0
    %v3871 = vadd.f32 %v3828, %v3870
    %v3872 = vpop.f32.mrb[0].mxu0
    %v3873 = vadd.f32 %v3830, %v3872
    %3874 = vdwg.mxu0
    %3875 = vmatprep.subr.bf16.mxu0 %v2512
    %3876 = vmatpush1.bf16.msra.mxu0 %v2511
    %3877 = vmatprep.subr.bf16.mxu0 %v2520
    %3878 = vmatpush1.bf16.msra.mxu0 %v2519
    %3879 = vmatprep.subr.bf16.mxu0 %v2528
    %3880 = vmatpush1.bf16.msra.mxu0 %v2527
    %3881 = vmatprep.subr.bf16.mxu0 %v2536
    %3882 = vmatpush1.bf16.msra.mxu0 %v2535
    %3883 = vmatprep.subr.bf16.mxu0 %v2544
    %3884 = vmatpush1.bf16.msra.mxu0 %v2543
    %3885 = vmatprep.subr.bf16.mxu0 %v2552
    %3886 = vmatpush1.bf16.msra.mxu0 %v2551
    %3887 = vmatprep.subr.bf16.mxu0 %v2560
    %3888 = vmatpush1.bf16.msra.mxu0 %v2559
    %3889 = vmatprep.subr.bf16.mxu0 %v2568
    %3890 = vmatpush1.bf16.msra.mxu0 %v2567
    %3891 = vmatprep.subr.bf16.mxu0 %v2576
    %3892 = vmatpush1.bf16.msra.mxu0 %v2575
    %3893 = vmatprep.subr.bf16.mxu0 %v2584
    %3894 = vmatpush1.bf16.msra.mxu0 %v2583
    %3895 = vmatprep.subr.bf16.mxu0 %v2592
    %3896 = vmatpush1.bf16.msra.mxu0 %v2591
    %3897 = vmatprep.subr.bf16.mxu0 %v2600
    %3898 = vmatpush1.bf16.msra.mxu0 %v2599
    %3899 = vmatprep.subr.bf16.mxu0 %v2608
    %3900 = vmatpush1.bf16.msra.mxu0 %v2607
    %3901 = vmatprep.subr.bf16.mxu0 %v2616
    %3902 = vmatpush1.bf16.msra.mxu0 %v2615
    %3903 = vmatprep.subr.bf16.mxu0 %v2624
    %3904 = vmatpush1.bf16.msra.mxu0 %v2623
    %3905 = vmatprep.subr.bf16.mxu0 %v2632
    %3906 = vmatpush1.bf16.msra.mxu0 %v2631
    %3907 = vmatprep.mubr.bf16.mxu0 %v156
    %3908 = vmatmul.mubr.bf16.gmra.mrb[0].mxu0 %v155
    %v3909 = vpop.f32.mrb[0].mxu0
    %v3910 = vadd.f32 %v3867, %v3909
    %v3911 = vpop.f32.mrb[0].mxu0
    %v3912 = vadd.f32 %v3869, %v3911
    %v3913 = vpop.f32.mrb[0].mxu0
    %v3914 = vadd.f32 %v3871, %v3913
    %v3915 = vpop.f32.mrb[0].mxu0
    %v3916 = vadd.f32 %v3873, %v3915
    %3917 = vdwg.mxu0
    %3918 = vmatprep.subr.bf16.mxu0 %v2640
    %3919 = vmatpush1.bf16.msra.mxu0 %v2639
    %3920 = vmatprep.subr.bf16.mxu0 %v2648
    %3921 = vmatpush1.bf16.msra.mxu0 %v2647
    %3922 = vmatprep.subr.bf16.mxu0 %v2656
    %3923 = vmatpush1.bf16.msra.mxu0 %v2655
    %3924 = vmatprep.subr.bf16.mxu0 %v2664
    %3925 = vmatpush1.bf16.msra.mxu0 %v2663
    %3926 = vmatprep.subr.bf16.mxu0 %v2672
    %3927 = vmatpush1.bf16.msra.mxu0 %v2671
    %3928 = vmatprep.subr.bf16.mxu0 %v2680
    %3929 = vmatpush1.bf16.msra.mxu0 %v2679
    %3930 = vmatprep.subr.bf16.mxu0 %v2688
    %3931 = vmatpush1.bf16.msra.mxu0 %v2687
    %3932 = vmatprep.subr.bf16.mxu0 %v2696
    %3933 = vmatpush1.bf16.msra.mxu0 %v2695
    %3934 = vmatprep.subr.bf16.mxu0 %v2704
    %3935 = vmatpush1.bf16.msra.mxu0 %v2703
    %3936 = vmatprep.subr.bf16.mxu0 %v2712
    %3937 = vmatpush1.bf16.msra.mxu0 %v2711
    %3938 = vmatprep.subr.bf16.mxu0 %v2720
    %3939 = vmatpush1.bf16.msra.mxu0 %v2719
    %3940 = vmatprep.subr.bf16.mxu0 %v2728
    %3941 = vmatpush1.bf16.msra.mxu0 %v2727
    %3942 = vmatprep.subr.bf16.mxu0 %v2736
    %3943 = vmatpush1.bf16.msra.mxu0 %v2735
    %3944 = vmatprep.subr.bf16.mxu0 %v2744
    %3945 = vmatpush1.bf16.msra.mxu0 %v2743
    %3946 = vmatprep.subr.bf16.mxu0 %v2752
    %3947 = vmatpush1.bf16.msra.mxu0 %v2751
    %3948 = vmatprep.subr.bf16.mxu0 %v2760
    %3949 = vmatpush1.bf16.msra.mxu0 %v2759
    %3950 = vmatprep.mubr.bf16.mxu0 %v158
    %3951 = vmatmul.mubr.bf16.gmra.mrb[0].mxu0 %v157
    %v3952 = vpop.f32.mrb[0].mxu0
    %v3953 = vadd.f32 %v3910, %v3952
    %v3954 = vpop.f32.mrb[0].mxu0
    %v3955 = vadd.f32 %v3912, %v3954
    %v3956 = vpop.f32.mrb[0].mxu0
    %v3957 = vadd.f32 %v3914, %v3956
    %v3958 = vpop.f32.mrb[0].mxu0
    %v3959 = vadd.f32 %v3916, %v3958
    %3960 = vdwg.mxu0
    %vm3961 = vcmp.gt.f32.partialorder %v3437, 0.0
    %vm3962 = vcmp.gt.f32.partialorder %v3439, 0.0
    %vm3963 = vcmp.gt.f32.partialorder %v3609, 0.0
    %vm3964 = vcmp.gt.f32.partialorder %v3611, 0.0
    %vm3965 = vcmp.gt.f32.partialorder %v3781, 0.0
    %vm3966 = vcmp.gt.f32.partialorder %v3783, 0.0
    %vm3967 = vcmp.gt.f32.partialorder %v3953, 0.0
    %vm3968 = vcmp.gt.f32.partialorder %v3955, 0.0
    %vm3969 = vcmp.gt.f32.partialorder %v3441, 0.0
    %vm3970 = vcmp.gt.f32.partialorder %v3443, 0.0
    %vm3971 = vcmp.gt.f32.partialorder %v3613, 0.0
    %vm3972 = vcmp.gt.f32.partialorder %v3615, 0.0
    %vm3973 = vcmp.gt.f32.partialorder %v3785, 0.0
    %vm3974 = vcmp.gt.f32.partialorder %v3787, 0.0
    %vm3975 = vcmp.gt.f32.partialorder %v3957, 0.0
    %vm3976 = vcmp.gt.f32.partialorder %v3959, 0.0
    %v3977 = vmul.f32 %v3437, 0.2
    %v3978 = vmul.f32 %v3439, 0.2
    %v3979 = vmul.f32 %v3609, 0.2
    %v3980 = vmul.f32 %v3611, 0.2
    %v3981 = vmul.f32 %v3781, 0.2
    %v3982 = vmul.f32 %v3783, 0.2
    %v3983 = vmul.f32 %v3953, 0.2
    %v3984 = vmul.f32 %v3955, 0.2
    %v3985 = vmul.f32 %v3441, 0.2
    %v3986 = vmul.f32 %v3443, 0.2
    %v3987 = vmul.f32 %v3613, 0.2
    %v3988 = vmul.f32 %v3615, 0.2
    %v3989 = vmul.f32 %v3785, 0.2
    %v3990 = vmul.f32 %v3787, 0.2
    %v3991 = vmul.f32 %v3957, 0.2
    %v3992 = vmul.f32 %v3959, 0.2
    %v3993 = vsel %vm3961, %v3437, %v3977
    %v3994 = vsel %vm3962, %v3439, %v3978
    %v3995 = vsel %vm3963, %v3609, %v3979
    %v3996 = vsel %vm3964, %v3611, %v3980
    %v3997 = vsel %vm3965, %v3781, %v3981
    %v3998 = vsel %vm3966, %v3783, %v3982
    %v3999 = vsel %vm3967, %v3953, %v3983
    %v4000 = vsel %vm3968, %v3955, %v3984
    %v4001 = vsel %vm3969, %v3441, %v3985
    %v4002 = vsel %vm3970, %v3443, %v3986
    %v4003 = vsel %vm3971, %v3613, %v3987
    %v4004 = vsel %vm3972, %v3615, %v3988
    %v4005 = vsel %vm3973, %v3785, %v3989
    %v4006 = vsel %vm3974, %v3787, %v3990
    %v4007 = vsel %vm3975, %v3957, %v3991
    %v4008 = vsel %vm3976, %v3959, %v3992
    %v4009 = vpack.c.bf16 %v4001, %v3993
    %v4010 = vpack.c.bf16 %v4002, %v3994
    %v4011 = vpack.c.bf16 %v4003, %v3995
    %v4012 = vpack.c.bf16 %v4004, %v3996
    %v4013 = vpack.c.bf16 %v4005, %v3997
    %v4014 = vpack.c.bf16 %v4006, %v3998
    %v4015 = vpack.c.bf16 %v4007, %v3999
    %v4016 = vpack.c.bf16 %v4008, %v4000
    %v4017 = vld [vmem:[#allocation8] sm:$0xff]
    %v4018 = vld [vmem:[#allocation8 + $0x8] sm:$0xff]
    %v4019 = vld [vmem:[#allocation8 + $0x10] sm:$0xff]
    %v4020 = vld [vmem:[#allocation8 + $0x18] sm:$0xff]
    %v4021 = vld [vmem:[#allocation8 + $0x20] sm:$0xff]
    %v4022 = vld [vmem:[#allocation8 + $0x28] sm:$0xff]
    %v4023 = vld [vmem:[#allocation8 + $0x30] sm:$0xff]
    %v4024 = vld [vmem:[#allocation8 + $0x38] sm:$0xff]
    %v4025 = vld [vmem:[#allocation8 + $0x40] sm:$0xff]
    %v4026 = vld [vmem:[#allocation8 + $0x48] sm:$0xff]
    %v4027 = vld [vmem:[#allocation8 + $0x50] sm:$0xff]
    %v4028 = vld [vmem:[#allocation8 + $0x58] sm:$0xff]
    %v4029 = vld [vmem:[#allocation8 + $0x60] sm:$0xff]
    %v4030 = vld [vmem:[#allocation8 + $0x68] sm:$0xff]
    %v4031 = vld [vmem:[#allocation8 + $0x70] sm:$0xff]
    %v4032 = vld [vmem:[#allocation8 + $0x78] sm:$0xff]
    %v4033 = vld [vmem:[#allocation8 + $0x80] sm:$0xff]
    %v4034 = vld [vmem:[#allocation8 + $0x88] sm:$0xff]
    %v4035 = vld [vmem:[#allocation8 + $0x90] sm:$0xff]
    %v4036 = vld [vmem:[#allocation8 + $0x98] sm:$0xff]
    %v4037 = vld [vmem:[#allocation8 + $0xa0] sm:$0xff]
    %v4038 = vld [vmem:[#allocation8 + $0xa8] sm:$0xff]
    %v4039 = vld [vmem:[#allocation8 + $0xb0] sm:$0xff]
    %v4040 = vld [vmem:[#allocation8 + $0xb8] sm:$0xff]
    %v4041 = vld [vmem:[#allocation8 + $0xc0] sm:$0xff]
    %v4042 = vld [vmem:[#allocation8 + $0xc8] sm:$0xff]
    %v4043 = vld [vmem:[#allocation8 + $0xd0] sm:$0xff]
    %v4044 = vld [vmem:[#allocation8 + $0xd8] sm:$0xff]
    %v4045 = vld [vmem:[#allocation8 + $0xe0] sm:$0xff]
    %v4046 = vld [vmem:[#allocation8 + $0xe8] sm:$0xff]
    %v4047 = vld [vmem:[#allocation8 + $0xf0] sm:$0xff]
    %v4048 = vld [vmem:[#allocation8 + $0xf8] sm:$0xff]
    %v4049 = vld [vmem:[#allocation8 + $0x100] sm:$0xff]
    %v4050 = vld [vmem:[#allocation8 + $0x108] sm:$0xff]
    %v4051 = vld [vmem:[#allocation8 + $0x110] sm:$0xff]
    %v4052 = vld [vmem:[#allocation8 + $0x118] sm:$0xff]
    %v4053 = vld [vmem:[#allocation8 + $0x120] sm:$0xff]
    %v4054 = vld [vmem:[#allocation8 + $0x128] sm:$0xff]
    %v4055 = vld [vmem:[#allocation8 + $0x130] sm:$0xff]
    %v4056 = vld [vmem:[#allocation8 + $0x138] sm:$0xff]
    %v4057 = vld [vmem:[#allocation8 + $0x140] sm:$0xff]
    %v4058 = vld [vmem:[#allocation8 + $0x148] sm:$0xff]
    %v4059 = vld [vmem:[#allocation8 + $0x150] sm:$0xff]
    %v4060 = vld [vmem:[#allocation8 + $0x158] sm:$0xff]
    %v4061 = vld [vmem:[#allocation8 + $0x160] sm:$0xff]
    %v4062 = vld [vmem:[#allocation8 + $0x168] sm:$0xff]
    %v4063 = vld [vmem:[#allocation8 + $0x170] sm:$0xff]
    %v4064 = vld [vmem:[#allocation8 + $0x178] sm:$0xff]
    %v4065 = vld [vmem:[#allocation8 + $0x180] sm:$0xff]
    %v4066 = vld [vmem:[#allocation8 + $0x188] sm:$0xff]
    %v4067 = vld [vmem:[#allocation8 + $0x190] sm:$0xff]
    %v4068 = vld [vmem:[#allocation8 + $0x198] sm:$0xff]
    %v4069 = vld [vmem:[#allocation8 + $0x1a0] sm:$0xff]
    %v4070 = vld [vmem:[#allocation8 + $0x1a8] sm:$0xff]
    %v4071 = vld [vmem:[#allocation8 + $0x1b0] sm:$0xff]
    %v4072 = vld [vmem:[#allocation8 + $0x1b8] sm:$0xff]
    %v4073 = vld [vmem:[#allocation8 + $0x1c0] sm:$0xff]
    %v4074 = vld [vmem:[#allocation8 + $0x1c8] sm:$0xff]
    %v4075 = vld [vmem:[#allocation8 + $0x1d0] sm:$0xff]
    %v4076 = vld [vmem:[#allocation8 + $0x1d8] sm:$0xff]
    %v4077 = vld [vmem:[#allocation8 + $0x1e0] sm:$0xff]
    %v4078 = vld [vmem:[#allocation8 + $0x1e8] sm:$0xff]
    %v4079 = vld [vmem:[#allocation8 + $0x1f0] sm:$0xff]
    %v4080 = vld [vmem:[#allocation8 + $0x1f8] sm:$0xff]
    %v4081 = vld [vmem:[#allocation8 + $0x200] sm:$0xff]
    %v4082 = vld [vmem:[#allocation8 + $0x208] sm:$0xff]
    %v4083 = vld [vmem:[#allocation8 + $0x210] sm:$0xff]
    %v4084 = vld [vmem:[#allocation8 + $0x218] sm:$0xff]
    %v4085 = vld [vmem:[#allocation8 + $0x220] sm:$0xff]
    %v4086 = vld [vmem:[#allocation8 + $0x228] sm:$0xff]
    %v4087 = vld [vmem:[#allocation8 + $0x230] sm:$0xff]
    %v4088 = vld [vmem:[#allocation8 + $0x238] sm:$0xff]
    %v4089 = vld [vmem:[#allocation8 + $0x240] sm:$0xff]
    %v4090 = vld [vmem:[#allocation8 + $0x248] sm:$0xff]
    %v4091 = vld [vmem:[#allocation8 + $0x250] sm:$0xff]
    %v4092 = vld [vmem:[#allocation8 + $0x258] sm:$0xff]
    %v4093 = vld [vmem:[#allocation8 + $0x260] sm:$0xff]
    %v4094 = vld [vmem:[#allocation8 + $0x268] sm:$0xff]
    %v4095 = vld [vmem:[#allocation8 + $0x270] sm:$0xff]
    %v4096 = vld [vmem:[#allocation8 + $0x278] sm:$0xff]
    %v4097 = vld [vmem:[#allocation8 + $0x280] sm:$0xff]
    %v4098 = vld [vmem:[#allocation8 + $0x288] sm:$0xff]
    %v4099 = vld [vmem:[#allocation8 + $0x290] sm:$0xff]
    %v4100 = vld [vmem:[#allocation8 + $0x298] sm:$0xff]
    %v4101 = vld [vmem:[#allocation8 + $0x2a0] sm:$0xff]
    %v4102 = vld [vmem:[#allocation8 + $0x2a8] sm:$0xff]
    %v4103 = vld [vmem:[#allocation8 + $0x2b0] sm:$0xff]
    %v4104 = vld [vmem:[#allocation8 + $0x2b8] sm:$0xff]
    %v4105 = vld [vmem:[#allocation8 + $0x2c0] sm:$0xff]
    %v4106 = vld [vmem:[#allocation8 + $0x2c8] sm:$0xff]
    %v4107 = vld [vmem:[#allocation8 + $0x2d0] sm:$0xff]
    %v4108 = vld [vmem:[#allocation8 + $0x2d8] sm:$0xff]
    %v4109 = vld [vmem:[#allocation8 + $0x2e0] sm:$0xff]
    %v4110 = vld [vmem:[#allocation8 + $0x2e8] sm:$0xff]
    %v4111 = vld [vmem:[#allocation8 + $0x2f0] sm:$0xff]
    %v4112 = vld [vmem:[#allocation8 + $0x2f8] sm:$0xff]
    %v4113 = vld [vmem:[#allocation8 + $0x300] sm:$0xff]
    %v4114 = vld [vmem:[#allocation8 + $0x308] sm:$0xff]
    %v4115 = vld [vmem:[#allocation8 + $0x310] sm:$0xff]
    %v4116 = vld [vmem:[#allocation8 + $0x318] sm:$0xff]
    %v4117 = vld [vmem:[#allocation8 + $0x320] sm:$0xff]
    %v4118 = vld [vmem:[#allocation8 + $0x328] sm:$0xff]
    %v4119 = vld [vmem:[#allocation8 + $0x330] sm:$0xff]
    %v4120 = vld [vmem:[#allocation8 + $0x338] sm:$0xff]
    %v4121 = vld [vmem:[#allocation8 + $0x340] sm:$0xff]
    %v4122 = vld [vmem:[#allocation8 + $0x348] sm:$0xff]
    %v4123 = vld [vmem:[#allocation8 + $0x350] sm:$0xff]
    %v4124 = vld [vmem:[#allocation8 + $0x358] sm:$0xff]
    %v4125 = vld [vmem:[#allocation8 + $0x360] sm:$0xff]
    %v4126 = vld [vmem:[#allocation8 + $0x368] sm:$0xff]
    %v4127 = vld [vmem:[#allocation8 + $0x370] sm:$0xff]
    %v4128 = vld [vmem:[#allocation8 + $0x378] sm:$0xff]
    %v4129 = vld [vmem:[#allocation8 + $0x380] sm:$0xff]
    %v4130 = vld [vmem:[#allocation8 + $0x388] sm:$0xff]
    %v4131 = vld [vmem:[#allocation8 + $0x390] sm:$0xff]
    %v4132 = vld [vmem:[#allocation8 + $0x398] sm:$0xff]
    %v4133 = vld [vmem:[#allocation8 + $0x3a0] sm:$0xff]
    %v4134 = vld [vmem:[#allocation8 + $0x3a8] sm:$0xff]
    %v4135 = vld [vmem:[#allocation8 + $0x3b0] sm:$0xff]
    %v4136 = vld [vmem:[#allocation8 + $0x3b8] sm:$0xff]
    %v4137 = vld [vmem:[#allocation8 + $0x3c0] sm:$0xff]
    %v4138 = vld [vmem:[#allocation8 + $0x3c8] sm:$0xff]
    %v4139 = vld [vmem:[#allocation8 + $0x3d0] sm:$0xff]
    %v4140 = vld [vmem:[#allocation8 + $0x3d8] sm:$0xff]
    %v4141 = vld [vmem:[#allocation8 + $0x3e0] sm:$0xff]
    %v4142 = vld [vmem:[#allocation8 + $0x3e8] sm:$0xff]
    %v4143 = vld [vmem:[#allocation8 + $0x3f0] sm:$0xff]
    %v4144 = vld [vmem:[#allocation8 + $0x3f8] sm:$0xff]
    %v4145 = vld [vmem:[#allocation8 + $0x400] sm:$0xff]
    %v4146 = vld [vmem:[#allocation8 + $0x408] sm:$0xff]
    %v4147 = vld [vmem:[#allocation8 + $0x410] sm:$0xff]
    %v4148 = vld [vmem:[#allocation8 + $0x418] sm:$0xff]
    %v4149 = vld [vmem:[#allocation8 + $0x420] sm:$0xff]
    %v4150 = vld [vmem:[#allocation8 + $0x428] sm:$0xff]
    %v4151 = vld [vmem:[#allocation8 + $0x430] sm:$0xff]
    %v4152 = vld [vmem:[#allocation8 + $0x438] sm:$0xff]
    %v4153 = vld [vmem:[#allocation8 + $0x440] sm:$0xff]
    %v4154 = vld [vmem:[#allocation8 + $0x448] sm:$0xff]
    %v4155 = vld [vmem:[#allocation8 + $0x450] sm:$0xff]
    %v4156 = vld [vmem:[#allocation8 + $0x458] sm:$0xff]
    %v4157 = vld [vmem:[#allocation8 + $0x460] sm:$0xff]
    %v4158 = vld [vmem:[#allocation8 + $0x468] sm:$0xff]
    %v4159 = vld [vmem:[#allocation8 + $0x470] sm:$0xff]
    %v4160 = vld [vmem:[#allocation8 + $0x478] sm:$0xff]
    %v4161 = vld [vmem:[#allocation8 + $0x480] sm:$0xff]
    %v4162 = vld [vmem:[#allocation8 + $0x488] sm:$0xff]
    %v4163 = vld [vmem:[#allocation8 + $0x490] sm:$0xff]
    %v4164 = vld [vmem:[#allocation8 + $0x498] sm:$0xff]
    %v4165 = vld [vmem:[#allocation8 + $0x4a0] sm:$0xff]
    %v4166 = vld [vmem:[#allocation8 + $0x4a8] sm:$0xff]
    %v4167 = vld [vmem:[#allocation8 + $0x4b0] sm:$0xff]
    %v4168 = vld [vmem:[#allocation8 + $0x4b8] sm:$0xff]
    %v4169 = vld [vmem:[#allocation8 + $0x4c0] sm:$0xff]
    %v4170 = vld [vmem:[#allocation8 + $0x4c8] sm:$0xff]
    %v4171 = vld [vmem:[#allocation8 + $0x4d0] sm:$0xff]
    %v4172 = vld [vmem:[#allocation8 + $0x4d8] sm:$0xff]
    %v4173 = vld [vmem:[#allocation8 + $0x4e0] sm:$0xff]
    %v4174 = vld [vmem:[#allocation8 + $0x4e8] sm:$0xff]
    %v4175 = vld [vmem:[#allocation8 + $0x4f0] sm:$0xff]
    %v4176 = vld [vmem:[#allocation8 + $0x4f8] sm:$0xff]
    %v4177 = vld [vmem:[#allocation8 + $0x500] sm:$0xff]
    %v4178 = vld [vmem:[#allocation8 + $0x508] sm:$0xff]
    %v4179 = vld [vmem:[#allocation8 + $0x510] sm:$0xff]
    %v4180 = vld [vmem:[#allocation8 + $0x518] sm:$0xff]
    %v4181 = vld [vmem:[#allocation8 + $0x520] sm:$0xff]
    %v4182 = vld [vmem:[#allocation8 + $0x528] sm:$0xff]
    %v4183 = vld [vmem:[#allocation8 + $0x530] sm:$0xff]
    %v4184 = vld [vmem:[#allocation8 + $0x538] sm:$0xff]
    %v4185 = vld [vmem:[#allocation8 + $0x540] sm:$0xff]
    %v4186 = vld [vmem:[#allocation8 + $0x548] sm:$0xff]
    %v4187 = vld [vmem:[#allocation8 + $0x550] sm:$0xff]
    %v4188 = vld [vmem:[#allocation8 + $0x558] sm:$0xff]
    %v4189 = vld [vmem:[#allocation8 + $0x560] sm:$0xff]
    %v4190 = vld [vmem:[#allocation8 + $0x568] sm:$0xff]
    %v4191 = vld [vmem:[#allocation8 + $0x570] sm:$0xff]
    %v4192 = vld [vmem:[#allocation8 + $0x578] sm:$0xff]
    %v4193 = vld [vmem:[#allocation8 + $0x580] sm:$0xff]
    %v4194 = vld [vmem:[#allocation8 + $0x588] sm:$0xff]
    %v4195 = vld [vmem:[#allocation8 + $0x590] sm:$0xff]
    %v4196 = vld [vmem:[#allocation8 + $0x598] sm:$0xff]
    %v4197 = vld [vmem:[#allocation8 + $0x5a0] sm:$0xff]
    %v4198 = vld [vmem:[#allocation8 + $0x5a8] sm:$0xff]
    %v4199 = vld [vmem:[#allocation8 + $0x5b0] sm:$0xff]
    %v4200 = vld [vmem:[#allocation8 + $0x5b8] sm:$0xff]
    %v4201 = vld [vmem:[#allocation8 + $0x5c0] sm:$0xff]
    %v4202 = vld [vmem:[#allocation8 + $0x5c8] sm:$0xff]
    %v4203 = vld [vmem:[#allocation8 + $0x5d0] sm:$0xff]
    %v4204 = vld [vmem:[#allocation8 + $0x5d8] sm:$0xff]
    %v4205 = vld [vmem:[#allocation8 + $0x5e0] sm:$0xff]
    %v4206 = vld [vmem:[#allocation8 + $0x5e8] sm:$0xff]
    %v4207 = vld [vmem:[#allocation8 + $0x5f0] sm:$0xff]
    %v4208 = vld [vmem:[#allocation8 + $0x5f8] sm:$0xff]
    %v4209 = vld [vmem:[#allocation8 + $0x600] sm:$0xff]
    %v4210 = vld [vmem:[#allocation8 + $0x608] sm:$0xff]
    %v4211 = vld [vmem:[#allocation8 + $0x610] sm:$0xff]
    %v4212 = vld [vmem:[#allocation8 + $0x618] sm:$0xff]
    %v4213 = vld [vmem:[#allocation8 + $0x620] sm:$0xff]
    %v4214 = vld [vmem:[#allocation8 + $0x628] sm:$0xff]
    %v4215 = vld [vmem:[#allocation8 + $0x630] sm:$0xff]
    %v4216 = vld [vmem:[#allocation8 + $0x638] sm:$0xff]
    %v4217 = vld [vmem:[#allocation8 + $0x640] sm:$0xff]
    %v4218 = vld [vmem:[#allocation8 + $0x648] sm:$0xff]
    %v4219 = vld [vmem:[#allocation8 + $0x650] sm:$0xff]
    %v4220 = vld [vmem:[#allocation8 + $0x658] sm:$0xff]
    %v4221 = vld [vmem:[#allocation8 + $0x660] sm:$0xff]
    %v4222 = vld [vmem:[#allocation8 + $0x668] sm:$0xff]
    %v4223 = vld [vmem:[#allocation8 + $0x670] sm:$0xff]
    %v4224 = vld [vmem:[#allocation8 + $0x678] sm:$0xff]
    %v4225 = vld [vmem:[#allocation8 + $0x680] sm:$0xff]
    %v4226 = vld [vmem:[#allocation8 + $0x688] sm:$0xff]
    %v4227 = vld [vmem:[#allocation8 + $0x690] sm:$0xff]
    %v4228 = vld [vmem:[#allocation8 + $0x698] sm:$0xff]
    %v4229 = vld [vmem:[#allocation8 + $0x6a0] sm:$0xff]
    %v4230 = vld [vmem:[#allocation8 + $0x6a8] sm:$0xff]
    %v4231 = vld [vmem:[#allocation8 + $0x6b0] sm:$0xff]
    %v4232 = vld [vmem:[#allocation8 + $0x6b8] sm:$0xff]
    %v4233 = vld [vmem:[#allocation8 + $0x6c0] sm:$0xff]
    %v4234 = vld [vmem:[#allocation8 + $0x6c8] sm:$0xff]
    %v4235 = vld [vmem:[#allocation8 + $0x6d0] sm:$0xff]
    %v4236 = vld [vmem:[#allocation8 + $0x6d8] sm:$0xff]
    %v4237 = vld [vmem:[#allocation8 + $0x6e0] sm:$0xff]
    %v4238 = vld [vmem:[#allocation8 + $0x6e8] sm:$0xff]
    %v4239 = vld [vmem:[#allocation8 + $0x6f0] sm:$0xff]
    %v4240 = vld [vmem:[#allocation8 + $0x6f8] sm:$0xff]
    %v4241 = vld [vmem:[#allocation8 + $0x700] sm:$0xff]
    %v4242 = vld [vmem:[#allocation8 + $0x708] sm:$0xff]
    %v4243 = vld [vmem:[#allocation8 + $0x710] sm:$0xff]
    %v4244 = vld [vmem:[#allocation8 + $0x718] sm:$0xff]
    %v4245 = vld [vmem:[#allocation8 + $0x720] sm:$0xff]
    %v4246 = vld [vmem:[#allocation8 + $0x728] sm:$0xff]
    %v4247 = vld [vmem:[#allocation8 + $0x730] sm:$0xff]
    %v4248 = vld [vmem:[#allocation8 + $0x738] sm:$0xff]
    %v4249 = vld [vmem:[#allocation8 + $0x740] sm:$0xff]
    %v4250 = vld [vmem:[#allocation8 + $0x748] sm:$0xff]
    %v4251 = vld [vmem:[#allocation8 + $0x750] sm:$0xff]
    %v4252 = vld [vmem:[#allocation8 + $0x758] sm:$0xff]
    %v4253 = vld [vmem:[#allocation8 + $0x760] sm:$0xff]
    %v4254 = vld [vmem:[#allocation8 + $0x768] sm:$0xff]
    %v4255 = vld [vmem:[#allocation8 + $0x770] sm:$0xff]
    %v4256 = vld [vmem:[#allocation8 + $0x778] sm:$0xff]
    %v4257 = vld [vmem:[#allocation8 + $0x780] sm:$0xff]
    %v4258 = vld [vmem:[#allocation8 + $0x788] sm:$0xff]
    %v4259 = vld [vmem:[#allocation8 + $0x790] sm:$0xff]
    %v4260 = vld [vmem:[#allocation8 + $0x798] sm:$0xff]
    %v4261 = vld [vmem:[#allocation8 + $0x7a0] sm:$0xff]
    %v4262 = vld [vmem:[#allocation8 + $0x7a8] sm:$0xff]
    %v4263 = vld [vmem:[#allocation8 + $0x7b0] sm:$0xff]
    %v4264 = vld [vmem:[#allocation8 + $0x7b8] sm:$0xff]
    %v4265 = vld [vmem:[#allocation8 + $0x7c0] sm:$0xff]
    %v4266 = vld [vmem:[#allocation8 + $0x7c8] sm:$0xff]
    %v4267 = vld [vmem:[#allocation8 + $0x7d0] sm:$0xff]
    %v4268 = vld [vmem:[#allocation8 + $0x7d8] sm:$0xff]
    %v4269 = vld [vmem:[#allocation8 + $0x7e0] sm:$0xff]
    %v4270 = vld [vmem:[#allocation8 + $0x7e8] sm:$0xff]
    %v4271 = vld [vmem:[#allocation8 + $0x7f0] sm:$0xff]
    %v4272 = vld [vmem:[#allocation8 + $0x7f8] sm:$0xff]
    %v4273 = vld [vmem:[#allocation10] sm:$0xf]
    %v4275 = vlaneseq
    %v4276 = vshrl.u32 %v4275, 7
    %v4277 = vsub.s32 0, %v4276
    %v4278 = vrot.slane %v4273, %v4277
    %v4279 = vlaneseq
    %v4280 = vshrl.u32 %v4279, 7
    %v4281 = vsub.s32 1, %v4280
    %v4282 = vrot.slane %v4273, %v4281
    %v4283 = vlaneseq
    %v4284 = vshrl.u32 %v4283, 7
    %v4285 = vsub.s32 2, %v4284
    %v4286 = vrot.slane %v4273, %v4285
    %v4287 = vlaneseq
    %v4288 = vshrl.u32 %v4287, 7
    %v4289 = vsub.s32 3, %v4288
    %v4290 = vrot.slane %v4273, %v4289
    %v4551 = vunpack.c.l.b16 %v4017
    %v4552 = vunpack.c.h.b16 %v4017
    %v4553 = vunpack.c.l.b16 %v4018
    %v4554 = vunpack.c.h.b16 %v4018
    %v4555 = vunpack.c.l.b16 %v4019
    %v4556 = vunpack.c.h.b16 %v4019
    %v4557 = vunpack.c.l.b16 %v4020
    %v4558 = vunpack.c.h.b16 %v4020
    %v4559 = vunpack.c.l.b16 %v4021
    %v4560 = vunpack.c.h.b16 %v4021
    %v4561 = vunpack.c.l.b16 %v4022
    %v4562 = vunpack.c.h.b16 %v4022
    %v4563 = vunpack.c.l.b16 %v4023
    %v4564 = vunpack.c.h.b16 %v4023
    %v4565 = vunpack.c.l.b16 %v4024
    %v4566 = vunpack.c.h.b16 %v4024
    %v4567 = vunpack.c.l.b16 %v4025
    %v4568 = vunpack.c.h.b16 %v4025
    %v4569 = vunpack.c.l.b16 %v4026
    %v4570 = vunpack.c.h.b16 %v4026
    %v4571 = vunpack.c.l.b16 %v4027
    %v4572 = vunpack.c.h.b16 %v4027
    %v4573 = vunpack.c.l.b16 %v4028
    %v4574 = vunpack.c.h.b16 %v4028
    %v4575 = vunpack.c.l.b16 %v4029
    %v4576 = vunpack.c.h.b16 %v4029
    %v4577 = vunpack.c.l.b16 %v4030
    %v4578 = vunpack.c.h.b16 %v4030
    %v4579 = vunpack.c.l.b16 %v4031
    %v4580 = vunpack.c.h.b16 %v4031
    %v4581 = vunpack.c.l.b16 %v4032
    %v4582 = vunpack.c.h.b16 %v4032
    %v4583 = vunpack.c.l.b16 %v4033
    %v4584 = vunpack.c.h.b16 %v4033
    %v4585 = vunpack.c.l.b16 %v4034
    %v4586 = vunpack.c.h.b16 %v4034
    %v4587 = vunpack.c.l.b16 %v4035
    %v4588 = vunpack.c.h.b16 %v4035
    %v4589 = vunpack.c.l.b16 %v4036
    %v4590 = vunpack.c.h.b16 %v4036
    %v4591 = vunpack.c.l.b16 %v4037
    %v4592 = vunpack.c.h.b16 %v4037
    %v4593 = vunpack.c.l.b16 %v4038
    %v4594 = vunpack.c.h.b16 %v4038
    %v4595 = vunpack.c.l.b16 %v4039
    %v4596 = vunpack.c.h.b16 %v4039
    %v4597 = vunpack.c.l.b16 %v4040
    %v4598 = vunpack.c.h.b16 %v4040
    %v4599 = vunpack.c.l.b16 %v4041
    %v4600 = vunpack.c.h.b16 %v4041
    %v4601 = vunpack.c.l.b16 %v4042
    %v4602 = vunpack.c.h.b16 %v4042
    %v4603 = vunpack.c.l.b16 %v4043
    %v4604 = vunpack.c.h.b16 %v4043
    %v4605 = vunpack.c.l.b16 %v4044
    %v4606 = vunpack.c.h.b16 %v4044
    %v4607 = vunpack.c.l.b16 %v4045
    %v4608 = vunpack.c.h.b16 %v4045
    %v4609 = vunpack.c.l.b16 %v4046
    %v4610 = vunpack.c.h.b16 %v4046
    %v4611 = vunpack.c.l.b16 %v4047
    %v4612 = vunpack.c.h.b16 %v4047
    %v4613 = vunpack.c.l.b16 %v4048
    %v4614 = vunpack.c.h.b16 %v4048
    %v4615 = vunpack.c.l.b16 %v4049
    %v4616 = vunpack.c.h.b16 %v4049
    %v4617 = vunpack.c.l.b16 %v4050
    %v4618 = vunpack.c.h.b16 %v4050
    %v4619 = vunpack.c.l.b16 %v4051
    %v4620 = vunpack.c.h.b16 %v4051
    %v4621 = vunpack.c.l.b16 %v4052
    %v4622 = vunpack.c.h.b16 %v4052
    %v4623 = vunpack.c.l.b16 %v4053
    %v4624 = vunpack.c.h.b16 %v4053
    %v4625 = vunpack.c.l.b16 %v4054
    %v4626 = vunpack.c.h.b16 %v4054
    %v4627 = vunpack.c.l.b16 %v4055
    %v4628 = vunpack.c.h.b16 %v4055
    %v4629 = vunpack.c.l.b16 %v4056
    %v4630 = vunpack.c.h.b16 %v4056
    %v4631 = vunpack.c.l.b16 %v4057
    %v4632 = vunpack.c.h.b16 %v4057
    %v4633 = vunpack.c.l.b16 %v4058
    %v4634 = vunpack.c.h.b16 %v4058
    %v4635 = vunpack.c.l.b16 %v4059
    %v4636 = vunpack.c.h.b16 %v4059
    %v4637 = vunpack.c.l.b16 %v4060
    %v4638 = vunpack.c.h.b16 %v4060
    %v4639 = vunpack.c.l.b16 %v4061
    %v4640 = vunpack.c.h.b16 %v4061
    %v4641 = vunpack.c.l.b16 %v4062
    %v4642 = vunpack.c.h.b16 %v4062
    %v4643 = vunpack.c.l.b16 %v4063
    %v4644 = vunpack.c.h.b16 %v4063
    %v4645 = vunpack.c.l.b16 %v4064
    %v4646 = vunpack.c.h.b16 %v4064
    %v4647 = vunpack.c.l.b16 %v4065
    %v4648 = vunpack.c.h.b16 %v4065
    %v4649 = vunpack.c.l.b16 %v4066
    %v4650 = vunpack.c.h.b16 %v4066
    %v4651 = vunpack.c.l.b16 %v4067
    %v4652 = vunpack.c.h.b16 %v4067
    %v4653 = vunpack.c.l.b16 %v4068
    %v4654 = vunpack.c.h.b16 %v4068
    %v4655 = vunpack.c.l.b16 %v4069
    %v4656 = vunpack.c.h.b16 %v4069
    %v4657 = vunpack.c.l.b16 %v4070
    %v4658 = vunpack.c.h.b16 %v4070
    %v4659 = vunpack.c.l.b16 %v4071
    %v4660 = vunpack.c.h.b16 %v4071
    %v4661 = vunpack.c.l.b16 %v4072
    %v4662 = vunpack.c.h.b16 %v4072
    %v4663 = vunpack.c.l.b16 %v4073
    %v4664 = vunpack.c.h.b16 %v4073
    %v4665 = vunpack.c.l.b16 %v4074
    %v4666 = vunpack.c.h.b16 %v4074
    %v4667 = vunpack.c.l.b16 %v4075
    %v4668 = vunpack.c.h.b16 %v4075
    %v4669 = vunpack.c.l.b16 %v4076
    %v4670 = vunpack.c.h.b16 %v4076
    %v4671 = vunpack.c.l.b16 %v4077
    %v4672 = vunpack.c.h.b16 %v4077
    %v4673 = vunpack.c.l.b16 %v4078
    %v4674 = vunpack.c.h.b16 %v4078
    %v4675 = vunpack.c.l.b16 %v4079
    %v4676 = vunpack.c.h.b16 %v4079
    %v4677 = vunpack.c.l.b16 %v4080
    %v4678 = vunpack.c.h.b16 %v4080
    %v4679 = vunpack.c.l.b16 %v4081
    %v4680 = vunpack.c.h.b16 %v4081
    %v4681 = vunpack.c.l.b16 %v4082
    %v4682 = vunpack.c.h.b16 %v4082
    %v4683 = vunpack.c.l.b16 %v4083
    %v4684 = vunpack.c.h.b16 %v4083
    %v4685 = vunpack.c.l.b16 %v4084
    %v4686 = vunpack.c.h.b16 %v4084
    %v4687 = vunpack.c.l.b16 %v4085
    %v4688 = vunpack.c.h.b16 %v4085
    %v4689 = vunpack.c.l.b16 %v4086
    %v4690 = vunpack.c.h.b16 %v4086
    %v4691 = vunpack.c.l.b16 %v4087
    %v4692 = vunpack.c.h.b16 %v4087
    %v4693 = vunpack.c.l.b16 %v4088
    %v4694 = vunpack.c.h.b16 %v4088
    %v4695 = vunpack.c.l.b16 %v4089
    %v4696 = vunpack.c.h.b16 %v4089
    %v4697 = vunpack.c.l.b16 %v4090
    %v4698 = vunpack.c.h.b16 %v4090
    %v4699 = vunpack.c.l.b16 %v4091
    %v4700 = vunpack.c.h.b16 %v4091
    %v4701 = vunpack.c.l.b16 %v4092
    %v4702 = vunpack.c.h.b16 %v4092
    %v4703 = vunpack.c.l.b16 %v4093
    %v4704 = vunpack.c.h.b16 %v4093
    %v4705 = vunpack.c.l.b16 %v4094
    %v4706 = vunpack.c.h.b16 %v4094
    %v4707 = vunpack.c.l.b16 %v4095
    %v4708 = vunpack.c.h.b16 %v4095
    %v4709 = vunpack.c.l.b16 %v4096
    %v4710 = vunpack.c.h.b16 %v4096
    %v4711 = vunpack.c.l.b16 %v4097
    %v4712 = vunpack.c.h.b16 %v4097
    %v4713 = vunpack.c.l.b16 %v4098
    %v4714 = vunpack.c.h.b16 %v4098
    %v4715 = vunpack.c.l.b16 %v4099
    %v4716 = vunpack.c.h.b16 %v4099
    %v4717 = vunpack.c.l.b16 %v4100
    %v4718 = vunpack.c.h.b16 %v4100
    %v4719 = vunpack.c.l.b16 %v4101
    %v4720 = vunpack.c.h.b16 %v4101
    %v4721 = vunpack.c.l.b16 %v4102
    %v4722 = vunpack.c.h.b16 %v4102
    %v4723 = vunpack.c.l.b16 %v4103
    %v4724 = vunpack.c.h.b16 %v4103
    %v4725 = vunpack.c.l.b16 %v4104
    %v4726 = vunpack.c.h.b16 %v4104
    %v4727 = vunpack.c.l.b16 %v4105
    %v4728 = vunpack.c.h.b16 %v4105
    %v4729 = vunpack.c.l.b16 %v4106
    %v4730 = vunpack.c.h.b16 %v4106
    %v4731 = vunpack.c.l.b16 %v4107
    %v4732 = vunpack.c.h.b16 %v4107
    %v4733 = vunpack.c.l.b16 %v4108
    %v4734 = vunpack.c.h.b16 %v4108
    %v4735 = vunpack.c.l.b16 %v4109
    %v4736 = vunpack.c.h.b16 %v4109
    %v4737 = vunpack.c.l.b16 %v4110
    %v4738 = vunpack.c.h.b16 %v4110
    %v4739 = vunpack.c.l.b16 %v4111
    %v4740 = vunpack.c.h.b16 %v4111
    %v4741 = vunpack.c.l.b16 %v4112
    %v4742 = vunpack.c.h.b16 %v4112
    %v4743 = vunpack.c.l.b16 %v4113
    %v4744 = vunpack.c.h.b16 %v4113
    %v4745 = vunpack.c.l.b16 %v4114
    %v4746 = vunpack.c.h.b16 %v4114
    %v4747 = vunpack.c.l.b16 %v4115
    %v4748 = vunpack.c.h.b16 %v4115
    %v4749 = vunpack.c.l.b16 %v4116
    %v4750 = vunpack.c.h.b16 %v4116
    %v4751 = vunpack.c.l.b16 %v4117
    %v4752 = vunpack.c.h.b16 %v4117
    %v4753 = vunpack.c.l.b16 %v4118
    %v4754 = vunpack.c.h.b16 %v4118
    %v4755 = vunpack.c.l.b16 %v4119
    %v4756 = vunpack.c.h.b16 %v4119
    %v4757 = vunpack.c.l.b16 %v4120
    %v4758 = vunpack.c.h.b16 %v4120
    %v4759 = vunpack.c.l.b16 %v4121
    %v4760 = vunpack.c.h.b16 %v4121
    %v4761 = vunpack.c.l.b16 %v4122
    %v4762 = vunpack.c.h.b16 %v4122
    %v4763 = vunpack.c.l.b16 %v4123
    %v4764 = vunpack.c.h.b16 %v4123
    %v4765 = vunpack.c.l.b16 %v4124
    %v4766 = vunpack.c.h.b16 %v4124
    %v4767 = vunpack.c.l.b16 %v4125
    %v4768 = vunpack.c.h.b16 %v4125
    %v4769 = vunpack.c.l.b16 %v4126
    %v4770 = vunpack.c.h.b16 %v4126
    %v4771 = vunpack.c.l.b16 %v4127
    %v4772 = vunpack.c.h.b16 %v4127
    %v4773 = vunpack.c.l.b16 %v4128
    %v4774 = vunpack.c.h.b16 %v4128
    %v4775 = vunpack.c.l.b16 %v4129
    %v4776 = vunpack.c.h.b16 %v4129
    %v4777 = vunpack.c.l.b16 %v4130
    %v4778 = vunpack.c.h.b16 %v4130
    %v4779 = vunpack.c.l.b16 %v4131
    %v4780 = vunpack.c.h.b16 %v4131
    %v4781 = vunpack.c.l.b16 %v4132
    %v4782 = vunpack.c.h.b16 %v4132
    %v4783 = vunpack.c.l.b16 %v4133
    %v4784 = vunpack.c.h.b16 %v4133
    %v4785 = vunpack.c.l.b16 %v4134
    %v4786 = vunpack.c.h.b16 %v4134
    %v4787 = vunpack.c.l.b16 %v4135
    %v4788 = vunpack.c.h.b16 %v4135
    %v4789 = vunpack.c.l.b16 %v4136
    %v4790 = vunpack.c.h.b16 %v4136
    %v4791 = vunpack.c.l.b16 %v4137
    %v4792 = vunpack.c.h.b16 %v4137
    %v4793 = vunpack.c.l.b16 %v4138
    %v4794 = vunpack.c.h.b16 %v4138
    %v4795 = vunpack.c.l.b16 %v4139
    %v4796 = vunpack.c.h.b16 %v4139
    %v4797 = vunpack.c.l.b16 %v4140
    %v4798 = vunpack.c.h.b16 %v4140
    %v4799 = vunpack.c.l.b16 %v4141
    %v4800 = vunpack.c.h.b16 %v4141
    %v4801 = vunpack.c.l.b16 %v4142
    %v4802 = vunpack.c.h.b16 %v4142
    %v4803 = vunpack.c.l.b16 %v4143
    %v4804 = vunpack.c.h.b16 %v4143
    %v4805 = vunpack.c.l.b16 %v4144
    %v4806 = vunpack.c.h.b16 %v4144
    %v4807 = vunpack.c.l.b16 %v4145
    %v4808 = vunpack.c.h.b16 %v4145
    %v4809 = vunpack.c.l.b16 %v4146
    %v4810 = vunpack.c.h.b16 %v4146
    %v4811 = vunpack.c.l.b16 %v4147
    %v4812 = vunpack.c.h.b16 %v4147
    %v4813 = vunpack.c.l.b16 %v4148
    %v4814 = vunpack.c.h.b16 %v4148
    %v4815 = vunpack.c.l.b16 %v4149
    %v4816 = vunpack.c.h.b16 %v4149
    %v4817 = vunpack.c.l.b16 %v4150
    %v4818 = vunpack.c.h.b16 %v4150
    %v4819 = vunpack.c.l.b16 %v4151
    %v4820 = vunpack.c.h.b16 %v4151
    %v4821 = vunpack.c.l.b16 %v4152
    %v4822 = vunpack.c.h.b16 %v4152
    %v4823 = vunpack.c.l.b16 %v4153
    %v4824 = vunpack.c.h.b16 %v4153
    %v4825 = vunpack.c.l.b16 %v4154
    %v4826 = vunpack.c.h.b16 %v4154
    %v4827 = vunpack.c.l.b16 %v4155
    %v4828 = vunpack.c.h.b16 %v4155
    %v4829 = vunpack.c.l.b16 %v4156
    %v4830 = vunpack.c.h.b16 %v4156
    %v4831 = vunpack.c.l.b16 %v4157
    %v4832 = vunpack.c.h.b16 %v4157
    %v4833 = vunpack.c.l.b16 %v4158
    %v4834 = vunpack.c.h.b16 %v4158
    %v4835 = vunpack.c.l.b16 %v4159
    %v4836 = vunpack.c.h.b16 %v4159
    %v4837 = vunpack.c.l.b16 %v4160
    %v4838 = vunpack.c.h.b16 %v4160
    %v4839 = vunpack.c.l.b16 %v4161
    %v4840 = vunpack.c.h.b16 %v4161
    %v4841 = vunpack.c.l.b16 %v4162
    %v4842 = vunpack.c.h.b16 %v4162
    %v4843 = vunpack.c.l.b16 %v4163
    %v4844 = vunpack.c.h.b16 %v4163
    %v4845 = vunpack.c.l.b16 %v4164
    %v4846 = vunpack.c.h.b16 %v4164
    %v4847 = vunpack.c.l.b16 %v4165
    %v4848 = vunpack.c.h.b16 %v4165
    %v4849 = vunpack.c.l.b16 %v4166
    %v4850 = vunpack.c.h.b16 %v4166
    %v4851 = vunpack.c.l.b16 %v4167
    %v4852 = vunpack.c.h.b16 %v4167
    %v4853 = vunpack.c.l.b16 %v4168
    %v4854 = vunpack.c.h.b16 %v4168
    %v4855 = vunpack.c.l.b16 %v4169
    %v4856 = vunpack.c.h.b16 %v4169
    %v4857 = vunpack.c.l.b16 %v4170
    %v4858 = vunpack.c.h.b16 %v4170
    %v4859 = vunpack.c.l.b16 %v4171
    %v4860 = vunpack.c.h.b16 %v4171
    %v4861 = vunpack.c.l.b16 %v4172
    %v4862 = vunpack.c.h.b16 %v4172
    %v4863 = vunpack.c.l.b16 %v4173
    %v4864 = vunpack.c.h.b16 %v4173
    %v4865 = vunpack.c.l.b16 %v4174
    %v4866 = vunpack.c.h.b16 %v4174
    %v4867 = vunpack.c.l.b16 %v4175
    %v4868 = vunpack.c.h.b16 %v4175
    %v4869 = vunpack.c.l.b16 %v4176
    %v4870 = vunpack.c.h.b16 %v4176
    %v4871 = vunpack.c.l.b16 %v4177
    %v4872 = vunpack.c.h.b16 %v4177
    %v4873 = vunpack.c.l.b16 %v4178
    %v4874 = vunpack.c.h.b16 %v4178
    %v4875 = vunpack.c.l.b16 %v4179
    %v4876 = vunpack.c.h.b16 %v4179
    %v4877 = vunpack.c.l.b16 %v4180
    %v4878 = vunpack.c.h.b16 %v4180
    %v4879 = vunpack.c.l.b16 %v4181
    %v4880 = vunpack.c.h.b16 %v4181
    %v4881 = vunpack.c.l.b16 %v4182
    %v4882 = vunpack.c.h.b16 %v4182
    %v4883 = vunpack.c.l.b16 %v4183
    %v4884 = vunpack.c.h.b16 %v4183
    %v4885 = vunpack.c.l.b16 %v4184
    %v4886 = vunpack.c.h.b16 %v4184
    %v4887 = vunpack.c.l.b16 %v4185
    %v4888 = vunpack.c.h.b16 %v4185
    %v4889 = vunpack.c.l.b16 %v4186
    %v4890 = vunpack.c.h.b16 %v4186
    %v4891 = vunpack.c.l.b16 %v4187
    %v4892 = vunpack.c.h.b16 %v4187
    %v4893 = vunpack.c.l.b16 %v4188
    %v4894 = vunpack.c.h.b16 %v4188
    %v4895 = vunpack.c.l.b16 %v4189
    %v4896 = vunpack.c.h.b16 %v4189
    %v4897 = vunpack.c.l.b16 %v4190
    %v4898 = vunpack.c.h.b16 %v4190
    %v4899 = vunpack.c.l.b16 %v4191
    %v4900 = vunpack.c.h.b16 %v4191
    %v4901 = vunpack.c.l.b16 %v4192
    %v4902 = vunpack.c.h.b16 %v4192
    %v4903 = vunpack.c.l.b16 %v4193
    %v4904 = vunpack.c.h.b16 %v4193
    %v4905 = vunpack.c.l.b16 %v4194
    %v4906 = vunpack.c.h.b16 %v4194
    %v4907 = vunpack.c.l.b16 %v4195
    %v4908 = vunpack.c.h.b16 %v4195
    %v4909 = vunpack.c.l.b16 %v4196
    %v4910 = vunpack.c.h.b16 %v4196
    %v4911 = vunpack.c.l.b16 %v4197
    %v4912 = vunpack.c.h.b16 %v4197
    %v4913 = vunpack.c.l.b16 %v4198
    %v4914 = vunpack.c.h.b16 %v4198
    %v4915 = vunpack.c.l.b16 %v4199
    %v4916 = vunpack.c.h.b16 %v4199
    %v4917 = vunpack.c.l.b16 %v4200
    %v4918 = vunpack.c.h.b16 %v4200
    %v4919 = vunpack.c.l.b16 %v4201
    %v4920 = vunpack.c.h.b16 %v4201
    %v4921 = vunpack.c.l.b16 %v4202
    %v4922 = vunpack.c.h.b16 %v4202
    %v4923 = vunpack.c.l.b16 %v4203
    %v4924 = vunpack.c.h.b16 %v4203
    %v4925 = vunpack.c.l.b16 %v4204
    %v4926 = vunpack.c.h.b16 %v4204
    %v4927 = vunpack.c.l.b16 %v4205
    %v4928 = vunpack.c.h.b16 %v4205
    %v4929 = vunpack.c.l.b16 %v4206
    %v4930 = vunpack.c.h.b16 %v4206
    %v4931 = vunpack.c.l.b16 %v4207
    %v4932 = vunpack.c.h.b16 %v4207
    %v4933 = vunpack.c.l.b16 %v4208
    %v4934 = vunpack.c.h.b16 %v4208
    %v4935 = vunpack.c.l.b16 %v4209
    %v4936 = vunpack.c.h.b16 %v4209
    %v4937 = vunpack.c.l.b16 %v4210
    %v4938 = vunpack.c.h.b16 %v4210
    %v4939 = vunpack.c.l.b16 %v4211
    %v4940 = vunpack.c.h.b16 %v4211
    %v4941 = vunpack.c.l.b16 %v4212
    %v4942 = vunpack.c.h.b16 %v4212
    %v4943 = vunpack.c.l.b16 %v4213
    %v4944 = vunpack.c.h.b16 %v4213
    %v4945 = vunpack.c.l.b16 %v4214
    %v4946 = vunpack.c.h.b16 %v4214
    %v4947 = vunpack.c.l.b16 %v4215
    %v4948 = vunpack.c.h.b16 %v4215
    %v4949 = vunpack.c.l.b16 %v4216
    %v4950 = vunpack.c.h.b16 %v4216
    %v4951 = vunpack.c.l.b16 %v4217
    %v4952 = vunpack.c.h.b16 %v4217
    %v4953 = vunpack.c.l.b16 %v4218
    %v4954 = vunpack.c.h.b16 %v4218
    %v4955 = vunpack.c.l.b16 %v4219
    %v4956 = vunpack.c.h.b16 %v4219
    %v4957 = vunpack.c.l.b16 %v4220
    %v4958 = vunpack.c.h.b16 %v4220
    %v4959 = vunpack.c.l.b16 %v4221
    %v4960 = vunpack.c.h.b16 %v4221
    %v4961 = vunpack.c.l.b16 %v4222
    %v4962 = vunpack.c.h.b16 %v4222
    %v4963 = vunpack.c.l.b16 %v4223
    %v4964 = vunpack.c.h.b16 %v4223
    %v4965 = vunpack.c.l.b16 %v4224
    %v4966 = vunpack.c.h.b16 %v4224
    %v4967 = vunpack.c.l.b16 %v4225
    %v4968 = vunpack.c.h.b16 %v4225
    %v4969 = vunpack.c.l.b16 %v4226
    %v4970 = vunpack.c.h.b16 %v4226
    %v4971 = vunpack.c.l.b16 %v4227
    %v4972 = vunpack.c.h.b16 %v4227
    %v4973 = vunpack.c.l.b16 %v4228
    %v4974 = vunpack.c.h.b16 %v4228
    %v4975 = vunpack.c.l.b16 %v4229
    %v4976 = vunpack.c.h.b16 %v4229
    %v4977 = vunpack.c.l.b16 %v4230
    %v4978 = vunpack.c.h.b16 %v4230
    %v4979 = vunpack.c.l.b16 %v4231
    %v4980 = vunpack.c.h.b16 %v4231
    %v4981 = vunpack.c.l.b16 %v4232
    %v4982 = vunpack.c.h.b16 %v4232
    %v4983 = vunpack.c.l.b16 %v4233
    %v4984 = vunpack.c.h.b16 %v4233
    %v4985 = vunpack.c.l.b16 %v4234
    %v4986 = vunpack.c.h.b16 %v4234
    %v4987 = vunpack.c.l.b16 %v4235
    %v4988 = vunpack.c.h.b16 %v4235
    %v4989 = vunpack.c.l.b16 %v4236
    %v4990 = vunpack.c.h.b16 %v4236
    %v4991 = vunpack.c.l.b16 %v4237
    %v4992 = vunpack.c.h.b16 %v4237
    %v4993 = vunpack.c.l.b16 %v4238
    %v4994 = vunpack.c.h.b16 %v4238
    %v4995 = vunpack.c.l.b16 %v4239
    %v4996 = vunpack.c.h.b16 %v4239
    %v4997 = vunpack.c.l.b16 %v4240
    %v4998 = vunpack.c.h.b16 %v4240
    %v4999 = vunpack.c.l.b16 %v4241
    %v5000 = vunpack.c.h.b16 %v4241
    %v5001 = vunpack.c.l.b16 %v4242
    %v5002 = vunpack.c.h.b16 %v4242
    %v5003 = vunpack.c.l.b16 %v4243
    %v5004 = vunpack.c.h.b16 %v4243
    %v5005 = vunpack.c.l.b16 %v4244
    %v5006 = vunpack.c.h.b16 %v4244
    %v5007 = vunpack.c.l.b16 %v4245
    %v5008 = vunpack.c.h.b16 %v4245
    %v5009 = vunpack.c.l.b16 %v4246
    %v5010 = vunpack.c.h.b16 %v4246
    %v5011 = vunpack.c.l.b16 %v4247
    %v5012 = vunpack.c.h.b16 %v4247
    %v5013 = vunpack.c.l.b16 %v4248
    %v5014 = vunpack.c.h.b16 %v4248
    %v5015 = vunpack.c.l.b16 %v4249
    %v5016 = vunpack.c.h.b16 %v4249
    %v5017 = vunpack.c.l.b16 %v4250
    %v5018 = vunpack.c.h.b16 %v4250
    %v5019 = vunpack.c.l.b16 %v4251
    %v5020 = vunpack.c.h.b16 %v4251
    %v5021 = vunpack.c.l.b16 %v4252
    %v5022 = vunpack.c.h.b16 %v4252
    %v5023 = vunpack.c.l.b16 %v4253
    %v5024 = vunpack.c.h.b16 %v4253
    %v5025 = vunpack.c.l.b16 %v4254
    %v5026 = vunpack.c.h.b16 %v4254
    %v5027 = vunpack.c.l.b16 %v4255
    %v5028 = vunpack.c.h.b16 %v4255
    %v5029 = vunpack.c.l.b16 %v4256
    %v5030 = vunpack.c.h.b16 %v4256
    %v5031 = vunpack.c.l.b16 %v4257
    %v5032 = vunpack.c.h.b16 %v4257
    %v5033 = vunpack.c.l.b16 %v4258
    %v5034 = vunpack.c.h.b16 %v4258
    %v5035 = vunpack.c.l.b16 %v4259
    %v5036 = vunpack.c.h.b16 %v4259
    %v5037 = vunpack.c.l.b16 %v4260
    %v5038 = vunpack.c.h.b16 %v4260
    %v5039 = vunpack.c.l.b16 %v4261
    %v5040 = vunpack.c.h.b16 %v4261
    %v5041 = vunpack.c.l.b16 %v4262
    %v5042 = vunpack.c.h.b16 %v4262
    %v5043 = vunpack.c.l.b16 %v4263
    %v5044 = vunpack.c.h.b16 %v4263
    %v5045 = vunpack.c.l.b16 %v4264
    %v5046 = vunpack.c.h.b16 %v4264
    %v5047 = vunpack.c.l.b16 %v4265
    %v5048 = vunpack.c.h.b16 %v4265
    %v5049 = vunpack.c.l.b16 %v4266
    %v5050 = vunpack.c.h.b16 %v4266
    %v5051 = vunpack.c.l.b16 %v4267
    %v5052 = vunpack.c.h.b16 %v4267
    %v5053 = vunpack.c.l.b16 %v4268
    %v5054 = vunpack.c.h.b16 %v4268
    %v5055 = vunpack.c.l.b16 %v4269
    %v5056 = vunpack.c.h.b16 %v4269
    %v5057 = vunpack.c.l.b16 %v4270
    %v5058 = vunpack.c.h.b16 %v4270
    %v5059 = vunpack.c.l.b16 %v4271
    %v5060 = vunpack.c.h.b16 %v4271
    %v5061 = vunpack.c.l.b16 %v4272
    %v5062 = vunpack.c.h.b16 %v4272
    %v5063 = vpack.c.b16 %v4555, %v4551
    %v5064 = vpack.c.b16 %v4556, %v4552
    %v5065 = vpack.c.b16 %v4557, %v4553
    %v5066 = vpack.c.b16 %v4558, %v4554
    %v5067 = vpack.c.b16 %v4563, %v4559
    %v5068 = vpack.c.b16 %v4564, %v4560
    %v5069 = vpack.c.b16 %v4565, %v4561
    %v5070 = vpack.c.b16 %v4566, %v4562
    %v5071 = vpack.c.b16 %v4571, %v4567
    %v5072 = vpack.c.b16 %v4572, %v4568
    %v5073 = vpack.c.b16 %v4573, %v4569
    %v5074 = vpack.c.b16 %v4574, %v4570
    %v5075 = vpack.c.b16 %v4579, %v4575
    %v5076 = vpack.c.b16 %v4580, %v4576
    %v5077 = vpack.c.b16 %v4581, %v4577
    %v5078 = vpack.c.b16 %v4582, %v4578
    %v5079 = vpack.c.b16 %v4587, %v4583
    %v5080 = vpack.c.b16 %v4588, %v4584
    %v5081 = vpack.c.b16 %v4589, %v4585
    %v5082 = vpack.c.b16 %v4590, %v4586
    %v5083 = vpack.c.b16 %v4595, %v4591
    %v5084 = vpack.c.b16 %v4596, %v4592
    %v5085 = vpack.c.b16 %v4597, %v4593
    %v5086 = vpack.c.b16 %v4598, %v4594
    %v5087 = vpack.c.b16 %v4603, %v4599
    %v5088 = vpack.c.b16 %v4604, %v4600
    %v5089 = vpack.c.b16 %v4605, %v4601
    %v5090 = vpack.c.b16 %v4606, %v4602
    %v5091 = vpack.c.b16 %v4611, %v4607
    %v5092 = vpack.c.b16 %v4612, %v4608
    %v5093 = vpack.c.b16 %v4613, %v4609
    %v5094 = vpack.c.b16 %v4614, %v4610
    %v5095 = vpack.c.b16 %v4619, %v4615
    %v5096 = vpack.c.b16 %v4620, %v4616
    %v5097 = vpack.c.b16 %v4621, %v4617
    %v5098 = vpack.c.b16 %v4622, %v4618
    %v5099 = vpack.c.b16 %v4627, %v4623
    %v5100 = vpack.c.b16 %v4628, %v4624
    %v5101 = vpack.c.b16 %v4629, %v4625
    %v5102 = vpack.c.b16 %v4630, %v4626
    %v5103 = vpack.c.b16 %v4635, %v4631
    %v5104 = vpack.c.b16 %v4636, %v4632
    %v5105 = vpack.c.b16 %v4637, %v4633
    %v5106 = vpack.c.b16 %v4638, %v4634
    %v5107 = vpack.c.b16 %v4643, %v4639
    %v5108 = vpack.c.b16 %v4644, %v4640
    %v5109 = vpack.c.b16 %v4645, %v4641
    %v5110 = vpack.c.b16 %v4646, %v4642
    %v5111 = vpack.c.b16 %v4651, %v4647
    %v5112 = vpack.c.b16 %v4652, %v4648
    %v5113 = vpack.c.b16 %v4653, %v4649
    %v5114 = vpack.c.b16 %v4654, %v4650
    %v5115 = vpack.c.b16 %v4659, %v4655
    %v5116 = vpack.c.b16 %v4660, %v4656
    %v5117 = vpack.c.b16 %v4661, %v4657
    %v5118 = vpack.c.b16 %v4662, %v4658
    %v5119 = vpack.c.b16 %v4667, %v4663
    %v5120 = vpack.c.b16 %v4668, %v4664
    %v5121 = vpack.c.b16 %v4669, %v4665
    %v5122 = vpack.c.b16 %v4670, %v4666
    %v5123 = vpack.c.b16 %v4675, %v4671
    %v5124 = vpack.c.b16 %v4676, %v4672
    %v5125 = vpack.c.b16 %v4677, %v4673
    %v5126 = vpack.c.b16 %v4678, %v4674
    %v5127 = vpack.c.b16 %v4683, %v4679
    %v5128 = vpack.c.b16 %v4684, %v4680
    %v5129 = vpack.c.b16 %v4685, %v4681
    %v5130 = vpack.c.b16 %v4686, %v4682
    %v5131 = vpack.c.b16 %v4691, %v4687
    %v5132 = vpack.c.b16 %v4692, %v4688
    %v5133 = vpack.c.b16 %v4693, %v4689
    %v5134 = vpack.c.b16 %v4694, %v4690
    %v5135 = vpack.c.b16 %v4699, %v4695
    %v5136 = vpack.c.b16 %v4700, %v4696
    %v5137 = vpack.c.b16 %v4701, %v4697
    %v5138 = vpack.c.b16 %v4702, %v4698
    %v5139 = vpack.c.b16 %v4707, %v4703
    %v5140 = vpack.c.b16 %v4708, %v4704
    %v5141 = vpack.c.b16 %v4709, %v4705
    %v5142 = vpack.c.b16 %v4710, %v4706
    %v5143 = vpack.c.b16 %v4715, %v4711
    %v5144 = vpack.c.b16 %v4716, %v4712
    %v5145 = vpack.c.b16 %v4717, %v4713
    %v5146 = vpack.c.b16 %v4718, %v4714
    %v5147 = vpack.c.b16 %v4723, %v4719
    %v5148 = vpack.c.b16 %v4724, %v4720
    %v5149 = vpack.c.b16 %v4725, %v4721
    %v5150 = vpack.c.b16 %v4726, %v4722
    %v5151 = vpack.c.b16 %v4731, %v4727
    %v5152 = vpack.c.b16 %v4732, %v4728
    %v5153 = vpack.c.b16 %v4733, %v4729
    %v5154 = vpack.c.b16 %v4734, %v4730
    %v5155 = vpack.c.b16 %v4739, %v4735
    %v5156 = vpack.c.b16 %v4740, %v4736
    %v5157 = vpack.c.b16 %v4741, %v4737
    %v5158 = vpack.c.b16 %v4742, %v4738
    %v5159 = vpack.c.b16 %v4747, %v4743
    %v5160 = vpack.c.b16 %v4748, %v4744
    %v5161 = vpack.c.b16 %v4749, %v4745
    %v5162 = vpack.c.b16 %v4750, %v4746
    %v5163 = vpack.c.b16 %v4755, %v4751
    %v5164 = vpack.c.b16 %v4756, %v4752
    %v5165 = vpack.c.b16 %v4757, %v4753
    %v5166 = vpack.c.b16 %v4758, %v4754
    %v5167 = vpack.c.b16 %v4763, %v4759
    %v5168 = vpack.c.b16 %v4764, %v4760
    %v5169 = vpack.c.b16 %v4765, %v4761
    %v5170 = vpack.c.b16 %v4766, %v4762
    %v5171 = vpack.c.b16 %v4771, %v4767
    %v5172 = vpack.c.b16 %v4772, %v4768
    %v5173 = vpack.c.b16 %v4773, %v4769
    %v5174 = vpack.c.b16 %v4774, %v4770
    %v5175 = vpack.c.b16 %v4779, %v4775
    %v5176 = vpack.c.b16 %v4780, %v4776
    %v5177 = vpack.c.b16 %v4781, %v4777
    %v5178 = vpack.c.b16 %v4782, %v4778
    %v5179 = vpack.c.b16 %v4787, %v4783
    %v5180 = vpack.c.b16 %v4788, %v4784
    %v5181 = vpack.c.b16 %v4789, %v4785
    %v5182 = vpack.c.b16 %v4790, %v4786
    %v5183 = vpack.c.b16 %v4795, %v4791
    %v5184 = vpack.c.b16 %v4796, %v4792
    %v5185 = vpack.c.b16 %v4797, %v4793
    %v5186 = vpack.c.b16 %v4798, %v4794
    %v5187 = vpack.c.b16 %v4803, %v4799
    %v5188 = vpack.c.b16 %v4804, %v4800
    %v5189 = vpack.c.b16 %v4805, %v4801
    %v5190 = vpack.c.b16 %v4806, %v4802
    %v5191 = vpack.c.b16 %v4811, %v4807
    %v5192 = vpack.c.b16 %v4812, %v4808
    %v5193 = vpack.c.b16 %v4813, %v4809
    %v5194 = vpack.c.b16 %v4814, %v4810
    %v5195 = vpack.c.b16 %v4819, %v4815
    %v5196 = vpack.c.b16 %v4820, %v4816
    %v5197 = vpack.c.b16 %v4821, %v4817
    %v5198 = vpack.c.b16 %v4822, %v4818
    %v5199 = vpack.c.b16 %v4827, %v4823
    %v5200 = vpack.c.b16 %v4828, %v4824
    %v5201 = vpack.c.b16 %v4829, %v4825
    %v5202 = vpack.c.b16 %v4830, %v4826
    %v5203 = vpack.c.b16 %v4835, %v4831
    %v5204 = vpack.c.b16 %v4836, %v4832
    %v5205 = vpack.c.b16 %v4837, %v4833
    %v5206 = vpack.c.b16 %v4838, %v4834
    %v5207 = vpack.c.b16 %v4843, %v4839
    %v5208 = vpack.c.b16 %v4844, %v4840
    %v5209 = vpack.c.b16 %v4845, %v4841
    %v5210 = vpack.c.b16 %v4846, %v4842
    %v5211 = vpack.c.b16 %v4851, %v4847
    %v5212 = vpack.c.b16 %v4852, %v4848
    %v5213 = vpack.c.b16 %v4853, %v4849
    %v5214 = vpack.c.b16 %v4854, %v4850
    %v5215 = vpack.c.b16 %v4859, %v4855
    %v5216 = vpack.c.b16 %v4860, %v4856
    %v5217 = vpack.c.b16 %v4861, %v4857
    %v5218 = vpack.c.b16 %v4862, %v4858
    %v5219 = vpack.c.b16 %v4867, %v4863
    %v5220 = vpack.c.b16 %v4868, %v4864
    %v5221 = vpack.c.b16 %v4869, %v4865
    %v5222 = vpack.c.b16 %v4870, %v4866
    %v5223 = vpack.c.b16 %v4875, %v4871
    %v5224 = vpack.c.b16 %v4876, %v4872
    %v5225 = vpack.c.b16 %v4877, %v4873
    %v5226 = vpack.c.b16 %v4878, %v4874
    %v5227 = vpack.c.b16 %v4883, %v4879
    %v5228 = vpack.c.b16 %v4884, %v4880
    %v5229 = vpack.c.b16 %v4885, %v4881
    %v5230 = vpack.c.b16 %v4886, %v4882
    %v5231 = vpack.c.b16 %v4891, %v4887
    %v5232 = vpack.c.b16 %v4892, %v4888
    %v5233 = vpack.c.b16 %v4893, %v4889
    %v5234 = vpack.c.b16 %v4894, %v4890
    %v5235 = vpack.c.b16 %v4899, %v4895
    %v5236 = vpack.c.b16 %v4900, %v4896
    %v5237 = vpack.c.b16 %v4901, %v4897
    %v5238 = vpack.c.b16 %v4902, %v4898
    %v5239 = vpack.c.b16 %v4907, %v4903
    %v5240 = vpack.c.b16 %v4908, %v4904
    %v5241 = vpack.c.b16 %v4909, %v4905
    %v5242 = vpack.c.b16 %v4910, %v4906
    %v5243 = vpack.c.b16 %v4915, %v4911
    %v5244 = vpack.c.b16 %v4916, %v4912
    %v5245 = vpack.c.b16 %v4917, %v4913
    %v5246 = vpack.c.b16 %v4918, %v4914
    %v5247 = vpack.c.b16 %v4923, %v4919
    %v5248 = vpack.c.b16 %v4924, %v4920
    %v5249 = vpack.c.b16 %v4925, %v4921
    %v5250 = vpack.c.b16 %v4926, %v4922
    %v5251 = vpack.c.b16 %v4931, %v4927
    %v5252 = vpack.c.b16 %v4932, %v4928
    %v5253 = vpack.c.b16 %v4933, %v4929
    %v5254 = vpack.c.b16 %v4934, %v4930
    %v5255 = vpack.c.b16 %v4939, %v4935
    %v5256 = vpack.c.b16 %v4940, %v4936
    %v5257 = vpack.c.b16 %v4941, %v4937
    %v5258 = vpack.c.b16 %v4942, %v4938
    %v5259 = vpack.c.b16 %v4947, %v4943
    %v5260 = vpack.c.b16 %v4948, %v4944
    %v5261 = vpack.c.b16 %v4949, %v4945
    %v5262 = vpack.c.b16 %v4950, %v4946
    %v5263 = vpack.c.b16 %v4955, %v4951
    %v5264 = vpack.c.b16 %v4956, %v4952
    %v5265 = vpack.c.b16 %v4957, %v4953
    %v5266 = vpack.c.b16 %v4958, %v4954
    %v5267 = vpack.c.b16 %v4963, %v4959
    %v5268 = vpack.c.b16 %v4964, %v4960
    %v5269 = vpack.c.b16 %v4965, %v4961
    %v5270 = vpack.c.b16 %v4966, %v4962
    %v5271 = vpack.c.b16 %v4971, %v4967
    %v5272 = vpack.c.b16 %v4972, %v4968
    %v5273 = vpack.c.b16 %v4973, %v4969
    %v5274 = vpack.c.b16 %v4974, %v4970
    %v5275 = vpack.c.b16 %v4979, %v4975
    %v5276 = vpack.c.b16 %v4980, %v4976
    %v5277 = vpack.c.b16 %v4981, %v4977
    %v5278 = vpack.c.b16 %v4982, %v4978
    %v5279 = vpack.c.b16 %v4987, %v4983
    %v5280 = vpack.c.b16 %v4988, %v4984
    %v5281 = vpack.c.b16 %v4989, %v4985
    %v5282 = vpack.c.b16 %v4990, %v4986
    %v5283 = vpack.c.b16 %v4995, %v4991
    %v5284 = vpack.c.b16 %v4996, %v4992
    %v5285 = vpack.c.b16 %v4997, %v4993
    %v5286 = vpack.c.b16 %v4998, %v4994
    %v5287 = vpack.c.b16 %v5003, %v4999
    %v5288 = vpack.c.b16 %v5004, %v5000
    %v5289 = vpack.c.b16 %v5005, %v5001
    %v5290 = vpack.c.b16 %v5006, %v5002
    %v5291 = vpack.c.b16 %v5011, %v5007
    %v5292 = vpack.c.b16 %v5012, %v5008
    %v5293 = vpack.c.b16 %v5013, %v5009
    %v5294 = vpack.c.b16 %v5014, %v5010
    %v5295 = vpack.c.b16 %v5019, %v5015
    %v5296 = vpack.c.b16 %v5020, %v5016
    %v5297 = vpack.c.b16 %v5021, %v5017
    %v5298 = vpack.c.b16 %v5022, %v5018
    %v5299 = vpack.c.b16 %v5027, %v5023
    %v5300 = vpack.c.b16 %v5028, %v5024
    %v5301 = vpack.c.b16 %v5029, %v5025
    %v5302 = vpack.c.b16 %v5030, %v5026
    %v5303 = vpack.c.b16 %v5035, %v5031
    %v5304 = vpack.c.b16 %v5036, %v5032
    %v5305 = vpack.c.b16 %v5037, %v5033
    %v5306 = vpack.c.b16 %v5038, %v5034
    %v5307 = vpack.c.b16 %v5043, %v5039
    %v5308 = vpack.c.b16 %v5044, %v5040
    %v5309 = vpack.c.b16 %v5045, %v5041
    %v5310 = vpack.c.b16 %v5046, %v5042
    %v5311 = vpack.c.b16 %v5051, %v5047
    %v5312 = vpack.c.b16 %v5052, %v5048
    %v5313 = vpack.c.b16 %v5053, %v5049
    %v5314 = vpack.c.b16 %v5054, %v5050
    %v5315 = vpack.c.b16 %v5059, %v5055
    %v5316 = vpack.c.b16 %v5060, %v5056
    %v5317 = vpack.c.b16 %v5061, %v5057
    %v5318 = vpack.c.b16 %v5062, %v5058
    %5575 = vmatprep.subr.bf16.mxu0 %v5064
    %5576 = vmatpush1.bf16.msra.mxu0 %v5063
    %5577 = vmatprep.subr.bf16.mxu0 %v5068
    %5578 = vmatpush1.bf16.msra.mxu0 %v5067
    %5579 = vmatprep.subr.bf16.mxu0 %v5072
    %5580 = vmatpush1.bf16.msra.mxu0 %v5071
    %5581 = vmatprep.subr.bf16.mxu0 %v5076
    %5582 = vmatpush1.bf16.msra.mxu0 %v5075
    %5583 = vmatprep.subr.bf16.mxu0 %v5080
    %5584 = vmatpush1.bf16.msra.mxu0 %v5079
    %5585 = vmatprep.subr.bf16.mxu0 %v5084
    %5586 = vmatpush1.bf16.msra.mxu0 %v5083
    %5587 = vmatprep.subr.bf16.mxu0 %v5088
    %5588 = vmatpush1.bf16.msra.mxu0 %v5087
    %5589 = vmatprep.subr.bf16.mxu0 %v5092
    %5590 = vmatpush1.bf16.msra.mxu0 %v5091
    %5591 = vmatprep.subr.bf16.mxu0 %v5096
    %5592 = vmatpush1.bf16.msra.mxu0 %v5095
    %5593 = vmatprep.subr.bf16.mxu0 %v5100
    %5594 = vmatpush1.bf16.msra.mxu0 %v5099
    %5595 = vmatprep.subr.bf16.mxu0 %v5104
    %5596 = vmatpush1.bf16.msra.mxu0 %v5103
    %5597 = vmatprep.subr.bf16.mxu0 %v5108
    %5598 = vmatpush1.bf16.msra.mxu0 %v5107
    %5599 = vmatprep.subr.bf16.mxu0 %v5112
    %5600 = vmatpush1.bf16.msra.mxu0 %v5111
    %5601 = vmatprep.subr.bf16.mxu0 %v5116
    %5602 = vmatpush1.bf16.msra.mxu0 %v5115
    %5603 = vmatprep.subr.bf16.mxu0 %v5120
    %5604 = vmatpush1.bf16.msra.mxu0 %v5119
    %5605 = vmatprep.subr.bf16.mxu0 %v5124
    %5606 = vmatpush1.bf16.msra.mxu0 %v5123
    %5607 = vmatprep.mubr.bf16.mxu0 %v4010
    %5608 = vmatmul.mubr.bf16.gmra.mrb[0].mxu0 %v4009
    %v5609 = vpop.f32.mrb[0].mxu0
    %v5610 = vadd.f32 %v4278, %v5609
    %v5611 = vpop.f32.mrb[0].mxu0
    %v5612 = vadd.f32 %v4282, %v5611
    %v5613 = vpop.f32.mrb[0].mxu0
    %v5614 = vadd.f32 %v4278, %v5613
    %v5615 = vpop.f32.mrb[0].mxu0
    %v5616 = vadd.f32 %v4282, %v5615
    %5617 = vdwg.mxu0
    %5618 = vmatprep.subr.bf16.mxu0 %v5128
    %5619 = vmatpush1.bf16.msra.mxu0 %v5127
    %5620 = vmatprep.subr.bf16.mxu0 %v5132
    %5621 = vmatpush1.bf16.msra.mxu0 %v5131
    %5622 = vmatprep.subr.bf16.mxu0 %v5136
    %5623 = vmatpush1.bf16.msra.mxu0 %v5135
    %5624 = vmatprep.subr.bf16.mxu0 %v5140
    %5625 = vmatpush1.bf16.msra.mxu0 %v5139
    %5626 = vmatprep.subr.bf16.mxu0 %v5144
    %5627 = vmatpush1.bf16.msra.mxu0 %v5143
    %5628 = vmatprep.subr.bf16.mxu0 %v5148
    %5629 = vmatpush1.bf16.msra.mxu0 %v5147
    %5630 = vmatprep.subr.bf16.mxu0 %v5152
    %5631 = vmatpush1.bf16.msra.mxu0 %v5151
    %5632 = vmatprep.subr.bf16.mxu0 %v5156
    %5633 = vmatpush1.bf16.msra.mxu0 %v5155
    %5634 = vmatprep.subr.bf16.mxu0 %v5160
    %5635 = vmatpush1.bf16.msra.mxu0 %v5159
    %5636 = vmatprep.subr.bf16.mxu0 %v5164
    %5637 = vmatpush1.bf16.msra.mxu0 %v5163
    %5638 = vmatprep.subr.bf16.mxu0 %v5168
    %5639 = vmatpush1.bf16.msra.mxu0 %v5167
    %5640 = vmatprep.subr.bf16.mxu0 %v5172
    %5641 = vmatpush1.bf16.msra.mxu0 %v5171
    %5642 = vmatprep.subr.bf16.mxu0 %v5176
    %5643 = vmatpush1.bf16.msra.mxu0 %v5175
    %5644 = vmatprep.subr.bf16.mxu0 %v5180
    %5645 = vmatpush1.bf16.msra.mxu0 %v5179
    %5646 = vmatprep.subr.bf16.mxu0 %v5184
    %5647 = vmatpush1.bf16.msra.mxu0 %v5183
    %5648 = vmatprep.subr.bf16.mxu0 %v5188
    %5649 = vmatpush1.bf16.msra.mxu0 %v5187
    %5650 = vmatprep.mubr.bf16.mxu0 %v4012
    %5651 = vmatmul.mubr.bf16.gmra.mrb[0].mxu0 %v4011
    %v5652 = vpop.f32.mrb[0].mxu0
    %v5653 = vadd.f32 %v5610, %v5652
    %v5654 = vpop.f32.mrb[0].mxu0
    %v5655 = vadd.f32 %v5612, %v5654
    %v5656 = vpop.f32.mrb[0].mxu0
    %v5657 = vadd.f32 %v5614, %v5656
    %v5658 = vpop.f32.mrb[0].mxu0
    %v5659 = vadd.f32 %v5616, %v5658
    %5660 = vdwg.mxu0
    %5661 = vmatprep.subr.bf16.mxu0 %v5192
    %5662 = vmatpush1.bf16.msra.mxu0 %v5191
    %5663 = vmatprep.subr.bf16.mxu0 %v5196
    %5664 = vmatpush1.bf16.msra.mxu0 %v5195
    %5665 = vmatprep.subr.bf16.mxu0 %v5200
    %5666 = vmatpush1.bf16.msra.mxu0 %v5199
    %5667 = vmatprep.subr.bf16.mxu0 %v5204
    %5668 = vmatpush1.bf16.msra.mxu0 %v5203
    %5669 = vmatprep.subr.bf16.mxu0 %v5208
    %5670 = vmatpush1.bf16.msra.mxu0 %v5207
    %5671 = vmatprep.subr.bf16.mxu0 %v5212
    %5672 = vmatpush1.bf16.msra.mxu0 %v5211
    %5673 = vmatprep.subr.bf16.mxu0 %v5216
    %5674 = vmatpush1.bf16.msra.mxu0 %v5215
    %5675 = vmatprep.subr.bf16.mxu0 %v5220
    %5676 = vmatpush1.bf16.msra.mxu0 %v5219
    %5677 = vmatprep.subr.bf16.mxu0 %v5224
    %5678 = vmatpush1.bf16.msra.mxu0 %v5223
    %5679 = vmatprep.subr.bf16.mxu0 %v5228
    %5680 = vmatpush1.bf16.msra.mxu0 %v5227
    %5681 = vmatprep.subr.bf16.mxu0 %v5232
    %5682 = vmatpush1.bf16.msra.mxu0 %v5231
    %5683 = vmatprep.subr.bf16.mxu0 %v5236
    %5684 = vmatpush1.bf16.msra.mxu0 %v5235
    %5685 = vmatprep.subr.bf16.mxu0 %v5240
    %5686 = vmatpush1.bf16.msra.mxu0 %v5239
    %5687 = vmatprep.subr.bf16.mxu0 %v5244
    %5688 = vmatpush1.bf16.msra.mxu0 %v5243
    %5689 = vmatprep.subr.bf16.mxu0 %v5248
    %5690 = vmatpush1.bf16.msra.mxu0 %v5247
    %5691 = vmatprep.subr.bf16.mxu0 %v5252
    %5692 = vmatpush1.bf16.msra.mxu0 %v5251
    %5693 = vmatprep.mubr.bf16.mxu0 %v4014
    %5694 = vmatmul.mubr.bf16.gmra.mrb[0].mxu0 %v4013
    %v5695 = vpop.f32.mrb[0].mxu0
    %v5696 = vadd.f32 %v5653, %v5695
    %v5697 = vpop.f32.mrb[0].mxu0
    %v5698 = vadd.f32 %v5655, %v5697
    %v5699 = vpop.f32.mrb[0].mxu0
    %v5700 = vadd.f32 %v5657, %v5699
    %v5701 = vpop.f32.mrb[0].mxu0
    %v5702 = vadd.f32 %v5659, %v5701
    %5703 = vdwg.mxu0
    %5704 = vmatprep.subr.bf16.mxu0 %v5256
    %5705 = vmatpush1.bf16.msra.mxu0 %v5255
    %5706 = vmatprep.subr.bf16.mxu0 %v5260
    %5707 = vmatpush1.bf16.msra.mxu0 %v5259
    %5708 = vmatprep.subr.bf16.mxu0 %v5264
    %5709 = vmatpush1.bf16.msra.mxu0 %v5263
    %5710 = vmatprep.subr.bf16.mxu0 %v5268
    %5711 = vmatpush1.bf16.msra.mxu0 %v5267
    %5712 = vmatprep.subr.bf16.mxu0 %v5272
    %5713 = vmatpush1.bf16.msra.mxu0 %v5271
    %5714 = vmatprep.subr.bf16.mxu0 %v5276
    %5715 = vmatpush1.bf16.msra.mxu0 %v5275
    %5716 = vmatprep.subr.bf16.mxu0 %v5280
    %5717 = vmatpush1.bf16.msra.mxu0 %v5279
    %5718 = vmatprep.subr.bf16.mxu0 %v5284
    %5719 = vmatpush1.bf16.msra.mxu0 %v5283
    %5720 = vmatprep.subr.bf16.mxu0 %v5288
    %5721 = vmatpush1.bf16.msra.mxu0 %v5287
    %5722 = vmatprep.subr.bf16.mxu0 %v5292
    %5723 = vmatpush1.bf16.msra.mxu0 %v5291
    %5724 = vmatprep.subr.bf16.mxu0 %v5296
    %5725 = vmatpush1.bf16.msra.mxu0 %v5295
    %5726 = vmatprep.subr.bf16.mxu0 %v5300
    %5727 = vmatpush1.bf16.msra.mxu0 %v5299
    %5728 = vmatprep.subr.bf16.mxu0 %v5304
    %5729 = vmatpush1.bf16.msra.mxu0 %v5303
    %5730 = vmatprep.subr.bf16.mxu0 %v5308
    %5731 = vmatpush1.bf16.msra.mxu0 %v5307
    %5732 = vmatprep.subr.bf16.mxu0 %v5312
    %5733 = vmatpush1.bf16.msra.mxu0 %v5311
    %5734 = vmatprep.subr.bf16.mxu0 %v5316
    %5735 = vmatpush1.bf16.msra.mxu0 %v5315
    %5736 = vmatprep.mubr.bf16.mxu0 %v4016
    %5737 = vmatmul.mubr.bf16.gmra.mrb[0].mxu0 %v4015
    %v5738 = vpop.f32.mrb[0].mxu0
    %v5739 = vadd.f32 %v5696, %v5738
    %v5740 = vpop.f32.mrb[0].mxu0
    %v5741 = vadd.f32 %v5698, %v5740
    %v5742 = vpop.f32.mrb[0].mxu0
    %v5743 = vadd.f32 %v5700, %v5742
    %v5744 = vpop.f32.mrb[0].mxu0
    %v5745 = vadd.f32 %v5702, %v5744
    %5746 = vdwg.mxu0
    %5747 = vmatprep.subr.bf16.mxu0 %v5066
    %5748 = vmatpush1.bf16.msra.mxu0 %v5065
    %5749 = vmatprep.subr.bf16.mxu0 %v5070
    %5750 = vmatpush1.bf16.msra.mxu0 %v5069
    %5751 = vmatprep.subr.bf16.mxu0 %v5074
    %5752 = vmatpush1.bf16.msra.mxu0 %v5073
    %5753 = vmatprep.subr.bf16.mxu0 %v5078
    %5754 = vmatpush1.bf16.msra.mxu0 %v5077
    %5755 = vmatprep.subr.bf16.mxu0 %v5082
    %5756 = vmatpush1.bf16.msra.mxu0 %v5081
    %5757 = vmatprep.subr.bf16.mxu0 %v5086
    %5758 = vmatpush1.bf16.msra.mxu0 %v5085
    %5759 = vmatprep.subr.bf16.mxu0 %v5090
    %5760 = vmatpush1.bf16.msra.mxu0 %v5089
    %5761 = vmatprep.subr.bf16.mxu0 %v5094
    %5762 = vmatpush1.bf16.msra.mxu0 %v5093
    %5763 = vmatprep.subr.bf16.mxu0 %v5098
    %5764 = vmatpush1.bf16.msra.mxu0 %v5097
    %5765 = vmatprep.subr.bf16.mxu0 %v5102
    %5766 = vmatpush1.bf16.msra.mxu0 %v5101
    %5767 = vmatprep.subr.bf16.mxu0 %v5106
    %5768 = vmatpush1.bf16.msra.mxu0 %v5105
    %5769 = vmatprep.subr.bf16.mxu0 %v5110
    %5770 = vmatpush1.bf16.msra.mxu0 %v5109
    %5771 = vmatprep.subr.bf16.mxu0 %v5114
    %5772 = vmatpush1.bf16.msra.mxu0 %v5113
    %5773 = vmatprep.subr.bf16.mxu0 %v5118
    %5774 = vmatpush1.bf16.msra.mxu0 %v5117
    %5775 = vmatprep.subr.bf16.mxu0 %v5122
    %5776 = vmatpush1.bf16.msra.mxu0 %v5121
    %5777 = vmatprep.subr.bf16.mxu0 %v5126
    %5778 = vmatpush1.bf16.msra.mxu0 %v5125
    %5779 = vmatprep.mubr.bf16.mxu0 %v4010
    %5780 = vmatmul.mubr.bf16.gmra.mrb[0].mxu0 %v4009
    %v5781 = vpop.f32.mrb[0].mxu0
    %v5782 = vadd.f32 %v4286, %v5781
    %v5783 = vpop.f32.mrb[0].mxu0
    %v5784 = vadd.f32 %v4290, %v5783
    %v5785 = vpop.f32.mrb[0].mxu0
    %v5786 = vadd.f32 %v4286, %v5785
    %v5787 = vpop.f32.mrb[0].mxu0
    %v5788 = vadd.f32 %v4290, %v5787
    %5789 = vdwg.mxu0
    %5790 = vmatprep.subr.bf16.mxu0 %v5130
    %5791 = vmatpush1.bf16.msra.mxu0 %v5129
    %5792 = vmatprep.subr.bf16.mxu0 %v5134
    %5793 = vmatpush1.bf16.msra.mxu0 %v5133
    %5794 = vmatprep.subr.bf16.mxu0 %v5138
    %5795 = vmatpush1.bf16.msra.mxu0 %v5137
    %5796 = vmatprep.subr.bf16.mxu0 %v5142
    %5797 = vmatpush1.bf16.msra.mxu0 %v5141
    %5798 = vmatprep.subr.bf16.mxu0 %v5146
    %5799 = vmatpush1.bf16.msra.mxu0 %v5145
    %5800 = vmatprep.subr.bf16.mxu0 %v5150
    %5801 = vmatpush1.bf16.msra.mxu0 %v5149
    %5802 = vmatprep.subr.bf16.mxu0 %v5154
    %5803 = vmatpush1.bf16.msra.mxu0 %v5153
    %5804 = vmatprep.subr.bf16.mxu0 %v5158
    %5805 = vmatpush1.bf16.msra.mxu0 %v5157
    %5806 = vmatprep.subr.bf16.mxu0 %v5162
    %5807 = vmatpush1.bf16.msra.mxu0 %v5161
    %5808 = vmatprep.subr.bf16.mxu0 %v5166
    %5809 = vmatpush1.bf16.msra.mxu0 %v5165
    %5810 = vmatprep.subr.bf16.mxu0 %v5170
    %5811 = vmatpush1.bf16.msra.mxu0 %v5169
    %5812 = vmatprep.subr.bf16.mxu0 %v5174
    %5813 = vmatpush1.bf16.msra.mxu0 %v5173
    %5814 = vmatprep.subr.bf16.mxu0 %v5178
    %5815 = vmatpush1.bf16.msra.mxu0 %v5177
    %5816 = vmatprep.subr.bf16.mxu0 %v5182
    %5817 = vmatpush1.bf16.msra.mxu0 %v5181
    %5818 = vmatprep.subr.bf16.mxu0 %v5186
    %5819 = vmatpush1.bf16.msra.mxu0 %v5185
    %5820 = vmatprep.subr.bf16.mxu0 %v5190
    %5821 = vmatpush1.bf16.msra.mxu0 %v5189
    %5822 = vmatprep.mubr.bf16.mxu0 %v4012
    %5823 = vmatmul.mubr.bf16.gmra.mrb[0].mxu0 %v4011
    %v5824 = vpop.f32.mrb[0].mxu0
    %v5825 = vadd.f32 %v5782, %v5824
    %v5826 = vpop.f32.mrb[0].mxu0
    %v5827 = vadd.f32 %v5784, %v5826
    %v5828 = vpop.f32.mrb[0].mxu0
    %v5829 = vadd.f32 %v5786, %v5828
    %v5830 = vpop.f32.mrb[0].mxu0
    %v5831 = vadd.f32 %v5788, %v5830
    %5832 = vdwg.mxu0
    %5833 = vmatprep.subr.bf16.mxu0 %v5194
    %5834 = vmatpush1.bf16.msra.mxu0 %v5193
    %5835 = vmatprep.subr.bf16.mxu0 %v5198
    %5836 = vmatpush1.bf16.msra.mxu0 %v5197
    %5837 = vmatprep.subr.bf16.mxu0 %v5202
    %5838 = vmatpush1.bf16.msra.mxu0 %v5201
    %5839 = vmatprep.subr.bf16.mxu0 %v5206
    %5840 = vmatpush1.bf16.msra.mxu0 %v5205
    %5841 = vmatprep.subr.bf16.mxu0 %v5210
    %5842 = vmatpush1.bf16.msra.mxu0 %v5209
    %5843 = vmatprep.subr.bf16.mxu0 %v5214
    %5844 = vmatpush1.bf16.msra.mxu0 %v5213
    %5845 = vmatprep.subr.bf16.mxu0 %v5218
    %5846 = vmatpush1.bf16.msra.mxu0 %v5217
    %5847 = vmatprep.subr.bf16.mxu0 %v5222
    %5848 = vmatpush1.bf16.msra.mxu0 %v5221
    %5849 = vmatprep.subr.bf16.mxu0 %v5226
    %5850 = vmatpush1.bf16.msra.mxu0 %v5225
    %5851 = vmatprep.subr.bf16.mxu0 %v5230
    %5852 = vmatpush1.bf16.msra.mxu0 %v5229
    %5853 = vmatprep.subr.bf16.mxu0 %v5234
    %5854 = vmatpush1.bf16.msra.mxu0 %v5233
    %5855 = vmatprep.subr.bf16.mxu0 %v5238
    %5856 = vmatpush1.bf16.msra.mxu0 %v5237
    %5857 = vmatprep.subr.bf16.mxu0 %v5242
    %5858 = vmatpush1.bf16.msra.mxu0 %v5241
    %5859 = vmatprep.subr.bf16.mxu0 %v5246
    %5860 = vmatpush1.bf16.msra.mxu0 %v5245
    %5861 = vmatprep.subr.bf16.mxu0 %v5250
    %5862 = vmatpush1.bf16.msra.mxu0 %v5249
    %5863 = vmatprep.subr.bf16.mxu0 %v5254
    %5864 = vmatpush1.bf16.msra.mxu0 %v5253
    %5865 = vmatprep.mubr.bf16.mxu0 %v4014
    %5866 = vmatmul.mubr.bf16.gmra.mrb[0].mxu0 %v4013
    %v5867 = vpop.f32.mrb[0].mxu0
    %v5868 = vadd.f32 %v5825, %v5867
    %v5869 = vpop.f32.mrb[0].mxu0
    %v5870 = vadd.f32 %v5827, %v5869
    %v5871 = vpop.f32.mrb[0].mxu0
    %v5872 = vadd.f32 %v5829, %v5871
    %v5873 = vpop.f32.mrb[0].mxu0
    %v5874 = vadd.f32 %v5831, %v5873
    %5875 = vdwg.mxu0
    %5876 = vmatprep.subr.bf16.mxu0 %v5258
    %5877 = vmatpush1.bf16.msra.mxu0 %v5257
    %5878 = vmatprep.subr.bf16.mxu0 %v5262
    %5879 = vmatpush1.bf16.msra.mxu0 %v5261
    %5880 = vmatprep.subr.bf16.mxu0 %v5266
    %5881 = vmatpush1.bf16.msra.mxu0 %v5265
    %5882 = vmatprep.subr.bf16.mxu0 %v5270
    %5883 = vmatpush1.bf16.msra.mxu0 %v5269
    %5884 = vmatprep.subr.bf16.mxu0 %v5274
    %5885 = vmatpush1.bf16.msra.mxu0 %v5273
    %5886 = vmatprep.subr.bf16.mxu0 %v5278
    %5887 = vmatpush1.bf16.msra.mxu0 %v5277
    %5888 = vmatprep.subr.bf16.mxu0 %v5282
    %5889 = vmatpush1.bf16.msra.mxu0 %v5281
    %5890 = vmatprep.subr.bf16.mxu0 %v5286
    %5891 = vmatpush1.bf16.msra.mxu0 %v5285
    %5892 = vmatprep.subr.bf16.mxu0 %v5290
    %5893 = vmatpush1.bf16.msra.mxu0 %v5289
    %5894 = vmatprep.subr.bf16.mxu0 %v5294
    %5895 = vmatpush1.bf16.msra.mxu0 %v5293
    %5896 = vmatprep.subr.bf16.mxu0 %v5298
    %5897 = vmatpush1.bf16.msra.mxu0 %v5297
    %5898 = vmatprep.subr.bf16.mxu0 %v5302
    %5899 = vmatpush1.bf16.msra.mxu0 %v5301
    %5900 = vmatprep.subr.bf16.mxu0 %v5306
    %5901 = vmatpush1.bf16.msra.mxu0 %v5305
    %5902 = vmatprep.subr.bf16.mxu0 %v5310
    %5903 = vmatpush1.bf16.msra.mxu0 %v5309
    %5904 = vmatprep.subr.bf16.mxu0 %v5314
    %5905 = vmatpush1.bf16.msra.mxu0 %v5313
    %5906 = vmatprep.subr.bf16.mxu0 %v5318
    %5907 = vmatpush1.bf16.msra.mxu0 %v5317
    %5908 = vmatprep.mubr.bf16.mxu0 %v4016
    %5909 = vmatmul.mubr.bf16.gmra.mrb[0].mxu0 %v4015
    %v5910 = vpop.f32.mrb[0].mxu0
    %v5911 = vadd.f32 %v5868, %v5910
    %v5912 = vpop.f32.mrb[0].mxu0
    %v5913 = vadd.f32 %v5870, %v5912
    %v5914 = vpop.f32.mrb[0].mxu0
    %v5915 = vadd.f32 %v5872, %v5914
    %v5916 = vpop.f32.mrb[0].mxu0
    %v5917 = vadd.f32 %v5874, %v5916
    %5918 = vdwg.mxu0
    %vm5919 = vcmp.gt.f32.partialorder %v5739, 0.0
    %vm5920 = vcmp.gt.f32.partialorder %v5741, 0.0
    %vm5921 = vcmp.gt.f32.partialorder %v5911, 0.0
    %vm5922 = vcmp.gt.f32.partialorder %v5913, 0.0
    %vm5923 = vcmp.gt.f32.partialorder %v5743, 0.0
    %vm5924 = vcmp.gt.f32.partialorder %v5745, 0.0
    %vm5925 = vcmp.gt.f32.partialorder %v5915, 0.0
    %vm5926 = vcmp.gt.f32.partialorder %v5917, 0.0
    %v5927 = vmul.f32 %v5739, 0.2
    %v5928 = vmul.f32 %v5741, 0.2
    %v5929 = vmul.f32 %v5911, 0.2
    %v5930 = vmul.f32 %v5913, 0.2
    %v5931 = vmul.f32 %v5743, 0.2
    %v5932 = vmul.f32 %v5745, 0.2
    %v5933 = vmul.f32 %v5915, 0.2
    %v5934 = vmul.f32 %v5917, 0.2
    %v5935 = vsel %vm5919, %v5739, %v5927
    %v5936 = vsel %vm5920, %v5741, %v5928
    %v5937 = vsel %vm5921, %v5911, %v5929
    %v5938 = vsel %vm5922, %v5913, %v5930
    %v5939 = vsel %vm5923, %v5743, %v5931
    %v5940 = vsel %vm5924, %v5745, %v5932
    %v5941 = vsel %vm5925, %v5915, %v5933
    %v5942 = vsel %vm5926, %v5917, %v5934
    %v5943 = vpack.c.bf16 %v5939, %v5935
    %v5944 = vpack.c.bf16 %v5940, %v5936
    %v5945 = vpack.c.bf16 %v5941, %v5937
    %v5946 = vpack.c.bf16 %v5942, %v5938
    %v5947 = vld [vmem:[#allocation11] sm:$0xff]
    %v5948 = vld [vmem:[#allocation11 + $0x8] sm:$0xff]
    %v5949 = vld [vmem:[#allocation11 + $0x10] sm:$0xff]
    %v5950 = vld [vmem:[#allocation11 + $0x18] sm:$0xff]
    %v5951 = vld [vmem:[#allocation11 + $0x20] sm:$0xff]
    %v5952 = vld [vmem:[#allocation11 + $0x28] sm:$0xff]
    %v5953 = vld [vmem:[#allocation11 + $0x30] sm:$0xff]
    %v5954 = vld [vmem:[#allocation11 + $0x38] sm:$0xff]
    %v5955 = vld [vmem:[#allocation11 + $0x40] sm:$0xff]
    %v5956 = vld [vmem:[#allocation11 + $0x48] sm:$0xff]
    %v5957 = vld [vmem:[#allocation11 + $0x50] sm:$0xff]
    %v5958 = vld [vmem:[#allocation11 + $0x58] sm:$0xff]
    %v5959 = vld [vmem:[#allocation11 + $0x60] sm:$0xff]
    %v5960 = vld [vmem:[#allocation11 + $0x68] sm:$0xff]
    %v5961 = vld [vmem:[#allocation11 + $0x70] sm:$0xff]
    %v5962 = vld [vmem:[#allocation11 + $0x78] sm:$0xff]
    %v5963 = vld [vmem:[#allocation11 + $0x80] sm:$0xff]
    %v5964 = vld [vmem:[#allocation11 + $0x88] sm:$0xff]
    %v5965 = vld [vmem:[#allocation11 + $0x90] sm:$0xff]
    %v5966 = vld [vmem:[#allocation11 + $0x98] sm:$0xff]
    %v5967 = vld [vmem:[#allocation11 + $0xa0] sm:$0xff]
    %v5968 = vld [vmem:[#allocation11 + $0xa8] sm:$0xff]
    %v5969 = vld [vmem:[#allocation11 + $0xb0] sm:$0xff]
    %v5970 = vld [vmem:[#allocation11 + $0xb8] sm:$0xff]
    %v5971 = vld [vmem:[#allocation11 + $0xc0] sm:$0xff]
    %v5972 = vld [vmem:[#allocation11 + $0xc8] sm:$0xff]
    %v5973 = vld [vmem:[#allocation11 + $0xd0] sm:$0xff]
    %v5974 = vld [vmem:[#allocation11 + $0xd8] sm:$0xff]
    %v5975 = vld [vmem:[#allocation11 + $0xe0] sm:$0xff]
    %v5976 = vld [vmem:[#allocation11 + $0xe8] sm:$0xff]
    %v5977 = vld [vmem:[#allocation11 + $0xf0] sm:$0xff]
    %v5978 = vld [vmem:[#allocation11 + $0xf8] sm:$0xff]
    %v5979 = vld [vmem:[#allocation11 + $0x100] sm:$0xff]
    %v5980 = vld [vmem:[#allocation11 + $0x108] sm:$0xff]
    %v5981 = vld [vmem:[#allocation11 + $0x110] sm:$0xff]
    %v5982 = vld [vmem:[#allocation11 + $0x118] sm:$0xff]
    %v5983 = vld [vmem:[#allocation11 + $0x120] sm:$0xff]
    %v5984 = vld [vmem:[#allocation11 + $0x128] sm:$0xff]
    %v5985 = vld [vmem:[#allocation11 + $0x130] sm:$0xff]
    %v5986 = vld [vmem:[#allocation11 + $0x138] sm:$0xff]
    %v5987 = vld [vmem:[#allocation11 + $0x140] sm:$0xff]
    %v5988 = vld [vmem:[#allocation11 + $0x148] sm:$0xff]
    %v5989 = vld [vmem:[#allocation11 + $0x150] sm:$0xff]
    %v5990 = vld [vmem:[#allocation11 + $0x158] sm:$0xff]
    %v5991 = vld [vmem:[#allocation11 + $0x160] sm:$0xff]
    %v5992 = vld [vmem:[#allocation11 + $0x168] sm:$0xff]
    %v5993 = vld [vmem:[#allocation11 + $0x170] sm:$0xff]
    %v5994 = vld [vmem:[#allocation11 + $0x178] sm:$0xff]
    %v5995 = vld [vmem:[#allocation11 + $0x180] sm:$0xff]
    %v5996 = vld [vmem:[#allocation11 + $0x188] sm:$0xff]
    %v5997 = vld [vmem:[#allocation11 + $0x190] sm:$0xff]
    %v5998 = vld [vmem:[#allocation11 + $0x198] sm:$0xff]
    %v5999 = vld [vmem:[#allocation11 + $0x1a0] sm:$0xff]
    %v6000 = vld [vmem:[#allocation11 + $0x1a8] sm:$0xff]
    %v6001 = vld [vmem:[#allocation11 + $0x1b0] sm:$0xff]
    %v6002 = vld [vmem:[#allocation11 + $0x1b8] sm:$0xff]
    %v6003 = vld [vmem:[#allocation11 + $0x1c0] sm:$0xff]
    %v6004 = vld [vmem:[#allocation11 + $0x1c8] sm:$0xff]
    %v6005 = vld [vmem:[#allocation11 + $0x1d0] sm:$0xff]
    %v6006 = vld [vmem:[#allocation11 + $0x1d8] sm:$0xff]
    %v6007 = vld [vmem:[#allocation11 + $0x1e0] sm:$0xff]
    %v6008 = vld [vmem:[#allocation11 + $0x1e8] sm:$0xff]
    %v6009 = vld [vmem:[#allocation11 + $0x1f0] sm:$0xff]
    %v6010 = vld [vmem:[#allocation11 + $0x1f8] sm:$0xff]
    %v6011 = vld [vmem:[#allocation13] sm:$0x3]
    %v6013 = vlaneseq
    %v6014 = vshrl.u32 %v6013, 7
    %v6015 = vsub.s32 0, %v6014
    %v6016 = vrot.slane %v6011, %v6015
    %v6017 = vlaneseq
    %v6018 = vshrl.u32 %v6017, 7
    %v6019 = vsub.s32 1, %v6018
    %v6020 = vrot.slane %v6011, %v6019
    %v6087 = vunpack.c.l.b16 %v5947
    %v6088 = vunpack.c.h.b16 %v5947
    %v6089 = vunpack.c.l.b16 %v5948
    %v6090 = vunpack.c.h.b16 %v5948
    %v6091 = vunpack.c.l.b16 %v5949
    %v6092 = vunpack.c.h.b16 %v5949
    %v6093 = vunpack.c.l.b16 %v5950
    %v6094 = vunpack.c.h.b16 %v5950
    %v6095 = vunpack.c.l.b16 %v5951
    %v6096 = vunpack.c.h.b16 %v5951
    %v6097 = vunpack.c.l.b16 %v5952
    %v6098 = vunpack.c.h.b16 %v5952
    %v6099 = vunpack.c.l.b16 %v5953
    %v6100 = vunpack.c.h.b16 %v5953
    %v6101 = vunpack.c.l.b16 %v5954
    %v6102 = vunpack.c.h.b16 %v5954
    %v6103 = vunpack.c.l.b16 %v5955
    %v6104 = vunpack.c.h.b16 %v5955
    %v6105 = vunpack.c.l.b16 %v5956
    %v6106 = vunpack.c.h.b16 %v5956
    %v6107 = vunpack.c.l.b16 %v5957
    %v6108 = vunpack.c.h.b16 %v5957
    %v6109 = vunpack.c.l.b16 %v5958
    %v6110 = vunpack.c.h.b16 %v5958
    %v6111 = vunpack.c.l.b16 %v5959
    %v6112 = vunpack.c.h.b16 %v5959
    %v6113 = vunpack.c.l.b16 %v5960
    %v6114 = vunpack.c.h.b16 %v5960
    %v6115 = vunpack.c.l.b16 %v5961
    %v6116 = vunpack.c.h.b16 %v5961
    %v6117 = vunpack.c.l.b16 %v5962
    %v6118 = vunpack.c.h.b16 %v5962
    %v6119 = vunpack.c.l.b16 %v5963
    %v6120 = vunpack.c.h.b16 %v5963
    %v6121 = vunpack.c.l.b16 %v5964
    %v6122 = vunpack.c.h.b16 %v5964
    %v6123 = vunpack.c.l.b16 %v5965
    %v6124 = vunpack.c.h.b16 %v5965
    %v6125 = vunpack.c.l.b16 %v5966
    %v6126 = vunpack.c.h.b16 %v5966
    %v6127 = vunpack.c.l.b16 %v5967
    %v6128 = vunpack.c.h.b16 %v5967
    %v6129 = vunpack.c.l.b16 %v5968
    %v6130 = vunpack.c.h.b16 %v5968
    %v6131 = vunpack.c.l.b16 %v5969
    %v6132 = vunpack.c.h.b16 %v5969
    %v6133 = vunpack.c.l.b16 %v5970
    %v6134 = vunpack.c.h.b16 %v5970
    %v6135 = vunpack.c.l.b16 %v5971
    %v6136 = vunpack.c.h.b16 %v5971
    %v6137 = vunpack.c.l.b16 %v5972
    %v6138 = vunpack.c.h.b16 %v5972
    %v6139 = vunpack.c.l.b16 %v5973
    %v6140 = vunpack.c.h.b16 %v5973
    %v6141 = vunpack.c.l.b16 %v5974
    %v6142 = vunpack.c.h.b16 %v5974
    %v6143 = vunpack.c.l.b16 %v5975
    %v6144 = vunpack.c.h.b16 %v5975
    %v6145 = vunpack.c.l.b16 %v5976
    %v6146 = vunpack.c.h.b16 %v5976
    %v6147 = vunpack.c.l.b16 %v5977
    %v6148 = vunpack.c.h.b16 %v5977
    %v6149 = vunpack.c.l.b16 %v5978
    %v6150 = vunpack.c.h.b16 %v5978
    %v6151 = vunpack.c.l.b16 %v5979
    %v6152 = vunpack.c.h.b16 %v5979
    %v6153 = vunpack.c.l.b16 %v5980
    %v6154 = vunpack.c.h.b16 %v5980
    %v6155 = vunpack.c.l.b16 %v5981
    %v6156 = vunpack.c.h.b16 %v5981
    %v6157 = vunpack.c.l.b16 %v5982
    %v6158 = vunpack.c.h.b16 %v5982
    %v6159 = vunpack.c.l.b16 %v5983
    %v6160 = vunpack.c.h.b16 %v5983
    %v6161 = vunpack.c.l.b16 %v5984
    %v6162 = vunpack.c.h.b16 %v5984
    %v6163 = vunpack.c.l.b16 %v5985
    %v6164 = vunpack.c.h.b16 %v5985
    %v6165 = vunpack.c.l.b16 %v5986
    %v6166 = vunpack.c.h.b16 %v5986
    %v6167 = vunpack.c.l.b16 %v5987
    %v6168 = vunpack.c.h.b16 %v5987
    %v6169 = vunpack.c.l.b16 %v5988
    %v6170 = vunpack.c.h.b16 %v5988
    %v6171 = vunpack.c.l.b16 %v5989
    %v6172 = vunpack.c.h.b16 %v5989
    %v6173 = vunpack.c.l.b16 %v5990
    %v6174 = vunpack.c.h.b16 %v5990
    %v6175 = vunpack.c.l.b16 %v5991
    %v6176 = vunpack.c.h.b16 %v5991
    %v6177 = vunpack.c.l.b16 %v5992
    %v6178 = vunpack.c.h.b16 %v5992
    %v6179 = vunpack.c.l.b16 %v5993
    %v6180 = vunpack.c.h.b16 %v5993
    %v6181 = vunpack.c.l.b16 %v5994
    %v6182 = vunpack.c.h.b16 %v5994
    %v6183 = vunpack.c.l.b16 %v5995
    %v6184 = vunpack.c.h.b16 %v5995
    %v6185 = vunpack.c.l.b16 %v5996
    %v6186 = vunpack.c.h.b16 %v5996
    %v6187 = vunpack.c.l.b16 %v5997
    %v6188 = vunpack.c.h.b16 %v5997
    %v6189 = vunpack.c.l.b16 %v5998
    %v6190 = vunpack.c.h.b16 %v5998
    %v6191 = vunpack.c.l.b16 %v5999
    %v6192 = vunpack.c.h.b16 %v5999
    %v6193 = vunpack.c.l.b16 %v6000
    %v6194 = vunpack.c.h.b16 %v6000
    %v6195 = vunpack.c.l.b16 %v6001
    %v6196 = vunpack.c.h.b16 %v6001
    %v6197 = vunpack.c.l.b16 %v6002
    %v6198 = vunpack.c.h.b16 %v6002
    %v6199 = vunpack.c.l.b16 %v6003
    %v6200 = vunpack.c.h.b16 %v6003
    %v6201 = vunpack.c.l.b16 %v6004
    %v6202 = vunpack.c.h.b16 %v6004
    %v6203 = vunpack.c.l.b16 %v6005
    %v6204 = vunpack.c.h.b16 %v6005
    %v6205 = vunpack.c.l.b16 %v6006
    %v6206 = vunpack.c.h.b16 %v6006
    %v6207 = vunpack.c.l.b16 %v6007
    %v6208 = vunpack.c.h.b16 %v6007
    %v6209 = vunpack.c.l.b16 %v6008
    %v6210 = vunpack.c.h.b16 %v6008
    %v6211 = vunpack.c.l.b16 %v6009
    %v6212 = vunpack.c.h.b16 %v6009
    %v6213 = vunpack.c.l.b16 %v6010
    %v6214 = vunpack.c.h.b16 %v6010
    %v6215 = vpack.c.b16 %v6089, %v6087
    %v6216 = vpack.c.b16 %v6090, %v6088
    %v6217 = vpack.c.b16 %v6093, %v6091
    %v6218 = vpack.c.b16 %v6094, %v6092
    %v6219 = vpack.c.b16 %v6097, %v6095
    %v6220 = vpack.c.b16 %v6098, %v6096
    %v6221 = vpack.c.b16 %v6101, %v6099
    %v6222 = vpack.c.b16 %v6102, %v6100
    %v6223 = vpack.c.b16 %v6105, %v6103
    %v6224 = vpack.c.b16 %v6106, %v6104
    %v6225 = vpack.c.b16 %v6109, %v6107
    %v6226 = vpack.c.b16 %v6110, %v6108
    %v6227 = vpack.c.b16 %v6113, %v6111
    %v6228 = vpack.c.b16 %v6114, %v6112
    %v6229 = vpack.c.b16 %v6117, %v6115
    %v6230 = vpack.c.b16 %v6118, %v6116
    %v6231 = vpack.c.b16 %v6121, %v6119
    %v6232 = vpack.c.b16 %v6122, %v6120
    %v6233 = vpack.c.b16 %v6125, %v6123
    %v6234 = vpack.c.b16 %v6126, %v6124
    %v6235 = vpack.c.b16 %v6129, %v6127
    %v6236 = vpack.c.b16 %v6130, %v6128
    %v6237 = vpack.c.b16 %v6133, %v6131
    %v6238 = vpack.c.b16 %v6134, %v6132
    %v6239 = vpack.c.b16 %v6137, %v6135
    %v6240 = vpack.c.b16 %v6138, %v6136
    %v6241 = vpack.c.b16 %v6141, %v6139
    %v6242 = vpack.c.b16 %v6142, %v6140
    %v6243 = vpack.c.b16 %v6145, %v6143
    %v6244 = vpack.c.b16 %v6146, %v6144
    %v6245 = vpack.c.b16 %v6149, %v6147
    %v6246 = vpack.c.b16 %v6150, %v6148
    %v6247 = vpack.c.b16 %v6153, %v6151
    %v6248 = vpack.c.b16 %v6154, %v6152
    %v6249 = vpack.c.b16 %v6157, %v6155
    %v6250 = vpack.c.b16 %v6158, %v6156
    %v6251 = vpack.c.b16 %v6161, %v6159
    %v6252 = vpack.c.b16 %v6162, %v6160
    %v6253 = vpack.c.b16 %v6165, %v6163
    %v6254 = vpack.c.b16 %v6166, %v6164
    %v6255 = vpack.c.b16 %v6169, %v6167
    %v6256 = vpack.c.b16 %v6170, %v6168
    %v6257 = vpack.c.b16 %v6173, %v6171
    %v6258 = vpack.c.b16 %v6174, %v6172
    %v6259 = vpack.c.b16 %v6177, %v6175
    %v6260 = vpack.c.b16 %v6178, %v6176
    %v6261 = vpack.c.b16 %v6181, %v6179
    %v6262 = vpack.c.b16 %v6182, %v6180
    %v6263 = vpack.c.b16 %v6185, %v6183
    %v6264 = vpack.c.b16 %v6186, %v6184
    %v6265 = vpack.c.b16 %v6189, %v6187
    %v6266 = vpack.c.b16 %v6190, %v6188
    %v6267 = vpack.c.b16 %v6193, %v6191
    %v6268 = vpack.c.b16 %v6194, %v6192
    %v6269 = vpack.c.b16 %v6197, %v6195
    %v6270 = vpack.c.b16 %v6198, %v6196
    %v6271 = vpack.c.b16 %v6201, %v6199
    %v6272 = vpack.c.b16 %v6202, %v6200
    %v6273 = vpack.c.b16 %v6205, %v6203
    %v6274 = vpack.c.b16 %v6206, %v6204
    %v6275 = vpack.c.b16 %v6209, %v6207
    %v6276 = vpack.c.b16 %v6210, %v6208
    %v6277 = vpack.c.b16 %v6213, %v6211
    %v6278 = vpack.c.b16 %v6214, %v6212
    %6343 = vmatprep.subr.bf16.mxu0 %v6216
    %6344 = vmatpush1.bf16.msra.mxu0 %v6215
    %6345 = vmatprep.subr.bf16.mxu0 %v6218
    %6346 = vmatpush1.bf16.msra.mxu0 %v6217
    %6347 = vmatprep.subr.bf16.mxu0 %v6220
    %6348 = vmatpush1.bf16.msra.mxu0 %v6219
    %6349 = vmatprep.subr.bf16.mxu0 %v6222
    %6350 = vmatpush1.bf16.msra.mxu0 %v6221
    %6351 = vmatprep.subr.bf16.mxu0 %v6224
    %6352 = vmatpush1.bf16.msra.mxu0 %v6223
    %6353 = vmatprep.subr.bf16.mxu0 %v6226
    %6354 = vmatpush1.bf16.msra.mxu0 %v6225
    %6355 = vmatprep.subr.bf16.mxu0 %v6228
    %6356 = vmatpush1.bf16.msra.mxu0 %v6227
    %6357 = vmatprep.subr.bf16.mxu0 %v6230
    %6358 = vmatpush1.bf16.msra.mxu0 %v6229
    %6359 = vmatprep.subr.bf16.mxu0 %v6232
    %6360 = vmatpush1.bf16.msra.mxu0 %v6231
    %6361 = vmatprep.subr.bf16.mxu0 %v6234
    %6362 = vmatpush1.bf16.msra.mxu0 %v6233
    %6363 = vmatprep.subr.bf16.mxu0 %v6236
    %6364 = vmatpush1.bf16.msra.mxu0 %v6235
    %6365 = vmatprep.subr.bf16.mxu0 %v6238
    %6366 = vmatpush1.bf16.msra.mxu0 %v6237
    %6367 = vmatprep.subr.bf16.mxu0 %v6240
    %6368 = vmatpush1.bf16.msra.mxu0 %v6239
    %6369 = vmatprep.subr.bf16.mxu0 %v6242
    %6370 = vmatpush1.bf16.msra.mxu0 %v6241
    %6371 = vmatprep.subr.bf16.mxu0 %v6244
    %6372 = vmatpush1.bf16.msra.mxu0 %v6243
    %6373 = vmatprep.subr.bf16.mxu0 %v6246
    %6374 = vmatpush1.bf16.msra.mxu0 %v6245
    %6375 = vmatprep.mubr.bf16.mxu0 %v5944
    %6376 = vmatmul.mubr.bf16.gmra.mrb[0].mxu0 %v5943
    %v6377 = vpop.f32.mrb[0].mxu0
    %v6378 = vadd.f32 %v6016, %v6377
    %v6379 = vpop.f32.mrb[0].mxu0
    %v6380 = vadd.f32 %v6020, %v6379
    %v6381 = vpop.f32.mrb[0].mxu0
    %v6382 = vadd.f32 %v6016, %v6381
    %v6383 = vpop.f32.mrb[0].mxu0
    %v6384 = vadd.f32 %v6020, %v6383
    %6385 = vdwg.mxu0
    %6386 = vmatprep.subr.bf16.mxu0 %v6248
    %6387 = vmatpush1.bf16.msra.mxu0 %v6247
    %6388 = vmatprep.subr.bf16.mxu0 %v6250
    %6389 = vmatpush1.bf16.msra.mxu0 %v6249
    %6390 = vmatprep.subr.bf16.mxu0 %v6252
    %6391 = vmatpush1.bf16.msra.mxu0 %v6251
    %6392 = vmatprep.subr.bf16.mxu0 %v6254
    %6393 = vmatpush1.bf16.msra.mxu0 %v6253
    %6394 = vmatprep.subr.bf16.mxu0 %v6256
    %6395 = vmatpush1.bf16.msra.mxu0 %v6255
    %6396 = vmatprep.subr.bf16.mxu0 %v6258
    %6397 = vmatpush1.bf16.msra.mxu0 %v6257
    %6398 = vmatprep.subr.bf16.mxu0 %v6260
    %6399 = vmatpush1.bf16.msra.mxu0 %v6259
    %6400 = vmatprep.subr.bf16.mxu0 %v6262
    %6401 = vmatpush1.bf16.msra.mxu0 %v6261
    %6402 = vmatprep.subr.bf16.mxu0 %v6264
    %6403 = vmatpush1.bf16.msra.mxu0 %v6263
    %6404 = vmatprep.subr.bf16.mxu0 %v6266
    %6405 = vmatpush1.bf16.msra.mxu0 %v6265
    %6406 = vmatprep.subr.bf16.mxu0 %v6268
    %6407 = vmatpush1.bf16.msra.mxu0 %v6267
    %6408 = vmatprep.subr.bf16.mxu0 %v6270
    %6409 = vmatpush1.bf16.msra.mxu0 %v6269
    %6410 = vmatprep.subr.bf16.mxu0 %v6272
    %6411 = vmatpush1.bf16.msra.mxu0 %v6271
    %6412 = vmatprep.subr.bf16.mxu0 %v6274
    %6413 = vmatpush1.bf16.msra.mxu0 %v6273
    %6414 = vmatprep.subr.bf16.mxu0 %v6276
    %6415 = vmatpush1.bf16.msra.mxu0 %v6275
    %6416 = vmatprep.subr.bf16.mxu0 %v6278
    %6417 = vmatpush1.bf16.msra.mxu0 %v6277
    %6418 = vmatprep.mubr.bf16.mxu0 %v5946
    %6419 = vmatmul.mubr.bf16.gmra.mrb[0].mxu0 %v5945
    %v6420 = vpop.f32.mrb[0].mxu0
    %v6421 = vadd.f32 %v6378, %v6420
    %v6422 = vpop.f32.mrb[0].mxu0
    %v6423 = vadd.f32 %v6380, %v6422
    %v6424 = vpop.f32.mrb[0].mxu0
    %v6425 = vadd.f32 %v6382, %v6424
    %v6426 = vpop.f32.mrb[0].mxu0
    %v6427 = vadd.f32 %v6384, %v6426
    %6428 = vdwg.mxu0
    %vm6429 = vcmp.gt.f32.partialorder %v6421, 0.0
    %vm6430 = vcmp.gt.f32.partialorder %v6423, 0.0
    %vm6431 = vcmp.gt.f32.partialorder %v6425, 0.0
    %vm6432 = vcmp.gt.f32.partialorder %v6427, 0.0
    %v6433 = vmul.f32 %v6421, 0.2
    %v6434 = vmul.f32 %v6423, 0.2
    %v6435 = vmul.f32 %v6425, 0.2
    %v6436 = vmul.f32 %v6427, 0.2
    %v6437 = vsel %vm6429, %v6421, %v6433
    %v6438 = vsel %vm6430, %v6423, %v6434
    %v6439 = vsel %vm6431, %v6425, %v6435
    %v6440 = vsel %vm6432, %v6427, %v6436
    %v6441 = vld [vmem:[#allocation14] sm:$0x3]
    %v6443 = vlaneseq
    %v6444 = vshrl.u32 %v6443, 7
    %v6445 = vsub.s32 0, %v6444
    %v6446 = vrot.slane %v6441, %v6445
    %v6447 = vlaneseq
    %v6448 = vshrl.u32 %v6447, 7
    %v6449 = vsub.s32 1, %v6448
    %v6450 = vrot.slane %v6441, %v6449
    %v6453 = vmul.f32 %v6437, %v6446
    %v6454 = vmul.f32 %v6438, %v6450
    %v6455 = vmul.f32 %v6439, %v6446
    %v6456 = vmul.f32 %v6440, %v6450
    %v6457 = vadd.f32 %v6453, %v6454
    %6458 = vadd.xlane.f32.xlu0 %v6457
    %v6459 = vpop.xlane.xlu0 %6458
    %v6460 = vadd.f32 %v6455, %v6456
    %6461 = vadd.xlane.f32.xlu0 %v6460
    %v6462 = vpop.xlane.xlu0 %6461
    %v6463 = vld [vmem:[#allocation2] sm:$0x1]
    %v6465 = vlaneseq
    %v6466 = vshrl.u32 %v6465, 7
    %v6467 = vsub.s32 0, %v6466
    %v6468 = vrot.slane %v6463, %v6467
    %v6470 = vadd.f32 %v6459, %v6468
    %v6471 = vadd.f32 %v6462, %v6468
    %vm6472 = vcmask 7168
    %6473 = vst.msk [vmem:[%s9] sm:$0xff] %vm6472, %v6470
    %6474 = vst.msk [vmem:[%s9 + $0x8] sm:$0xff] %vm6472, %v6471
    // Predicated region
    $region70: #{tpu_custom_call.1} parent=1 // pred_check
      _
    $region71: #{tpu_custom_call.1} parent=1 // pred_check_branch
      %6476 = sbr.rel (0) target = $region73
    $region72: #{tpu_custom_call.1} parent=1 // pred_region
      _
    $region73: #{tpu_custom_call.1} parent=1 // pred_fallthru
      _
    // Predicated region
    $region74: #{tpu_custom_call.1} parent=1 // pred_check
      _
    $region75: #{tpu_custom_call.1} parent=1 // pred_check_branch
      %6478 = sbr.rel (0) target = $region77
    $region76: #{tpu_custom_call.1} parent=1 // pred_region
      _
    $region77: #{tpu_custom_call.1} parent=1 // pred_fallthru
      _
    %6479 = vsyncpa [#allocation4], 1
    %6480 = vsyncpa [#allocation6], 1
    %6481 = vsyncpa [#allocation9], 1
    %6482 = vsyncpa [#allocation12], 1
    %6483 = vsyncpa [#allocation15], 1

// kernel: tpu_custom_call.1
$region0: #{tpu_custom_call.1}
  #allocation0 [shape = 'u32[]', space=smem, size = 0x4, offset = 0x4, fixed_abs, tag = 'smem constant byte address 0x4 - core index']
  #allocation1 [shape = 'u32[144,128]{1,0:T(1,128)}', space=vmem, size = 0x12000, scoped, tag = 'internal scratch']
  #allocation2 [shape = 'f32[1,1]{1,0:T(1,128)S(1)}', space=vmem, size = 0x200, scoped, tag = 'scoped memory for tpu_custom_call.1']
  %s0 = inlined_call_operand.hbm [shape: f32[16,1024], index: 0, kind: input, shape index: {}]
  %s1 = inlined_call_operand.hbm [shape: bf16[1024,1024], index: 1, kind: input, shape index: {}]
  %s2 = inlined_call_operand.hbm [shape: f32[1,1024], index: 2, kind: input, shape index: {}]
  %s3 = inlined_call_operand.hbm [shape: bf16[1024,512], index: 3, kind: input, shape index: {}]
  %s4 = inlined_call_operand.hbm [shape: f32[1,512], index: 4, kind: input, shape index: {}]
  %s5 = inlined_call_operand.hbm [shape: bf16[512,256], index: 5, kind: input, shape index: {}]
  %s6 = inlined_call_operand.hbm [shape: f32[1,256], index: 6, kind: input, shape index: {}]
  %s7 = inlined_call_operand.hbm [shape: f32[1,256], index: 7, kind: input, shape index: {}]
  %s8 = inlined_call_operand.<no memory space> [shape: f32[1,1], index: 8, kind: input, shape index: {}]
  %s9 = inlined_call_operand.vmem [shape: f32[16,1], index: 9, kind: output, shape index: {}]
  %s10 = sld [smem:[#allocation0]]
  $region78: #{tpu_custom_call.1} parent=0
    _
  %s12 = ssub.s32 1, %s10
  %s13 = scalar_select 0, %s12, %s10
  %v14 = vstv %s8
  %15 = vst [vmem:[#allocation2] sm:$0x1] %v14
  $region1: #{tpu_custom_call.1} parent=0
    #allocation3 [shape = 'u8[65536]{0}', space=vmem, size = 0x10000, scoped, tag = 'input window, operand 0, single buffered']
    #allocation4 [shape = 's32[1]{0}', space=sflag, size = 0x4, scoped, tag = 'scoped memory for tpu_custom_call.1']
    #allocation5 [shape = 'u8[2097152]{0}', space=vmem, size = 0x200000, scoped, tag = 'input window, operand 1, single buffered']
    #allocation6 [shape = 's32[1]{0}', space=sflag, size = 0x4, scoped, tag = 'scoped memory for tpu_custom_call.1']
    #allocation7 [shape = 'u8[4096]{0}', space=vmem, size = 0x1000, scoped, tag = 'input window, operand 2, single buffered']
    #allocation8 [shape = 'u8[1048576]{0}', space=vmem, size = 0x100000, scoped, tag = 'input window, operand 3, single buffered']
    #allocation9 [shape = 's32[1]{0}', space=sflag, size = 0x4, scoped, tag = 'scoped memory for tpu_custom_call.1']
    #allocation10 [shape = 'u8[2048]{0}', space=vmem, size = 0x800, scoped, tag = 'input window, operand 4, single buffered']
    #allocation11 [shape = 'u8[262144]{0}', space=vmem, size = 0x40000, scoped, tag = 'input window, operand 5, single buffered']
    #allocation12 [shape = 's32[1]{0}', space=sflag, size = 0x4, scoped, tag = 'scoped memory for tpu_custom_call.1']
    #allocation13 [shape = 'u8[1024]{0}', space=vmem, size = 0x400, scoped, tag = 'input window, operand 6, single buffered']
    #allocation14 [shape = 'u8[1024]{0}', space=vmem, size = 0x400, scoped, tag = 'input window, operand 7, single buffered']
    #allocation15 [shape = 's32[1]{0}', space=sflag, size = 0x4, scoped, tag = 'scoped memory for tpu_custom_call.1']
    %16 = vsyncpa [#allocation4], 0
    %17 = vsyncpa [#allocation6], 0
    %18 = vsyncpa [#allocation9], 0
    %19 = vsyncpa [#allocation12], 0
    %20 = vsyncpa [#allocation15], 0
    // Predicated region
    $region2: #{tpu_custom_call.1} parent=1 // pred_check
      _
    $region3: #{tpu_custom_call.1} parent=1 // pred_check_branch
      %22 = sbr.rel (0) target = $region5
    $region4: #{tpu_custom_call.1} parent=1 // pred_region
      %s24 = ssub.s32 2048, 2048
      %25 = vsyncadd [#allocation4], %s24
      %s26 = sshll.u32 [#allocation3], 4
      %s27 = int_to_ptr.vmem [resolvable:$true] %s26
      %32 = dma.hbm_to_vmem [thread:$0]  %s0, 2048, %s27, [#allocation4], 1024, 1024, 64
    $region5: #{tpu_custom_call.1} parent=1 // pred_fallthru
      _
    // Predicated region
    $region6: #{tpu_custom_call.1} parent=1 // pred_check
      _
    $region7: #{tpu_custom_call.1} parent=1 // pred_check_branch
      %34 = sbr.rel (0) target = $region9
    $region8: #{tpu_custom_call.1} parent=1 // pred_region
      %s36 = ssub.s32 65536, 65536
      %37 = vsyncadd [#allocation6], %s36
      %s38 = sshll.u32 [#allocation5], 4
      %s39 = int_to_ptr.vmem [resolvable:$true] %s38
      %44 = dma.hbm_to_vmem [thread:$0]  %s1, 65536, %s39, [#allocation6], 512, 512, 32
    $region9: #{tpu_custom_call.1} parent=1 // pred_fallthru
      _
    // Predicated region
    $region10: #{tpu_custom_call.1} parent=1 // pred_check
      _
    $region11: #{tpu_custom_call.1} parent=1 // pred_check_branch
      %46 = sbr.rel (0) target = $region13
    $region12: #{tpu_custom_call.1} parent=1 // pred_region
      %s48 = ssub.s32 128, 128
      %49 = vsyncadd [#allocation6], %s48
      %s51 = sshll.u32 [#allocation7], 4
      %s52 = int_to_ptr.vmem [resolvable:$true] %s51
      %54 = dma.hbm_to_vmem [thread:$0]  %s2, 128, %s52, [#allocation6]
    $region13: #{tpu_custom_call.1} parent=1 // pred_fallthru
      _
    // Predicated region
    $region14: #{tpu_custom_call.1} parent=1 // pred_check
      _
    $region15: #{tpu_custom_call.1} parent=1 // pred_check_branch
      %56 = sbr.rel (0) target = $region17
    $region16: #{tpu_custom_call.1} parent=1 // pred_region
      %s58 = ssub.s32 32768, 32768
      %59 = vsyncadd [#allocation9], %s58
      %s60 = sshll.u32 [#allocation8], 4
      %s61 = int_to_ptr.vmem [resolvable:$true] %s60
      %66 = dma.hbm_to_vmem [thread:$0]  %s3, 32768, %s61, [#allocation9], 256, 256, 16
    $region17: #{tpu_custom_call.1} parent=1 // pred_fallthru
      _
    // Predicated region
    $region18: #{tpu_custom_call.1} parent=1 // pred_check
      _
    $region19: #{tpu_custom_call.1} parent=1 // pred_check_branch
      %68 = sbr.rel (0) target = $region21
    $region20: #{tpu_custom_call.1} parent=1 // pred_region
      %s70 = ssub.s32 64, 64
      %71 = vsyncadd [#allocation9], %s70
      %s73 = sshll.u32 [#allocation10], 4
      %s74 = int_to_ptr.vmem [resolvable:$true] %s73
      %76 = dma.hbm_to_vmem [thread:$0]  %s4, 64, %s74, [#allocation9]
    $region21: #{tpu_custom_call.1} parent=1 // pred_fallthru
      _
    // Predicated region
    $region22: #{tpu_custom_call.1} parent=1 // pred_check
      _
    $region23: #{tpu_custom_call.1} parent=1 // pred_check_branch
      %78 = sbr.rel (0) target = $region25
    $region24: #{tpu_custom_call.1} parent=1 // pred_region
      %s80 = ssub.s32 8192, 8192
      %81 = vsyncadd [#allocation12], %s80
      %s82 = sshll.u32 [#allocation11], 4
      %s83 = int_to_ptr.vmem [resolvable:$true] %s82
      %88 = dma.hbm_to_vmem [thread:$0]  %s5, 8192, %s83, [#allocation12], 128, 128, 8
    $region25: #{tpu_custom_call.1} parent=1 // pred_fallthru
      _
    // Predicated region
    $region26: #{tpu_custom_call.1} parent=1 // pred_check
      _
    $region27: #{tpu_custom_call.1} parent=1 // pred_check_branch
      %90 = sbr.rel (0) target = $region29
    $region28: #{tpu_custom_call.1} parent=1 // pred_region
      %s92 = ssub.s32 32, 32
      %93 = vsyncadd [#allocation12], %s92
      %s95 = sshll.u32 [#allocation13], 4
      %s96 = int_to_ptr.vmem [resolvable:$true] %s95
      %98 = dma.hbm_to_vmem [thread:$0]  %s6, 32, %s96, [#allocation12]
    $region29: #{tpu_custom_call.1} parent=1 // pred_fallthru
      _
    // Predicated region
    $region30: #{tpu_custom_call.1} parent=1 // pred_check
      _
    $region31: #{tpu_custom_call.1} parent=1 // pred_check_branch
      %100 = sbr.rel (0) target = $region33
    $region32: #{tpu_custom_call.1} parent=1 // pred_region
      %s102 = ssub.s32 32, 32
      %103 = vsyncadd [#allocation15], %s102
      %s105 = sshll.u32 [#allocation14], 4
      %s106 = int_to_ptr.vmem [resolvable:$true] %s105
      %108 = dma.hbm_to_vmem [thread:$0]  %s7, 32, %s106, [#allocation15]
    $region33: #{tpu_custom_call.1} parent=1 // pred_fallthru
      _
    // Predicated region
    $region34: #{tpu_custom_call.1} parent=1 // pred_check
      _
    $region35: #{tpu_custom_call.1} parent=1 // pred_check_branch
      %110 = sbr.rel (0) target = $region37
    $region36: #{tpu_custom_call.1} parent=1 // pred_region
      _
    $region37: #{tpu_custom_call.1} parent=1 // pred_fallthru
      _
    // Predicated region
    $region38: #{tpu_custom_call.1} parent=1 // pred_check
      _
    $region39: #{tpu_custom_call.1} parent=1 // pred_check_branch
      %112 = sbr.rel (0) target = $region41
    $region40: #{tpu_custom_call.1} parent=1 // pred_region
      %113 = dma.done [#allocation4], 2048
    $region41: #{tpu_custom_call.1} parent=1 // pred_fallthru
      _
    // Predicated region
    $region42: #{tpu_custom_call.1} parent=1 // pred_check
      _
    $region43: #{tpu_custom_call.1} parent=1 // pred_check_branch
      %115 = sbr.rel (0) target = $region45
    $region44: #{tpu_custom_call.1} parent=1 // pred_region
      %116 = dma.done [#allocation6], 65536
    $region45: #{tpu_custom_call.1} parent=1 // pred_fallthru
      _
    // Predicated region
    $region46: #{tpu_custom_call.1} parent=1 // pred_check
      _
    $region47: #{tpu_custom_call.1} parent=1 // pred_check_branch
      %118 = sbr.rel (0) target = $region49
    $region48: #{tpu_custom_call.1} parent=1 // pred_region
      %119 = dma.done [#allocation6], 128
    $region49: #{tpu_custom_call.1} parent=1 // pred_fallthru
      _
    // Predicated region
    $region50: #{tpu_custom_call.1} parent=1 // pred_check
      _
    $region51: #{tpu_custom_call.1} parent=1 // pred_check_branch
      %121 = sbr.rel (0) target = $region53
    $region52: #{tpu_custom_call.1} parent=1 // pred_region
      %122 = dma.done [#allocation9], 32768
    $region53: #{tpu_custom_call.1} parent=1 // pred_fallthru
      _
    // Predicated region
    $region54: #{tpu_custom_call.1} parent=1 // pred_check
      _
    $region55: #{tpu_custom_call.1} parent=1 // pred_check_branch
      %124 = sbr.rel (0) target = $region57
    $region56: #{tpu_custom_call.1} parent=1 // pred_region
      %125 = dma.done [#allocation9], 64
    $region57: #{tpu_custom_call.1} parent=1 // pred_fallthru
      _
    // Predicated region
    $region58: #{tpu_custom_call.1} parent=1 // pred_check
      _
    $region59: #{tpu_custom_call.1} parent=1 // pred_check_branch
      %127 = sbr.rel (0) target = $region61
    $region60: #{tpu_custom_call.1} parent=1 // pred_region
      %128 = dma.done [#allocation12], 8192
    $region61: #{tpu_custom_call.1} parent=1 // pred_fallthru
      _
    // Predicated region
    $region62: #{tpu_custom_call.1} parent=1 // pred_check
      _
    $region63: #{tpu_custom_call.1} parent=1 // pred_check_branch
      %130 = sbr.rel (0) target = $region65
    $region64: #{tpu_custom_call.1} parent=1 // pred_region
      %131 = dma.done [#allocation12], 32
    $region65: #{tpu_custom_call.1} parent=1 // pred_fallthru
      _
    // Predicated region
    $region66: #{tpu_custom_call.1} parent=1 // pred_check
      _
    $region67: #{tpu_custom_call.1} parent=1 // pred_check_branch
      %133 = sbr.rel (0) target = $region69
    $region68: #{tpu_custom_call.1} parent=1 // pred_region
      %134 = dma.done [#allocation15], 32
    $region69: #{tpu_custom_call.1} parent=1 // pred_fallthru
      _
    %v135 = vld [vmem:[#allocation3] sm:$0xff]
    %v136 = vld [vmem:[#allocation3 + $0x8] sm:$0xff]
    %v137 = vld [vmem:[#allocation3 + $0x10] sm:$0xff]
    %v138 = vld [vmem:[#allocation3 + $0x18] sm:$0xff]
    %v139 = vld [vmem:[#allocation3 + $0x20] sm:$0xff]
    %v140 = vld [vmem:[#allocation3 + $0x28] sm:$0xff]
    %v141 = vld [vmem:[#allocation3 + $0x30] sm:$0xff]
    %v142 = vld [vmem:[#allocation3 + $0x38] sm:$0xff]
    %v143 = vld [vmem:[#allocation3 + $0x40] sm:$0xff]
    %v144 = vld [vmem:[#allocation3 + $0x48] sm:$0xff]
    %v145 = vld [vmem:[#allocation3 + $0x50] sm:$0xff]
    %v146 = vld [vmem:[#allocation3 + $0x58] sm:$0xff]
    %v147 = vld [vmem:[#allocation3 + $0x60] sm:$0xff]
    %v148 = vld [vmem:[#allocation3 + $0x68] sm:$0xff]
    %v149 = vld [vmem:[#allocation3 + $0x70] sm:$0xff]
    %v150 = vld [vmem:[#allocation3 + $0x78] sm:$0xff]
    %v151 = vpack.c.bf16 %v143, %v135
    %v152 = vpack.c.bf16 %v144, %v136
    %v153 = vpack.c.bf16 %v145, %v137
    %v154 = vpack.c.bf16 %v146, %v138
    %v155 = vpack.c.bf16 %v147, %v139
    %v156 = vpack.c.bf16 %v148, %v140
    %v157 = vpack.c.bf16 %v149, %v141
    %v158 = vpack.c.bf16 %v150, %v142
    %v159 = vld [vmem:[#allocation5] sm:$0xff]
    %v160 = vld [vmem:[#allocation5 + $0x8] sm:$0xff]
    %v161 = vld [vmem:[#allocation5 + $0x10] sm:$0xff]
    %v162 = vld [vmem:[#allocation5 + $0x18] sm:$0xff]
    %v163 = vld [vmem:[#allocation5 + $0x20] sm:$0xff]
    %v164 = vld [vmem:[#allocation5 + $0x28] sm:$0xff]
    %v165 = vld [vmem:[#allocation5 + $0x30] sm:$0xff]
    %v166 = vld [vmem:[#allocation5 + $0x38] sm:$0xff]
    %v167 = vld [vmem:[#allocation5 + $0x40] sm:$0xff]
    %v168 = vld [vmem:[#allocation5 + $0x48] sm:$0xff]
    %v169 = vld [vmem:[#allocation5 + $0x50] sm:$0xff]
    %v170 = vld [vmem:[#allocation5 + $0x58] sm:$0xff]
    %v171 = vld [vmem:[#allocation5 + $0x60] sm:$0xff]
    %v172 = vld [vmem:[#allocation5 + $0x68] sm:$0xff]
    %v173 = vld [vmem:[#allocation5 + $0x70] sm:$0xff]
    %v174 = vld [vmem:[#allocation5 + $0x78] sm:$0xff]
    %v175 = vld [vmem:[#allocation5 + $0x80] sm:$0xff]
    %v176 = vld [vmem:[#allocation5 + $0x88] sm:$0xff]
    %v177 = vld [vmem:[#allocation5 + $0x90] sm:$0xff]
    %v178 = vld [vmem:[#allocation5 + $0x98] sm:$0xff]
    %v179 = vld [vmem:[#allocation5 + $0xa0] sm:$0xff]
    %v180 = vld [vmem:[#allocation5 + $0xa8] sm:$0xff]
    %v181 = vld [vmem:[#allocation5 + $0xb0] sm:$0xff]
    %v182 = vld [vmem:[#allocation5 + $0xb8] sm:$0xff]
    %v183 = vld [vmem:[#allocation5 + $0xc0] sm:$0xff]
    %v184 = vld [vmem:[#allocation5 + $0xc8] sm:$0xff]
    %v185 = vld [vmem:[#allocation5 + $0xd0] sm:$0xff]
    %v186 = vld [vmem:[#allocation5 + $0xd8] sm:$0xff]
    %v187 = vld [vmem:[#allocation5 + $0xe0] sm:$0xff]
    %v188 = vld [vmem:[#allocation5 + $0xe8] sm:$0xff]
    %v189 = vld [vmem:[#allocation5 + $0xf0] sm:$0xff]
    %v190 = vld [vmem:[#allocation5 + $0xf8] sm:$0xff]
    %v191 = vld [vmem:[#allocation5 + $0x100] sm:$0xff]
    %v192 = vld [vmem:[#allocation5 + $0x108] sm:$0xff]
    %v193 = vld [vmem:[#allocation5 + $0x110] sm:$0xff]
    %v194 = vld [vmem:[#allocation5 + $0x118] sm:$0xff]
    %v195 = vld [vmem:[#allocation5 + $0x120] sm:$0xff]
    %v196 = vld [vmem:[#allocation5 + $0x128] sm:$0xff]
    %v197 = vld [vmem:[#allocation5 + $0x130] sm:$0xff]
    %v198 = vld [vmem:[#allocation5 + $0x138] sm:$0xff]
    %v199 = vld [vmem:[#allocation5 + $0x140] sm:$0xff]
    %v200 = vld [vmem:[#allocation5 + $0x148] sm:$0xff]
    %v201 = vld [vmem:[#allocation5 + $0x150] sm:$0xff]
    %v202 = vld [vmem:[#allocation5 + $0x158] sm:$0xff]
    %v203 = vld [vmem:[#allocation5 + $0x160] sm:$0xff]
    %v204 = vld [vmem:[#allocation5 + $0x168] sm:$0xff]
    %v205 = vld [vmem:[#allocation5 + $0x170] sm:$0xff]
    %v206 = vld [vmem:[#allocation5 + $0x178] sm:$0xff]
    %v207 = vld [vmem:[#allocation5 + $0x180] sm:$0xff]
    %v208 = vld [vmem:[#allocation5 + $0x188] sm:$0xff]
    %v209 = vld [vmem:[#allocation5 + $0x190] sm:$0xff]
    %v210 = vld [vmem:[#allocation5 + $0x198] sm:$0xff]
    %v211 = vld [vmem:[#allocation5 + $0x1a0] sm:$0xff]
    %v212 = vld [vmem:[#allocation5 + $0x1a8] sm:$0xff]
    %v213 = vld [vmem:[#allocation5 + $0x1b0] sm:$0xff]
    %v214 = vld [vmem:[#allocation5 + $0x1b8] sm:$0xff]
    %v215 = vld [vmem:[#allocation5 + $0x1c0] sm:$0xff]
    %v216 = vld [vmem:[#allocation5 + $0x1c8] sm:$0xff]
    %v217 = vld [vmem:[#allocation5 + $0x1d0] sm:$0xff]
    %v218 = vld [vmem:[#allocation5 + $0x1d8] sm:$0xff]
    %v219 = vld [vmem:[#allocation5 + $0x1e0] sm:$0xff]
    %v220 = vld [vmem:[#allocation5 + $0x1e8] sm:$0xff]
    %v221 = vld [vmem:[#allocation5 + $0x1f0] sm:$0xff]
    %v222 = vld [vmem:[#allocation5 + $0x1f8] sm:$0xff]
    %v223 = vld [vmem:[#allocation5 + $0x200] sm:$0xff]
    %v224 = vld [vmem:[#allocation5 + $0x208] sm:$0xff]
    %v225 = vld [vmem:[#allocation5 + $0x210] sm:$0xff]
    %v226 = vld [vmem:[#allocation5 + $0x218] sm:$0xff]
    %v227 = vld [vmem:[#allocation5 + $0x220] sm:$0xff]
    %v228 = vld [vmem:[#allocation5 + $0x228] sm:$0xff]
    %v229 = vld [vmem:[#allocation5 + $0x230] sm:$0xff]
    %v230 = vld [vmem:[#allocation5 + $0x238] sm:$0xff]
    %v231 = vld [vmem:[#allocation5 + $0x240] sm:$0xff]
    %v232 = vld [vmem:[#allocation5 + $0x248] sm:$0xff]
    %v233 = vld [vmem:[#allocation5 + $0x250] sm:$0xff]
    %v234 = vld [vmem:[#allocation5 + $0x258] sm:$0xff]
    %v235 = vld [vmem:[#allocation5 + $0x260] sm:$0xff]
    %v236 = vld [vmem:[#allocation5 + $0x268] sm:$0xff]
    %v237 = vld [vmem:[#allocation5 + $0x270] sm:$0xff]
    %v238 = vld [vmem:[#allocation5 + $0x278] sm:$0xff]
    %v239 = vld [vmem:[#allocation5 + $0x280] sm:$0xff]
    %v240 = vld [vmem:[#allocation5 + $0x288] sm:$0xff]
    %v241 = vld [vmem:[#allocation5 + $0x290] sm:$0xff]
    %v242 = vld [vmem:[#allocation5 + $0x298] sm:$0xff]
    %v243 = vld [vmem:[#allocation5 + $0x2a0] sm:$0xff]
    %v244 = vld [vmem:[#allocation5 + $0x2a8] sm:$0xff]
    %v245 = vld [vmem:[#allocation5 + $0x2b0] sm:$0xff]
    %v246 = vld [vmem:[#allocation5 + $0x2b8] sm:$0xff]
    %v247 = vld [vmem:[#allocation5 + $0x2c0] sm:$0xff]
    %v248 = vld [vmem:[#allocation5 + $0x2c8] sm:$0xff]
    %v249 = vld [vmem:[#allocation5 + $0x2d0] sm:$0xff]
    %v250 = vld [vmem:[#allocation5 + $0x2d8] sm:$0xff]
    %v251 = vld [vmem:[#allocation5 + $0x2e0] sm:$0xff]
    %v252 = vld [vmem:[#allocation5 + $0x2e8] sm:$0xff]
    %v253 = vld [vmem:[#allocation5 + $0x2f0] sm:$0xff]
    %v254 = vld [vmem:[#allocation5 + $0x2f8] sm:$0xff]
    %v255 = vld [vmem:[#allocation5 + $0x300] sm:$0xff]
    %v256 = vld [vmem:[#allocation5 + $0x308] sm:$0xff]
    %v257 = vld [vmem:[#allocation5 + $0x310] sm:$0xff]
    %v258 = vld [vmem:[#allocation5 + $0x318] sm:$0xff]
    %v259 = vld [vmem:[#allocation5 + $0x320] sm:$0xff]
    %v260 = vld [vmem:[#allocation5 + $0x328] sm:$0xff]
    %v261 = vld [vmem:[#allocation5 + $0x330] sm:$0xff]
    %v262 = vld [vmem:[#allocation5 + $0x338] sm:$0xff]
    %v263 = vld [vmem:[#allocation5 + $0x340] sm:$0xff]
    %v264 = vld [vmem:[#allocation5 + $0x348] sm:$0xff]
    %v265 = vld [vmem:[#allocation5 + $0x350] sm:$0xff]
    %v266 = vld [vmem:[#allocation5 + $0x358] sm:$0xff]
    %v267 = vld [vmem:[#allocation5 + $0x360] sm:$0xff]
    %v268 = vld [vmem:[#allocation5 + $0x368] sm:$0xff]
    %v269 = vld [vmem:[#allocation5 + $0x370] sm:$0xff]
    %v270 = vld [vmem:[#allocation5 + $0x378] sm:$0xff]
    %v271 = vld [vmem:[#allocation5 + $0x380] sm:$0xff]
    %v272 = vld [vmem:[#allocation5 + $0x388] sm:$0xff]
    %v273 = vld [vmem:[#allocation5 + $0x390] sm:$0xff]
    %v274 = vld [vmem:[#allocation5 + $0x398] sm:$0xff]
    %v275 = vld [vmem:[#allocation5 + $0x3a0] sm:$0xff]
    %v276 = vld [vmem:[#allocation5 + $0x3a8] sm:$0xff]
    %v277 = vld [vmem:[#allocation5 + $0x3b0] sm:$0xff]
    %v278 = vld [vmem:[#allocation5 + $0x3b8] sm:$0xff]
    %v279 = vld [vmem:[#allocation5 + $0x3c0] sm:$0xff]
    %v280 = vld [vmem:[#allocation5 + $0x3c8] sm:$0xff]
    %v281 = vld [vmem:[#allocation5 + $0x3d0] sm:$0xff]
    %v282 = vld [vmem:[#allocation5 + $0x3d8] sm:$0xff]
    %v283 = vld [vmem:[#allocation5 + $0x3e0] sm:$0xff]
    %v284 = vld [vmem:[#allocation5 + $0x3e8] sm:$0xff]
    %v285 = vld [vmem:[#allocation5 + $0x3f0] sm:$0xff]
    %v286 = vld [vmem:[#allocation5 + $0x3f8] sm:$0xff]
    %v287 = vld [vmem:[#allocation5 + $0x400] sm:$0xff]
    %v288 = vld [vmem:[#allocation5 + $0x408] sm:$0xff]
    %v289 = vld [vmem:[#allocation5 + $0x410] sm:$0xff]
    %v290 = vld [vmem:[#allocation5 + $0x418] sm:$0xff]
    %v291 = vld [vmem:[#allocation5 + $0x420] sm:$0xff]
    %v292 = vld [vmem:[#allocation5 + $0x428] sm:$0xff]
    %v293 = vld [vmem:[#allocation5 + $0x430] sm:$0xff]
    %v294 = vld [vmem:[#allocation5 + $0x438] sm:$0xff]
    %v295 = vld [vmem:[#allocation5 + $0x440] sm:$0xff]
    %v296 = vld [vmem:[#allocation5 + $0x448] sm:$0xff]
    %v297 = vld [vmem:[#allocation5 + $0x450] sm:$0xff]
    %v298 = vld [vmem:[#allocation5 + $0x458] sm:$0xff]
    %v299 = vld [vmem:[#allocation5 + $0x460] sm:$0xff]
    %v300 = vld [vmem:[#allocation5 + $0x468] sm:$0xff]
    %v301 = vld [vmem:[#allocation5 + $0x470] sm:$0xff]
    %v302 = vld [vmem:[#allocation5 + $0x478] sm:$0xff]
    %v303 = vld [vmem:[#allocation5 + $0x480] sm:$0xff]
    %v304 = vld [vmem:[#allocation5 + $0x488] sm:$0xff]
    %v305 = vld [vmem:[#allocation5 + $0x490] sm:$0xff]
    %v306 = vld [vmem:[#allocation5 + $0x498] sm:$0xff]
    %v307 = vld [vmem:[#allocation5 + $0x4a0] sm:$0xff]
    %v308 = vld [vmem:[#allocation5 + $0x4a8] sm:$0xff]
    %v309 = vld [vmem:[#allocation5 + $0x4b0] sm:$0xff]
    %v310 = vld [vmem:[#allocation5 + $0x4b8] sm:$0xff]
    %v311 = vld [vmem:[#allocation5 + $0x4c0] sm:$0xff]
    %v312 = vld [vmem:[#allocation5 + $0x4c8] sm:$0xff]
    %v313 = vld [vmem:[#allocation5 + $0x4d0] sm:$0xff]
    %v314 = vld [vmem:[#allocation5 + $0x4d8] sm:$0xff]
    %v315 = vld [vmem:[#allocation5 + $0x4e0] sm:$0xff]
    %v316 = vld [vmem:[#allocation5 + $0x4e8] sm:$0xff]
    %v317 = vld [vmem:[#allocation5 + $0x4f0] sm:$0xff]
    %v318 = vld [vmem:[#allocation5 + $0x4f8] sm:$0xff]
    %v319 = vld [vmem:[#allocation5 + $0x500] sm:$0xff]
    %v320 = vld [vmem:[#allocation5 + $0x508] sm:$0xff]
    %v321 = vld [vmem:[#allocation5 + $0x510] sm:$0xff]
    %v322 = vld [vmem:[#allocation5 + $0x518] sm:$0xff]
    %v323 = vld [vmem:[#allocation5 + $0x520] sm:$0xff]
    %v324 = vld [vmem:[#allocation5 + $0x528] sm:$0xff]
    %v325 = vld [vmem:[#allocation5 + $0x530] sm:$0xff]
    %v326 = vld [vmem:[#allocation5 + $0x538] sm:$0xff]
    %v327 = vld [vmem:[#allocation5 + $0x540] sm:$0xff]
    %v328 = vld [vmem:[#allocation5 + $0x548] sm:$0xff]
    %v329 = vld [vmem:[#allocation5 + $0x550] sm:$0xff]
    %v330 = vld [vmem:[#allocation5 + $0x558] sm:$0xff]
    %v331 = vld [vmem:[#allocation5 + $0x560] sm:$0xff]
    %v332 = vld [vmem:[#allocation5 + $0x568] sm:$0xff]
    %v333 = vld [vmem:[#allocation5 + $0x570] sm:$0xff]
    %v334 = vld [vmem:[#allocation5 + $0x578] sm:$0xff]
    %v335 = vld [vmem:[#allocation5 + $0x580] sm:$0xff]
    %v336 = vld [vmem:[#allocation5 + $0x588] sm:$0xff]
    %v337 = vld [vmem:[#allocation5 + $0x590] sm:$0xff]
    %v338 = vld [vmem:[#allocation5 + $0x598] sm:$0xff]
    %v339 = vld [vmem:[#allocation5 + $0x5a0] sm:$0xff]
    %v340 = vld [vmem:[#allocation5 + $0x5a8] sm:$0xff]
    %v341 = vld [vmem:[#allocation5 + $0x5b0] sm:$0xff]
    %v342 = vld [vmem:[#allocation5 + $0x5b8] sm:$0xff]
    %v343 = vld [vmem:[#allocation5 + $0x5c0] sm:$0xff]
    %v344 = vld [vmem:[#allocation5 + $0x5c8] sm:$0xff]
    %v345 = vld [vmem:[#allocation5 + $0x5d0] sm:$0xff]
    %v346 = vld [vmem:[#allocation5 + $0x5d8] sm:$0xff]
    %v347 = vld [vmem:[#allocation5 + $0x5e0] sm:$0xff]
    %v348 = vld [vmem:[#allocation5 + $0x5e8] sm:$0xff]
    %v349 = vld [vmem:[#allocation5 + $0x5f0] sm:$0xff]
    %v350 = vld [vmem:[#allocation5 + $0x5f8] sm:$0xff]
    %v351 = vld [vmem:[#allocation5 + $0x600] sm:$0xff]
    %v352 = vld [vmem:[#allocation5 + $0x608] sm:$0xff]
    %v353 = vld [vmem:[#allocation5 + $0x610] sm:$0xff]
    %v354 = vld [vmem:[#allocation5 + $0x618] sm:$0xff]
    %v355 = vld [vmem:[#allocation5 + $0x620] sm:$0xff]
    %v356 = vld [vmem:[#allocation5 + $0x628] sm:$0xff]
    %v357 = vld [vmem:[#allocation5 + $0x630] sm:$0xff]
    %v358 = vld [vmem:[#allocation5 + $0x638] sm:$0xff]
    %v359 = vld [vmem:[#allocation5 + $0x640] sm:$0xff]
    %v360 = vld [vmem:[#allocation5 + $0x648] sm:$0xff]
    %v361 = vld [vmem:[#allocation5 + $0x650] sm:$0xff]
    %v362 = vld [vmem:[#allocation5 + $0x658] sm:$0xff]
    %v363 = vld [vmem:[#allocation5 + $0x660] sm:$0xff]
    %v364 = vld [vmem:[#allocation5 + $0x668] sm:$0xff]
    %v365 = vld [vmem:[#allocation5 + $0x670] sm:$0xff]
    %v366 = vld [vmem:[#allocation5 + $0x678] sm:$0xff]
    %v367 = vld [vmem:[#allocation5 + $0x680] sm:$0xff]
    %v368 = vld [vmem:[#allocation5 + $0x688] sm:$0xff]
    %v369 = vld [vmem:[#allocation5 + $0x690] sm:$0xff]
    %v370 = vld [vmem:[#allocation5 + $0x698] sm:$0xff]
    %v371 = vld [vmem:[#allocation5 + $0x6a0] sm:$0xff]
    %v372 = vld [vmem:[#allocation5 + $0x6a8] sm:$0xff]
    %v373 = vld [vmem:[#allocation5 + $0x6b0] sm:$0xff]
    %v374 = vld [vmem:[#allocation5 + $0x6b8] sm:$0xff]
    %v375 = vld [vmem:[#allocation5 + $0x6c0] sm:$0xff]
    %v376 = vld [vmem:[#allocation5 + $0x6c8] sm:$0xff]
    %v377 = vld [vmem:[#allocation5 + $0x6d0] sm:$0xff]
    %v378 = vld [vmem:[#allocation5 + $0x6d8] sm:$0xff]
    %v379 = vld [vmem:[#allocation5 + $0x6e0] sm:$0xff]
    %v380 = vld [vmem:[#allocation5 + $0x6e8] sm:$0xff]
    %v381 = vld [vmem:[#allocation5 + $0x6f0] sm:$0xff]
    %v382 = vld [vmem:[#allocation5 + $0x6f8] sm:$0xff]
    %v383 = vld [vmem:[#allocation5 + $0x700] sm:$0xff]
    %v384 = vld [vmem:[#allocation5 + $0x708] sm:$0xff]
    %v385 = vld [vmem:[#allocation5 + $0x710] sm:$0xff]
    %v386 = vld [vmem:[#allocation5 + $0x718] sm:$0xff]
    %v387 = vld [vmem:[#allocation5 + $0x720] sm:$0xff]
    %v388 = vld [vmem:[#allocation5 + $0x728] sm:$0xff]
    %v389 = vld [vmem:[#allocation5 + $0x730] sm:$0xff]
    %v390 = vld [vmem:[#allocation5 + $0x738] sm:$0xff]
    %v391 = vld [vmem:[#allocation5 + $0x740] sm:$0xff]
    %v392 = vld [vmem:[#allocation5 + $0x748] sm:$0xff]
    %v393 = vld [vmem:[#allocation5 + $0x750] sm:$0xff]
    %v394 = vld [vmem:[#allocation5 + $0x758] sm:$0xff]
    %v395 = vld [vmem:[#allocation5 + $0x760] sm:$0xff]
    %v396 = vld [vmem:[#allocation5 + $0x768] sm:$0xff]
    %v397 = vld [vmem:[#allocation5 + $0x770] sm:$0xff]
    %v398 = vld [vmem:[#allocation5 + $0x778] sm:$0xff]
    %v399 = vld [vmem:[#allocation5 + $0x780] sm:$0xff]
    %v400 = vld [vmem:[#allocation5 + $0x788] sm:$0xff]
    %v401 = vld [vmem:[#allocation5 + $0x790] sm:$0xff]
    %v402 = vld [vmem:[#allocation5 + $0x798] sm:$0xff]
    %v403 = vld [vmem:[#allocation5 + $0x7a0] sm:$0xff]
    %v404 = vld [vmem:[#allocation5 + $0x7a8] sm:$0xff]
    %v405 = vld [vmem:[#allocation5 + $0x7b0] sm:$0xff]
    %v406 = vld [vmem:[#allocation5 + $0x7b8] sm:$0xff]
    %v407 = vld [vmem:[#allocation5 + $0x7c0] sm:$0xff]
    %v408 = vld [vmem:[#allocation5 + $0x7c8] sm:$0xff]
    %v409 = vld [vmem:[#allocation5 + $0x7d0] sm:$0xff]
    %v410 = vld [vmem:[#allocation5 + $0x7d8] sm:$0xff]
    %v411 = vld [vmem:[#allocation5 + $0x7e0] sm:$0xff]
    %v412 = vld [vmem:[#allocation5 + $0x7e8] sm:$0xff]
    %v413 = vld [vmem:[#allocation5 + $0x7f0] sm:$0xff]
    %v414 = vld [vmem:[#allocation5 + $0x7f8] sm:$0xff]
    %v415 = vld [vmem:[#allocation5 + $0x800] sm:$0xff]
    %v416 = vld [vmem:[#allocation5 + $0x808] sm:$0xff]
    %v417 = vld [vmem:[#allocation5 + $0x810] sm:$0xff]
    %v418 = vld [vmem:[#allocation5 + $0x818] sm:$0xff]
    %v419 = vld [vmem:[#allocation5 + $0x820] sm:$0xff]
    %v420 = vld [vmem:[#allocation5 + $0x828] sm:$0xff]
    %v421 = vld [vmem:[#allocation5 + $0x830] sm:$0xff]
    %v422 = vld [vmem:[#allocation5 + $0x838] sm:$0xff]
    %v423 = vld [vmem:[#allocation5 + $0x840] sm:$0xff]
    %v424 = vld [vmem:[#allocation5 + $0x848] sm:$0xff]
    %v425 = vld [vmem:[#allocation5 + $0x850] sm:$0xff]
    %v426 = vld [vmem:[#allocation5 + $0x858] sm:$0xff]
    %v427 = vld [vmem:[#allocation5 + $0x860] sm:$0xff]
    %v428 = vld [vmem:[#allocation5 + $0x868] sm:$0xff]
    %v429 = vld [vmem:[#allocation5 + $0x870] sm:$0xff]
    %v430 = vld [vmem:[#allocation5 + $0x878] sm:$0xff]
    %v431 = vld [vmem:[#allocation5 + $0x880] sm:$0xff]
    %v432 = vld [vmem:[#allocation5 + $0x888] sm:$0xff]
    %v433 = vld [vmem:[#allocation5 + $0x890] sm:$0xff]
    %v434 = vld [vmem:[#allocation5 + $0x898] sm:$0xff]
    %v435 = vld [vmem:[#allocation5 + $0x8a0] sm:$0xff]
    %v436 = vld [vmem:[#allocation5 + $0x8a8] sm:$0xff]
    %v437 = vld [vmem:[#allocation5 + $0x8b0] sm:$0xff]
    %v438 = vld [vmem:[#allocation5 + $0x8b8] sm:$0xff]
    %v439 = vld [vmem:[#allocation5 + $0x8c0] sm:$0xff]
    %v440 = vld [vmem:[#allocation5 + $0x8c8] sm:$0xff]
    %v441 = vld [vmem:[#allocation5 + $0x8d0] sm:$0xff]
    %v442 = vld [vmem:[#allocation5 + $0x8d8] sm:$0xff]
    %v443 = vld [vmem:[#allocation5 + $0x8e0] sm:$0xff]
    %v444 = vld [vmem:[#allocation5 + $0x8e8] sm:$0xff]
    %v445 = vld [vmem:[#allocation5 + $0x8f0] sm:$0xff]
    %v446 = vld [vmem:[#allocation5 + $0x8f8] sm:$0xff]
    %v447 = vld [vmem:[#allocation5 + $0x900] sm:$0xff]
    %v448 = vld [vmem:[#allocation5 + $0x908] sm:$0xff]
    %v449 = vld [vmem:[#allocation5 + $0x910] sm:$0xff]
    %v450 = vld [vmem:[#allocation5 + $0x918] sm:$0xff]
    %v451 = vld [vmem:[#allocation5 + $0x920] sm:$0xff]
    %v452 = vld [vmem:[#allocation5 + $0x928] sm:$0xff]
    %v453 = vld [vmem:[#allocation5 + $0x930] sm:$0xff]
    %v454 = vld [vmem:[#allocation5 + $0x938] sm:$0xff]
    %v455 = vld [vmem:[#allocation5 + $0x940] sm:$0xff]
    %v456 = vld [vmem:[#allocation5 + $0x948] sm:$0xff]
    %v457 = vld [vmem:[#allocation5 + $0x950] sm:$0xff]
    %v458 = vld [vmem:[#allocation5 + $0x958] sm:$0xff]
    %v459 = vld [vmem:[#allocation5 + $0x960] sm:$0xff]
    %v460 = vld [vmem:[#allocation5 + $0x968] sm:$0xff]
    %v461 = vld [vmem:[#allocation5 + $0x970] sm:$0xff]
    %v462 = vld [vmem:[#allocation5 + $0x978] sm:$0xff]
    %v463 = vld [vmem:[#allocation5 + $0x980] sm:$0xff]
    %v464 = vld [vmem:[#allocation5 + $0x988] sm:$0xff]
    %v465 = vld [vmem:[#allocation5 + $0x990] sm:$0xff]
    %v466 = vld [vmem:[#allocation5 + $0x998] sm:$0xff]
    %v467 = vld [vmem:[#allocation5 + $0x9a0] sm:$0xff]
    %v468 = vld [vmem:[#allocation5 + $0x9a8] sm:$0xff]
    %v469 = vld [vmem:[#allocation5 + $0x9b0] sm:$0xff]
    %v470 = vld [vmem:[#allocation5 + $0x9b8] sm:$0xff]
    %v471 = vld [vmem:[#allocation5 + $0x9c0] sm:$0xff]
    %v472 = vld [vmem:[#allocation5 + $0x9c8] sm:$0xff]
    %v473 = vld [vmem:[#allocation5 + $0x9d0] sm:$0xff]
    %v474 = vld [vmem:[#allocation5 + $0x9d8] sm:$0xff]
    %v475 = vld [vmem:[#allocation5 + $0x9e0] sm:$0xff]
    %v476 = vld [vmem:[#allocation5 + $0x9e8] sm:$0xff]
    %v477 = vld [vmem:[#allocation5 + $0x9f0] sm:$0xff]
    %v478 = vld [vmem:[#allocation5 + $0x9f8] sm:$0xff]
    %v479 = vld [vmem:[#allocation5 + $0xa00] sm:$0xff]
    %v480 = vld [vmem:[#allocation5 + $0xa08] sm:$0xff]
    %v481 = vld [vmem:[#allocation5 + $0xa10] sm:$0xff]
    %v482 = vld [vmem:[#allocation5 + $0xa18] sm:$0xff]
    %v483 = vld [vmem:[#allocation5 + $0xa20] sm:$0xff]
    %v484 = vld [vmem:[#allocation5 + $0xa28] sm:$0xff]
    %v485 = vld [vmem:[#allocation5 + $0xa30] sm:$0xff]
    %v486 = vld [vmem:[#allocation5 + $0xa38] sm:$0xff]
    %v487 = vld [vmem:[#allocation5 + $0xa40] sm:$0xff]
    %v488 = vld [vmem:[#allocation5 + $0xa48] sm:$0xff]
    %v489 = vld [vmem:[#allocation5 + $0xa50] sm:$0xff]
    %v490 = vld [vmem:[#allocation5 + $0xa58] sm:$0xff]
    %v491 = vld [vmem:[#allocation5 + $0xa60] sm:$0xff]
    %v492 = vld [vmem:[#allocation5 + $0xa68] sm:$0xff]
    %v493 = vld [vmem:[#allocation5 + $0xa70] sm:$0xff]
    %v494 = vld [vmem:[#allocation5 + $0xa78] sm:$0xff]
    %v495 = vld [vmem:[#allocation5 + $0xa80] sm:$0xff]
    %v496 = vld [vmem:[#allocation5 + $0xa88] sm:$0xff]
    %v497 = vld [vmem:[#allocation5 + $0xa90] sm:$0xff]
    %v498 = vld [vmem:[#allocation5 + $0xa98] sm:$0xff]
    %v499 = vld [vmem:[#allocation5 + $0xaa0] sm:$0xff]
    %v500 = vld [vmem:[#allocation5 + $0xaa8] sm:$0xff]
    %v501 = vld [vmem:[#allocation5 + $0xab0] sm:$0xff]
    %v502 = vld [vmem:[#allocation5 + $0xab8] sm:$0xff]
    %v503 = vld [vmem:[#allocation5 + $0xac0] sm:$0xff]
    %v504 = vld [vmem:[#allocation5 + $0xac8] sm:$0xff]
    %v505 = vld [vmem:[#allocation5 + $0xad0] sm:$0xff]
    %v506 = vld [vmem:[#allocation5 + $0xad8] sm:$0xff]
    %v507 = vld [vmem:[#allocation5 + $0xae0] sm:$0xff]
    %v508 = vld [vmem:[#allocation5 + $0xae8] sm:$0xff]
    %v509 = vld [vmem:[#allocation5 + $0xaf0] sm:$0xff]
    %v510 = vld [vmem:[#allocation5 + $0xaf8] sm:$0xff]
    %v511 = vld [vmem:[#allocation5 + $0xb00] sm:$0xff]
    %v512 = vld [vmem:[#allocation5 + $0xb08] sm:$0xff]
    %v513 = vld [vmem:[#allocation5 + $0xb10] sm:$0xff]
    %v514 = vld [vmem:[#allocation5 + $0xb18] sm:$0xff]
    %v515 = vld [vmem:[#allocation5 + $0xb20] sm:$0xff]
    %v516 = vld [vmem:[#allocation5 + $0xb28] sm:$0xff]
    %v517 = vld [vmem:[#allocation5 + $0xb30] sm:$0xff]
    %v518 = vld [vmem:[#allocation5 + $0xb38] sm:$0xff]
    %v519 = vld [vmem:[#allocation5 + $0xb40] sm:$0xff]
    %v520 = vld [vmem:[#allocation5 + $0xb48] sm:$0xff]
    %v521 = vld [vmem:[#allocation5 + $0xb50] sm:$0xff]
    %v522 = vld [vmem:[#allocation5 + $0xb58] sm:$0xff]
    %v523 = vld [vmem:[#allocation5 + $0xb60] sm:$0xff]
    %v524 = vld [vmem:[#allocation5 + $0xb68] sm:$0xff]
    %v525 = vld [vmem:[#allocation5 + $0xb70] sm:$0xff]
    %v526 = vld [vmem:[#allocation5 + $0xb78] sm:$0xff]
    %v527 = vld [vmem:[#allocation5 + $0xb80] sm:$0xff]
    %v528 = vld [vmem:[#allocation5 + $0xb88] sm:$0xff]
    %v529 = vld [vmem:[#allocation5 + $0xb90] sm:$0xff]
    %v530 = vld [vmem:[#allocation5 + $0xb98] sm:$0xff]
    %v531 = vld [vmem:[#allocation5 + $0xba0] sm:$0xff]
    %v532 = vld [vmem:[#allocation5 + $0xba8] sm:$0xff]
    %v533 = vld [vmem:[#allocation5 + $0xbb0] sm:$0xff]
    %v534 = vld [vmem:[#allocation5 + $0xbb8] sm:$0xff]
    %v535 = vld [vmem:[#allocation5 + $0xbc0] sm:$0xff]
    %v536 = vld [vmem:[#allocation5 + $0xbc8] sm:$0xff]
    %v537 = vld [vmem:[#allocation5 + $0xbd0] sm:$0xff]
    %v538 = vld [vmem:[#allocation5 + $0xbd8] sm:$0xff]
    %v539 = vld [vmem:[#allocation5 + $0xbe0] sm:$0xff]
    %v540 = vld [vmem:[#allocation5 + $0xbe8] sm:$0xff]
    %v541 = vld [vmem:[#allocation5 + $0xbf0] sm:$0xff]
    %v542 = vld [vmem:[#allocation5 + $0xbf8] sm:$0xff]
    %v543 = vld [vmem:[#allocation5 + $0xc00] sm:$0xff]
    %v544 = vld [vmem:[#allocation5 + $0xc08] sm:$0xff]
    %v545 = vld [vmem:[#allocation5 + $0xc10] sm:$0xff]
    %v546 = vld [vmem:[#allocation5 + $0xc18] sm:$0xff]
    %v547 = vld [vmem:[#allocation5 + $0xc20] sm:$0xff]
    %v548 = vld [vmem:[#allocation5 + $0xc28] sm:$0xff]
    %v549 = vld [vmem:[#allocation5 + $0xc30] sm:$0xff]
    %v550 = vld [vmem:[#allocation5 + $0xc38] sm:$0xff]
    %v551 = vld [vmem:[#allocation5 + $0xc40] sm:$0xff]
    %v552 = vld [vmem:[#allocation5 + $0xc48] sm:$0xff]
    %v553 = vld [vmem:[#allocation5 + $0xc50] sm:$0xff]
    %v554 = vld [vmem:[#allocation5 + $0xc58] sm:$0xff]
    %v555 = vld [vmem:[#allocation5 + $0xc60] sm:$0xff]
    %v556 = vld [vmem:[#allocation5 + $0xc68] sm:$0xff]
    %v557 = vld [vmem:[#allocation5 + $0xc70] sm:$0xff]
    %v558 = vld [vmem:[#allocation5 + $0xc78] sm:$0xff]
    %v559 = vld [vmem:[#allocation5 + $0xc80] sm:$0xff]
    %v560 = vld [vmem:[#allocation5 + $0xc88] sm:$0xff]
    %v561 = vld [vmem:[#allocation5 + $0xc90] sm:$0xff]
    %v562 = vld [vmem:[#allocation5 + $0xc98] sm:$0xff]
    %v563 = vld [vmem:[#allocation5 + $0xca0] sm:$0xff]
    %v564 = vld [vmem:[#allocation5 + $0xca8] sm:$0xff]
    %v565 = vld [vmem:[#allocation5 + $0xcb0] sm:$0xff]
    %v566 = vld [vmem:[#allocation5 + $0xcb8] sm:$0xff]
    %v567 = vld [vmem:[#allocation5 + $0xcc0] sm:$0xff]
    %v568 = vld [vmem:[#allocation5 + $0xcc8] sm:$0xff]
    %v569 = vld [vmem:[#allocation5 + $0xcd0] sm:$0xff]
    %v570 = vld [vmem:[#allocation5 + $0xcd8] sm:$0xff]
    %v571 = vld [vmem:[#allocation5 + $0xce0] sm:$0xff]
    %v572 = vld [vmem:[#allocation5 + $0xce8] sm:$0xff]
    %v573 = vld [vmem:[#allocation5 + $0xcf0] sm:$0xff]
    %v574 = vld [vmem:[#allocation5 + $0xcf8] sm:$0xff]
    %v575 = vld [vmem:[#allocation5 + $0xd00] sm:$0xff]
    %v576 = vld [vmem:[#allocation5 + $0xd08] sm:$0xff]
    %v577 = vld [vmem:[#allocation5 + $0xd10] sm:$0xff]
    %v578 = vld [vmem:[#allocation5 + $0xd18] sm:$0xff]
    %v579 = vld [vmem:[#allocation5 + $0xd20] sm:$0xff]
    %v580 = vld [vmem:[#allocation5 + $0xd28] sm:$0xff]
    %v581 = vld [vmem:[#allocation5 + $0xd30] sm:$0xff]
    %v582 = vld [vmem:[#allocation5 + $0xd38] sm:$0xff]
    %v583 = vld [vmem:[#allocation5 + $0xd40] sm:$0xff]
    %v584 = vld [vmem:[#allocation5 + $0xd48] sm:$0xff]
    %v585 = vld [vmem:[#allocation5 + $0xd50] sm:$0xff]
    %v586 = vld [vmem:[#allocation5 + $0xd58] sm:$0xff]
    %v587 = vld [vmem:[#allocation5 + $0xd60] sm:$0xff]
    %v588 = vld [vmem:[#allocation5 + $0xd68] sm:$0xff]
    %v589 = vld [vmem:[#allocation5 + $0xd70] sm:$0xff]
    %v590 = vld [vmem:[#allocation5 + $0xd78] sm:$0xff]
    %v591 = vld [vmem:[#allocation5 + $0xd80] sm:$0xff]
    %v592 = vld [vmem:[#allocation5 + $0xd88] sm:$0xff]
    %v593 = vld [vmem:[#allocation5 + $0xd90] sm:$0xff]
    %v594 = vld [vmem:[#allocation5 + $0xd98] sm:$0xff]
    %v595 = vld [vmem:[#allocation5 + $0xda0] sm:$0xff]
    %v596 = vld [vmem:[#allocation5 + $0xda8] sm:$0xff]
    %v597 = vld [vmem:[#allocation5 + $0xdb0] sm:$0xff]
    %v598 = vld [vmem:[#allocation5 + $0xdb8] sm:$0xff]
    %v599 = vld [vmem:[#allocation5 + $0xdc0] sm:$0xff]
    %v600 = vld [vmem:[#allocation5 + $0xdc8] sm:$0xff]
    %v601 = vld [vmem:[#allocation5 + $0xdd0] sm:$0xff]
    %v602 = vld [vmem:[#allocation5 + $0xdd8] sm:$0xff]
    %v603 = vld [vmem:[#allocation5 + $0xde0] sm:$0xff]
    %v604 = vld [vmem:[#allocation5 + $0xde8] sm:$0xff]
    %v605 = vld [vmem:[#allocation5 + $0xdf0] sm:$0xff]
    %v606 = vld [vmem:[#allocation5 + $0xdf8] sm:$0xff]
    %v607 = vld [vmem:[#allocation5 + $0xe00] sm:$0xff]
    %v608 = vld [vmem:[#allocation5 + $0xe08] sm:$0xff]
    %v609 = vld [vmem:[#allocation5 + $0xe10] sm:$0xff]
    %v610 = vld [vmem:[#allocation5 + $0xe18] sm:$0xff]
    %v611 = vld [vmem:[#allocation5 + $0xe20] sm:$0xff]
    %v612 = vld [vmem:[#allocation5 + $0xe28] sm:$0xff]
    %v613 = vld [vmem:[#allocation5 + $0xe30] sm:$0xff]
    %v614 = vld [vmem:[#allocation5 + $0xe38] sm:$0xff]
    %v615 = vld [vmem:[#allocation5 + $0xe40] sm:$0xff]
    %v616 = vld [vmem:[#allocation5 + $0xe48] sm:$0xff]
    %v617 = vld [vmem:[#allocation5 + $0xe50] sm:$0xff]
    %v618 = vld [vmem:[#allocation5 + $0xe58] sm:$0xff]
    %v619 = vld [vmem:[#allocation5 + $0xe60] sm:$0xff]
    %v620 = vld [vmem:[#allocation5 + $0xe68] sm:$0xff]
    %v621 = vld [vmem:[#allocation5 + $0xe70] sm:$0xff]
    %v622 = vld [vmem:[#allocation5 + $0xe78] sm:$0xff]
    %v623 = vld [vmem:[#allocation5 + $0xe80] sm:$0xff]
    %v624 = vld [vmem:[#allocation5 + $0xe88] sm:$0xff]
    %v625 = vld [vmem:[#allocation5 + $0xe90] sm:$0xff]
    %v626 = vld [vmem:[#allocation5 + $0xe98] sm:$0xff]
    %v627 = vld [vmem:[#allocation5 + $0xea0] sm:$0xff]
    %v628 = vld [vmem:[#allocation5 + $0xea8] sm:$0xff]
    %v629 = vld [vmem:[#allocation5 + $0xeb0] sm:$0xff]
    %v630 = vld [vmem:[#allocation5 + $0xeb8] sm:$0xff]
    %v631 = vld [vmem:[#allocation5 + $0xec0] sm:$0xff]
    %v632 = vld [vmem:[#allocation5 + $0xec8] sm:$0xff]
    %v633 = vld [vmem:[#allocation5 + $0xed0] sm:$0xff]
    %v634 = vld [vmem:[#allocation5 + $0xed8] sm:$0xff]
    %v635 = vld [vmem:[#allocation5 + $0xee0] sm:$0xff]
    %v636 = vld [vmem:[#allocation5 + $0xee8] sm:$0xff]
    %v637 = vld [vmem:[#allocation5 + $0xef0] sm:$0xff]
    %v638 = vld [vmem:[#allocation5 + $0xef8] sm:$0xff]
    %v639 = vld [vmem:[#allocation5 + $0xf00] sm:$0xff]
    %v640 = vld [vmem:[#allocation5 + $0xf08] sm:$0xff]
    %v641 = vld [vmem:[#allocation5 + $0xf10] sm:$0xff]
    %v642 = vld [vmem:[#allocation5 + $0xf18] sm:$0xff]
    %v643 = vld [vmem:[#allocation5 + $0xf20] sm:$0xff]
    %v644 = vld [vmem:[#allocation5 + $0xf28] sm:$0xff]
    %v645 = vld [vmem:[#allocation5 + $0xf30] sm:$0xff]
    %v646 = vld [vmem:[#allocation5 + $0xf38] sm:$0xff]
    %v647 = vld [vmem:[#allocation5 + $0xf40] sm:$0xff]
    %v648 = vld [vmem:[#allocation5 + $0xf48] sm:$0xff]
    %v649 = vld [vmem:[#allocation5 + $0xf50] sm:$0xff]
    %v650 = vld [vmem:[#allocation5 + $0xf58] sm:$0xff]
    %v651 = vld [vmem:[#allocation5 + $0xf60] sm:$0xff]
    %v652 = vld [vmem:[#allocation5 + $0xf68] sm:$0xff]
    %v653 = vld [vmem:[#allocation5 + $0xf70] sm:$0xff]
    %v654 = vld [vmem:[#allocation5 + $0xf78] sm:$0xff]
    %v655 = vld [vmem:[#allocation5 + $0xf80] sm:$0xff]
    %v656 = vld [vmem:[#allocation5 + $0xf88] sm:$0xff]
    %v657 = vld [vmem:[#allocation5 + $0xf90] sm:$0xff]
    %v658 = vld [vmem:[#allocation5 + $0xf98] sm:$0xff]
    %v659 = vld [vmem:[#allocation5 + $0xfa0] sm:$0xff]
    %v660 = vld [vmem:[#allocation5 + $0xfa8] sm:$0xff]
    %v661 = vld [vmem:[#allocation5 + $0xfb0] sm:$0xff]
    %v662 = vld [vmem:[#allocation5 + $0xfb8] sm:$0xff]
    %v663 = vld [vmem:[#allocation5 + $0xfc0] sm:$0xff]
    %v664 = vld [vmem:[#allocation5 + $0xfc8] sm:$0xff]
    %v665 = vld [vmem:[#allocation5 + $0xfd0] sm:$0xff]
    %v666 = vld [vmem:[#allocation5 + $0xfd8] sm:$0xff]
    %v667 = vld [vmem:[#allocation5 + $0xfe0] sm:$0xff]
    %v668 = vld [vmem:[#allocation5 + $0xfe8] sm:$0xff]
    %v669 = vld [vmem:[#allocation5 + $0xff0] sm:$0xff]
    %v670 = vld [vmem:[#allocation5 + $0xff8] sm:$0xff]
    %v671 = vld [vmem:[#allocation7] sm:$0xff]
    %v673 = vlaneseq
    %v674 = vshrl.u32 %v673, 7
    %v675 = vsub.s32 0, %v674
    %v676 = vrot.slane %v671, %v675
    %v677 = vlaneseq
    %v678 = vshrl.u32 %v677, 7
    %v679 = vsub.s32 1, %v678
    %v680 = vrot.slane %v671, %v679
    %v681 = vlaneseq
    %v682 = vshrl.u32 %v681, 7
    %v683 = vsub.s32 2, %v682
    %v684 = vrot.slane %v671, %v683
    %v685 = vlaneseq
    %v686 = vshrl.u32 %v685, 7
    %v687 = vsub.s32 3, %v686
    %v688 = vrot.slane %v671, %v687
    %v689 = vlaneseq
    %v690 = vshrl.u32 %v689, 7
    %v691 = vsub.s32 4, %v690
    %v692 = vrot.slane %v671, %v691
    %v693 = vlaneseq
    %v694 = vshrl.u32 %v693, 7
    %v695 = vsub.s32 5, %v694
    %v696 = vrot.slane %v671, %v695
    %v697 = vlaneseq
    %v698 = vshrl.u32 %v697, 7
    %v699 = vsub.s32 6, %v698
    %v700 = vrot.slane %v671, %v699
    %v701 = vlaneseq
    %v702 = vshrl.u32 %v701, 7
    %v703 = vsub.s32 7, %v702
    %v704 = vrot.slane %v671, %v703
    %v1225 = vunpack.c.l.b16 %v159
    %v1226 = vunpack.c.h.b16 %v159
    %v1227 = vunpack.c.l.b16 %v160
    %v1228 = vunpack.c.h.b16 %v160
    %v1229 = vunpack.c.l.b16 %v161
    %v1230 = vunpack.c.h.b16 %v161
    %v1231 = vunpack.c.l.b16 %v162
    %v1232 = vunpack.c.h.b16 %v162
    %v1233 = vunpack.c.l.b16 %v163
    %v1234 = vunpack.c.h.b16 %v163
    %v1235 = vunpack.c.l.b16 %v164
    %v1236 = vunpack.c.h.b16 %v164
    %v1237 = vunpack.c.l.b16 %v165
    %v1238 = vunpack.c.h.b16 %v165
    %v1239 = vunpack.c.l.b16 %v166
    %v1240 = vunpack.c.h.b16 %v166
    %v1241 = vunpack.c.l.b16 %v167
    %v1242 = vunpack.c.h.b16 %v167
    %v1243 = vunpack.c.l.b16 %v168
    %v1244 = vunpack.c.h.b16 %v168
    %v1245 = vunpack.c.l.b16 %v169
    %v1246 = vunpack.c.h.b16 %v169
    %v1247 = vunpack.c.l.b16 %v170
    %v1248 = vunpack.c.h.b16 %v170
    %v1249 = vunpack.c.l.b16 %v171
    %v1250 = vunpack.c.h.b16 %v171
    %v1251 = vunpack.c.l.b16 %v172
    %v1252 = vunpack.c.h.b16 %v172
    %v1253 = vunpack.c.l.b16 %v173
    %v1254 = vunpack.c.h.b16 %v173
    %v1255 = vunpack.c.l.b16 %v174
    %v1256 = vunpack.c.h.b16 %v174
    %v1257 = vunpack.c.l.b16 %v175
    %v1258 = vunpack.c.h.b16 %v175
    %v1259 = vunpack.c.l.b16 %v176
    %v1260 = vunpack.c.h.b16 %v176
    %v1261 = vunpack.c.l.b16 %v177
    %v1262 = vunpack.c.h.b16 %v177
    %v1263 = vunpack.c.l.b16 %v178
    %v1264 = vunpack.c.h.b16 %v178
    %v1265 = vunpack.c.l.b16 %v179
    %v1266 = vunpack.c.h.b16 %v179
    %v1267 = vunpack.c.l.b16 %v180
    %v1268 = vunpack.c.h.b16 %v180
    %v1269 = vunpack.c.l.b16 %v181
    %v1270 = vunpack.c.h.b16 %v181
    %v1271 = vunpack.c.l.b16 %v182
    %v1272 = vunpack.c.h.b16 %v182
    %v1273 = vunpack.c.l.b16 %v183
    %v1274 = vunpack.c.h.b16 %v183
    %v1275 = vunpack.c.l.b16 %v184
    %v1276 = vunpack.c.h.b16 %v184
    %v1277 = vunpack.c.l.b16 %v185
    %v1278 = vunpack.c.h.b16 %v185
    %v1279 = vunpack.c.l.b16 %v186
    %v1280 = vunpack.c.h.b16 %v186
    %v1281 = vunpack.c.l.b16 %v187
    %v1282 = vunpack.c.h.b16 %v187
    %v1283 = vunpack.c.l.b16 %v188
    %v1284 = vunpack.c.h.b16 %v188
    %v1285 = vunpack.c.l.b16 %v189
    %v1286 = vunpack.c.h.b16 %v189
    %v1287 = vunpack.c.l.b16 %v190
    %v1288 = vunpack.c.h.b16 %v190
    %v1289 = vunpack.c.l.b16 %v191
    %v1290 = vunpack.c.h.b16 %v191
    %v1291 = vunpack.c.l.b16 %v192
    %v1292 = vunpack.c.h.b16 %v192
    %v1293 = vunpack.c.l.b16 %v193
    %v1294 = vunpack.c.h.b16 %v193
    %v1295 = vunpack.c.l.b16 %v194
    %v1296 = vunpack.c.h.b16 %v194
    %v1297 = vunpack.c.l.b16 %v195
    %v1298 = vunpack.c.h.b16 %v195
    %v1299 = vunpack.c.l.b16 %v196
    %v1300 = vunpack.c.h.b16 %v196
    %v1301 = vunpack.c.l.b16 %v197
    %v1302 = vunpack.c.h.b16 %v197
    %v1303 = vunpack.c.l.b16 %v198
    %v1304 = vunpack.c.h.b16 %v198
    %v1305 = vunpack.c.l.b16 %v199
    %v1306 = vunpack.c.h.b16 %v199
    %v1307 = vunpack.c.l.b16 %v200
    %v1308 = vunpack.c.h.b16 %v200
    %v1309 = vunpack.c.l.b16 %v201
    %v1310 = vunpack.c.h.b16 %v201
    %v1311 = vunpack.c.l.b16 %v202
    %v1312 = vunpack.c.h.b16 %v202
    %v1313 = vunpack.c.l.b16 %v203
    %v1314 = vunpack.c.h.b16 %v203
    %v1315 = vunpack.c.l.b16 %v204
    %v1316 = vunpack.c.h.b16 %v204
    %v1317 = vunpack.c.l.b16 %v205
    %v1318 = vunpack.c.h.b16 %v205
    %v1319 = vunpack.c.l.b16 %v206
    %v1320 = vunpack.c.h.b16 %v206
    %v1321 = vunpack.c.l.b16 %v207
    %v1322 = vunpack.c.h.b16 %v207
    %v1323 = vunpack.c.l.b16 %v208
    %v1324 = vunpack.c.h.b16 %v208
    %v1325 = vunpack.c.l.b16 %v209
    %v1326 = vunpack.c.h.b16 %v209
    %v1327 = vunpack.c.l.b16 %v210
    %v1328 = vunpack.c.h.b16 %v210
    %v1329 = vunpack.c.l.b16 %v211
    %v1330 = vunpack.c.h.b16 %v211
    %v1331 = vunpack.c.l.b16 %v212
    %v1332 = vunpack.c.h.b16 %v212
    %v1333 = vunpack.c.l.b16 %v213
    %v1334 = vunpack.c.h.b16 %v213
    %v1335 = vunpack.c.l.b16 %v214
    %v1336 = vunpack.c.h.b16 %v214
    %v1337 = vunpack.c.l.b16 %v215
    %v1338 = vunpack.c.h.b16 %v215
    %v1339 = vunpack.c.l.b16 %v216
    %v1340 = vunpack.c.h.b16 %v216
    %v1341 = vunpack.c.l.b16 %v217
    %v1342 = vunpack.c.h.b16 %v217
    %v1343 = vunpack.c.l.b16 %v218
    %v1344 = vunpack.c.h.b16 %v218
    %v1345 = vunpack.c.l.b16 %v219
    %v1346 = vunpack.c.h.b16 %v219
    %v1347 = vunpack.c.l.b16 %v220
    %v1348 = vunpack.c.h.b16 %v220
    %v1349 = vunpack.c.l.b16 %v221
    %v1350 = vunpack.c.h.b16 %v221
    %v1351 = vunpack.c.l.b16 %v222
    %v1352 = vunpack.c.h.b16 %v222
    %v1353 = vunpack.c.l.b16 %v223
    %v1354 = vunpack.c.h.b16 %v223
    %v1355 = vunpack.c.l.b16 %v224
    %v1356 = vunpack.c.h.b16 %v224
    %v1357 = vunpack.c.l.b16 %v225
    %v1358 = vunpack.c.h.b16 %v225
    %v1359 = vunpack.c.l.b16 %v226
    %v1360 = vunpack.c.h.b16 %v226
    %v1361 = vunpack.c.l.b16 %v227
    %v1362 = vunpack.c.h.b16 %v227
    %v1363 = vunpack.c.l.b16 %v228
    %v1364 = vunpack.c.h.b16 %v228
    %v1365 = vunpack.c.l.b16 %v229
    %v1366 = vunpack.c.h.b16 %v229
    %v1367 = vunpack.c.l.b16 %v230
    %v1368 = vunpack.c.h.b16 %v230
    %v1369 = vunpack.c.l.b16 %v231
    %v1370 = vunpack.c.h.b16 %v231
    %v1371 = vunpack.c.l.b16 %v232
    %v1372 = vunpack.c.h.b16 %v232
    %v1373 = vunpack.c.l.b16 %v233
    %v1374 = vunpack.c.h.b16 %v233
    %v1375 = vunpack.c.l.b16 %v234
    %v1376 = vunpack.c.h.b16 %v234
    %v1377 = vunpack.c.l.b16 %v235
    %v1378 = vunpack.c.h.b16 %v235
    %v1379 = vunpack.c.l.b16 %v236
    %v1380 = vunpack.c.h.b16 %v236
    %v1381 = vunpack.c.l.b16 %v237
    %v1382 = vunpack.c.h.b16 %v237
    %v1383 = vunpack.c.l.b16 %v238
    %v1384 = vunpack.c.h.b16 %v238
    %v1385 = vunpack.c.l.b16 %v239
    %v1386 = vunpack.c.h.b16 %v239
    %v1387 = vunpack.c.l.b16 %v240
    %v1388 = vunpack.c.h.b16 %v240
    %v1389 = vunpack.c.l.b16 %v241
    %v1390 = vunpack.c.h.b16 %v241
    %v1391 = vunpack.c.l.b16 %v242
    %v1392 = vunpack.c.h.b16 %v242
    %v1393 = vunpack.c.l.b16 %v243
    %v1394 = vunpack.c.h.b16 %v243
    %v1395 = vunpack.c.l.b16 %v244
    %v1396 = vunpack.c.h.b16 %v244
    %v1397 = vunpack.c.l.b16 %v245
    %v1398 = vunpack.c.h.b16 %v245
    %v1399 = vunpack.c.l.b16 %v246
    %v1400 = vunpack.c.h.b16 %v246
    %v1401 = vunpack.c.l.b16 %v247
    %v1402 = vunpack.c.h.b16 %v247
    %v1403 = vunpack.c.l.b16 %v248
    %v1404 = vunpack.c.h.b16 %v248
    %v1405 = vunpack.c.l.b16 %v249
    %v1406 = vunpack.c.h.b16 %v249
    %v1407 = vunpack.c.l.b16 %v250
    %v1408 = vunpack.c.h.b16 %v250
    %v1409 = vunpack.c.l.b16 %v251
    %v1410 = vunpack.c.h.b16 %v251
    %v1411 = vunpack.c.l.b16 %v252
    %v1412 = vunpack.c.h.b16 %v252
    %v1413 = vunpack.c.l.b16 %v253
    %v1414 = vunpack.c.h.b16 %v253
    %v1415 = vunpack.c.l.b16 %v254
    %v1416 = vunpack.c.h.b16 %v254
    %v1417 = vunpack.c.l.b16 %v255
    %v1418 = vunpack.c.h.b16 %v255
    %v1419 = vunpack.c.l.b16 %v256
    %v1420 = vunpack.c.h.b16 %v256
    %v1421 = vunpack.c.l.b16 %v257
    %v1422 = vunpack.c.h.b16 %v257
    %v1423 = vunpack.c.l.b16 %v258
    %v1424 = vunpack.c.h.b16 %v258
    %v1425 = vunpack.c.l.b16 %v259
    %v1426 = vunpack.c.h.b16 %v259
    %v1427 = vunpack.c.l.b16 %v260
    %v1428 = vunpack.c.h.b16 %v260
    %v1429 = vunpack.c.l.b16 %v261
    %v1430 = vunpack.c.h.b16 %v261
    %v1431 = vunpack.c.l.b16 %v262
    %v1432 = vunpack.c.h.b16 %v262
    %v1433 = vunpack.c.l.b16 %v263
    %v1434 = vunpack.c.h.b16 %v263
    %v1435 = vunpack.c.l.b16 %v264
    %v1436 = vunpack.c.h.b16 %v264
    %v1437 = vunpack.c.l.b16 %v265
    %v1438 = vunpack.c.h.b16 %v265
    %v1439 = vunpack.c.l.b16 %v266
    %v1440 = vunpack.c.h.b16 %v266
    %v1441 = vunpack.c.l.b16 %v267
    %v1442 = vunpack.c.h.b16 %v267
    %v1443 = vunpack.c.l.b16 %v268
    %v1444 = vunpack.c.h.b16 %v268
    %v1445 = vunpack.c.l.b16 %v269
    %v1446 = vunpack.c.h.b16 %v269
    %v1447 = vunpack.c.l.b16 %v270
    %v1448 = vunpack.c.h.b16 %v270
    %v1449 = vunpack.c.l.b16 %v271
    %v1450 = vunpack.c.h.b16 %v271
    %v1451 = vunpack.c.l.b16 %v272
    %v1452 = vunpack.c.h.b16 %v272
    %v1453 = vunpack.c.l.b16 %v273
    %v1454 = vunpack.c.h.b16 %v273
    %v1455 = vunpack.c.l.b16 %v274
    %v1456 = vunpack.c.h.b16 %v274
    %v1457 = vunpack.c.l.b16 %v275
    %v1458 = vunpack.c.h.b16 %v275
    %v1459 = vunpack.c.l.b16 %v276
    %v1460 = vunpack.c.h.b16 %v276
    %v1461 = vunpack.c.l.b16 %v277
    %v1462 = vunpack.c.h.b16 %v277
    %v1463 = vunpack.c.l.b16 %v278
    %v1464 = vunpack.c.h.b16 %v278
    %v1465 = vunpack.c.l.b16 %v279
    %v1466 = vunpack.c.h.b16 %v279
    %v1467 = vunpack.c.l.b16 %v280
    %v1468 = vunpack.c.h.b16 %v280
    %v1469 = vunpack.c.l.b16 %v281
    %v1470 = vunpack.c.h.b16 %v281
    %v1471 = vunpack.c.l.b16 %v282
    %v1472 = vunpack.c.h.b16 %v282
    %v1473 = vunpack.c.l.b16 %v283
    %v1474 = vunpack.c.h.b16 %v283
    %v1475 = vunpack.c.l.b16 %v284
    %v1476 = vunpack.c.h.b16 %v284
    %v1477 = vunpack.c.l.b16 %v285
    %v1478 = vunpack.c.h.b16 %v285
    %v1479 = vunpack.c.l.b16 %v286
    %v1480 = vunpack.c.h.b16 %v286
    %v1481 = vunpack.c.l.b16 %v287
    %v1482 = vunpack.c.h.b16 %v287
    %v1483 = vunpack.c.l.b16 %v288
    %v1484 = vunpack.c.h.b16 %v288
    %v1485 = vunpack.c.l.b16 %v289
    %v1486 = vunpack.c.h.b16 %v289
    %v1487 = vunpack.c.l.b16 %v290
    %v1488 = vunpack.c.h.b16 %v290
    %v1489 = vunpack.c.l.b16 %v291
    %v1490 = vunpack.c.h.b16 %v291
    %v1491 = vunpack.c.l.b16 %v292
    %v1492 = vunpack.c.h.b16 %v292
    %v1493 = vunpack.c.l.b16 %v293
    %v1494 = vunpack.c.h.b16 %v293
    %v1495 = vunpack.c.l.b16 %v294
    %v1496 = vunpack.c.h.b16 %v294
    %v1497 = vunpack.c.l.b16 %v295
    %v1498 = vunpack.c.h.b16 %v295
    %v1499 = vunpack.c.l.b16 %v296
    %v1500 = vunpack.c.h.b16 %v296
    %v1501 = vunpack.c.l.b16 %v297
    %v1502 = vunpack.c.h.b16 %v297
    %v1503 = vunpack.c.l.b16 %v298
    %v1504 = vunpack.c.h.b16 %v298
    %v1505 = vunpack.c.l.b16 %v299
    %v1506 = vunpack.c.h.b16 %v299
    %v1507 = vunpack.c.l.b16 %v300
    %v1508 = vunpack.c.h.b16 %v300
    %v1509 = vunpack.c.l.b16 %v301
    %v1510 = vunpack.c.h.b16 %v301
    %v1511 = vunpack.c.l.b16 %v302
    %v1512 = vunpack.c.h.b16 %v302
    %v1513 = vunpack.c.l.b16 %v303
    %v1514 = vunpack.c.h.b16 %v303
    %v1515 = vunpack.c.l.b16 %v304
    %v1516 = vunpack.c.h.b16 %v304
    %v1517 = vunpack.c.l.b16 %v305
    %v1518 = vunpack.c.h.b16 %v305
    %v1519 = vunpack.c.l.b16 %v306
    %v1520 = vunpack.c.h.b16 %v306
    %v1521 = vunpack.c.l.b16 %v307
    %v1522 = vunpack.c.h.b16 %v307
    %v1523 = vunpack.c.l.b16 %v308
    %v1524 = vunpack.c.h.b16 %v308
    %v1525 = vunpack.c.l.b16 %v309
    %v1526 = vunpack.c.h.b16 %v309
    %v1527 = vunpack.c.l.b16 %v310
    %v1528 = vunpack.c.h.b16 %v310
    %v1529 = vunpack.c.l.b16 %v311
    %v1530 = vunpack.c.h.b16 %v311
    %v1531 = vunpack.c.l.b16 %v312
    %v1532 = vunpack.c.h.b16 %v312
    %v1533 = vunpack.c.l.b16 %v313
    %v1534 = vunpack.c.h.b16 %v313
    %v1535 = vunpack.c.l.b16 %v314
    %v1536 = vunpack.c.h.b16 %v314
    %v1537 = vunpack.c.l.b16 %v315
    %v1538 = vunpack.c.h.b16 %v315
    %v1539 = vunpack.c.l.b16 %v316
    %v1540 = vunpack.c.h.b16 %v316
    %v1541 = vunpack.c.l.b16 %v317
    %v1542 = vunpack.c.h.b16 %v317
    %v1543 = vunpack.c.l.b16 %v318
    %v1544 = vunpack.c.h.b16 %v318
    %v1545 = vunpack.c.l.b16 %v319
    %v1546 = vunpack.c.h.b16 %v319
    %v1547 = vunpack.c.l.b16 %v320
    %v1548 = vunpack.c.h.b16 %v320
    %v1549 = vunpack.c.l.b16 %v321
    %v1550 = vunpack.c.h.b16 %v321
    %v1551 = vunpack.c.l.b16 %v322
    %v1552 = vunpack.c.h.b16 %v322
    %v1553 = vunpack.c.l.b16 %v323
    %v1554 = vunpack.c.h.b16 %v323
    %v1555 = vunpack.c.l.b16 %v324
    %v1556 = vunpack.c.h.b16 %v324
    %v1557 = vunpack.c.l.b16 %v325
    %v1558 = vunpack.c.h.b16 %v325
    %v1559 = vunpack.c.l.b16 %v326
    %v1560 = vunpack.c.h.b16 %v326
    %v1561 = vunpack.c.l.b16 %v327
    %v1562 = vunpack.c.h.b16 %v327
    %v1563 = vunpack.c.l.b16 %v328
    %v1564 = vunpack.c.h.b16 %v328
    %v1565 = vunpack.c.l.b16 %v329
    %v1566 = vunpack.c.h.b16 %v329
    %v1567 = vunpack.c.l.b16 %v330
    %v1568 = vunpack.c.h.b16 %v330
    %v1569 = vunpack.c.l.b16 %v331
    %v1570 = vunpack.c.h.b16 %v331
    %v1571 = vunpack.c.l.b16 %v332
    %v1572 = vunpack.c.h.b16 %v332
    %v1573 = vunpack.c.l.b16 %v333
    %v1574 = vunpack.c.h.b16 %v333
    %v1575 = vunpack.c.l.b16 %v334
    %v1576 = vunpack.c.h.b16 %v334
    %v1577 = vunpack.c.l.b16 %v335
    %v1578 = vunpack.c.h.b16 %v335
    %v1579 = vunpack.c.l.b16 %v336
    %v1580 = vunpack.c.h.b16 %v336
    %v1581 = vunpack.c.l.b16 %v337
    %v1582 = vunpack.c.h.b16 %v337
    %v1583 = vunpack.c.l.b16 %v338
    %v1584 = vunpack.c.h.b16 %v338
    %v1585 = vunpack.c.l.b16 %v339
    %v1586 = vunpack.c.h.b16 %v339
    %v1587 = vunpack.c.l.b16 %v340
    %v1588 = vunpack.c.h.b16 %v340
    %v1589 = vunpack.c.l.b16 %v341
    %v1590 = vunpack.c.h.b16 %v341
    %v1591 = vunpack.c.l.b16 %v342
    %v1592 = vunpack.c.h.b16 %v342
    %v1593 = vunpack.c.l.b16 %v343
    %v1594 = vunpack.c.h.b16 %v343
    %v1595 = vunpack.c.l.b16 %v344
    %v1596 = vunpack.c.h.b16 %v344
    %v1597 = vunpack.c.l.b16 %v345
    %v1598 = vunpack.c.h.b16 %v345
    %v1599 = vunpack.c.l.b16 %v346
    %v1600 = vunpack.c.h.b16 %v346
    %v1601 = vunpack.c.l.b16 %v347
    %v1602 = vunpack.c.h.b16 %v347
    %v1603 = vunpack.c.l.b16 %v348
    %v1604 = vunpack.c.h.b16 %v348
    %v1605 = vunpack.c.l.b16 %v349
    %v1606 = vunpack.c.h.b16 %v349
    %v1607 = vunpack.c.l.b16 %v350
    %v1608 = vunpack.c.h.b16 %v350
    %v1609 = vunpack.c.l.b16 %v351
    %v1610 = vunpack.c.h.b16 %v351
    %v1611 = vunpack.c.l.b16 %v352
    %v1612 = vunpack.c.h.b16 %v352
    %v1613 = vunpack.c.l.b16 %v353
    %v1614 = vunpack.c.h.b16 %v353
    %v1615 = vunpack.c.l.b16 %v354
    %v1616 = vunpack.c.h.b16 %v354
    %v1617 = vunpack.c.l.b16 %v355
    %v1618 = vunpack.c.h.b16 %v355
    %v1619 = vunpack.c.l.b16 %v356
    %v1620 = vunpack.c.h.b16 %v356
    %v1621 = vunpack.c.l.b16 %v357
    %v1622 = vunpack.c.h.b16 %v357
    %v1623 = vunpack.c.l.b16 %v358
    %v1624 = vunpack.c.h.b16 %v358
    %v1625 = vunpack.c.l.b16 %v359
    %v1626 = vunpack.c.h.b16 %v359
    %v1627 = vunpack.c.l.b16 %v360
    %v1628 = vunpack.c.h.b16 %v360
    %v1629 = vunpack.c.l.b16 %v361
    %v1630 = vunpack.c.h.b16 %v361
    %v1631 = vunpack.c.l.b16 %v362
    %v1632 = vunpack.c.h.b16 %v362
    %v1633 = vunpack.c.l.b16 %v363
    %v1634 = vunpack.c.h.b16 %v363
    %v1635 = vunpack.c.l.b16 %v364
    %v1636 = vunpack.c.h.b16 %v364
    %v1637 = vunpack.c.l.b16 %v365
    %v1638 = vunpack.c.h.b16 %v365
    %v1639 = vunpack.c.l.b16 %v366
    %v1640 = vunpack.c.h.b16 %v366
    %v1641 = vunpack.c.l.b16 %v367
    %v1642 = vunpack.c.h.b16 %v367
    %v1643 = vunpack.c.l.b16 %v368
    %v1644 = vunpack.c.h.b16 %v368
    %v1645 = vunpack.c.l.b16 %v369
    %v1646 = vunpack.c.h.b16 %v369
    %v1647 = vunpack.c.l.b16 %v370
    %v1648 = vunpack.c.h.b16 %v370
    %v1649 = vunpack.c.l.b16 %v371
    %v1650 = vunpack.c.h.b16 %v371
    %v1651 = vunpack.c.l.b16 %v372
    %v1652 = vunpack.c.h.b16 %v372
    %v1653 = vunpack.c.l.b16 %v373
    %v1654 = vunpack.c.h.b16 %v373
    %v1655 = vunpack.c.l.b16 %v374
    %v1656 = vunpack.c.h.b16 %v374
    %v1657 = vunpack.c.l.b16 %v375
    %v1658 = vunpack.c.h.b16 %v375
    %v1659 = vunpack.c.l.b16 %v376
    %v1660 = vunpack.c.h.b16 %v376
    %v1661 = vunpack.c.l.b16 %v377
    %v1662 = vunpack.c.h.b16 %v377
    %v1663 = vunpack.c.l.b16 %v378
    %v1664 = vunpack.c.h.b16 %v378
    %v1665 = vunpack.c.l.b16 %v379
    %v1666 = vunpack.c.h.b16 %v379
    %v1667 = vunpack.c.l.b16 %v380
    %v1668 = vunpack.c.h.b16 %v380
    %v1669 = vunpack.c.l.b16 %v381
    %v1670 = vunpack.c.h.b16 %v381
    %v1671 = vunpack.c.l.b16 %v382
    %v1672 = vunpack.c.h.b16 %v382
    %v1673 = vunpack.c.l.b16 %v383
    %v1674 = vunpack.c.h.b16 %v383
    %v1675 = vunpack.c.l.b16 %v384
    %v1676 = vunpack.c.h.b16 %v384
    %v1677 = vunpack.c.l.b16 %v385
    %v1678 = vunpack.c.h.b16 %v385
    %v1679 = vunpack.c.l.b16 %v386
    %v1680 = vunpack.c.h.b16 %v386
    %v1681 = vunpack.c.l.b16 %v387
    %v1682 = vunpack.c.h.b16 %v387
    %v1683 = vunpack.c.l.b16 %v388
    %v1684 = vunpack.c.h.b16 %v388
    %v1685 = vunpack.c.l.b16 %v389
    %v1686 = vunpack.c.h.b16 %v389
    %v1687 = vunpack.c.l.b16 %v390
    %v1688 = vunpack.c.h.b16 %v390
    %v1689 = vunpack.c.l.b16 %v391
    %v1690 = vunpack.c.h.b16 %v391
    %v1691 = vunpack.c.l.b16 %v392
    %v1692 = vunpack.c.h.b16 %v392
    %v1693 = vunpack.c.l.b16 %v393
    %v1694 = vunpack.c.h.b16 %v393
    %v1695 = vunpack.c.l.b16 %v394
    %v1696 = vunpack.c.h.b16 %v394
    %v1697 = vunpack.c.l.b16 %v395
    %v1698 = vunpack.c.h.b16 %v395
    %v1699 = vunpack.c.l.b16 %v396
    %v1700 = vunpack.c.h.b16 %v396
    %v1701 = vunpack.c.l.b16 %v397
    %v1702 = vunpack.c.h.b16 %v397
    %v1703 = vunpack.c.l.b16 %v398
    %v1704 = vunpack.c.h.b16 %v398
    %v1705 = vunpack.c.l.b16 %v399
    %v1706 = vunpack.c.h.b16 %v399
    %v1707 = vunpack.c.l.b16 %v400
    %v1708 = vunpack.c.h.b16 %v400
    %v1709 = vunpack.c.l.b16 %v401
    %v1710 = vunpack.c.h.b16 %v401
    %v1711 = vunpack.c.l.b16 %v402
    %v1712 = vunpack.c.h.b16 %v402
    %v1713 = vunpack.c.l.b16 %v403
    %v1714 = vunpack.c.h.b16 %v403
    %v1715 = vunpack.c.l.b16 %v404
    %v1716 = vunpack.c.h.b16 %v404
    %v1717 = vunpack.c.l.b16 %v405
    %v1718 = vunpack.c.h.b16 %v405
    %v1719 = vunpack.c.l.b16 %v406
    %v1720 = vunpack.c.h.b16 %v406
    %v1721 = vunpack.c.l.b16 %v407
    %v1722 = vunpack.c.h.b16 %v407
    %v1723 = vunpack.c.l.b16 %v408
    %v1724 = vunpack.c.h.b16 %v408
    %v1725 = vunpack.c.l.b16 %v409
    %v1726 = vunpack.c.h.b16 %v409
    %v1727 = vunpack.c.l.b16 %v410
    %v1728 = vunpack.c.h.b16 %v410
    %v1729 = vunpack.c.l.b16 %v411
    %v1730 = vunpack.c.h.b16 %v411
    %v1731 = vunpack.c.l.b16 %v412
    %v1732 = vunpack.c.h.b16 %v412
    %v1733 = vunpack.c.l.b16 %v413
    %v1734 = vunpack.c.h.b16 %v413
    %v1735 = vunpack.c.l.b16 %v414
    %v1736 = vunpack.c.h.b16 %v414
    %v1737 = vunpack.c.l.b16 %v415
    %v1738 = vunpack.c.h.b16 %v415
    %v1739 = vunpack.c.l.b16 %v416
    %v1740 = vunpack.c.h.b16 %v416
    %v1741 = vunpack.c.l.b16 %v417
    %v1742 = vunpack.c.h.b16 %v417
    %v1743 = vunpack.c.l.b16 %v418
    %v1744 = vunpack.c.h.b16 %v418
    %v1745 = vunpack.c.l.b16 %v419
    %v1746 = vunpack.c.h.b16 %v419
    %v1747 = vunpack.c.l.b16 %v420
    %v1748 = vunpack.c.h.b16 %v420
    %v1749 = vunpack.c.l.b16 %v421
    %v1750 = vunpack.c.h.b16 %v421
    %v1751 = vunpack.c.l.b16 %v422
    %v1752 = vunpack.c.h.b16 %v422
    %v1753 = vunpack.c.l.b16 %v423
    %v1754 = vunpack.c.h.b16 %v423
    %v1755 = vunpack.c.l.b16 %v424
    %v1756 = vunpack.c.h.b16 %v424
    %v1757 = vunpack.c.l.b16 %v425
    %v1758 = vunpack.c.h.b16 %v425
    %v1759 = vunpack.c.l.b16 %v426
    %v1760 = vunpack.c.h.b16 %v426
    %v1761 = vunpack.c.l.b16 %v427
    %v1762 = vunpack.c.h.b16 %v427
    %v1763 = vunpack.c.l.b16 %v428
    %v1764 = vunpack.c.h.b16 %v428
    %v1765 = vunpack.c.l.b16 %v429
    %v1766 = vunpack.c.h.b16 %v429
    %v1767 = vunpack.c.l.b16 %v430
    %v1768 = vunpack.c.h.b16 %v430
    %v1769 = vunpack.c.l.b16 %v431
    %v1770 = vunpack.c.h.b16 %v431
    %v1771 = vunpack.c.l.b16 %v432
    %v1772 = vunpack.c.h.b16 %v432
    %v1773 = vunpack.c.l.b16 %v433
    %v1774 = vunpack.c.h.b16 %v433
    %v1775 = vunpack.c.l.b16 %v434
    %v1776 = vunpack.c.h.b16 %v434
    %v1777 = vunpack.c.l.b16 %v435
    %v1778 = vunpack.c.h.b16 %v435
    %v1779 = vunpack.c.l.b16 %v436
    %v1780 = vunpack.c.h.b16 %v436
    %v1781 = vunpack.c.l.b16 %v437
    %v1782 = vunpack.c.h.b16 %v437
    %v1783 = vunpack.c.l.b16 %v438
    %v1784 = vunpack.c.h.b16 %v438
    %v1785 = vunpack.c.l.b16 %v439
    %v1786 = vunpack.c.h.b16 %v439
    %v1787 = vunpack.c.l.b16 %v440
    %v1788 = vunpack.c.h.b16 %v440
    %v1789 = vunpack.c.l.b16 %v441
    %v1790 = vunpack.c.h.b16 %v441
    %v1791 = vunpack.c.l.b16 %v442
    %v1792 = vunpack.c.h.b16 %v442
    %v1793 = vunpack.c.l.b16 %v443
    %v1794 = vunpack.c.h.b16 %v443
    %v1795 = vunpack.c.l.b16 %v444
    %v1796 = vunpack.c.h.b16 %v444
    %v1797 = vunpack.c.l.b16 %v445
    %v1798 = vunpack.c.h.b16 %v445
    %v1799 = vunpack.c.l.b16 %v446
    %v1800 = vunpack.c.h.b16 %v446
    %v1801 = vunpack.c.l.b16 %v447
    %v1802 = vunpack.c.h.b16 %v447
    %v1803 = vunpack.c.l.b16 %v448
    %v1804 = vunpack.c.h.b16 %v448
    %v1805 = vunpack.c.l.b16 %v449
    %v1806 = vunpack.c.h.b16 %v449
    %v1807 = vunpack.c.l.b16 %v450
    %v1808 = vunpack.c.h.b16 %v450
    %v1809 = vunpack.c.l.b16 %v451
    %v1810 = vunpack.c.h.b16 %v451
    %v1811 = vunpack.c.l.b16 %v452
    %v1812 = vunpack.c.h.b16 %v452
    %v1813 = vunpack.c.l.b16 %v453
    %v1814 = vunpack.c.h.b16 %v453
    %v1815 = vunpack.c.l.b16 %v454
    %v1816 = vunpack.c.h.b16 %v454
    %v1817 = vunpack.c.l.b16 %v455
    %v1818 = vunpack.c.h.b16 %v455
    %v1819 = vunpack.c.l.b16 %v456
    %v1820 = vunpack.c.h.b16 %v456
    %v1821 = vunpack.c.l.b16 %v457
    %v1822 = vunpack.c.h.b16 %v457
    %v1823 = vunpack.c.l.b16 %v458
    %v1824 = vunpack.c.h.b16 %v458
    %v1825 = vunpack.c.l.b16 %v459
    %v1826 = vunpack.c.h.b16 %v459
    %v1827 = vunpack.c.l.b16 %v460
    %v1828 = vunpack.c.h.b16 %v460
    %v1829 = vunpack.c.l.b16 %v461
    %v1830 = vunpack.c.h.b16 %v461
    %v1831 = vunpack.c.l.b16 %v462
    %v1832 = vunpack.c.h.b16 %v462
    %v1833 = vunpack.c.l.b16 %v463
    %v1834 = vunpack.c.h.b16 %v463
    %v1835 = vunpack.c.l.b16 %v464
    %v1836 = vunpack.c.h.b16 %v464
    %v1837 = vunpack.c.l.b16 %v465
    %v1838 = vunpack.c.h.b16 %v465
    %v1839 = vunpack.c.l.b16 %v466
    %v1840 = vunpack.c.h.b16 %v466
    %v1841 = vunpack.c.l.b16 %v467
    %v1842 = vunpack.c.h.b16 %v467
    %v1843 = vunpack.c.l.b16 %v468
    %v1844 = vunpack.c.h.b16 %v468
    %v1845 = vunpack.c.l.b16 %v469
    %v1846 = vunpack.c.h.b16 %v469
    %v1847 = vunpack.c.l.b16 %v470
    %v1848 = vunpack.c.h.b16 %v470
    %v1849 = vunpack.c.l.b16 %v471
    %v1850 = vunpack.c.h.b16 %v471
    %v1851 = vunpack.c.l.b16 %v472
    %v1852 = vunpack.c.h.b16 %v472
    %v1853 = vunpack.c.l.b16 %v473
    %v1854 = vunpack.c.h.b16 %v473
    %v1855 = vunpack.c.l.b16 %v474
    %v1856 = vunpack.c.h.b16 %v474
    %v1857 = vunpack.c.l.b16 %v475
    %v1858 = vunpack.c.h.b16 %v475
    %v1859 = vunpack.c.l.b16 %v476
    %v1860 = vunpack.c.h.b16 %v476
    %v1861 = vunpack.c.l.b16 %v477
    %v1862 = vunpack.c.h.b16 %v477
    %v1863 = vunpack.c.l.b16 %v478
    %v1864 = vunpack.c.h.b16 %v478
    %v1865 = vunpack.c.l.b16 %v479
    %v1866 = vunpack.c.h.b16 %v479
    %v1867 = vunpack.c.l.b16 %v480
    %v1868 = vunpack.c.h.b16 %v480
    %v1869 = vunpack.c.l.b16 %v481
    %v1870 = vunpack.c.h.b16 %v481
    %v1871 = vunpack.c.l.b16 %v482
    %v1872 = vunpack.c.h.b16 %v482
    %v1873 = vunpack.c.l.b16 %v483
    %v1874 = vunpack.c.h.b16 %v483
    %v1875 = vunpack.c.l.b16 %v484
    %v1876 = vunpack.c.h.b16 %v484
    %v1877 = vunpack.c.l.b16 %v485
    %v1878 = vunpack.c.h.b16 %v485
    %v1879 = vunpack.c.l.b16 %v486
    %v1880 = vunpack.c.h.b16 %v486
    %v1881 = vunpack.c.l.b16 %v487
    %v1882 = vunpack.c.h.b16 %v487
    %v1883 = vunpack.c.l.b16 %v488
    %v1884 = vunpack.c.h.b16 %v488
    %v1885 = vunpack.c.l.b16 %v489
    %v1886 = vunpack.c.h.b16 %v489
    %v1887 = vunpack.c.l.b16 %v490
    %v1888 = vunpack.c.h.b16 %v490
    %v1889 = vunpack.c.l.b16 %v491
    %v1890 = vunpack.c.h.b16 %v491
    %v1891 = vunpack.c.l.b16 %v492
    %v1892 = vunpack.c.h.b16 %v492
    %v1893 = vunpack.c.l.b16 %v493
    %v1894 = vunpack.c.h.b16 %v493
    %v1895 = vunpack.c.l.b16 %v494
    %v1896 = vunpack.c.h.b16 %v494
    %v1897 = vunpack.c.l.b16 %v495
    %v1898 = vunpack.c.h.b16 %v495
    %v1899 = vunpack.c.l.b16 %v496
    %v1900 = vunpack.c.h.b16 %v496
    %v1901 = vunpack.c.l.b16 %v497
    %v1902 = vunpack.c.h.b16 %v497
    %v1903 = vunpack.c.l.b16 %v498
    %v1904 = vunpack.c.h.b16 %v498
    %v1905 = vunpack.c.l.b16 %v499
    %v1906 = vunpack.c.h.b16 %v499
    %v1907 = vunpack.c.l.b16 %v500
    %v1908 = vunpack.c.h.b16 %v500
    %v1909 = vunpack.c.l.b16 %v501
    %v1910 = vunpack.c.h.b16 %v501
    %v1911 = vunpack.c.l.b16 %v502
    %v1912 = vunpack.c.h.b16 %v502
    %v1913 = vunpack.c.l.b16 %v503
    %v1914 = vunpack.c.h.b16 %v503
    %v1915 = vunpack.c.l.b16 %v504
    %v1916 = vunpack.c.h.b16 %v504
    %v1917 = vunpack.c.l.b16 %v505
    %v1918 = vunpack.c.h.b16 %v505
    %v1919 = vunpack.c.l.b16 %v506
    %v1920 = vunpack.c.h.b16 %v506
    %v1921 = vunpack.c.l.b16 %v507
    %v1922 = vunpack.c.h.b16 %v507
    %v1923 = vunpack.c.l.b16 %v508
    %v1924 = vunpack.c.h.b16 %v508
    %v1925 = vunpack.c.l.b16 %v509
    %v1926 = vunpack.c.h.b16 %v509
    %v1927 = vunpack.c.l.b16 %v510
    %v1928 = vunpack.c.h.b16 %v510
    %v1929 = vunpack.c.l.b16 %v511
    %v1930 = vunpack.c.h.b16 %v511
    %v1931 = vunpack.c.l.b16 %v512
    %v1932 = vunpack.c.h.b16 %v512
    %v1933 = vunpack.c.l.b16 %v513
    %v1934 = vunpack.c.h.b16 %v513
    %v1935 = vunpack.c.l.b16 %v514
    %v1936 = vunpack.c.h.b16 %v514
    %v1937 = vunpack.c.l.b16 %v515
    %v1938 = vunpack.c.h.b16 %v515
    %v1939 = vunpack.c.l.b16 %v516
    %v1940 = vunpack.c.h.b16 %v516
    %v1941 = vunpack.c.l.b16 %v517
    %v1942 = vunpack.c.h.b16 %v517
    %v1943 = vunpack.c.l.b16 %v518
    %v1944 = vunpack.c.h.b16 %v518
    %v1945 = vunpack.c.l.b16 %v519
    %v1946 = vunpack.c.h.b16 %v519
    %v1947 = vunpack.c.l.b16 %v520
    %v1948 = vunpack.c.h.b16 %v520
    %v1949 = vunpack.c.l.b16 %v521
    %v1950 = vunpack.c.h.b16 %v521
    %v1951 = vunpack.c.l.b16 %v522
    %v1952 = vunpack.c.h.b16 %v522
    %v1953 = vunpack.c.l.b16 %v523
    %v1954 = vunpack.c.h.b16 %v523
    %v1955 = vunpack.c.l.b16 %v524
    %v1956 = vunpack.c.h.b16 %v524
    %v1957 = vunpack.c.l.b16 %v525
    %v1958 = vunpack.c.h.b16 %v525
    %v1959 = vunpack.c.l.b16 %v526
    %v1960 = vunpack.c.h.b16 %v526
    %v1961 = vunpack.c.l.b16 %v527
    %v1962 = vunpack.c.h.b16 %v527
    %v1963 = vunpack.c.l.b16 %v528
    %v1964 = vunpack.c.h.b16 %v528
    %v1965 = vunpack.c.l.b16 %v529
    %v1966 = vunpack.c.h.b16 %v529
    %v1967 = vunpack.c.l.b16 %v530
    %v1968 = vunpack.c.h.b16 %v530
    %v1969 = vunpack.c.l.b16 %v531
    %v1970 = vunpack.c.h.b16 %v531
    %v1971 = vunpack.c.l.b16 %v532
    %v1972 = vunpack.c.h.b16 %v532
    %v1973 = vunpack.c.l.b16 %v533
    %v1974 = vunpack.c.h.b16 %v533
    %v1975 = vunpack.c.l.b16 %v534
    %v1976 = vunpack.c.h.b16 %v534
    %v1977 = vunpack.c.l.b16 %v535
    %v1978 = vunpack.c.h.b16 %v535
    %v1979 = vunpack.c.l.b16 %v536
    %v1980 = vunpack.c.h.b16 %v536
    %v1981 = vunpack.c.l.b16 %v537
    %v1982 = vunpack.c.h.b16 %v537
    %v1983 = vunpack.c.l.b16 %v538
    %v1984 = vunpack.c.h.b16 %v538
    %v1985 = vunpack.c.l.b16 %v539
    %v1986 = vunpack.c.h.b16 %v539
    %v1987 = vunpack.c.l.b16 %v540
    %v1988 = vunpack.c.h.b16 %v540
    %v1989 = vunpack.c.l.b16 %v541
    %v1990 = vunpack.c.h.b16 %v541
    %v1991 = vunpack.c.l.b16 %v542
    %v1992 = vunpack.c.h.b16 %v542
    %v1993 = vunpack.c.l.b16 %v543
    %v1994 = vunpack.c.h.b16 %v543
    %v1995 = vunpack.c.l.b16 %v544
    %v1996 = vunpack.c.h.b16 %v544
    %v1997 = vunpack.c.l.b16 %v545
    %v1998 = vunpack.c.h.b16 %v545
    %v1999 = vunpack.c.l.b16 %v546
    %v2000 = vunpack.c.h.b16 %v546
    %v2001 = vunpack.c.l.b16 %v547
    %v2002 = vunpack.c.h.b16 %v547
    %v2003 = vunpack.c.l.b16 %v548
    %v2004 = vunpack.c.h.b16 %v548
    %v2005 = vunpack.c.l.b16 %v549
    %v2006 = vunpack.c.h.b16 %v549
    %v2007 = vunpack.c.l.b16 %v550
    %v2008 = vunpack.c.h.b16 %v550
    %v2009 = vunpack.c.l.b16 %v551
    %v2010 = vunpack.c.h.b16 %v551
    %v2011 = vunpack.c.l.b16 %v552
    %v2012 = vunpack.c.h.b16 %v552
    %v2013 = vunpack.c.l.b16 %v553
    %v2014 = vunpack.c.h.b16 %v553
    %v2015 = vunpack.c.l.b16 %v554
    %v2016 = vunpack.c.h.b16 %v554
    %v2017 = vunpack.c.l.b16 %v555
    %v2018 = vunpack.c.h.b16 %v555
    %v2019 = vunpack.c.l.b16 %v556
    %v2020 = vunpack.c.h.b16 %v556
    %v2021 = vunpack.c.l.b16 %v557
    %v2022 = vunpack.c.h.b16 %v557
    %v2023 = vunpack.c.l.b16 %v558
    %v2024 = vunpack.c.h.b16 %v558
    %v2025 = vunpack.c.l.b16 %v559
    %v2026 = vunpack.c.h.b16 %v559
    %v2027 = vunpack.c.l.b16 %v560
    %v2028 = vunpack.c.h.b16 %v560
    %v2029 = vunpack.c.l.b16 %v561
    %v2030 = vunpack.c.h.b16 %v561
    %v2031 = vunpack.c.l.b16 %v562
    %v2032 = vunpack.c.h.b16 %v562
    %v2033 = vunpack.c.l.b16 %v563
    %v2034 = vunpack.c.h.b16 %v563
    %v2035 = vunpack.c.l.b16 %v564
    %v2036 = vunpack.c.h.b16 %v564
    %v2037 = vunpack.c.l.b16 %v565
    %v2038 = vunpack.c.h.b16 %v565
    %v2039 = vunpack.c.l.b16 %v566
    %v2040 = vunpack.c.h.b16 %v566
    %v2041 = vunpack.c.l.b16 %v567
    %v2042 = vunpack.c.h.b16 %v567
    %v2043 = vunpack.c.l.b16 %v568
    %v2044 = vunpack.c.h.b16 %v568
    %v2045 = vunpack.c.l.b16 %v569
    %v2046 = vunpack.c.h.b16 %v569
    %v2047 = vunpack.c.l.b16 %v570
    %v2048 = vunpack.c.h.b16 %v570
    %v2049 = vunpack.c.l.b16 %v571
    %v2050 = vunpack.c.h.b16 %v571
    %v2051 = vunpack.c.l.b16 %v572
    %v2052 = vunpack.c.h.b16 %v572
    %v2053 = vunpack.c.l.b16 %v573
    %v2054 = vunpack.c.h.b16 %v573
    %v2055 = vunpack.c.l.b16 %v574
    %v2056 = vunpack.c.h.b16 %v574
    %v2057 = vunpack.c.l.b16 %v575
    %v2058 = vunpack.c.h.b16 %v575
    %v2059 = vunpack.c.l.b16 %v576
    %v2060 = vunpack.c.h.b16 %v576
    %v2061 = vunpack.c.l.b16 %v577
    %v2062 = vunpack.c.h.b16 %v577
    %v2063 = vunpack.c.l.b16 %v578
    %v2064 = vunpack.c.h.b16 %v578
    %v2065 = vunpack.c.l.b16 %v579
    %v2066 = vunpack.c.h.b16 %v579
    %v2067 = vunpack.c.l.b16 %v580
    %v2068 = vunpack.c.h.b16 %v580
    %v2069 = vunpack.c.l.b16 %v581
    %v2070 = vunpack.c.h.b16 %v581
    %v2071 = vunpack.c.l.b16 %v582
    %v2072 = vunpack.c.h.b16 %v582
    %v2073 = vunpack.c.l.b16 %v583
    %v2074 = vunpack.c.h.b16 %v583
    %v2075 = vunpack.c.l.b16 %v584
    %v2076 = vunpack.c.h.b16 %v584
    %v2077 = vunpack.c.l.b16 %v585
    %v2078 = vunpack.c.h.b16 %v585
    %v2079 = vunpack.c.l.b16 %v586
    %v2080 = vunpack.c.h.b16 %v586
    %v2081 = vunpack.c.l.b16 %v587
    %v2082 = vunpack.c.h.b16 %v587
    %v2083 = vunpack.c.l.b16 %v588
    %v2084 = vunpack.c.h.b16 %v588
    %v2085 = vunpack.c.l.b16 %v589
    %v2086 = vunpack.c.h.b16 %v589
    %v2087 = vunpack.c.l.b16 %v590
    %v2088 = vunpack.c.h.b16 %v590
    %v2089 = vunpack.c.l.b16 %v591
    %v2090 = vunpack.c.h.b16 %v591
    %v2091 = vunpack.c.l.b16 %v592
    %v2092 = vunpack.c.h.b16 %v592
    %v2093 = vunpack.c.l.b16 %v593
    %v2094 = vunpack.c.h.b16 %v593
    %v2095 = vunpack.c.l.b16 %v594
    %v2096 = vunpack.c.h.b16 %v594
    %v2097 = vunpack.c.l.b16 %v595
    %v2098 = vunpack.c.h.b16 %v595
    %v2099 = vunpack.c.l.b16 %v596
    %v2100 = vunpack.c.h.b16 %v596
    %v2101 = vunpack.c.l.b16 %v597
    %v2102 = vunpack.c.h.b16 %v597
    %v2103 = vunpack.c.l.b16 %v598
    %v2104 = vunpack.c.h.b16 %v598
    %v2105 = vunpack.c.l.b16 %v599
    %v2106 = vunpack.c.h.b16 %v599
    %v2107 = vunpack.c.l.b16 %v600
    %v2108 = vunpack.c.h.b16 %v600
    %v2109 = vunpack.c.l.b16 %v601
    %v2110 = vunpack.c.h.b16 %v601
    %v2111 = vunpack.c.l.b16 %v602
    %v2112 = vunpack.c.h.b16 %v602
    %v2113 = vunpack.c.l.b16 %v603
    %v2114 = vunpack.c.h.b16 %v603
    %v2115 = vunpack.c.l.b16 %v604
    %v2116 = vunpack.c.h.b16 %v604
    %v2117 = vunpack.c.l.b16 %v605
    %v2118 = vunpack.c.h.b16 %v605
    %v2119 = vunpack.c.l.b16 %v606
    %v2120 = vunpack.c.h.b16 %v606
    %v2121 = vunpack.c.l.b16 %v607
    %v2122 = vunpack.c.h.b16 %v607
    %v2123 = vunpack.c.l.b16 %v608
    %v2124 = vunpack.c.h.b16 %v608
    %v2125 = vunpack.c.l.b16 %v609
    %v2126 = vunpack.c.h.b16 %v609
    %v2127 = vunpack.c.l.b16 %v610
    %v2128 = vunpack.c.h.b16 %v610
    %v2129 = vunpack.c.l.b16 %v611
    %v2130 = vunpack.c.h.b16 %v611
    %v2131 = vunpack.c.l.b16 %v612
    %v2132 = vunpack.c.h.b16 %v612
    %v2133 = vunpack.c.l.b16 %v613
    %v2134 = vunpack.c.h.b16 %v613
    %v2135 = vunpack.c.l.b16 %v614
    %v2136 = vunpack.c.h.b16 %v614
    %v2137 = vunpack.c.l.b16 %v615
    %v2138 = vunpack.c.h.b16 %v615
    %v2139 = vunpack.c.l.b16 %v616
    %v2140 = vunpack.c.h.b16 %v616
    %v2141 = vunpack.c.l.b16 %v617
    %v2142 = vunpack.c.h.b16 %v617
    %v2143 = vunpack.c.l.b16 %v618
    %v2144 = vunpack.c.h.b16 %v618
    %v2145 = vunpack.c.l.b16 %v619
    %v2146 = vunpack.c.h.b16 %v619
    %v2147 = vunpack.c.l.b16 %v620
    %v2148 = vunpack.c.h.b16 %v620
    %v2149 = vunpack.c.l.b16 %v621
    %v2150 = vunpack.c.h.b16 %v621
    %v2151 = vunpack.c.l.b16 %v622
    %v2152 = vunpack.c.h.b16 %v622
    %v2153 = vunpack.c.l.b16 %v623
    %v2154 = vunpack.c.h.b16 %v623
    %v2155 = vunpack.c.l.b16 %v624
    %v2156 = vunpack.c.h.b16 %v624
    %v2157 = vunpack.c.l.b16 %v625
    %v2158 = vunpack.c.h.b16 %v625
    %v2159 = vunpack.c.l.b16 %v626
    %v2160 = vunpack.c.h.b16 %v626
    %v2161 = vunpack.c.l.b16 %v627
    %v2162 = vunpack.c.h.b16 %v627
    %v2163 = vunpack.c.l.b16 %v628
    %v2164 = vunpack.c.h.b16 %v628
    %v2165 = vunpack.c.l.b16 %v629
    %v2166 = vunpack.c.h.b16 %v629
    %v2167 = vunpack.c.l.b16 %v630
    %v2168 = vunpack.c.h.b16 %v630
    %v2169 = vunpack.c.l.b16 %v631
    %v2170 = vunpack.c.h.b16 %v631
    %v2171 = vunpack.c.l.b16 %v632
    %v2172 = vunpack.c.h.b16 %v632
    %v2173 = vunpack.c.l.b16 %v633
    %v2174 = vunpack.c.h.b16 %v633
    %v2175 = vunpack.c.l.b16 %v634
    %v2176 = vunpack.c.h.b16 %v634
    %v2177 = vunpack.c.l.b16 %v635
    %v2178 = vunpack.c.h.b16 %v635
    %v2179 = vunpack.c.l.b16 %v636
    %v2180 = vunpack.c.h.b16 %v636
    %v2181 = vunpack.c.l.b16 %v637
    %v2182 = vunpack.c.h.b16 %v637
    %v2183 = vunpack.c.l.b16 %v638
    %v2184 = vunpack.c.h.b16 %v638
    %v2185 = vunpack.c.l.b16 %v639
    %v2186 = vunpack.c.h.b16 %v639
    %v2187 = vunpack.c.l.b16 %v640
    %v2188 = vunpack.c.h.b16 %v640
    %v2189 = vunpack.c.l.b16 %v641
    %v2190 = vunpack.c.h.b16 %v641
    %v2191 = vunpack.c.l.b16 %v642
    %v2192 = vunpack.c.h.b16 %v642
    %v2193 = vunpack.c.l.b16 %v643
    %v2194 = vunpack.c.h.b16 %v643
    %v2195 = vunpack.c.l.b16 %v644
    %v2196 = vunpack.c.h.b16 %v644
    %v2197 = vunpack.c.l.b16 %v645
    %v2198 = vunpack.c.h.b16 %v645
    %v2199 = vunpack.c.l.b16 %v646
    %v2200 = vunpack.c.h.b16 %v646
    %v2201 = vunpack.c.l.b16 %v647
    %v2202 = vunpack.c.h.b16 %v647
    %v2203 = vunpack.c.l.b16 %v648
    %v2204 = vunpack.c.h.b16 %v648
    %v2205 = vunpack.c.l.b16 %v649
    %v2206 = vunpack.c.h.b16 %v649
    %v2207 = vunpack.c.l.b16 %v650
    %v2208 = vunpack.c.h.b16 %v650
    %v2209 = vunpack.c.l.b16 %v651
    %v2210 = vunpack.c.h.b16 %v651
    %v2211 = vunpack.c.l.b16 %v652
    %v2212 = vunpack.c.h.b16 %v652
    %v2213 = vunpack.c.l.b16 %v653
    %v2214 = vunpack.c.h.b16 %v653
    %v2215 = vunpack.c.l.b16 %v654
    %v2216 = vunpack.c.h.b16 %v654
    %v2217 = vunpack.c.l.b16 %v655
    %v2218 = vunpack.c.h.b16 %v655
    %v2219 = vunpack.c.l.b16 %v656
    %v2220 = vunpack.c.h.b16 %v656
    %v2221 = vunpack.c.l.b16 %v657
    %v2222 = vunpack.c.h.b16 %v657
    %v2223 = vunpack.c.l.b16 %v658
    %v2224 = vunpack.c.h.b16 %v658
    %v2225 = vunpack.c.l.b16 %v659
    %v2226 = vunpack.c.h.b16 %v659
    %v2227 = vunpack.c.l.b16 %v660
    %v2228 = vunpack.c.h.b16 %v660
    %v2229 = vunpack.c.l.b16 %v661
    %v2230 = vunpack.c.h.b16 %v661
    %v2231 = vunpack.c.l.b16 %v662
    %v2232 = vunpack.c.h.b16 %v662
    %v2233 = vunpack.c.l.b16 %v663
    %v2234 = vunpack.c.h.b16 %v663
    %v2235 = vunpack.c.l.b16 %v664
    %v2236 = vunpack.c.h.b16 %v664
    %v2237 = vunpack.c.l.b16 %v665
    %v2238 = vunpack.c.h.b16 %v665
    %v2239 = vunpack.c.l.b16 %v666
    %v2240 = vunpack.c.h.b16 %v666
    %v2241 = vunpack.c.l.b16 %v667
    %v2242 = vunpack.c.h.b16 %v667
    %v2243 = vunpack.c.l.b16 %v668
    %v2244 = vunpack.c.h.b16 %v668
    %v2245 = vunpack.c.l.b16 %v669
    %v2246 = vunpack.c.h.b16 %v669
    %v2247 = vunpack.c.l.b16 %v670
    %v2248 = vunpack.c.h.b16 %v670
    %v2249 = vpack.c.b16 %v1233, %v1225
    %v2250 = vpack.c.b16 %v1234, %v1226
    %v2251 = vpack.c.b16 %v1235, %v1227
    %v2252 = vpack.c.b16 %v1236, %v1228
    %v2253 = vpack.c.b16 %v1237, %v1229
    %v2254 = vpack.c.b16 %v1238, %v1230
    %v2255 = vpack.c.b16 %v1239, %v1231
    %v2256 = vpack.c.b16 %v1240, %v1232
    %v2257 = vpack.c.b16 %v1249, %v1241
    %v2258 = vpack.c.b16 %v1250, %v1242
    %v2259 = vpack.c.b16 %v1251, %v1243
    %v2260 = vpack.c.b16 %v1252, %v1244
    %v2261 = vpack.c.b16 %v1253, %v1245
    %v2262 = vpack.c.b16 %v1254, %v1246
    %v2263 = vpack.c.b16 %v1255, %v1247
    %v2264 = vpack.c.b16 %v1256, %v1248
    %v2265 = vpack.c.b16 %v1265, %v1257
    %v2266 = vpack.c.b16 %v1266, %v1258
    %v2267 = vpack.c.b16 %v1267, %v1259
    %v2268 = vpack.c.b16 %v1268, %v1260
    %v2269 = vpack.c.b16 %v1269, %v1261
    %v2270 = vpack.c.b16 %v1270, %v1262
    %v2271 = vpack.c.b16 %v1271, %v1263
    %v2272 = vpack.c.b16 %v1272, %v1264
    %v2273 = vpack.c.b16 %v1281, %v1273
    %v2274 = vpack.c.b16 %v1282, %v1274
    %v2275 = vpack.c.b16 %v1283, %v1275
    %v2276 = vpack.c.b16 %v1284, %v1276
    %v2277 = vpack.c.b16 %v1285, %v1277
    %v2278 = vpack.c.b16 %v1286, %v1278
    %v2279 = vpack.c.b16 %v1287, %v1279
    %v2280 = vpack.c.b16 %v1288, %v1280
    %v2281 = vpack.c.b16 %v1297, %v1289
    %v2282 = vpack.c.b16 %v1298, %v1290
    %v2283 = vpack.c.b16 %v1299, %v1291
    %v2284 = vpack.c.b16 %v1300, %v1292
    %v2285 = vpack.c.b16 %v1301, %v1293
    %v2286 = vpack.c.b16 %v1302, %v1294
    %v2287 = vpack.c.b16 %v1303, %v1295
    %v2288 = vpack.c.b16 %v1304, %v1296
    %v2289 = vpack.c.b16 %v1313, %v1305
    %v2290 = vpack.c.b16 %v1314, %v1306
    %v2291 = vpack.c.b16 %v1315, %v1307
    %v2292 = vpack.c.b16 %v1316, %v1308
    %v2293 = vpack.c.b16 %v1317, %v1309
    %v2294 = vpack.c.b16 %v1318, %v1310
    %v2295 = vpack.c.b16 %v1319, %v1311
    %v2296 = vpack.c.b16 %v1320, %v1312
    %v2297 = vpack.c.b16 %v1329, %v1321
    %v2298 = vpack.c.b16 %v1330, %v1322
    %v2299 = vpack.c.b16 %v1331, %v1323
    %v2300 = vpack.c.b16 %v1332, %v1324
    %v2301 = vpack.c.b16 %v1333, %v1325
    %v2302 = vpack.c.b16 %v1334, %v1326
    %v2303 = vpack.c.b16 %v1335, %v1327
    %v2304 = vpack.c.b16 %v1336, %v1328
    %v2305 = vpack.c.b16 %v1345, %v1337
    %v2306 = vpack.c.b16 %v1346, %v1338
    %v2307 = vpack.c.b16 %v1347, %v1339
    %v2308 = vpack.c.b16 %v1348, %v1340
    %v2309 = vpack.c.b16 %v1349, %v1341
    %v2310 = vpack.c.b16 %v1350, %v1342
    %v2311 = vpack.c.b16 %v1351, %v1343
    %v2312 = vpack.c.b16 %v1352, %v1344
    %v2313 = vpack.c.b16 %v1361, %v1353
    %v2314 = vpack.c.b16 %v1362, %v1354
    %v2315 = vpack.c.b16 %v1363, %v1355
    %v2316 = vpack.c.b16 %v1364, %v1356
    %v2317 = vpack.c.b16 %v1365, %v1357
    %v2318 = vpack.c.b16 %v1366, %v1358
    %v2319 = vpack.c.b16 %v1367, %v1359
    %v2320 = vpack.c.b16 %v1368, %v1360
    %v2321 = vpack.c.b16 %v1377, %v1369
    %v2322 = vpack.c.b16 %v1378, %v1370
    %v2323 = vpack.c.b16 %v1379, %v1371
    %v2324 = vpack.c.b16 %v1380, %v1372
    %v2325 = vpack.c.b16 %v1381, %v1373
    %v2326 = vpack.c.b16 %v1382, %v1374
    %v2327 = vpack.c.b16 %v1383, %v1375
    %v2328 = vpack.c.b16 %v1384, %v1376
    %v2329 = vpack.c.b16 %v1393, %v1385
    %v2330 = vpack.c.b16 %v1394, %v1386
    %v2331 = vpack.c.b16 %v1395, %v1387
    %v2332 = vpack.c.b16 %v1396, %v1388
    %v2333 = vpack.c.b16 %v1397, %v1389
    %v2334 = vpack.c.b16 %v1398, %v1390
    %v2335 = vpack.c.b16 %v1399, %v1391
    %v2336 = vpack.c.b16 %v1400, %v1392
    %v2337 = vpack.c.b16 %v1409, %v1401
    %v2338 = vpack.c.b16 %v1410, %v1402
    %v2339 = vpack.c.b16 %v1411, %v1403
    %v2340 = vpack.c.b16 %v1412, %v1404
    %v2341 = vpack.c.b16 %v1413, %v1405
    %v2342 = vpack.c.b16 %v1414, %v1406
    %v2343 = vpack.c.b16 %v1415, %v1407
    %v2344 = vpack.c.b16 %v1416, %v1408
    %v2345 = vpack.c.b16 %v1425, %v1417
    %v2346 = vpack.c.b16 %v1426, %v1418
    %v2347 = vpack.c.b16 %v1427, %v1419
    %v2348 = vpack.c.b16 %v1428, %v1420
    %v2349 = vpack.c.b16 %v1429, %v1421
    %v2350 = vpack.c.b16 %v1430, %v1422
    %v2351 = vpack.c.b16 %v1431, %v1423
    %v2352 = vpack.c.b16 %v1432, %v1424
    %v2353 = vpack.c.b16 %v1441, %v1433
    %v2354 = vpack.c.b16 %v1442, %v1434
    %v2355 = vpack.c.b16 %v1443, %v1435
    %v2356 = vpack.c.b16 %v1444, %v1436
    %v2357 = vpack.c.b16 %v1445, %v1437
    %v2358 = vpack.c.b16 %v1446, %v1438
    %v2359 = vpack.c.b16 %v1447, %v1439
    %v2360 = vpack.c.b16 %v1448, %v1440
    %v2361 = vpack.c.b16 %v1457, %v1449
    %v2362 = vpack.c.b16 %v1458, %v1450
    %v2363 = vpack.c.b16 %v1459, %v1451
    %v2364 = vpack.c.b16 %v1460, %v1452
    %v2365 = vpack.c.b16 %v1461, %v1453
    %v2366 = vpack.c.b16 %v1462, %v1454
    %v2367 = vpack.c.b16 %v1463, %v1455
    %v2368 = vpack.c.b16 %v1464, %v1456
    %v2369 = vpack.c.b16 %v1473, %v1465
    %v2370 = vpack.c.b16 %v1474, %v1466
    %v2371 = vpack.c.b16 %v1475, %v1467
    %v2372 = vpack.c.b16 %v1476, %v1468
    %v2373 = vpack.c.b16 %v1477, %v1469
    %v2374 = vpack.c.b16 %v1478, %v1470
    %v2375 = vpack.c.b16 %v1479, %v1471
    %v2376 = vpack.c.b16 %v1480, %v1472
    %v2377 = vpack.c.b16 %v1489, %v1481
    %v2378 = vpack.c.b16 %v1490, %v1482
    %v2379 = vpack.c.b16 %v1491, %v1483
    %v2380 = vpack.c.b16 %v1492, %v1484
    %v2381 = vpack.c.b16 %v1493, %v1485
    %v2382 = vpack.c.b16 %v1494, %v1486
    %v2383 = vpack.c.b16 %v1495, %v1487
    %v2384 = vpack.c.b16 %v1496, %v1488
    %v2385 = vpack.c.b16 %v1505, %v1497
    %v2386 = vpack.c.b16 %v1506, %v1498
    %v2387 = vpack.c.b16 %v1507, %v1499
    %v2388 = vpack.c.b16 %v1508, %v1500
    %v2389 = vpack.c.b16 %v1509, %v1501
    %v2390 = vpack.c.b16 %v1510, %v1502
    %v2391 = vpack.c.b16 %v1511, %v1503
    %v2392 = vpack.c.b16 %v1512, %v1504
    %v2393 = vpack.c.b16 %v1521, %v1513
    %v2394 = vpack.c.b16 %v1522, %v1514
    %v2395 = vpack.c.b16 %v1523, %v1515
    %v2396 = vpack.c.b16 %v1524, %v1516
    %v2397 = vpack.c.b16 %v1525, %v1517
    %v2398 = vpack.c.b16 %v1526, %v1518
    %v2399 = vpack.c.b16 %v1527, %v1519
    %v2400 = vpack.c.b16 %v1528, %v1520
    %v2401 = vpack.c.b16 %v1537, %v1529
    %v2402 = vpack.c.b16 %v1538, %v1530
    %v2403 = vpack.c.b16 %v1539, %v1531
    %v2404 = vpack.c.b16 %v1540, %v1532
    %v2405 = vpack.c.b16 %v1541, %v1533
    %v2406 = vpack.c.b16 %v1542, %v1534
    %v2407 = vpack.c.b16 %v1543, %v1535
    %v2408 = vpack.c.b16 %v1544, %v1536
    %v2409 = vpack.c.b16 %v1553, %v1545
    %v2410 = vpack.c.b16 %v1554, %v1546
    %v2411 = vpack.c.b16 %v1555, %v1547
    %v2412 = vpack.c.b16 %v1556, %v1548
    %v2413 = vpack.c.b16 %v1557, %v1549
    %v2414 = vpack.c.b16 %v1558, %v1550
    %v2415 = vpack.c.b16 %v1559, %v1551
    %v2416 = vpack.c.b16 %v1560, %v1552
    %v2417 = vpack.c.b16 %v1569, %v1561
    %v2418 = vpack.c.b16 %v1570, %v1562
    %v2419 = vpack.c.b16 %v1571, %v1563
    %v2420 = vpack.c.b16 %v1572, %v1564
    %v2421 = vpack.c.b16 %v1573, %v1565
    %v2422 = vpack.c.b16 %v1574, %v1566
    %v2423 = vpack.c.b16 %v1575, %v1567
    %v2424 = vpack.c.b16 %v1576, %v1568
    %v2425 = vpack.c.b16 %v1585, %v1577
    %v2426 = vpack.c.b16 %v1586, %v1578
    %v2427 = vpack.c.b16 %v1587, %v1579
    %v2428 = vpack.c.b16 %v1588, %v1580
    %v2429 = vpack.c.b16 %v1589, %v1581
    %v2430 = vpack.c.b16 %v1590, %v1582
    %v2431 = vpack.c.b16 %v1591, %v1583
    %v2432 = vpack.c.b16 %v1592, %v1584
    %v2433 = vpack.c.b16 %v1601, %v1593
    %v2434 = vpack.c.b16 %v1602, %v1594
    %v2435 = vpack.c.b16 %v1603, %v1595
    %v2436 = vpack.c.b16 %v1604, %v1596
    %v2437 = vpack.c.b16 %v1605, %v1597
    %v2438 = vpack.c.b16 %v1606, %v1598
    %v2439 = vpack.c.b16 %v1607, %v1599
    %v2440 = vpack.c.b16 %v1608, %v1600
    %v2441 = vpack.c.b16 %v1617, %v1609
    %v2442 = vpack.c.b16 %v1618, %v1610
    %v2443 = vpack.c.b16 %v1619, %v1611
    %v2444 = vpack.c.b16 %v1620, %v1612
    %v2445 = vpack.c.b16 %v1621, %v1613
    %v2446 = vpack.c.b16 %v1622, %v1614
    %v2447 = vpack.c.b16 %v1623, %v1615
    %v2448 = vpack.c.b16 %v1624, %v1616
    %v2449 = vpack.c.b16 %v1633, %v1625
    %v2450 = vpack.c.b16 %v1634, %v1626
    %v2451 = vpack.c.b16 %v1635, %v1627
    %v2452 = vpack.c.b16 %v1636, %v1628
    %v2453 = vpack.c.b16 %v1637, %v1629
    %v2454 = vpack.c.b16 %v1638, %v1630
    %v2455 = vpack.c.b16 %v1639, %v1631
    %v2456 = vpack.c.b16 %v1640, %v1632
    %v2457 = vpack.c.b16 %v1649, %v1641
    %v2458 = vpack.c.b16 %v1650, %v1642
    %v2459 = vpack.c.b16 %v1651, %v1643
    %v2460 = vpack.c.b16 %v1652, %v1644
    %v2461 = vpack.c.b16 %v1653, %v1645
    %v2462 = vpack.c.b16 %v1654, %v1646
    %v2463 = vpack.c.b16 %v1655, %v1647
    %v2464 = vpack.c.b16 %v1656, %v1648
    %v2465 = vpack.c.b16 %v1665, %v1657
    %v2466 = vpack.c.b16 %v1666, %v1658
    %v2467 = vpack.c.b16 %v1667, %v1659
    %v2468 = vpack.c.b16 %v1668, %v1660
    %v2469 = vpack.c.b16 %v1669, %v1661
    %v2470 = vpack.c.b16 %v1670, %v1662
    %v2471 = vpack.c.b16 %v1671, %v1663
    %v2472 = vpack.c.b16 %v1672, %v1664
    %v2473 = vpack.c.b16 %v1681, %v1673
    %v2474 = vpack.c.b16 %v1682, %v1674
    %v2475 = vpack.c.b16 %v1683, %v1675
    %v2476 = vpack.c.b16 %v1684, %v1676
    %v2477 = vpack.c.b16 %v1685, %v1677
    %v2478 = vpack.c.b16 %v1686, %v1678
    %v2479 = vpack.c.b16 %v1687, %v1679
    %v2480 = vpack.c.b16 %v1688, %v1680
    %v2481 = vpack.c.b16 %v1697, %v1689
    %v2482 = vpack.c.b16 %v1698, %v1690
    %v2483 = vpack.c.b16 %v1699, %v1691
    %v2484 = vpack.c.b16 %v1700, %v1692
    %v2485 = vpack.c.b16 %v1701, %v1693
    %v2486 = vpack.c.b16 %v1702, %v1694
    %v2487 = vpack.c.b16 %v1703, %v1695
    %v2488 = vpack.c.b16 %v1704, %v1696
    %v2489 = vpack.c.b16 %v1713, %v1705
    %v2490 = vpack.c.b16 %v1714, %v1706
    %v2491 = vpack.c.b16 %v1715, %v1707
    %v2492 = vpack.c.b16 %v1716, %v1708
    %v2493 = vpack.c.b16 %v1717, %v1709
    %v2494 = vpack.c.b16 %v1718, %v1710
    %v2495 = vpack.c.b16 %v1719, %v1711
    %v2496 = vpack.c.b16 %v1720, %v1712
    %v2497 = vpack.c.b16 %v1729, %v1721
    %v2498 = vpack.c.b16 %v1730, %v1722
    %v2499 = vpack.c.b16 %v1731, %v1723
    %v2500 = vpack.c.b16 %v1732, %v1724
    %v2501 = vpack.c.b16 %v1733, %v1725
    %v2502 = vpack.c.b16 %v1734, %v1726
    %v2503 = vpack.c.b16 %v1735, %v1727
    %v2504 = vpack.c.b16 %v1736, %v1728
    %v2505 = vpack.c.b16 %v1745, %v1737
    %v2506 = vpack.c.b16 %v1746, %v1738
    %v2507 = vpack.c.b16 %v1747, %v1739
    %v2508 = vpack.c.b16 %v1748, %v1740
    %v2509 = vpack.c.b16 %v1749, %v1741
    %v2510 = vpack.c.b16 %v1750, %v1742
    %v2511 = vpack.c.b16 %v1751, %v1743
    %v2512 = vpack.c.b16 %v1752, %v1744
    %v2513 = vpack.c.b16 %v1761, %v1753
    %v2514 = vpack.c.b16 %v1762, %v1754
    %v2515 = vpack.c.b16 %v1763, %v1755
    %v2516 = vpack.c.b16 %v1764, %v1756
    %v2517 = vpack.c.b16 %v1765, %v1757
    %v2518 = vpack.c.b16 %v1766, %v1758
    %v2519 = vpack.c.b16 %v1767, %v1759
    %v2520 = vpack.c.b16 %v1768, %v1760
    %v2521 = vpack.c.b16 %v1777, %v1769
    %v2522 = vpack.c.b16 %v1778, %v1770
    %v2523 = vpack.c.b16 %v1779, %v1771
    %v2524 = vpack.c.b16 %v1780, %v1772
    %v2525 = vpack.c.b16 %v1781, %v1773
    %v2526 = vpack.c.b16 %v1782, %v1774
    %v2527 = vpack.c.b16 %v1783, %v1775
    %v2528 = vpack.c.b16 %v1784, %v1776
    %v2529 = vpack.c.b16 %v1793, %v1785
    %v2530 = vpack.c.b16 %v1794, %v1786
    %v2531 = vpack.c.b16 %v1795, %v1787
    %v2532 = vpack.c.b16 %v1796, %v1788
    %v2533 = vpack.c.b16 %v1797, %v1789
    %v2534 = vpack.c.b16 %v1798, %v1790
    %v2535 = vpack.c.b16 %v1799, %v1791
    %v2536 = vpack.c.b16 %v1800, %v1792
    %v2537 = vpack.c.b16 %v1809, %v1801
    %v2538 = vpack.c.b16 %v1810, %v1802
    %v2539 = vpack.c.b16 %v1811, %v1803
    %v2540 = vpack.c.b16 %v1812, %v1804
    %v2541 = vpack.c.b16 %v1813, %v1805
    %v2542 = vpack.c.b16 %v1814, %v1806
    %v2543 = vpack.c.b16 %v1815, %v1807
    %v2544 = vpack.c.b16 %v1816, %v1808
    %v2545 = vpack.c.b16 %v1825, %v1817
    %v2546 = vpack.c.b16 %v1826, %v1818
    %v2547 = vpack.c.b16 %v1827, %v1819
    %v2548 = vpack.c.b16 %v1828, %v1820
    %v2549 = vpack.c.b16 %v1829, %v1821
    %v2550 = vpack.c.b16 %v1830, %v1822
    %v2551 = vpack.c.b16 %v1831, %v1823
    %v2552 = vpack.c.b16 %v1832, %v1824
    %v2553 = vpack.c.b16 %v1841, %v1833
    %v2554 = vpack.c.b16 %v1842, %v1834
    %v2555 = vpack.c.b16 %v1843, %v1835
    %v2556 = vpack.c.b16 %v1844, %v1836
    %v2557 = vpack.c.b16 %v1845, %v1837
    %v2558 = vpack.c.b16 %v1846, %v1838
    %v2559 = vpack.c.b16 %v1847, %v1839
    %v2560 = vpack.c.b16 %v1848, %v1840
    %v2561 = vpack.c.b16 %v1857, %v1849
    %v2562 = vpack.c.b16 %v1858, %v1850
    %v2563 = vpack.c.b16 %v1859, %v1851
    %v2564 = vpack.c.b16 %v1860, %v1852
    %v2565 = vpack.c.b16 %v1861, %v1853
    %v2566 = vpack.c.b16 %v1862, %v1854
    %v2567 = vpack.c.b16 %v1863, %v1855
    %v2568 = vpack.c.b16 %v1864, %v1856
    %v2569 = vpack.c.b16 %v1873, %v1865
    %v2570 = vpack.c.b16 %v1874, %v1866
    %v2571 = vpack.c.b16 %v1875, %v1867
    %v2572 = vpack.c.b16 %v1876, %v1868
    %v2573 = vpack.c.b16 %v1877, %v1869
    %v2574 = vpack.c.b16 %v1878, %v1870
    %v2575 = vpack.c.b16 %v1879, %v1871
    %v2576 = vpack.c.b16 %v1880, %v1872
    %v2577 = vpack.c.b16 %v1889, %v1881
    %v2578 = vpack.c.b16 %v1890, %v1882
    %v2579 = vpack.c.b16 %v1891, %v1883
    %v2580 = vpack.c.b16 %v1892, %v1884
    %v2581 = vpack.c.b16 %v1893, %v1885
    %v2582 = vpack.c.b16 %v1894, %v1886
    %v2583 = vpack.c.b16 %v1895, %v1887
    %v2584 = vpack.c.b16 %v1896, %v1888
    %v2585 = vpack.c.b16 %v1905, %v1897
    %v2586 = vpack.c.b16 %v1906, %v1898
    %v2587 = vpack.c.b16 %v1907, %v1899
    %v2588 = vpack.c.b16 %v1908, %v1900
    %v2589 = vpack.c.b16 %v1909, %v1901
    %v2590 = vpack.c.b16 %v1910, %v1902
    %v2591 = vpack.c.b16 %v1911, %v1903
    %v2592 = vpack.c.b16 %v1912, %v1904
    %v2593 = vpack.c.b16 %v1921, %v1913
    %v2594 = vpack.c.b16 %v1922, %v1914
    %v2595 = vpack.c.b16 %v1923, %v1915
    %v2596 = vpack.c.b16 %v1924, %v1916
    %v2597 = vpack.c.b16 %v1925, %v1917
    %v2598 = vpack.c.b16 %v1926, %v1918
    %v2599 = vpack.c.b16 %v1927, %v1919
    %v2600 = vpack.c.b16 %v1928, %v1920
    %v2601 = vpack.c.b16 %v1937, %v1929
    %v2602 = vpack.c.b16 %v1938, %v1930
    %v2603 = vpack.c.b16 %v1939, %v1931
    %v2604 = vpack.c.b16 %v1940, %v1932
    %v2605 = vpack.c.b16 %v1941, %v1933
    %v2606 = vpack.c.b16 %v1942, %v1934
    %v2607 = vpack.c.b16 %v1943, %v1935
    %v2608 = vpack.c.b16 %v1944, %v1936
    %v2609 = vpack.c.b16 %v1953, %v1945
    %v2610 = vpack.c.b16 %v1954, %v1946
    %v2611 = vpack.c.b16 %v1955, %v1947
    %v2612 = vpack.c.b16 %v1956, %v1948
    %v2613 = vpack.c.b16 %v1957, %v1949
    %v2614 = vpack.c.b16 %v1958, %v1950
    %v2615 = vpack.c.b16 %v1959, %v1951
    %v2616 = vpack.c.b16 %v1960, %v1952
    %v2617 = vpack.c.b16 %v1969, %v1961
    %v2618 = vpack.c.b16 %v1970, %v1962
    %v2619 = vpack.c.b16 %v1971, %v1963
    %v2620 = vpack.c.b16 %v1972, %v1964
    %v2621 = vpack.c.b16 %v1973, %v1965
    %v2622 = vpack.c.b16 %v1974, %v1966
    %v2623 = vpack.c.b16 %v1975, %v1967
    %v2624 = vpack.c.b16 %v1976, %v1968
    %v2625 = vpack.c.b16 %v1985, %v1977
    %v2626 = vpack.c.b16 %v1986, %v1978
    %v2627 = vpack.c.b16 %v1987, %v1979
    %v2628 = vpack.c.b16 %v1988, %v1980
    %v2629 = vpack.c.b16 %v1989, %v1981
    %v2630 = vpack.c.b16 %v1990, %v1982
    %v2631 = vpack.c.b16 %v1991, %v1983
    %v2632 = vpack.c.b16 %v1992, %v1984
    %v2633 = vpack.c.b16 %v2001, %v1993
    %v2634 = vpack.c.b16 %v2002, %v1994
    %v2635 = vpack.c.b16 %v2003, %v1995
    %v2636 = vpack.c.b16 %v2004, %v1996
    %v2637 = vpack.c.b16 %v2005, %v1997
    %v2638 = vpack.c.b16 %v2006, %v1998
    %v2639 = vpack.c.b16 %v2007, %v1999
    %v2640 = vpack.c.b16 %v2008, %v2000
    %v2641 = vpack.c.b16 %v2017, %v2009
    %v2642 = vpack.c.b16 %v2018, %v2010
    %v2643 = vpack.c.b16 %v2019, %v2011
    %v2644 = vpack.c.b16 %v2020, %v2012
    %v2645 = vpack.c.b16 %v2021, %v2013
    %v2646 = vpack.c.b16 %v2022, %v2014
    %v2647 = vpack.c.b16 %v2023, %v2015
    %v2648 = vpack.c.b16 %v2024, %v2016
    %v2649 = vpack.c.b16 %v2033, %v2025
    %v2650 = vpack.c.b16 %v2034, %v2026
    %v2651 = vpack.c.b16 %v2035, %v2027
    %v2652 = vpack.c.b16 %v2036, %v2028
    %v2653 = vpack.c.b16 %v2037, %v2029
    %v2654 = vpack.c.b16 %v2038, %v2030
    %v2655 = vpack.c.b16 %v2039, %v2031
    %v2656 = vpack.c.b16 %v2040, %v2032
    %v2657 = vpack.c.b16 %v2049, %v2041
    %v2658 = vpack.c.b16 %v2050, %v2042
    %v2659 = vpack.c.b16 %v2051, %v2043
    %v2660 = vpack.c.b16 %v2052, %v2044
    %v2661 = vpack.c.b16 %v2053, %v2045
    %v2662 = vpack.c.b16 %v2054, %v2046
    %v2663 = vpack.c.b16 %v2055, %v2047
    %v2664 = vpack.c.b16 %v2056, %v2048
    %v2665 = vpack.c.b16 %v2065, %v2057
    %v2666 = vpack.c.b16 %v2066, %v2058
    %v2667 = vpack.c.b16 %v2067, %v2059
    %v2668 = vpack.c.b16 %v2068, %v2060
    %v2669 = vpack.c.b16 %v2069, %v2061
    %v2670 = vpack.c.b16 %v2070, %v2062
    %v2671 = vpack.c.b16 %v2071, %v2063
    %v2672 = vpack.c.b16 %v2072, %v2064
    %v2673 = vpack.c.b16 %v2081, %v2073
    %v2674 = vpack.c.b16 %v2082, %v2074
    %v2675 = vpack.c.b16 %v2083, %v2075
    %v2676 = vpack.c.b16 %v2084, %v2076
    %v2677 = vpack.c.b16 %v2085, %v2077
    %v2678 = vpack.c.b16 %v2086, %v2078
    %v2679 = vpack.c.b16 %v2087, %v2079
    %v2680 = vpack.c.b16 %v2088, %v2080
    %v2681 = vpack.c.b16 %v2097, %v2089
    %v2682 = vpack.c.b16 %v2098, %v2090
    %v2683 = vpack.c.b16 %v2099, %v2091
    %v2684 = vpack.c.b16 %v2100, %v2092
    %v2685 = vpack.c.b16 %v2101, %v2093
    %v2686 = vpack.c.b16 %v2102, %v2094
    %v2687 = vpack.c.b16 %v2103, %v2095
    %v2688 = vpack.c.b16 %v2104, %v2096
    %v2689 = vpack.c.b16 %v2113, %v2105
    %v2690 = vpack.c.b16 %v2114, %v2106
    %v2691 = vpack.c.b16 %v2115, %v2107
    %v2692 = vpack.c.b16 %v2116, %v2108
    %v2693 = vpack.c.b16 %v2117, %v2109
    %v2694 = vpack.c.b16 %v2118, %v2110
    %v2695 = vpack.c.b16 %v2119, %v2111
    %v2696 = vpack.c.b16 %v2120, %v2112
    %v2697 = vpack.c.b16 %v2129, %v2121
    %v2698 = vpack.c.b16 %v2130, %v2122
    %v2699 = vpack.c.b16 %v2131, %v2123
    %v2700 = vpack.c.b16 %v2132, %v2124
    %v2701 = vpack.c.b16 %v2133, %v2125
    %v2702 = vpack.c.b16 %v2134, %v2126
    %v2703 = vpack.c.b16 %v2135, %v2127
    %v2704 = vpack.c.b16 %v2136, %v2128
    %v2705 = vpack.c.b16 %v2145, %v2137
    %v2706 = vpack.c.b16 %v2146, %v2138
    %v2707 = vpack.c.b16 %v2147, %v2139
    %v2708 = vpack.c.b16 %v2148, %v2140
    %v2709 = vpack.c.b16 %v2149, %v2141
    %v2710 = vpack.c.b16 %v2150, %v2142
    %v2711 = vpack.c.b16 %v2151, %v2143
    %v2712 = vpack.c.b16 %v2152, %v2144
    %v2713 = vpack.c.b16 %v2161, %v2153
    %v2714 = vpack.c.b16 %v2162, %v2154
    %v2715 = vpack.c.b16 %v2163, %v2155
    %v2716 = vpack.c.b16 %v2164, %v2156
    %v2717 = vpack.c.b16 %v2165, %v2157
    %v2718 = vpack.c.b16 %v2166, %v2158
    %v2719 = vpack.c.b16 %v2167, %v2159
    %v2720 = vpack.c.b16 %v2168, %v2160
    %v2721 = vpack.c.b16 %v2177, %v2169
    %v2722 = vpack.c.b16 %v2178, %v2170
    %v2723 = vpack.c.b16 %v2179, %v2171
    %v2724 = vpack.c.b16 %v2180, %v2172
    %v2725 = vpack.c.b16 %v2181, %v2173
    %v2726 = vpack.c.b16 %v2182, %v2174
    %v2727 = vpack.c.b16 %v2183, %v2175
    %v2728 = vpack.c.b16 %v2184, %v2176
    %v2729 = vpack.c.b16 %v2193, %v2185
    %v2730 = vpack.c.b16 %v2194, %v2186
    %v2731 = vpack.c.b16 %v2195, %v2187
    %v2732 = vpack.c.b16 %v2196, %v2188
    %v2733 = vpack.c.b16 %v2197, %v2189
    %v2734 = vpack.c.b16 %v2198, %v2190
    %v2735 = vpack.c.b16 %v2199, %v2191
    %v2736 = vpack.c.b16 %v2200, %v2192
    %v2737 = vpack.c.b16 %v2209, %v2201
    %v2738 = vpack.c.b16 %v2210, %v2202
    %v2739 = vpack.c.b16 %v2211, %v2203
    %v2740 = vpack.c.b16 %v2212, %v2204
    %v2741 = vpack.c.b16 %v2213, %v2205
    %v2742 = vpack.c.b16 %v2214, %v2206
    %v2743 = vpack.c.b16 %v2215, %v2207
    %v2744 = vpack.c.b16 %v2216, %v2208
    %v2745 = vpack.c.b16 %v2225, %v2217
    %v2746 = vpack.c.b16 %v2226, %v2218
    %v2747 = vpack.c.b16 %v2227, %v2219
    %v2748 = vpack.c.b16 %v2228, %v2220
    %v2749 = vpack.c.b16 %v2229, %v2221
    %v2750 = vpack.c.b16 %v2230, %v2222
    %v2751 = vpack.c.b16 %v2231, %v2223
    %v2752 = vpack.c.b16 %v2232, %v2224
    %v2753 = vpack.c.b16 %v2241, %v2233
    %v2754 = vpack.c.b16 %v2242, %v2234
    %v2755 = vpack.c.b16 %v2243, %v2235
    %v2756 = vpack.c.b16 %v2244, %v2236
    %v2757 = vpack.c.b16 %v2245, %v2237
    %v2758 = vpack.c.b16 %v2246, %v2238
    %v2759 = vpack.c.b16 %v2247, %v2239
    %v2760 = vpack.c.b16 %v2248, %v2240
    %3273 = vmatprep.subr.bf16.mxu0 %v2250
    %3274 = vmatpush1.bf16.msra.mxu0 %v2249
    %3275 = vmatprep.subr.bf16.mxu0 %v2258
    %3276 = vmatpush1.bf16.msra.mxu0 %v2257
    %3277 = vmatprep.subr.bf16.mxu0 %v2266
    %3278 = vmatpush1.bf16.msra.mxu0 %v2265
    %3279 = vmatprep.subr.bf16.mxu0 %v2274
    %3280 = vmatpush1.bf16.msra.mxu0 %v2273
    %3281 = vmatprep.subr.bf16.mxu0 %v2282
    %3282 = vmatpush1.bf16.msra.mxu0 %v2281
    %3283 = vmatprep.subr.bf16.mxu0 %v2290
    %3284 = vmatpush1.bf16.msra.mxu0 %v2289
    %3285 = vmatprep.subr.bf16.mxu0 %v2298
    %3286 = vmatpush1.bf16.msra.mxu0 %v2297
    %3287 = vmatprep.subr.bf16.mxu0 %v2306
    %3288 = vmatpush1.bf16.msra.mxu0 %v2305
    %3289 = vmatprep.subr.bf16.mxu0 %v2314
    %3290 = vmatpush1.bf16.msra.mxu0 %v2313
    %3291 = vmatprep.subr.bf16.mxu0 %v2322
    %3292 = vmatpush1.bf16.msra.mxu0 %v2321
    %3293 = vmatprep.subr.bf16.mxu0 %v2330
    %3294 = vmatpush1.bf16.msra.mxu0 %v2329
    %3295 = vmatprep.subr.bf16.mxu0 %v2338
    %3296 = vmatpush1.bf16.msra.mxu0 %v2337
    %3297 = vmatprep.subr.bf16.mxu0 %v2346
    %3298 = vmatpush1.bf16.msra.mxu0 %v2345
    %3299 = vmatprep.subr.bf16.mxu0 %v2354
    %3300 = vmatpush1.bf16.msra.mxu0 %v2353
    %3301 = vmatprep.subr.bf16.mxu0 %v2362
    %3302 = vmatpush1.bf16.msra.mxu0 %v2361
    %3303 = vmatprep.subr.bf16.mxu0 %v2370
    %3304 = vmatpush1.bf16.msra.mxu0 %v2369
    %3305 = vmatprep.mubr.bf16.mxu0 %v152
    %3306 = vmatmul.mubr.bf16.gmra.mrb[0].mxu0 %v151
    %v3307 = vpop.f32.mrb[0].mxu0
    %v3308 = vadd.f32 %v676, %v3307
    %v3309 = vpop.f32.mrb[0].mxu0
    %v3310 = vadd.f32 %v680, %v3309
    %v3311 = vpop.f32.mrb[0].mxu0
    %v3312 = vadd.f32 %v676, %v3311
    %v3313 = vpop.f32.mrb[0].mxu0
    %v3314 = vadd.f32 %v680, %v3313
    %3315 = vdwg.mxu0
    %3316 = vmatprep.subr.bf16.mxu0 %v2378
    %3317 = vmatpush1.bf16.msra.mxu0 %v2377
    %3318 = vmatprep.subr.bf16.mxu0 %v2386
    %3319 = vmatpush1.bf16.msra.mxu0 %v2385
    %3320 = vmatprep.subr.bf16.mxu0 %v2394
    %3321 = vmatpush1.bf16.msra.mxu0 %v2393
    %3322 = vmatprep.subr.bf16.mxu0 %v2402
    %3323 = vmatpush1.bf16.msra.mxu0 %v2401
    %3324 = vmatprep.subr.bf16.mxu0 %v2410
    %3325 = vmatpush1.bf16.msra.mxu0 %v2409
    %3326 = vmatprep.subr.bf16.mxu0 %v2418
    %3327 = vmatpush1.bf16.msra.mxu0 %v2417
    %3328 = vmatprep.subr.bf16.mxu0 %v2426
    %3329 = vmatpush1.bf16.msra.mxu0 %v2425
    %3330 = vmatprep.subr.bf16.mxu0 %v2434
    %3331 = vmatpush1.bf16.msra.mxu0 %v2433
    %3332 = vmatprep.subr.bf16.mxu0 %v2442
    %3333 = vmatpush1.bf16.msra.mxu0 %v2441
    %3334 = vmatprep.subr.bf16.mxu0 %v2450
    %3335 = vmatpush1.bf16.msra.mxu0 %v2449
    %3336 = vmatprep.subr.bf16.mxu0 %v2458
    %3337 = vmatpush1.bf16.msra.mxu0 %v2457
    %3338 = vmatprep.subr.bf16.mxu0 %v2466
    %3339 = vmatpush1.bf16.msra.mxu0 %v2465
    %3340 = vmatprep.subr.bf16.mxu0 %v2474
    %3341 = vmatpush1.bf16.msra.mxu0 %v2473
    %3342 = vmatprep.subr.bf16.mxu0 %v2482
    %3343 = vmatpush1.bf16.msra.mxu0 %v2481
    %3344 = vmatprep.subr.bf16.mxu0 %v2490
    %3345 = vmatpush1.bf16.msra.mxu0 %v2489
    %3346 = vmatprep.subr.bf16.mxu0 %v2498
    %3347 = vmatpush1.bf16.msra.mxu0 %v2497
    %3348 = vmatprep.mubr.bf16.mxu0 %v154
    %3349 = vmatmul.mubr.bf16.gmra.mrb[0].mxu0 %v153
    %v3350 = vpop.f32.mrb[0].mxu0
    %v3351 = vadd.f32 %v3308, %v3350
    %v3352 = vpop.f32.mrb[0].mxu0
    %v3353 = vadd.f32 %v3310, %v3352
    %v3354 = vpop.f32.mrb[0].mxu0
    %v3355 = vadd.f32 %v3312, %v3354
    %v3356 = vpop.f32.mrb[0].mxu0
    %v3357 = vadd.f32 %v3314, %v3356
    %3358 = vdwg.mxu0
    %3359 = vmatprep.subr.bf16.mxu0 %v2506
    %3360 = vmatpush1.bf16.msra.mxu0 %v2505
    %3361 = vmatprep.subr.bf16.mxu0 %v2514
    %3362 = vmatpush1.bf16.msra.mxu0 %v2513
    %3363 = vmatprep.subr.bf16.mxu0 %v2522
    %3364 = vmatpush1.bf16.msra.mxu0 %v2521
    %3365 = vmatprep.subr.bf16.mxu0 %v2530
    %3366 = vmatpush1.bf16.msra.mxu0 %v2529
    %3367 = vmatprep.subr.bf16.mxu0 %v2538
    %3368 = vmatpush1.bf16.msra.mxu0 %v2537
    %3369 = vmatprep.subr.bf16.mxu0 %v2546
    %3370 = vmatpush1.bf16.msra.mxu0 %v2545
    %3371 = vmatprep.subr.bf16.mxu0 %v2554
    %3372 = vmatpush1.bf16.msra.mxu0 %v2553
    %3373 = vmatprep.subr.bf16.mxu0 %v2562
    %3374 = vmatpush1.bf16.msra.mxu0 %v2561
    %3375 = vmatprep.subr.bf16.mxu0 %v2570
    %3376 = vmatpush1.bf16.msra.mxu0 %v2569
    %3377 = vmatprep.subr.bf16.mxu0 %v2578
    %3378 = vmatpush1.bf16.msra.mxu0 %v2577
    %3379 = vmatprep.subr.bf16.mxu0 %v2586
    %3380 = vmatpush1.bf16.msra.mxu0 %v2585
    %3381 = vmatprep.subr.bf16.mxu0 %v2594
    %3382 = vmatpush1.bf16.msra.mxu0 %v2593
    %3383 = vmatprep.subr.bf16.mxu0 %v2602
    %3384 = vmatpush1.bf16.msra.mxu0 %v2601
    %3385 = vmatprep.subr.bf16.mxu0 %v2610
    %3386 = vmatpush1.bf16.msra.mxu0 %v2609
    %3387 = vmatprep.subr.bf16.mxu0 %v2618
    %3388 = vmatpush1.bf16.msra.mxu0 %v2617
    %3389 = vmatprep.subr.bf16.mxu0 %v2626
    %3390 = vmatpush1.bf16.msra.mxu0 %v2625
    %3391 = vmatprep.mubr.bf16.mxu0 %v156
    %3392 = vmatmul.mubr.bf16.gmra.mrb[0].mxu0 %v155
    %v3393 = vpop.f32.mrb[0].mxu0
    %v3394 = vadd.f32 %v3351, %v3393
    %v3395 = vpop.f32.mrb[0].mxu0
    %v3396 = vadd.f32 %v3353, %v3395
    %v3397 = vpop.f32.mrb[0].mxu0
    %v3398 = vadd.f32 %v3355, %v3397
    %v3399 = vpop.f32.mrb[0].mxu0
    %v3400 = vadd.f32 %v3357, %v3399
    %3401 = vdwg.mxu0
    %3402 = vmatprep.subr.bf16.mxu0 %v2634
    %3403 = vmatpush1.bf16.msra.mxu0 %v2633
    %3404 = vmatprep.subr.bf16.mxu0 %v2642
    %3405 = vmatpush1.bf16.msra.mxu0 %v2641
    %3406 = vmatprep.subr.bf16.mxu0 %v2650
    %3407 = vmatpush1.bf16.msra.mxu0 %v2649
    %3408 = vmatprep.subr.bf16.mxu0 %v2658
    %3409 = vmatpush1.bf16.msra.mxu0 %v2657
    %3410 = vmatprep.subr.bf16.mxu0 %v2666
    %3411 = vmatpush1.bf16.msra.mxu0 %v2665
    %3412 = vmatprep.subr.bf16.mxu0 %v2674
    %3413 = vmatpush1.bf16.msra.mxu0 %v2673
    %3414 = vmatprep.subr.bf16.mxu0 %v2682
    %3415 = vmatpush1.bf16.msra.mxu0 %v2681
    %3416 = vmatprep.subr.bf16.mxu0 %v2690
    %3417 = vmatpush1.bf16.msra.mxu0 %v2689
    %3418 = vmatprep.subr.bf16.mxu0 %v2698
    %3419 = vmatpush1.bf16.msra.mxu0 %v2697
    %3420 = vmatprep.subr.bf16.mxu0 %v2706
    %3421 = vmatpush1.bf16.msra.mxu0 %v2705
    %3422 = vmatprep.subr.bf16.mxu0 %v2714
    %3423 = vmatpush1.bf16.msra.mxu0 %v2713
    %3424 = vmatprep.subr.bf16.mxu0 %v2722
    %3425 = vmatpush1.bf16.msra.mxu0 %v2721
    %3426 = vmatprep.subr.bf16.mxu0 %v2730
    %3427 = vmatpush1.bf16.msra.mxu0 %v2729
    %3428 = vmatprep.subr.bf16.mxu0 %v2738
    %3429 = vmatpush1.bf16.msra.mxu0 %v2737
    %3430 = vmatprep.subr.bf16.mxu0 %v2746
    %3431 = vmatpush1.bf16.msra.mxu0 %v2745
    %3432 = vmatprep.subr.bf16.mxu0 %v2754
    %3433 = vmatpush1.bf16.msra.mxu0 %v2753
    %3434 = vmatprep.mubr.bf16.mxu0 %v158
    %3435 = vmatmul.mubr.bf16.gmra.mrb[0].mxu0 %v157
    %v3436 = vpop.f32.mrb[0].mxu0
    %v3437 = vadd.f32 %v3394, %v3436
    %v3438 = vpop.f32.mrb[0].mxu0
    %v3439 = vadd.f32 %v3396, %v3438
    %v3440 = vpop.f32.mrb[0].mxu0
    %v3441 = vadd.f32 %v3398, %v3440
    %v3442 = vpop.f32.mrb[0].mxu0
    %v3443 = vadd.f32 %v3400, %v3442
    %3444 = vdwg.mxu0
    %3445 = vmatprep.subr.bf16.mxu0 %v2252
    %3446 = vmatpush1.bf16.msra.mxu0 %v2251
    %3447 = vmatprep.subr.bf16.mxu0 %v2260
    %3448 = vmatpush1.bf16.msra.mxu0 %v2259
    %3449 = vmatprep.subr.bf16.mxu0 %v2268
    %3450 = vmatpush1.bf16.msra.mxu0 %v2267
    %3451 = vmatprep.subr.bf16.mxu0 %v2276
    %3452 = vmatpush1.bf16.msra.mxu0 %v2275
    %3453 = vmatprep.subr.bf16.mxu0 %v2284
    %3454 = vmatpush1.bf16.msra.mxu0 %v2283
    %3455 = vmatprep.subr.bf16.mxu0 %v2292
    %3456 = vmatpush1.bf16.msra.mxu0 %v2291
    %3457 = vmatprep.subr.bf16.mxu0 %v2300
    %3458 = vmatpush1.bf16.msra.mxu0 %v2299
    %3459 = vmatprep.subr.bf16.mxu0 %v2308
    %3460 = vmatpush1.bf16.msra.mxu0 %v2307
    %3461 = vmatprep.subr.bf16.mxu0 %v2316
    %3462 = vmatpush1.bf16.msra.mxu0 %v2315
    %3463 = vmatprep.subr.bf16.mxu0 %v2324
    %3464 = vmatpush1.bf16.msra.mxu0 %v2323
    %3465 = vmatprep.subr.bf16.mxu0 %v2332
    %3466 = vmatpush1.bf16.msra.mxu0 %v2331
    %3467 = vmatprep.subr.bf16.mxu0 %v2340
    %3468 = vmatpush1.bf16.msra.mxu0 %v2339
    %3469 = vmatprep.subr.bf16.mxu0 %v2348
    %3470 = vmatpush1.bf16.msra.mxu0 %v2347
    %3471 = vmatprep.subr.bf16.mxu0 %v2356
    %3472 = vmatpush1.bf16.msra.mxu0 %v2355
    %3473 = vmatprep.subr.bf16.mxu0 %v2364
    %3474 = vmatpush1.bf16.msra.mxu0 %v2363
    %3475 = vmatprep.subr.bf16.mxu0 %v2372
    %3476 = vmatpush1.bf16.msra.mxu0 %v2371
    %3477 = vmatprep.mubr.bf16.mxu0 %v152
    %3478 = vmatmul.mubr.bf16.gmra.mrb[0].mxu0 %v151
    %v3479 = vpop.f32.mrb[0].mxu0
    %v3480 = vadd.f32 %v684, %v3479
    %v3481 = vpop.f32.mrb[0].mxu0
    %v3482 = vadd.f32 %v688, %v3481
    %v3483 = vpop.f32.mrb[0].mxu0
    %v3484 = vadd.f32 %v684, %v3483
    %v3485 = vpop.f32.mrb[0].mxu0
    %v3486 = vadd.f32 %v688, %v3485
    %3487 = vdwg.mxu0
    %3488 = vmatprep.subr.bf16.mxu0 %v2380
    %3489 = vmatpush1.bf16.msra.mxu0 %v2379
    %3490 = vmatprep.subr.bf16.mxu0 %v2388
    %3491 = vmatpush1.bf16.msra.mxu0 %v2387
    %3492 = vmatprep.subr.bf16.mxu0 %v2396
    %3493 = vmatpush1.bf16.msra.mxu0 %v2395
    %3494 = vmatprep.subr.bf16.mxu0 %v2404
    %3495 = vmatpush1.bf16.msra.mxu0 %v2403
    %3496 = vmatprep.subr.bf16.mxu0 %v2412
    %3497 = vmatpush1.bf16.msra.mxu0 %v2411
    %3498 = vmatprep.subr.bf16.mxu0 %v2420
    %3499 = vmatpush1.bf16.msra.mxu0 %v2419
    %3500 = vmatprep.subr.bf16.mxu0 %v2428
    %3501 = vmatpush1.bf16.msra.mxu0 %v2427
    %3502 = vmatprep.subr.bf16.mxu0 %v2436
    %3503 = vmatpush1.bf16.msra.mxu0 %v2435
    %3504 = vmatprep.subr.bf16.mxu0 %v2444
    %3505 = vmatpush1.bf16.msra.mxu0 %v2443
    %3506 = vmatprep.subr.bf16.mxu0 %v2452
    %3507 = vmatpush1.bf16.msra.mxu0 %v2451
    %3508 = vmatprep.subr.bf16.mxu0 %v2460
    %3509 = vmatpush1.bf16.msra.mxu0 %v2459
    %3510 = vmatprep.subr.bf16.mxu0 %v2468
    %3511 = vmatpush1.bf16.msra.mxu0 %v2467
    %3512 = vmatprep.subr.bf16.mxu0 %v2476
    %3513 = vmatpush1.bf16.msra.mxu0 %v2475
    %3514 = vmatprep.subr.bf16.mxu0 %v2484
    %3515 = vmatpush1.bf16.msra.mxu0 %v2483
    %3516 = vmatprep.subr.bf16.mxu0 %v2492
    %3517 = vmatpush1.bf16.msra.mxu0 %v2491
    %3518 = vmatprep.subr.bf16.mxu0 %v2500
    %3519 = vmatpush1.bf16.msra.mxu0 %v2499
    %3520 = vmatprep.mubr.bf16.mxu0 %v154
    %3521 = vmatmul.mubr.bf16.gmra.mrb[0].mxu0 %v153
    %v3522 = vpop.f32.mrb[0].mxu0
    %v3523 = vadd.f32 %v3480, %v3522
    %v3524 = vpop.f32.mrb[0].mxu0
    %v3525 = vadd.f32 %v3482, %v3524
    %v3526 = vpop.f32.mrb[0].mxu0
    %v3527 = vadd.f32 %v3484, %v3526
    %v3528 = vpop.f32.mrb[0].mxu0
    %v3529 = vadd.f32 %v3486, %v3528
    %3530 = vdwg.mxu0
    %3531 = vmatprep.subr.bf16.mxu0 %v2508
    %3532 = vmatpush1.bf16.msra.mxu0 %v2507
    %3533 = vmatprep.subr.bf16.mxu0 %v2516
    %3534 = vmatpush1.bf16.msra.mxu0 %v2515
    %3535 = vmatprep.subr.bf16.mxu0 %v2524
    %3536 = vmatpush1.bf16.msra.mxu0 %v2523
    %3537 = vmatprep.subr.bf16.mxu0 %v2532
    %3538 = vmatpush1.bf16.msra.mxu0 %v2531
    %3539 = vmatprep.subr.bf16.mxu0 %v2540
    %3540 = vmatpush1.bf16.msra.mxu0 %v2539
    %3541 = vmatprep.subr.bf16.mxu0 %v2548
    %3542 = vmatpush1.bf16.msra.mxu0 %v2547
    %3543 = vmatprep.subr.bf16.mxu0 %v2556
    %3544 = vmatpush1.bf16.msra.mxu0 %v2555
    %3545 = vmatprep.subr.bf16.mxu0 %v2564
    %3546 = vmatpush1.bf16.msra.mxu0 %v2563
    %3547 = vmatprep.subr.bf16.mxu0 %v2572
    %3548 = vmatpush1.bf16.msra.mxu0 %v2571
    %3549 = vmatprep.subr.bf16.mxu0 %v2580
    %3550 = vmatpush1.bf16.msra.mxu0 %v2579
    %3551 = vmatprep.subr.bf16.mxu0 %v2588
    %3552 = vmatpush1.bf16.msra.mxu0 %v2587
    %3553 = vmatprep.subr.bf16.mxu0 %v2596
    %3554 = vmatpush1.bf16.msra.mxu0 %v2595
    %3555 = vmatprep.subr.bf16.mxu0 %v2604
    %3556 = vmatpush1.bf16.msra.mxu0 %v2603
    %3557 = vmatprep.subr.bf16.mxu0 %v2612
    %3558 = vmatpush1.bf16.msra.mxu0 %v2611
    %3559 = vmatprep.subr.bf16.mxu0 %v2620
    %3560 = vmatpush1.bf16.msra.mxu0 %v2619
    %3561 = vmatprep.subr.bf16.mxu0 %v2628
    %3562 = vmatpush1.bf16.msra.mxu0 %v2627
    %3563 = vmatprep.mubr.bf16.mxu0 %v156
    %3564 = vmatmul.mubr.bf16.gmra.mrb[0].mxu0 %v155
    %v3565 = vpop.f32.mrb[0].mxu0
    %v3566 = vadd.f32 %v3523, %v3565
    %v3567 = vpop.f32.mrb[0].mxu0
    %v3568 = vadd.f32 %v3525, %v3567
    %v3569 = vpop.f32.mrb[0].mxu0
    %v3570 = vadd.f32 %v3527, %v3569
    %v3571 = vpop.f32.mrb[0].mxu0
    %v3572 = vadd.f32 %v3529, %v3571
    %3573 = vdwg.mxu0
    %3574 = vmatprep.subr.bf16.mxu0 %v2636
    %3575 = vmatpush1.bf16.msra.mxu0 %v2635
    %3576 = vmatprep.subr.bf16.mxu0 %v2644
    %3577 = vmatpush1.bf16.msra.mxu0 %v2643
    %3578 = vmatprep.subr.bf16.mxu0 %v2652
    %3579 = vmatpush1.bf16.msra.mxu0 %v2651
    %3580 = vmatprep.subr.bf16.mxu0 %v2660
    %3581 = vmatpush1.bf16.msra.mxu0 %v2659
    %3582 = vmatprep.subr.bf16.mxu0 %v2668
    %3583 = vmatpush1.bf16.msra.mxu0 %v2667
    %3584 = vmatprep.subr.bf16.mxu0 %v2676
    %3585 = vmatpush1.bf16.msra.mxu0 %v2675
    %3586 = vmatprep.subr.bf16.mxu0 %v2684
    %3587 = vmatpush1.bf16.msra.mxu0 %v2683
    %3588 = vmatprep.subr.bf16.mxu0 %v2692
    %3589 = vmatpush1.bf16.msra.mxu0 %v2691
    %3590 = vmatprep.subr.bf16.mxu0 %v2700
    %3591 = vmatpush1.bf16.msra.mxu0 %v2699
    %3592 = vmatprep.subr.bf16.mxu0 %v2708
    %3593 = vmatpush1.bf16.msra.mxu0 %v2707
    %3594 = vmatprep.subr.bf16.mxu0 %v2716
    %3595 = vmatpush1.bf16.msra.mxu0 %v2715
    %3596 = vmatprep.subr.bf16.mxu0 %v2724
    %3597 = vmatpush1.bf16.msra.mxu0 %v2723
    %3598 = vmatprep.subr.bf16.mxu0 %v2732
    %3599 = vmatpush1.bf16.msra.mxu0 %v2731
    %3600 = vmatprep.subr.bf16.mxu0 %v2740
    %3601 = vmatpush1.bf16.msra.mxu0 %v2739
    %3602 = vmatprep.subr.bf16.mxu0 %v2748
    %3603 = vmatpush1.bf16.msra.mxu0 %v2747
    %3604 = vmatprep.subr.bf16.mxu0 %v2756
    %3605 = vmatpush1.bf16.msra.mxu0 %v2755
    %3606 = vmatprep.mubr.bf16.mxu0 %v158
    %3607 = vmatmul.mubr.bf16.gmra.mrb[0].mxu0 %v157
    %v3608 = vpop.f32.mrb[0].mxu0
    %v3609 = vadd.f32 %v3566, %v3608
    %v3610 = vpop.f32.mrb[0].mxu0
    %v3611 = vadd.f32 %v3568, %v3610
    %v3612 = vpop.f32.mrb[0].mxu0
    %v3613 = vadd.f32 %v3570, %v3612
    %v3614 = vpop.f32.mrb[0].mxu0
    %v3615 = vadd.f32 %v3572, %v3614
    %3616 = vdwg.mxu0
    %3617 = vmatprep.subr.bf16.mxu0 %v2254
    %3618 = vmatpush1.bf16.msra.mxu0 %v2253
    %3619 = vmatprep.subr.bf16.mxu0 %v2262
    %3620 = vmatpush1.bf16.msra.mxu0 %v2261
    %3621 = vmatprep.subr.bf16.mxu0 %v2270
    %3622 = vmatpush1.bf16.msra.mxu0 %v2269
    %3623 = vmatprep.subr.bf16.mxu0 %v2278
    %3624 = vmatpush1.bf16.msra.mxu0 %v2277
    %3625 = vmatprep.subr.bf16.mxu0 %v2286
    %3626 = vmatpush1.bf16.msra.mxu0 %v2285
    %3627 = vmatprep.subr.bf16.mxu0 %v2294
    %3628 = vmatpush1.bf16.msra.mxu0 %v2293
    %3629 = vmatprep.subr.bf16.mxu0 %v2302
    %3630 = vmatpush1.bf16.msra.mxu0 %v2301
    %3631 = vmatprep.subr.bf16.mxu0 %v2310
    %3632 = vmatpush1.bf16.msra.mxu0 %v2309
    %3633 = vmatprep.subr.bf16.mxu0 %v2318
    %3634 = vmatpush1.bf16.msra.mxu0 %v2317
    %3635 = vmatprep.subr.bf16.mxu0 %v2326
    %3636 = vmatpush1.bf16.msra.mxu0 %v2325
    %3637 = vmatprep.subr.bf16.mxu0 %v2334
    %3638 = vmatpush1.bf16.msra.mxu0 %v2333
    %3639 = vmatprep.subr.bf16.mxu0 %v2342
    %3640 = vmatpush1.bf16.msra.mxu0 %v2341
    %3641 = vmatprep.subr.bf16.mxu0 %v2350
    %3642 = vmatpush1.bf16.msra.mxu0 %v2349
    %3643 = vmatprep.subr.bf16.mxu0 %v2358
    %3644 = vmatpush1.bf16.msra.mxu0 %v2357
    %3645 = vmatprep.subr.bf16.mxu0 %v2366
    %3646 = vmatpush1.bf16.msra.mxu0 %v2365
    %3647 = vmatprep.subr.bf16.mxu0 %v2374
    %3648 = vmatpush1.bf16.msra.mxu0 %v2373
    %3649 = vmatprep.mubr.bf16.mxu0 %v152
    %3650 = vmatmul.mubr.bf16.gmra.mrb[0].mxu0 %v151
    %v3651 = vpop.f32.mrb[0].mxu0
    %v3652 = vadd.f32 %v692, %v3651
    %v3653 = vpop.f32.mrb[0].mxu0
    %v3654 = vadd.f32 %v696, %v3653
    %v3655 = vpop.f32.mrb[0].mxu0
    %v3656 = vadd.f32 %v692, %v3655
    %v3657 = vpop.f32.mrb[0].mxu0
    %v3658 = vadd.f32 %v696, %v3657
    %3659 = vdwg.mxu0
    %3660 = vmatprep.subr.bf16.mxu0 %v2382
    %3661 = vmatpush1.bf16.msra.mxu0 %v2381
    %3662 = vmatprep.subr.bf16.mxu0 %v2390
    %3663 = vmatpush1.bf16.msra.mxu0 %v2389
    %3664 = vmatprep.subr.bf16.mxu0 %v2398
    %3665 = vmatpush1.bf16.msra.mxu0 %v2397
    %3666 = vmatprep.subr.bf16.mxu0 %v2406
    %3667 = vmatpush1.bf16.msra.mxu0 %v2405
    %3668 = vmatprep.subr.bf16.mxu0 %v2414
    %3669 = vmatpush1.bf16.msra.mxu0 %v2413
    %3670 = vmatprep.subr.bf16.mxu0 %v2422
    %3671 = vmatpush1.bf16.msra.mxu0 %v2421
    %3672 = vmatprep.subr.bf16.mxu0 %v2430
    %3673 = vmatpush1.bf16.msra.mxu0 %v2429
    %3674 = vmatprep.subr.bf16.mxu0 %v2438
    %3675 = vmatpush1.bf16.msra.mxu0 %v2437
    %3676 = vmatprep.subr.bf16.mxu0 %v2446
    %3677 = vmatpush1.bf16.msra.mxu0 %v2445
    %3678 = vmatprep.subr.bf16.mxu0 %v2454
    %3679 = vmatpush1.bf16.msra.mxu0 %v2453
    %3680 = vmatprep.subr.bf16.mxu0 %v2462
    %3681 = vmatpush1.bf16.msra.mxu0 %v2461
    %3682 = vmatprep.subr.bf16.mxu0 %v2470
    %3683 = vmatpush1.bf16.msra.mxu0 %v2469
    %3684 = vmatprep.subr.bf16.mxu0 %v2478
    %3685 = vmatpush1.bf16.msra.mxu0 %v2477
    %3686 = vmatprep.subr.bf16.mxu0 %v2486
    %3687 = vmatpush1.bf16.msra.mxu0 %v2485
    %3688 = vmatprep.subr.bf16.mxu0 %v2494
    %3689 = vmatpush1.bf16.msra.mxu0 %v2493
    %3690 = vmatprep.subr.bf16.mxu0 %v2502
    %3691 = vmatpush1.bf16.msra.mxu0 %v2501
    %3692 = vmatprep.mubr.bf16.mxu0 %v154
    %3693 = vmatmul.mubr.bf16.gmra.mrb[0].mxu0 %v153
    %v3694 = vpop.f32.mrb[0].mxu0
    %v3695 = vadd.f32 %v3652, %v3694
    %v3696 = vpop.f32.mrb[0].mxu0
    %v3697 = vadd.f32 %v3654, %v3696
    %v3698 = vpop.f32.mrb[0].mxu0
    %v3699 = vadd.f32 %v3656, %v3698
    %v3700 = vpop.f32.mrb[0].mxu0
    %v3701 = vadd.f32 %v3658, %v3700
    %3702 = vdwg.mxu0
    %3703 = vmatprep.subr.bf16.mxu0 %v2510
    %3704 = vmatpush1.bf16.msra.mxu0 %v2509
    %3705 = vmatprep.subr.bf16.mxu0 %v2518
    %3706 = vmatpush1.bf16.msra.mxu0 %v2517
    %3707 = vmatprep.subr.bf16.mxu0 %v2526
    %3708 = vmatpush1.bf16.msra.mxu0 %v2525
    %3709 = vmatprep.subr.bf16.mxu0 %v2534
    %3710 = vmatpush1.bf16.msra.mxu0 %v2533
    %3711 = vmatprep.subr.bf16.mxu0 %v2542
    %3712 = vmatpush1.bf16.msra.mxu0 %v2541
    %3713 = vmatprep.subr.bf16.mxu0 %v2550
    %3714 = vmatpush1.bf16.msra.mxu0 %v2549
    %3715 = vmatprep.subr.bf16.mxu0 %v2558
    %3716 = vmatpush1.bf16.msra.mxu0 %v2557
    %3717 = vmatprep.subr.bf16.mxu0 %v2566
    %3718 = vmatpush1.bf16.msra.mxu0 %v2565
    %3719 = vmatprep.subr.bf16.mxu0 %v2574
    %3720 = vmatpush1.bf16.msra.mxu0 %v2573
    %3721 = vmatprep.subr.bf16.mxu0 %v2582
    %3722 = vmatpush1.bf16.msra.mxu0 %v2581
    %3723 = vmatprep.subr.bf16.mxu0 %v2590
    %3724 = vmatpush1.bf16.msra.mxu0 %v2589
    %3725 = vmatprep.subr.bf16.mxu0 %v2598
    %3726 = vmatpush1.bf16.msra.mxu0 %v2597
    %3727 = vmatprep.subr.bf16.mxu0 %v2606
    %3728 = vmatpush1.bf16.msra.mxu0 %v2605
    %3729 = vmatprep.subr.bf16.mxu0 %v2614
    %3730 = vmatpush1.bf16.msra.mxu0 %v2613
    %3731 = vmatprep.subr.bf16.mxu0 %v2622
    %3732 = vmatpush1.bf16.msra.mxu0 %v2621
    %3733 = vmatprep.subr.bf16.mxu0 %v2630
    %3734 = vmatpush1.bf16.msra.mxu0 %v2629
    %3735 = vmatprep.mubr.bf16.mxu0 %v156
    %3736 = vmatmul.mubr.bf16.gmra.mrb[0].mxu0 %v155
    %v3737 = vpop.f32.mrb[0].mxu0
    %v3738 = vadd.f32 %v3695, %v3737
    %v3739 = vpop.f32.mrb[0].mxu0
    %v3740 = vadd.f32 %v3697, %v3739
    %v3741 = vpop.f32.mrb[0].mxu0
    %v3742 = vadd.f32 %v3699, %v3741
    %v3743 = vpop.f32.mrb[0].mxu0
    %v3744 = vadd.f32 %v3701, %v3743
    %3745 = vdwg.mxu0
    %3746 = vmatprep.subr.bf16.mxu0 %v2638
    %3747 = vmatpush1.bf16.msra.mxu0 %v2637
    %3748 = vmatprep.subr.bf16.mxu0 %v2646
    %3749 = vmatpush1.bf16.msra.mxu0 %v2645
    %3750 = vmatprep.subr.bf16.mxu0 %v2654
    %3751 = vmatpush1.bf16.msra.mxu0 %v2653
    %3752 = vmatprep.subr.bf16.mxu0 %v2662
    %3753 = vmatpush1.bf16.msra.mxu0 %v2661
    %3754 = vmatprep.subr.bf16.mxu0 %v2670
    %3755 = vmatpush1.bf16.msra.mxu0 %v2669
    %3756 = vmatprep.subr.bf16.mxu0 %v2678
    %3757 = vmatpush1.bf16.msra.mxu0 %v2677
    %3758 = vmatprep.subr.bf16.mxu0 %v2686
    %3759 = vmatpush1.bf16.msra.mxu0 %v2685
    %3760 = vmatprep.subr.bf16.mxu0 %v2694
    %3761 = vmatpush1.bf16.msra.mxu0 %v2693
    %3762 = vmatprep.subr.bf16.mxu0 %v2702
    %3763 = vmatpush1.bf16.msra.mxu0 %v2701
    %3764 = vmatprep.subr.bf16.mxu0 %v2710
    %3765 = vmatpush1.bf16.msra.mxu0 %v2709
    %3766 = vmatprep.subr.bf16.mxu0 %v2718
    %3767 = vmatpush1.bf16.msra.mxu0 %v2717
    %3768 = vmatprep.subr.bf16.mxu0 %v2726
    %3769 = vmatpush1.bf16.msra.mxu0 %v2725
    %3770 = vmatprep.subr.bf16.mxu0 %v2734
    %3771 = vmatpush1.bf16.msra.mxu0 %v2733
    %3772 = vmatprep.subr.bf16.mxu0 %v2742
    %3773 = vmatpush1.bf16.msra.mxu0 %v2741
    %3774 = vmatprep.subr.bf16.mxu0 %v2750
    %3775 = vmatpush1.bf16.msra.mxu0 %v2749
    %3776 = vmatprep.subr.bf16.mxu0 %v2758
    %3777 = vmatpush1.bf16.msra.mxu0 %v2757
    %3778 = vmatprep.mubr.bf16.mxu0 %v158
    %3779 = vmatmul.mubr.bf16.gmra.mrb[0].mxu0 %v157
    %v3780 = vpop.f32.mrb[0].mxu0
    %v3781 = vadd.f32 %v3738, %v3780
    %v3782 = vpop.f32.mrb[0].mxu0
    %v3783 = vadd.f32 %v3740, %v3782
    %v3784 = vpop.f32.mrb[0].mxu0
    %v3785 = vadd.f32 %v3742, %v3784
    %v3786 = vpop.f32.mrb[0].mxu0
    %v3787 = vadd.f32 %v3744, %v3786
    %3788 = vdwg.mxu0
    %3789 = vmatprep.subr.bf16.mxu0 %v2256
    %3790 = vmatpush1.bf16.msra.mxu0 %v2255
    %3791 = vmatprep.subr.bf16.mxu0 %v2264
    %3792 = vmatpush1.bf16.msra.mxu0 %v2263
    %3793 = vmatprep.subr.bf16.mxu0 %v2272
    %3794 = vmatpush1.bf16.msra.mxu0 %v2271
    %3795 = vmatprep.subr.bf16.mxu0 %v2280
    %3796 = vmatpush1.bf16.msra.mxu0 %v2279
    %3797 = vmatprep.subr.bf16.mxu0 %v2288
    %3798 = vmatpush1.bf16.msra.mxu0 %v2287
    %3799 = vmatprep.subr.bf16.mxu0 %v2296
    %3800 = vmatpush1.bf16.msra.mxu0 %v2295
    %3801 = vmatprep.subr.bf16.mxu0 %v2304
    %3802 = vmatpush1.bf16.msra.mxu0 %v2303
    %3803 = vmatprep.subr.bf16.mxu0 %v2312
    %3804 = vmatpush1.bf16.msra.mxu0 %v2311
    %3805 = vmatprep.subr.bf16.mxu0 %v2320
    %3806 = vmatpush1.bf16.msra.mxu0 %v2319
    %3807 = vmatprep.subr.bf16.mxu0 %v2328
    %3808 = vmatpush1.bf16.msra.mxu0 %v2327
    %3809 = vmatprep.subr.bf16.mxu0 %v2336
    %3810 = vmatpush1.bf16.msra.mxu0 %v2335
    %3811 = vmatprep.subr.bf16.mxu0 %v2344
    %3812 = vmatpush1.bf16.msra.mxu0 %v2343
    %3813 = vmatprep.subr.bf16.mxu0 %v2352
    %3814 = vmatpush1.bf16.msra.mxu0 %v2351
    %3815 = vmatprep.subr.bf16.mxu0 %v2360
    %3816 = vmatpush1.bf16.msra.mxu0 %v2359
    %3817 = vmatprep.subr.bf16.mxu0 %v2368
    %3818 = vmatpush1.bf16.msra.mxu0 %v2367
    %3819 = vmatprep.subr.bf16.mxu0 %v2376
    %3820 = vmatpush1.bf16.msra.mxu0 %v2375
    %3821 = vmatprep.mubr.bf16.mxu0 %v152
    %3822 = vmatmul.mubr.bf16.gmra.mrb[0].mxu0 %v151
    %v3823 = vpop.f32.mrb[0].mxu0
    %v3824 = vadd.f32 %v700, %v3823
    %v3825 = vpop.f32.mrb[0].mxu0
    %v3826 = vadd.f32 %v704, %v3825
    %v3827 = vpop.f32.mrb[0].mxu0
    %v3828 = vadd.f32 %v700, %v3827
    %v3829 = vpop.f32.mrb[0].mxu0
    %v3830 = vadd.f32 %v704, %v3829
    %3831 = vdwg.mxu0
    %3832 = vmatprep.subr.bf16.mxu0 %v2384
    %3833 = vmatpush1.bf16.msra.mxu0 %v2383
    %3834 = vmatprep.subr.bf16.mxu0 %v2392
    %3835 = vmatpush1.bf16.msra.mxu0 %v2391
    %3836 = vmatprep.subr.bf16.mxu0 %v2400
    %3837 = vmatpush1.bf16.msra.mxu0 %v2399
    %3838 = vmatprep.subr.bf16.mxu0 %v2408
    %3839 = vmatpush1.bf16.msra.mxu0 %v2407
    %3840 = vmatprep.subr.bf16.mxu0 %v2416
    %3841 = vmatpush1.bf16.msra.mxu0 %v2415
    %3842 = vmatprep.subr.bf16.mxu0 %v2424
    %3843 = vmatpush1.bf16.msra.mxu0 %v2423
    %3844 = vmatprep.subr.bf16.mxu0 %v2432
    %3845 = vmatpush1.bf16.msra.mxu0 %v2431
    %3846 = vmatprep.subr.bf16.mxu0 %v2440
    %3847 = vmatpush1.bf16.msra.mxu0 %v2439
    %3848 = vmatprep.subr.bf16.mxu0 %v2448
    %3849 = vmatpush1.bf16.msra.mxu0 %v2447
    %3850 = vmatprep.subr.bf16.mxu0 %v2456
    %3851 = vmatpush1.bf16.msra.mxu0 %v2455
    %3852 = vmatprep.subr.bf16.mxu0 %v2464
    %3853 = vmatpush1.bf16.msra.mxu0 %v2463
    %3854 = vmatprep.subr.bf16.mxu0 %v2472
    %3855 = vmatpush1.bf16.msra.mxu0 %v2471
    %3856 = vmatprep.subr.bf16.mxu0 %v2480
    %3857 = vmatpush1.bf16.msra.mxu0 %v2479
    %3858 = vmatprep.subr.bf16.mxu0 %v2488
    %3859 = vmatpush1.bf16.msra.mxu0 %v2487
    %3860 = vmatprep.subr.bf16.mxu0 %v2496
    %3861 = vmatpush1.bf16.msra.mxu0 %v2495
    %3862 = vmatprep.subr.bf16.mxu0 %v2504
    %3863 = vmatpush1.bf16.msra.mxu0 %v2503
    %3864 = vmatprep.mubr.bf16.mxu0 %v154
    %3865 = vmatmul.mubr.bf16.gmra.mrb[0].mxu0 %v153
    %v3866 = vpop.f32.mrb[0].mxu0
    %v3867 = vadd.f32 %v3824, %v3866
    %v3868 = vpop.f32.mrb[0].mxu0
    %v3869 = vadd.f32 %v3826, %v3868
    %v3870 = vpop.f32.mrb[0].mxu0
    %v3871 = vadd.f32 %v3828, %v3870
    %v3872 = vpop.f32.mrb[0].mxu0
    %v3873 = vadd.f32 %v3830, %v3872
    %3874 = vdwg.mxu0
    %3875 = vmatprep.subr.bf16.mxu0 %v2512
    %3876 = vmatpush1.bf16.msra.mxu0 %v2511
    %3877 = vmatprep.subr.bf16.mxu0 %v2520
    %3878 = vmatpush1.bf16.msra.mxu0 %v2519
    %3879 = vmatprep.subr.bf16.mxu0 %v2528
    %3880 = vmatpush1.bf16.msra.mxu0 %v2527
    %3881 = vmatprep.subr.bf16.mxu0 %v2536
    %3882 = vmatpush1.bf16.msra.mxu0 %v2535
    %3883 = vmatprep.subr.bf16.mxu0 %v2544
    %3884 = vmatpush1.bf16.msra.mxu0 %v2543
    %3885 = vmatprep.subr.bf16.mxu0 %v2552
    %3886 = vmatpush1.bf16.msra.mxu0 %v2551
    %3887 = vmatprep.subr.bf16.mxu0 %v2560
    %3888 = vmatpush1.bf16.msra.mxu0 %v2559
    %3889 = vmatprep.subr.bf16.mxu0 %v2568
    %3890 = vmatpush1.bf16.msra.mxu0 %v2567
    %3891 = vmatprep.subr.bf16.mxu0 %v2576
    %3892 = vmatpush1.bf16.msra.mxu0 %v2575
    %3893 = vmatprep.subr.bf16.mxu0 %v2584
    %3894 = vmatpush1.bf16.msra.mxu0 %v2583
    %3895 = vmatprep.subr.bf16.mxu0 %v2592
    %3896 = vmatpush1.bf16.msra.mxu0 %v2591
    %3897 = vmatprep.subr.bf16.mxu0 %v2600
    %3898 = vmatpush1.bf16.msra.mxu0 %v2599
    %3899 = vmatprep.subr.bf16.mxu0 %v2608
    %3900 = vmatpush1.bf16.msra.mxu0 %v2607
    %3901 = vmatprep.subr.bf16.mxu0 %v2616
    %3902 = vmatpush1.bf16.msra.mxu0 %v2615
    %3903 = vmatprep.subr.bf16.mxu0 %v2624
    %3904 = vmatpush1.bf16.msra.mxu0 %v2623
    %3905 = vmatprep.subr.bf16.mxu0 %v2632
    %3906 = vmatpush1.bf16.msra.mxu0 %v2631
    %3907 = vmatprep.mubr.bf16.mxu0 %v156
    %3908 = vmatmul.mubr.bf16.gmra.mrb[0].mxu0 %v155
    %v3909 = vpop.f32.mrb[0].mxu0
    %v3910 = vadd.f32 %v3867, %v3909
    %v3911 = vpop.f32.mrb[0].mxu0
    %v3912 = vadd.f32 %v3869, %v3911
    %v3913 = vpop.f32.mrb[0].mxu0
    %v3914 = vadd.f32 %v3871, %v3913
    %v3915 = vpop.f32.mrb[0].mxu0
    %v3916 = vadd.f32 %v3873, %v3915
    %3917 = vdwg.mxu0
    %3918 = vmatprep.subr.bf16.mxu0 %v2640
    %3919 = vmatpush1.bf16.msra.mxu0 %v2639
    %3920 = vmatprep.subr.bf16.mxu0 %v2648
    %3921 = vmatpush1.bf16.msra.mxu0 %v2647
    %3922 = vmatprep.subr.bf16.mxu0 %v2656
    %3923 = vmatpush1.bf16.msra.mxu0 %v2655
    %3924 = vmatprep.subr.bf16.mxu0 %v2664
    %3925 = vmatpush1.bf16.msra.mxu0 %v2663
    %3926 = vmatprep.subr.bf16.mxu0 %v2672
    %3927 = vmatpush1.bf16.msra.mxu0 %v2671
    %3928 = vmatprep.subr.bf16.mxu0 %v2680
    %3929 = vmatpush1.bf16.msra.mxu0 %v2679
    %3930 = vmatprep.subr.bf16.mxu0 %v2688
    %3931 = vmatpush1.bf16.msra.mxu0 %v2687
    %3932 = vmatprep.subr.bf16.mxu0 %v2696
    %3933 = vmatpush1.bf16.msra.mxu0 %v2695
    %3934 = vmatprep.subr.bf16.mxu0 %v2704
    %3935 = vmatpush1.bf16.msra.mxu0 %v2703
    %3936 = vmatprep.subr.bf16.mxu0 %v2712
    %3937 = vmatpush1.bf16.msra.mxu0 %v2711
    %3938 = vmatprep.subr.bf16.mxu0 %v2720
    %3939 = vmatpush1.bf16.msra.mxu0 %v2719
    %3940 = vmatprep.subr.bf16.mxu0 %v2728
    %3941 = vmatpush1.bf16.msra.mxu0 %v2727
    %3942 = vmatprep.subr.bf16.mxu0 %v2736
    %3943 = vmatpush1.bf16.msra.mxu0 %v2735
    %3944 = vmatprep.subr.bf16.mxu0 %v2744
    %3945 = vmatpush1.bf16.msra.mxu0 %v2743
    %3946 = vmatprep.subr.bf16.mxu0 %v2752
    %3947 = vmatpush1.bf16.msra.mxu0 %v2751
    %3948 = vmatprep.subr.bf16.mxu0 %v2760
    %3949 = vmatpush1.bf16.msra.mxu0 %v2759
    %3950 = vmatprep.mubr.bf16.mxu0 %v158
    %3951 = vmatmul.mubr.bf16.gmra.mrb[0].mxu0 %v157
    %v3952 = vpop.f32.mrb[0].mxu0
    %v3953 = vadd.f32 %v3910, %v3952
    %v3954 = vpop.f32.mrb[0].mxu0
    %v3955 = vadd.f32 %v3912, %v3954
    %v3956 = vpop.f32.mrb[0].mxu0
    %v3957 = vadd.f32 %v3914, %v3956
    %v3958 = vpop.f32.mrb[0].mxu0
    %v3959 = vadd.f32 %v3916, %v3958
    %3960 = vdwg.mxu0
    %vm3961 = vcmp.gt.f32.partialorder %v3437, 0.0
    %vm3962 = vcmp.gt.f32.partialorder %v3439, 0.0
    %vm3963 = vcmp.gt.f32.partialorder %v3609, 0.0
    %vm3964 = vcmp.gt.f32.partialorder %v3611, 0.0
    %vm3965 = vcmp.gt.f32.partialorder %v3781, 0.0
    %vm3966 = vcmp.gt.f32.partialorder %v3783, 0.0
    %vm3967 = vcmp.gt.f32.partialorder %v3953, 0.0
    %vm3968 = vcmp.gt.f32.partialorder %v3955, 0.0
    %vm3969 = vcmp.gt.f32.partialorder %v3441, 0.0
    %vm3970 = vcmp.gt.f32.partialorder %v3443, 0.0
    %vm3971 = vcmp.gt.f32.partialorder %v3613, 0.0
    %vm3972 = vcmp.gt.f32.partialorder %v3615, 0.0
    %vm3973 = vcmp.gt.f32.partialorder %v3785, 0.0
    %vm3974 = vcmp.gt.f32.partialorder %v3787, 0.0
    %vm3975 = vcmp.gt.f32.partialorder %v3957, 0.0
    %vm3976 = vcmp.gt.f32.partialorder %v3959, 0.0
    %v3977 = vmul.f32 %v3437, 0.2
    %v3978 = vmul.f32 %v3439, 0.2
    %v3979 = vmul.f32 %v3609, 0.2
    %v3980 = vmul.f32 %v3611, 0.2
    %v3981 = vmul.f32 %v3781, 0.2
    %v3982 = vmul.f32 %v3783, 0.2
    %v3983 = vmul.f32 %v3953, 0.2
    %v3984 = vmul.f32 %v3955, 0.2
    %v3985 = vmul.f32 %v3441, 0.2
    %v3986 = vmul.f32 %v3443, 0.2
    %v3987 = vmul.f32 %v3613, 0.2
    %v3988 = vmul.f32 %v3615, 0.2
    %v3989 = vmul.f32 %v3785, 0.2
    %v3990 = vmul.f32 %v3787, 0.2
    %v3991 = vmul.f32 %v3957, 0.2
    %v3992 = vmul.f32 %v3959, 0.2
    %v3993 = vsel %vm3961, %v3437, %v3977
    %v3994 = vsel %vm3962, %v3439, %v3978
    %v3995 = vsel %vm3963, %v3609, %v3979
    %v3996 = vsel %vm3964, %v3611, %v3980
    %v3997 = vsel %vm3965, %v3781, %v3981
    %v3998 = vsel %vm3966, %v3783, %v3982
    %v3999 = vsel %vm3967, %v3953, %v3983
    %v4000 = vsel %vm3968, %v3955, %v3984
    %v4001 = vsel %vm3969, %v3441, %v3985
    %v4002 = vsel %vm3970, %v3443, %v3986
    %v4003 = vsel %vm3971, %v3613, %v3987
    %v4004 = vsel %vm3972, %v3615, %v3988
    %v4005 = vsel %vm3973, %v3785, %v3989
    %v4006 = vsel %vm3974, %v3787, %v3990
    %v4007 = vsel %vm3975, %v3957, %v3991
    %v4008 = vsel %vm3976, %v3959, %v3992
    %v4009 = vpack.c.bf16 %v4001, %v3993
    %v4010 = vpack.c.bf16 %v4002, %v3994
    %v4011 = vpack.c.bf16 %v4003, %v3995
    %v4012 = vpack.c.bf16 %v4004, %v3996
    %v4013 = vpack.c.bf16 %v4005, %v3997
    %v4014 = vpack.c.bf16 %v4006, %v3998
    %v4015 = vpack.c.bf16 %v4007, %v3999
    %v4016 = vpack.c.bf16 %v4008, %v4000
    %v4017 = vld [vmem:[#allocation8] sm:$0xff]
    %v4018 = vld [vmem:[#allocation8 + $0x8] sm:$0xff]
    %v4019 = vld [vmem:[#allocation8 + $0x10] sm:$0xff]
    %v4020 = vld [vmem:[#allocation8 + $0x18] sm:$0xff]
    %v4021 = vld [vmem:[#allocation8 + $0x20] sm:$0xff]
    %v4022 = vld [vmem:[#allocation8 + $0x28] sm:$0xff]
    %v4023 = vld [vmem:[#allocation8 + $0x30] sm:$0xff]
    %v4024 = vld [vmem:[#allocation8 + $0x38] sm:$0xff]
    %v4025 = vld [vmem:[#allocation8 + $0x40] sm:$0xff]
    %v4026 = vld [vmem:[#allocation8 + $0x48] sm:$0xff]
    %v4027 = vld [vmem:[#allocation8 + $0x50] sm:$0xff]
    %v4028 = vld [vmem:[#allocation8 + $0x58] sm:$0xff]
    %v4029 = vld [vmem:[#allocation8 + $0x60] sm:$0xff]
    %v4030 = vld [vmem:[#allocation8 + $0x68] sm:$0xff]
    %v4031 = vld [vmem:[#allocation8 + $0x70] sm:$0xff]
    %v4032 = vld [vmem:[#allocation8 + $0x78] sm:$0xff]
    %v4033 = vld [vmem:[#allocation8 + $0x80] sm:$0xff]
    %v4034 = vld [vmem:[#allocation8 + $0x88] sm:$0xff]
    %v4035 = vld [vmem:[#allocation8 + $0x90] sm:$0xff]
    %v4036 = vld [vmem:[#allocation8 + $0x98] sm:$0xff]
    %v4037 = vld [vmem:[#allocation8 + $0xa0] sm:$0xff]
    %v4038 = vld [vmem:[#allocation8 + $0xa8] sm:$0xff]
    %v4039 = vld [vmem:[#allocation8 + $0xb0] sm:$0xff]
    %v4040 = vld [vmem:[#allocation8 + $0xb8] sm:$0xff]
    %v4041 = vld [vmem:[#allocation8 + $0xc0] sm:$0xff]
    %v4042 = vld [vmem:[#allocation8 + $0xc8] sm:$0xff]
    %v4043 = vld [vmem:[#allocation8 + $0xd0] sm:$0xff]
    %v4044 = vld [vmem:[#allocation8 + $0xd8] sm:$0xff]
    %v4045 = vld [vmem:[#allocation8 + $0xe0] sm:$0xff]
    %v4046 = vld [vmem:[#allocation8 + $0xe8] sm:$0xff]
    %v4047 = vld [vmem:[#allocation8 + $0xf0] sm:$0xff]
    %v4048 = vld [vmem:[#allocation8 + $0xf8] sm:$0xff]
    %v4049 = vld [vmem:[#allocation8 + $0x100] sm:$0xff]
    %v4050 = vld [vmem:[#allocation8 + $0x108] sm:$0xff]
    %v4051 = vld [vmem:[#allocation8 + $0x110] sm:$0xff]
    %v4052 = vld [vmem:[#allocation8 + $0x118] sm:$0xff]
    %v4053 = vld [vmem:[#allocation8 + $0x120] sm:$0xff]
    %v4054 = vld [vmem:[#allocation8 + $0x128] sm:$0xff]
    %v4055 = vld [vmem:[#allocation8 + $0x130] sm:$0xff]
    %v4056 = vld [vmem:[#allocation8 + $0x138] sm:$0xff]
    %v4057 = vld [vmem:[#allocation8 + $0x140] sm:$0xff]
    %v4058 = vld [vmem:[#allocation8 + $0x148] sm:$0xff]
    %v4059 = vld [vmem:[#allocation8 + $0x150] sm:$0xff]
    %v4060 = vld [vmem:[#allocation8 + $0x158] sm:$0xff]
    %v4061 = vld [vmem:[#allocation8 + $0x160] sm:$0xff]
    %v4062 = vld [vmem:[#allocation8 + $0x168] sm:$0xff]
    %v4063 = vld [vmem:[#allocation8 + $0x170] sm:$0xff]
    %v4064 = vld [vmem:[#allocation8 + $0x178] sm:$0xff]
    %v4065 = vld [vmem:[#allocation8 + $0x180] sm:$0xff]
    %v4066 = vld [vmem:[#allocation8 + $0x188] sm:$0xff]
    %v4067 = vld [vmem:[#allocation8 + $0x190] sm:$0xff]
    %v4068 = vld [vmem:[#allocation8 + $0x198] sm:$0xff]
    %v4069 = vld [vmem:[#allocation8 + $0x1a0] sm:$0xff]
    %v4070 = vld [vmem:[#allocation8 + $0x1a8] sm:$0xff]
    %v4071 = vld [vmem:[#allocation8 + $0x1b0] sm:$0xff]
    %v4072 = vld [vmem:[#allocation8 + $0x1b8] sm:$0xff]
    %v4073 = vld [vmem:[#allocation8 + $0x1c0] sm:$0xff]
    %v4074 = vld [vmem:[#allocation8 + $0x1c8] sm:$0xff]
    %v4075 = vld [vmem:[#allocation8 + $0x1d0] sm:$0xff]
    %v4076 = vld [vmem:[#allocation8 + $0x1d8] sm:$0xff]
    %v4077 = vld [vmem:[#allocation8 + $0x1e0] sm:$0xff]
    %v4078 = vld [vmem:[#allocation8 + $0x1e8] sm:$0xff]
    %v4079 = vld [vmem:[#allocation8 + $0x1f0] sm:$0xff]
    %v4080 = vld [vmem:[#allocation8 + $0x1f8] sm:$0xff]
    %v4081 = vld [vmem:[#allocation8 + $0x200] sm:$0xff]
    %v4082 = vld [vmem:[#allocation8 + $0x208] sm:$0xff]
    %v4083 = vld [vmem:[#allocation8 + $0x210] sm:$0xff]
    %v4084 = vld [vmem:[#allocation8 + $0x218] sm:$0xff]
    %v4085 = vld [vmem:[#allocation8 + $0x220] sm:$0xff]
    %v4086 = vld [vmem:[#allocation8 + $0x228] sm:$0xff]
    %v4087 = vld [vmem:[#allocation8 + $0x230] sm:$0xff]
    %v4088 = vld [vmem:[#allocation8 + $0x238] sm:$0xff]
    %v4089 = vld [vmem:[#allocation8 + $0x240] sm:$0xff]
    %v4090 = vld [vmem:[#allocation8 + $0x248] sm:$0xff]
    %v4091 = vld [vmem:[#allocation8 + $0x250] sm:$0xff]
    %v4092 = vld [vmem:[#allocation8 + $0x258] sm:$0xff]
    %v4093 = vld [vmem:[#allocation8 + $0x260] sm:$0xff]
    %v4094 = vld [vmem:[#allocation8 + $0x268] sm:$0xff]
    %v4095 = vld [vmem:[#allocation8 + $0x270] sm:$0xff]
    %v4096 = vld [vmem:[#allocation8 + $0x278] sm:$0xff]
    %v4097 = vld [vmem:[#allocation8 + $0x280] sm:$0xff]
    %v4098 = vld [vmem:[#allocation8 + $0x288] sm:$0xff]
    %v4099 = vld [vmem:[#allocation8 + $0x290] sm:$0xff]
    %v4100 = vld [vmem:[#allocation8 + $0x298] sm:$0xff]
    %v4101 = vld [vmem:[#allocation8 + $0x2a0] sm:$0xff]
    %v4102 = vld [vmem:[#allocation8 + $0x2a8] sm:$0xff]
    %v4103 = vld [vmem:[#allocation8 + $0x2b0] sm:$0xff]
    %v4104 = vld [vmem:[#allocation8 + $0x2b8] sm:$0xff]
    %v4105 = vld [vmem:[#allocation8 + $0x2c0] sm:$0xff]
    %v4106 = vld [vmem:[#allocation8 + $0x2c8] sm:$0xff]
    %v4107 = vld [vmem:[#allocation8 + $0x2d0] sm:$0xff]
    %v4108 = vld [vmem:[#allocation8 + $0x2d8] sm:$0xff]
    %v4109 = vld [vmem:[#allocation8 + $0x2e0] sm:$0xff]
    %v4110 = vld [vmem:[#allocation8 + $0x2e8] sm:$0xff]
    %v4111 = vld [vmem:[#allocation8 + $0x2f0] sm:$0xff]
    %v4112 = vld [vmem:[#allocation8 + $0x2f8] sm:$0xff]
    %v4113 = vld [vmem:[#allocation8 + $0x300] sm:$0xff]
    %v4114 = vld [vmem:[#allocation8 + $0x308] sm:$0xff]
    %v4115 = vld [vmem:[#allocation8 + $0x310] sm:$0xff]
    %v4116 = vld [vmem:[#allocation8 + $0x318] sm:$0xff]
    %v4117 = vld [vmem:[#allocation8 + $0x320] sm:$0xff]
    %v4118 = vld [vmem:[#allocation8 + $0x328] sm:$0xff]
    %v4119 = vld [vmem:[#allocation8 + $0x330] sm:$0xff]
    %v4120 = vld [vmem:[#allocation8 + $0x338] sm:$0xff]
    %v4121 = vld [vmem:[#allocation8 + $0x340] sm:$0xff]
    %v4122 = vld [vmem:[#allocation8 + $0x348] sm:$0xff]
    %v4123 = vld [vmem:[#allocation8 + $0x350] sm:$0xff]
    %v4124 = vld [vmem:[#allocation8 + $0x358] sm:$0xff]
    %v4125 = vld [vmem:[#allocation8 + $0x360] sm:$0xff]
    %v4126 = vld [vmem:[#allocation8 + $0x368] sm:$0xff]
    %v4127 = vld [vmem:[#allocation8 + $0x370] sm:$0xff]
    %v4128 = vld [vmem:[#allocation8 + $0x378] sm:$0xff]
    %v4129 = vld [vmem:[#allocation8 + $0x380] sm:$0xff]
    %v4130 = vld [vmem:[#allocation8 + $0x388] sm:$0xff]
    %v4131 = vld [vmem:[#allocation8 + $0x390] sm:$0xff]
    %v4132 = vld [vmem:[#allocation8 + $0x398] sm:$0xff]
    %v4133 = vld [vmem:[#allocation8 + $0x3a0] sm:$0xff]
    %v4134 = vld [vmem:[#allocation8 + $0x3a8] sm:$0xff]
    %v4135 = vld [vmem:[#allocation8 + $0x3b0] sm:$0xff]
    %v4136 = vld [vmem:[#allocation8 + $0x3b8] sm:$0xff]
    %v4137 = vld [vmem:[#allocation8 + $0x3c0] sm:$0xff]
    %v4138 = vld [vmem:[#allocation8 + $0x3c8] sm:$0xff]
    %v4139 = vld [vmem:[#allocation8 + $0x3d0] sm:$0xff]
    %v4140 = vld [vmem:[#allocation8 + $0x3d8] sm:$0xff]
    %v4141 = vld [vmem:[#allocation8 + $0x3e0] sm:$0xff]
    %v4142 = vld [vmem:[#allocation8 + $0x3e8] sm:$0xff]
    %v4143 = vld [vmem:[#allocation8 + $0x3f0] sm:$0xff]
    %v4144 = vld [vmem:[#allocation8 + $0x3f8] sm:$0xff]
    %v4145 = vld [vmem:[#allocation8 + $0x400] sm:$0xff]
    %v4146 = vld [vmem:[#allocation8 + $0x408] sm:$0xff]
    %v4147 = vld [vmem:[#allocation8 + $0x410] sm:$0xff]
    %v4148 = vld [vmem:[#allocation8 + $0x418] sm:$0xff]
    %v4149 = vld [vmem:[#allocation8 + $0x420] sm:$0xff]
    %v4150 = vld [vmem:[#allocation8 + $0x428] sm:$0xff]
    %v4151 = vld [vmem:[#allocation8 + $0x430] sm:$0xff]
    %v4152 = vld [vmem:[#allocation8 + $0x438] sm:$0xff]
    %v4153 = vld [vmem:[#allocation8 + $0x440] sm:$0xff]
    %v4154 = vld [vmem:[#allocation8 + $0x448] sm:$0xff]
    %v4155 = vld [vmem:[#allocation8 + $0x450] sm:$0xff]
    %v4156 = vld [vmem:[#allocation8 + $0x458] sm:$0xff]
    %v4157 = vld [vmem:[#allocation8 + $0x460] sm:$0xff]
    %v4158 = vld [vmem:[#allocation8 + $0x468] sm:$0xff]
    %v4159 = vld [vmem:[#allocation8 + $0x470] sm:$0xff]
    %v4160 = vld [vmem:[#allocation8 + $0x478] sm:$0xff]
    %v4161 = vld [vmem:[#allocation8 + $0x480] sm:$0xff]
    %v4162 = vld [vmem:[#allocation8 + $0x488] sm:$0xff]
    %v4163 = vld [vmem:[#allocation8 + $0x490] sm:$0xff]
    %v4164 = vld [vmem:[#allocation8 + $0x498] sm:$0xff]
    %v4165 = vld [vmem:[#allocation8 + $0x4a0] sm:$0xff]
    %v4166 = vld [vmem:[#allocation8 + $0x4a8] sm:$0xff]
    %v4167 = vld [vmem:[#allocation8 + $0x4b0] sm:$0xff]
    %v4168 = vld [vmem:[#allocation8 + $0x4b8] sm:$0xff]
    %v4169 = vld [vmem:[#allocation8 + $0x4c0] sm:$0xff]
    %v4170 = vld [vmem:[#allocation8 + $0x4c8] sm:$0xff]
    %v4171 = vld [vmem:[#allocation8 + $0x4d0] sm:$0xff]
    %v4172 = vld [vmem:[#allocation8 + $0x4d8] sm:$0xff]
    %v4173 = vld [vmem:[#allocation8 + $0x4e0] sm:$0xff]
    %v4174 = vld [vmem:[#allocation8 + $0x4e8] sm:$0xff]
    %v4175 = vld [vmem:[#allocation8 + $0x4f0] sm:$0xff]
    %v4176 = vld [vmem:[#allocation8 + $0x4f8] sm:$0xff]
    %v4177 = vld [vmem:[#allocation8 + $0x500] sm:$0xff]
    %v4178 = vld [vmem:[#allocation8 + $0x508] sm:$0xff]
    %v4179 = vld [vmem:[#allocation8 + $0x510] sm:$0xff]
    %v4180 = vld [vmem:[#allocation8 + $0x518] sm:$0xff]
    %v4181 = vld [vmem:[#allocation8 + $0x520] sm:$0xff]
    %v4182 = vld [vmem:[#allocation8 + $0x528] sm:$0xff]
    %v4183 = vld [vmem:[#allocation8 + $0x530] sm:$0xff]
    %v4184 = vld [vmem:[#allocation8 + $0x538] sm:$0xff]
    %v4185 = vld [vmem:[#allocation8 + $0x540] sm:$0xff]
    %v4186 = vld [vmem:[#allocation8 + $0x548] sm:$0xff]
    %v4187 = vld [vmem:[#allocation8 + $0x550] sm:$0xff]
    %v4188 = vld [vmem:[#allocation8 + $0x558] sm:$0xff]
    %v4189 = vld [vmem:[#allocation8 + $0x560] sm:$0xff]
    %v4190 = vld [vmem:[#allocation8 + $0x568] sm:$0xff]
    %v4191 = vld [vmem:[#allocation8 + $0x570] sm:$0xff]
    %v4192 = vld [vmem:[#allocation8 + $0x578] sm:$0xff]
    %v4193 = vld [vmem:[#allocation8 + $0x580] sm:$0xff]
    %v4194 = vld [vmem:[#allocation8 + $0x588] sm:$0xff]
    %v4195 = vld [vmem:[#allocation8 + $0x590] sm:$0xff]
    %v4196 = vld [vmem:[#allocation8 + $0x598] sm:$0xff]
    %v4197 = vld [vmem:[#allocation8 + $0x5a0] sm:$0xff]
    %v4198 = vld [vmem:[#allocation8 + $0x5a8] sm:$0xff]
    %v4199 = vld [vmem:[#allocation8 + $0x5b0] sm:$0xff]
    %v4200 = vld [vmem:[#allocation8 + $0x5b8] sm:$0xff]
    %v4201 = vld [vmem:[#allocation8 + $0x5c0] sm:$0xff]
    %v4202 = vld [vmem:[#allocation8 + $0x5c8] sm:$0xff]
    %v4203 = vld [vmem:[#allocation8 + $0x5d0] sm:$0xff]
    %v4204 = vld [vmem:[#allocation8 + $0x5d8] sm:$0xff]
    %v4205 = vld [vmem:[#allocation8 + $0x5e0] sm:$0xff]
    %v4206 = vld [vmem:[#allocation8 + $0x5e8] sm:$0xff]
    %v4207 = vld [vmem:[#allocation8 + $0x5f0] sm:$0xff]
    %v4208 = vld [vmem:[#allocation8 + $0x5f8] sm:$0xff]
    %v4209 = vld [vmem:[#allocation8 + $0x600] sm:$0xff]
    %v4210 = vld [vmem:[#allocation8 + $0x608] sm:$0xff]
    %v4211 = vld [vmem:[#allocation8 + $0x610] sm:$0xff]
    %v4212 = vld [vmem:[#allocation8 + $0x618] sm:$0xff]
    %v4213 = vld [vmem:[#allocation8 + $0x620] sm:$0xff]
    %v4214 = vld [vmem:[#allocation8 + $0x628] sm:$0xff]
    %v4215 = vld [vmem:[#allocation8 + $0x630] sm:$0xff]
    %v4216 = vld [vmem:[#allocation8 + $0x638] sm:$0xff]
    %v4217 = vld [vmem:[#allocation8 + $0x640] sm:$0xff]
    %v4218 = vld [vmem:[#allocation8 + $0x648] sm:$0xff]
    %v4219 = vld [vmem:[#allocation8 + $0x650] sm:$0xff]
    %v4220 = vld [vmem:[#allocation8 + $0x658] sm:$0xff]
    %v4221 = vld [vmem:[#allocation8 + $0x660] sm:$0xff]
    %v4222 = vld [vmem:[#allocation8 + $0x668] sm:$0xff]
    %v4223 = vld [vmem:[#allocation8 + $0x670] sm:$0xff]
    %v4224 = vld [vmem:[#allocation8 + $0x678] sm:$0xff]
    %v4225 = vld [vmem:[#allocation8 + $0x680] sm:$0xff]
    %v4226 = vld [vmem:[#allocation8 + $0x688] sm:$0xff]
    %v4227 = vld [vmem:[#allocation8 + $0x690] sm:$0xff]
    %v4228 = vld [vmem:[#allocation8 + $0x698] sm:$0xff]
    %v4229 = vld [vmem:[#allocation8 + $0x6a0] sm:$0xff]
    %v4230 = vld [vmem:[#allocation8 + $0x6a8] sm:$0xff]
    %v4231 = vld [vmem:[#allocation8 + $0x6b0] sm:$0xff]
    %v4232 = vld [vmem:[#allocation8 + $0x6b8] sm:$0xff]
    %v4233 = vld [vmem:[#allocation8 + $0x6c0] sm:$0xff]
    %v4234 = vld [vmem:[#allocation8 + $0x6c8] sm:$0xff]
    %v4235 = vld [vmem:[#allocation8 + $0x6d0] sm:$0xff]
    %v4236 = vld [vmem:[#allocation8 + $0x6d8] sm:$0xff]
    %v4237 = vld [vmem:[#allocation8 + $0x6e0] sm:$0xff]
    %v4238 = vld [vmem:[#allocation8 + $0x6e8] sm:$0xff]
    %v4239 = vld [vmem:[#allocation8 + $0x6f0] sm:$0xff]
    %v4240 = vld [vmem:[#allocation8 + $0x6f8] sm:$0xff]
    %v4241 = vld [vmem:[#allocation8 + $0x700] sm:$0xff]
    %v4242 = vld [vmem:[#allocation8 + $0x708] sm:$0xff]
    %v4243 = vld [vmem:[#allocation8 + $0x710] sm:$0xff]
    %v4244 = vld [vmem:[#allocation8 + $0x718] sm:$0xff]
    %v4245 = vld [vmem:[#allocation8 + $0x720] sm:$0xff]
    %v4246 = vld [vmem:[#allocation8 + $0x728] sm:$0xff]
    %v4247 = vld [vmem:[#allocation8 + $0x730] sm:$0xff]
    %v4248 = vld [vmem:[#allocation8 + $0x738] sm:$0xff]
    %v4249 = vld [vmem:[#allocation8 + $0x740] sm:$0xff]
    %v4250 = vld [vmem:[#allocation8 + $0x748] sm:$0xff]
    %v4251 = vld [vmem:[#allocation8 + $0x750] sm:$0xff]
    %v4252 = vld [vmem:[#allocation8 + $0x758] sm:$0xff]
    %v4253 = vld [vmem:[#allocation8 + $0x760] sm:$0xff]
    %v4254 = vld [vmem:[#allocation8 + $0x768] sm:$0xff]
    %v4255 = vld [vmem:[#allocation8 + $0x770] sm:$0xff]
    %v4256 = vld [vmem:[#allocation8 + $0x778] sm:$0xff]
    %v4257 = vld [vmem:[#allocation8 + $0x780] sm:$0xff]
    %v4258 = vld [vmem:[#allocation8 + $0x788] sm:$0xff]
    %v4259 = vld [vmem:[#allocation8 + $0x790] sm:$0xff]
    %v4260 = vld [vmem:[#allocation8 + $0x798] sm:$0xff]
    %v4261 = vld [vmem:[#allocation8 + $0x7a0] sm:$0xff]
    %v4262 = vld [vmem:[#allocation8 + $0x7a8] sm:$0xff]
    %v4263 = vld [vmem:[#allocation8 + $0x7b0] sm:$0xff]
    %v4264 = vld [vmem:[#allocation8 + $0x7b8] sm:$0xff]
    %v4265 = vld [vmem:[#allocation8 + $0x7c0] sm:$0xff]
    %v4266 = vld [vmem:[#allocation8 + $0x7c8] sm:$0xff]
    %v4267 = vld [vmem:[#allocation8 + $0x7d0] sm:$0xff]
    %v4268 = vld [vmem:[#allocation8 + $0x7d8] sm:$0xff]
    %v4269 = vld [vmem:[#allocation8 + $0x7e0] sm:$0xff]
    %v4270 = vld [vmem:[#allocation8 + $0x7e8] sm:$0xff]
    %v4271 = vld [vmem:[#allocation8 + $0x7f0] sm:$0xff]
    %v4272 = vld [vmem:[#allocation8 + $0x7f8] sm:$0xff]
    %v4273 = vld [vmem:[#allocation10] sm:$0xf]
    %v4275 = vlaneseq
    %v4276 = vshrl.u32 %v4275, 7
    %v4277 = vsub.s32 0, %v4276
    %v4278 = vrot.slane %v4273, %v4277
    %v4279 = vlaneseq
    %v4280 = vshrl.u32 %v4279, 7
    %v4281 = vsub.s32 1, %v4280
    %v4282 = vrot.slane %v4273, %v4281
    %v4283 = vlaneseq
    %v4284 = vshrl.u32 %v4283, 7
    %v4285 = vsub.s32 2, %v4284
    %v4286 = vrot.slane %v4273, %v4285
    %v4287 = vlaneseq
    %v4288 = vshrl.u32 %v4287, 7
    %v4289 = vsub.s32 3, %v4288
    %v4290 = vrot.slane %v4273, %v4289
    %v4551 = vunpack.c.l.b16 %v4017
    %v4552 = vunpack.c.h.b16 %v4017
    %v4553 = vunpack.c.l.b16 %v4018
    %v4554 = vunpack.c.h.b16 %v4018
    %v4555 = vunpack.c.l.b16 %v4019
    %v4556 = vunpack.c.h.b16 %v4019
    %v4557 = vunpack.c.l.b16 %v4020
    %v4558 = vunpack.c.h.b16 %v4020
    %v4559 = vunpack.c.l.b16 %v4021
    %v4560 = vunpack.c.h.b16 %v4021
    %v4561 = vunpack.c.l.b16 %v4022
    %v4562 = vunpack.c.h.b16 %v4022
    %v4563 = vunpack.c.l.b16 %v4023
    %v4564 = vunpack.c.h.b16 %v4023
    %v4565 = vunpack.c.l.b16 %v4024
    %v4566 = vunpack.c.h.b16 %v4024
    %v4567 = vunpack.c.l.b16 %v4025
    %v4568 = vunpack.c.h.b16 %v4025
    %v4569 = vunpack.c.l.b16 %v4026
    %v4570 = vunpack.c.h.b16 %v4026
    %v4571 = vunpack.c.l.b16 %v4027
    %v4572 = vunpack.c.h.b16 %v4027
    %v4573 = vunpack.c.l.b16 %v4028
    %v4574 = vunpack.c.h.b16 %v4028
    %v4575 = vunpack.c.l.b16 %v4029
    %v4576 = vunpack.c.h.b16 %v4029
    %v4577 = vunpack.c.l.b16 %v4030
    %v4578 = vunpack.c.h.b16 %v4030
    %v4579 = vunpack.c.l.b16 %v4031
    %v4580 = vunpack.c.h.b16 %v4031
    %v4581 = vunpack.c.l.b16 %v4032
    %v4582 = vunpack.c.h.b16 %v4032
    %v4583 = vunpack.c.l.b16 %v4033
    %v4584 = vunpack.c.h.b16 %v4033
    %v4585 = vunpack.c.l.b16 %v4034
    %v4586 = vunpack.c.h.b16 %v4034
    %v4587 = vunpack.c.l.b16 %v4035
    %v4588 = vunpack.c.h.b16 %v4035
    %v4589 = vunpack.c.l.b16 %v4036
    %v4590 = vunpack.c.h.b16 %v4036
    %v4591 = vunpack.c.l.b16 %v4037
    %v4592 = vunpack.c.h.b16 %v4037
    %v4593 = vunpack.c.l.b16 %v4038
    %v4594 = vunpack.c.h.b16 %v4038
    %v4595 = vunpack.c.l.b16 %v4039
    %v4596 = vunpack.c.h.b16 %v4039
    %v4597 = vunpack.c.l.b16 %v4040
    %v4598 = vunpack.c.h.b16 %v4040
    %v4599 = vunpack.c.l.b16 %v4041
    %v4600 = vunpack.c.h.b16 %v4041
    %v4601 = vunpack.c.l.b16 %v4042
    %v4602 = vunpack.c.h.b16 %v4042
    %v4603 = vunpack.c.l.b16 %v4043
    %v4604 = vunpack.c.h.b16 %v4043
    %v4605 = vunpack.c.l.b16 %v4044
    %v4606 = vunpack.c.h.b16 %v4044
    %v4607 = vunpack.c.l.b16 %v4045
    %v4608 = vunpack.c.h.b16 %v4045
    %v4609 = vunpack.c.l.b16 %v4046
    %v4610 = vunpack.c.h.b16 %v4046
    %v4611 = vunpack.c.l.b16 %v4047
    %v4612 = vunpack.c.h.b16 %v4047
    %v4613 = vunpack.c.l.b16 %v4048
    %v4614 = vunpack.c.h.b16 %v4048
    %v4615 = vunpack.c.l.b16 %v4049
    %v4616 = vunpack.c.h.b16 %v4049
    %v4617 = vunpack.c.l.b16 %v4050
    %v4618 = vunpack.c.h.b16 %v4050
    %v4619 = vunpack.c.l.b16 %v4051
    %v4620 = vunpack.c.h.b16 %v4051
    %v4621 = vunpack.c.l.b16 %v4052
    %v4622 = vunpack.c.h.b16 %v4052
    %v4623 = vunpack.c.l.b16 %v4053
    %v4624 = vunpack.c.h.b16 %v4053
    %v4625 = vunpack.c.l.b16 %v4054
    %v4626 = vunpack.c.h.b16 %v4054
    %v4627 = vunpack.c.l.b16 %v4055
    %v4628 = vunpack.c.h.b16 %v4055
    %v4629 = vunpack.c.l.b16 %v4056
    %v4630 = vunpack.c.h.b16 %v4056
    %v4631 = vunpack.c.l.b16 %v4057
    %v4632 = vunpack.c.h.b16 %v4057
    %v4633 = vunpack.c.l.b16 %v4058
    %v4634 = vunpack.c.h.b16 %v4058
    %v4635 = vunpack.c.l.b16 %v4059
    %v4636 = vunpack.c.h.b16 %v4059
    %v4637 = vunpack.c.l.b16 %v4060
    %v4638 = vunpack.c.h.b16 %v4060
    %v4639 = vunpack.c.l.b16 %v4061
    %v4640 = vunpack.c.h.b16 %v4061
    %v4641 = vunpack.c.l.b16 %v4062
    %v4642 = vunpack.c.h.b16 %v4062
    %v4643 = vunpack.c.l.b16 %v4063
    %v4644 = vunpack.c.h.b16 %v4063
    %v4645 = vunpack.c.l.b16 %v4064
    %v4646 = vunpack.c.h.b16 %v4064
    %v4647 = vunpack.c.l.b16 %v4065
    %v4648 = vunpack.c.h.b16 %v4065
    %v4649 = vunpack.c.l.b16 %v4066
    %v4650 = vunpack.c.h.b16 %v4066
    %v4651 = vunpack.c.l.b16 %v4067
    %v4652 = vunpack.c.h.b16 %v4067
    %v4653 = vunpack.c.l.b16 %v4068
    %v4654 = vunpack.c.h.b16 %v4068
    %v4655 = vunpack.c.l.b16 %v4069
    %v4656 = vunpack.c.h.b16 %v4069
    %v4657 = vunpack.c.l.b16 %v4070
    %v4658 = vunpack.c.h.b16 %v4070
    %v4659 = vunpack.c.l.b16 %v4071
    %v4660 = vunpack.c.h.b16 %v4071
    %v4661 = vunpack.c.l.b16 %v4072
    %v4662 = vunpack.c.h.b16 %v4072
    %v4663 = vunpack.c.l.b16 %v4073
    %v4664 = vunpack.c.h.b16 %v4073
    %v4665 = vunpack.c.l.b16 %v4074
    %v4666 = vunpack.c.h.b16 %v4074
    %v4667 = vunpack.c.l.b16 %v4075
    %v4668 = vunpack.c.h.b16 %v4075
    %v4669 = vunpack.c.l.b16 %v4076
    %v4670 = vunpack.c.h.b16 %v4076
    %v4671 = vunpack.c.l.b16 %v4077
    %v4672 = vunpack.c.h.b16 %v4077
    %v4673 = vunpack.c.l.b16 %v4078
    %v4674 = vunpack.c.h.b16 %v4078
    %v4675 = vunpack.c.l.b16 %v4079
    %v4676 = vunpack.c.h.b16 %v4079
    %v4677 = vunpack.c.l.b16 %v4080
    %v4678 = vunpack.c.h.b16 %v4080
    %v4679 = vunpack.c.l.b16 %v4081
    %v4680 = vunpack.c.h.b16 %v4081
    %v4681 = vunpack.c.l.b16 %v4082
    %v4682 = vunpack.c.h.b16 %v4082
    %v4683 = vunpack.c.l.b16 %v4083
    %v4684 = vunpack.c.h.b16 %v4083
    %v4685 = vunpack.c.l.b16 %v4084
    %v4686 = vunpack.c.h.b16 %v4084
    %v4687 = vunpack.c.l.b16 %v4085
    %v4688 = vunpack.c.h.b16 %v4085
    %v4689 = vunpack.c.l.b16 %v4086
    %v4690 = vunpack.c.h.b16 %v4086
    %v4691 = vunpack.c.l.b16 %v4087
    %v4692 = vunpack.c.h.b16 %v4087
    %v4693 = vunpack.c.l.b16 %v4088
    %v4694 = vunpack.c.h.b16 %v4088
    %v4695 = vunpack.c.l.b16 %v4089
    %v4696 = vunpack.c.h.b16 %v4089
    %v4697 = vunpack.c.l.b16 %v4090
    %v4698 = vunpack.c.h.b16 %v4090
    %v4699 = vunpack.c.l.b16 %v4091
    %v4700 = vunpack.c.h.b16 %v4091
    %v4701 = vunpack.c.l.b16 %v4092
    %v4702 = vunpack.c.h.b16 %v4092
    %v4703 = vunpack.c.l.b16 %v4093
    %v4704 = vunpack.c.h.b16 %v4093
    %v4705 = vunpack.c.l.b16 %v4094
    %v4706 = vunpack.c.h.b16 %v4094
    %v4707 = vunpack.c.l.b16 %v4095
    %v4708 = vunpack.c.h.b16 %v4095
    %v4709 = vunpack.c.l.b16 %v4096
    %v4710 = vunpack.c.h.b16 %v4096
    %v4711 = vunpack.c.l.b16 %v4097
    %v4712 = vunpack.c.h.b16 %v4097
    %v4713 = vunpack.c.l.b16 %v4098
    %v4714 = vunpack.c.h.b16 %v4098
    %v4715 = vunpack.c.l.b16 %v4099
    %v4716 = vunpack.c.h.b16 %v4099
    %v4717 = vunpack.c.l.b16 %v4100
    %v4718 = vunpack.c.h.b16 %v4100
    %v4719 = vunpack.c.l.b16 %v4101
    %v4720 = vunpack.c.h.b16 %v4101
    %v4721 = vunpack.c.l.b16 %v4102
    %v4722 = vunpack.c.h.b16 %v4102
    %v4723 = vunpack.c.l.b16 %v4103
    %v4724 = vunpack.c.h.b16 %v4103
    %v4725 = vunpack.c.l.b16 %v4104
    %v4726 = vunpack.c.h.b16 %v4104
    %v4727 = vunpack.c.l.b16 %v4105
    %v4728 = vunpack.c.h.b16 %v4105
    %v4729 = vunpack.c.l.b16 %v4106
    %v4730 = vunpack.c.h.b16 %v4106
    %v4731 = vunpack.c.l.b16 %v4107
    %v4732 = vunpack.c.h.b16 %v4107
    %v4733 = vunpack.c.l.b16 %v4108
    %v4734 = vunpack.c.h.b16 %v4108
    %v4735 = vunpack.c.l.b16 %v4109
    %v4736 = vunpack.c.h.b16 %v4109
    %v4737 = vunpack.c.l.b16 %v4110
    %v4738 = vunpack.c.h.b16 %v4110
    %v4739 = vunpack.c.l.b16 %v4111
    %v4740 = vunpack.c.h.b16 %v4111
    %v4741 = vunpack.c.l.b16 %v4112
    %v4742 = vunpack.c.h.b16 %v4112
    %v4743 = vunpack.c.l.b16 %v4113
    %v4744 = vunpack.c.h.b16 %v4113
    %v4745 = vunpack.c.l.b16 %v4114
    %v4746 = vunpack.c.h.b16 %v4114
    %v4747 = vunpack.c.l.b16 %v4115
    %v4748 = vunpack.c.h.b16 %v4115
    %v4749 = vunpack.c.l.b16 %v4116
    %v4750 = vunpack.c.h.b16 %v4116
    %v4751 = vunpack.c.l.b16 %v4117
    %v4752 = vunpack.c.h.b16 %v4117
    %v4753 = vunpack.c.l.b16 %v4118
    %v4754 = vunpack.c.h.b16 %v4118
    %v4755 = vunpack.c.l.b16 %v4119
    %v4756 = vunpack.c.h.b16 %v4119
    %v4757 = vunpack.c.l.b16 %v4120
    %v4758 = vunpack.c.h.b16 %v4120
    %v4759 = vunpack.c.l.b16 %v4121
    %v4760 = vunpack.c.h.b16 %v4121
    %v4761 = vunpack.c.l.b16 %v4122
    %v4762 = vunpack.c.h.b16 %v4122
    %v4763 = vunpack.c.l.b16 %v4123
    %v4764 = vunpack.c.h.b16 %v4123
    %v4765 = vunpack.c.l.b16 %v4124
    %v4766 = vunpack.c.h.b16 %v4124
    %v4767 = vunpack.c.l.b16 %v4125
    %v4768 = vunpack.c.h.b16 %v4125
    %v4769 = vunpack.c.l.b16 %v4126
    %v4770 = vunpack.c.h.b16 %v4126
    %v4771 = vunpack.c.l.b16 %v4127
    %v4772 = vunpack.c.h.b16 %v4127
    %v4773 = vunpack.c.l.b16 %v4128
    %v4774 = vunpack.c.h.b16 %v4128
    %v4775 = vunpack.c.l.b16 %v4129
    %v4776 = vunpack.c.h.b16 %v4129
    %v4777 = vunpack.c.l.b16 %v4130
    %v4778 = vunpack.c.h.b16 %v4130
    %v4779 = vunpack.c.l.b16 %v4131
    %v4780 = vunpack.c.h.b16 %v4131
    %v4781 = vunpack.c.l.b16 %v4132
    %v4782 = vunpack.c.h.b16 %v4132
    %v4783 = vunpack.c.l.b16 %v4133
    %v4784 = vunpack.c.h.b16 %v4133
    %v4785 = vunpack.c.l.b16 %v4134
    %v4786 = vunpack.c.h.b16 %v4134
    %v4787 = vunpack.c.l.b16 %v4135
    %v4788 = vunpack.c.h.b16 %v4135
    %v4789 = vunpack.c.l.b16 %v4136
    %v4790 = vunpack.c.h.b16 %v4136
    %v4791 = vunpack.c.l.b16 %v4137
    %v4792 = vunpack.c.h.b16 %v4137
    %v4793 = vunpack.c.l.b16 %v4138
    %v4794 = vunpack.c.h.b16 %v4138
    %v4795 = vunpack.c.l.b16 %v4139
    %v4796 = vunpack.c.h.b16 %v4139
    %v4797 = vunpack.c.l.b16 %v4140
    %v4798 = vunpack.c.h.b16 %v4140
    %v4799 = vunpack.c.l.b16 %v4141
    %v4800 = vunpack.c.h.b16 %v4141
    %v4801 = vunpack.c.l.b16 %v4142
    %v4802 = vunpack.c.h.b16 %v4142
    %v4803 = vunpack.c.l.b16 %v4143
    %v4804 = vunpack.c.h.b16 %v4143
    %v4805 = vunpack.c.l.b16 %v4144
    %v4806 = vunpack.c.h.b16 %v4144
    %v4807 = vunpack.c.l.b16 %v4145
    %v4808 = vunpack.c.h.b16 %v4145
    %v4809 = vunpack.c.l.b16 %v4146
    %v4810 = vunpack.c.h.b16 %v4146
    %v4811 = vunpack.c.l.b16 %v4147
    %v4812 = vunpack.c.h.b16 %v4147
    %v4813 = vunpack.c.l.b16 %v4148
    %v4814 = vunpack.c.h.b16 %v4148
    %v4815 = vunpack.c.l.b16 %v4149
    %v4816 = vunpack.c.h.b16 %v4149
    %v4817 = vunpack.c.l.b16 %v4150
    %v4818 = vunpack.c.h.b16 %v4150
    %v4819 = vunpack.c.l.b16 %v4151
    %v4820 = vunpack.c.h.b16 %v4151
    %v4821 = vunpack.c.l.b16 %v4152
    %v4822 = vunpack.c.h.b16 %v4152
    %v4823 = vunpack.c.l.b16 %v4153
    %v4824 = vunpack.c.h.b16 %v4153
    %v4825 = vunpack.c.l.b16 %v4154
    %v4826 = vunpack.c.h.b16 %v4154
    %v4827 = vunpack.c.l.b16 %v4155
    %v4828 = vunpack.c.h.b16 %v4155
    %v4829 = vunpack.c.l.b16 %v4156
    %v4830 = vunpack.c.h.b16 %v4156
    %v4831 = vunpack.c.l.b16 %v4157
    %v4832 = vunpack.c.h.b16 %v4157
    %v4833 = vunpack.c.l.b16 %v4158
    %v4834 = vunpack.c.h.b16 %v4158
    %v4835 = vunpack.c.l.b16 %v4159
    %v4836 = vunpack.c.h.b16 %v4159
    %v4837 = vunpack.c.l.b16 %v4160
    %v4838 = vunpack.c.h.b16 %v4160
    %v4839 = vunpack.c.l.b16 %v4161
    %v4840 = vunpack.c.h.b16 %v4161
    %v4841 = vunpack.c.l.b16 %v4162
    %v4842 = vunpack.c.h.b16 %v4162
    %v4843 = vunpack.c.l.b16 %v4163
    %v4844 = vunpack.c.h.b16 %v4163
    %v4845 = vunpack.c.l.b16 %v4164
    %v4846 = vunpack.c.h.b16 %v4164
    %v4847 = vunpack.c.l.b16 %v4165
    %v4848 = vunpack.c.h.b16 %v4165
    %v4849 = vunpack.c.l.b16 %v4166
    %v4850 = vunpack.c.h.b16 %v4166
    %v4851 = vunpack.c.l.b16 %v4167
    %v4852 = vunpack.c.h.b16 %v4167
    %v4853 = vunpack.c.l.b16 %v4168
    %v4854 = vunpack.c.h.b16 %v4168
    %v4855 = vunpack.c.l.b16 %v4169
    %v4856 = vunpack.c.h.b16 %v4169
    %v4857 = vunpack.c.l.b16 %v4170
    %v4858 = vunpack.c.h.b16 %v4170
    %v4859 = vunpack.c.l.b16 %v4171
    %v4860 = vunpack.c.h.b16 %v4171
    %v4861 = vunpack.c.l.b16 %v4172
    %v4862 = vunpack.c.h.b16 %v4172
    %v4863 = vunpack.c.l.b16 %v4173
    %v4864 = vunpack.c.h.b16 %v4173
    %v4865 = vunpack.c.l.b16 %v4174
    %v4866 = vunpack.c.h.b16 %v4174
    %v4867 = vunpack.c.l.b16 %v4175
    %v4868 = vunpack.c.h.b16 %v4175
    %v4869 = vunpack.c.l.b16 %v4176
    %v4870 = vunpack.c.h.b16 %v4176
    %v4871 = vunpack.c.l.b16 %v4177
    %v4872 = vunpack.c.h.b16 %v4177
    %v4873 = vunpack.c.l.b16 %v4178
    %v4874 = vunpack.c.h.b16 %v4178
    %v4875 = vunpack.c.l.b16 %v4179
    %v4876 = vunpack.c.h.b16 %v4179
    %v4877 = vunpack.c.l.b16 %v4180
    %v4878 = vunpack.c.h.b16 %v4180
    %v4879 = vunpack.c.l.b16 %v4181
    %v4880 = vunpack.c.h.b16 %v4181
    %v4881 = vunpack.c.l.b16 %v4182
    %v4882 = vunpack.c.h.b16 %v4182
    %v4883 = vunpack.c.l.b16 %v4183
    %v4884 = vunpack.c.h.b16 %v4183
    %v4885 = vunpack.c.l.b16 %v4184
    %v4886 = vunpack.c.h.b16 %v4184
    %v4887 = vunpack.c.l.b16 %v4185
    %v4888 = vunpack.c.h.b16 %v4185
    %v4889 = vunpack.c.l.b16 %v4186
    %v4890 = vunpack.c.h.b16 %v4186
    %v4891 = vunpack.c.l.b16 %v4187
    %v4892 = vunpack.c.h.b16 %v4187
    %v4893 = vunpack.c.l.b16 %v4188
    %v4894 = vunpack.c.h.b16 %v4188
    %v4895 = vunpack.c.l.b16 %v4189
    %v4896 = vunpack.c.h.b16 %v4189
    %v4897 = vunpack.c.l.b16 %v4190
    %v4898 = vunpack.c.h.b16 %v4190
    %v4899 = vunpack.c.l.b16 %v4191
    %v4900 = vunpack.c.h.b16 %v4191
    %v4901 = vunpack.c.l.b16 %v4192
    %v4902 = vunpack.c.h.b16 %v4192
    %v4903 = vunpack.c.l.b16 %v4193
    %v4904 = vunpack.c.h.b16 %v4193
    %v4905 = vunpack.c.l.b16 %v4194
    %v4906 = vunpack.c.h.b16 %v4194
    %v4907 = vunpack.c.l.b16 %v4195
    %v4908 = vunpack.c.h.b16 %v4195
    %v4909 = vunpack.c.l.b16 %v4196
    %v4910 = vunpack.c.h.b16 %v4196
    %v4911 = vunpack.c.l.b16 %v4197
    %v4912 = vunpack.c.h.b16 %v4197
    %v4913 = vunpack.c.l.b16 %v4198
    %v4914 = vunpack.c.h.b16 %v4198
    %v4915 = vunpack.c.l.b16 %v4199
    %v4916 = vunpack.c.h.b16 %v4199
    %v4917 = vunpack.c.l.b16 %v4200
    %v4918 = vunpack.c.h.b16 %v4200
    %v4919 = vunpack.c.l.b16 %v4201
    %v4920 = vunpack.c.h.b16 %v4201
    %v4921 = vunpack.c.l.b16 %v4202
    %v4922 = vunpack.c.h.b16 %v4202
    %v4923 = vunpack.c.l.b16 %v4203
    %v4924 = vunpack.c.h.b16 %v4203
    %v4925 = vunpack.c.l.b16 %v4204
    %v4926 = vunpack.c.h.b16 %v4204
    %v4927 = vunpack.c.l.b16 %v4205
    %v4928 = vunpack.c.h.b16 %v4205
    %v4929 = vunpack.c.l.b16 %v4206
    %v4930 = vunpack.c.h.b16 %v4206
    %v4931 = vunpack.c.l.b16 %v4207
    %v4932 = vunpack.c.h.b16 %v4207
    %v4933 = vunpack.c.l.b16 %v4208
    %v4934 = vunpack.c.h.b16 %v4208
    %v4935 = vunpack.c.l.b16 %v4209
    %v4936 = vunpack.c.h.b16 %v4209
    %v4937 = vunpack.c.l.b16 %v4210
    %v4938 = vunpack.c.h.b16 %v4210
    %v4939 = vunpack.c.l.b16 %v4211
    %v4940 = vunpack.c.h.b16 %v4211
    %v4941 = vunpack.c.l.b16 %v4212
    %v4942 = vunpack.c.h.b16 %v4212
    %v4943 = vunpack.c.l.b16 %v4213
    %v4944 = vunpack.c.h.b16 %v4213
    %v4945 = vunpack.c.l.b16 %v4214
    %v4946 = vunpack.c.h.b16 %v4214
    %v4947 = vunpack.c.l.b16 %v4215
    %v4948 = vunpack.c.h.b16 %v4215
    %v4949 = vunpack.c.l.b16 %v4216
    %v4950 = vunpack.c.h.b16 %v4216
    %v4951 = vunpack.c.l.b16 %v4217
    %v4952 = vunpack.c.h.b16 %v4217
    %v4953 = vunpack.c.l.b16 %v4218
    %v4954 = vunpack.c.h.b16 %v4218
    %v4955 = vunpack.c.l.b16 %v4219
    %v4956 = vunpack.c.h.b16 %v4219
    %v4957 = vunpack.c.l.b16 %v4220
    %v4958 = vunpack.c.h.b16 %v4220
    %v4959 = vunpack.c.l.b16 %v4221
    %v4960 = vunpack.c.h.b16 %v4221
    %v4961 = vunpack.c.l.b16 %v4222
    %v4962 = vunpack.c.h.b16 %v4222
    %v4963 = vunpack.c.l.b16 %v4223
    %v4964 = vunpack.c.h.b16 %v4223
    %v4965 = vunpack.c.l.b16 %v4224
    %v4966 = vunpack.c.h.b16 %v4224
    %v4967 = vunpack.c.l.b16 %v4225
    %v4968 = vunpack.c.h.b16 %v4225
    %v4969 = vunpack.c.l.b16 %v4226
    %v4970 = vunpack.c.h.b16 %v4226
    %v4971 = vunpack.c.l.b16 %v4227
    %v4972 = vunpack.c.h.b16 %v4227
    %v4973 = vunpack.c.l.b16 %v4228
    %v4974 = vunpack.c.h.b16 %v4228
    %v4975 = vunpack.c.l.b16 %v4229
    %v4976 = vunpack.c.h.b16 %v4229
    %v4977 = vunpack.c.l.b16 %v4230
    %v4978 = vunpack.c.h.b16 %v4230
    %v4979 = vunpack.c.l.b16 %v4231
    %v4980 = vunpack.c.h.b16 %v4231
    %v4981 = vunpack.c.l.b16 %v4232
    %v4982 = vunpack.c.h.b16 %v4232
    %v4983 = vunpack.c.l.b16 %v4233
    %v4984 = vunpack.c.h.b16 %v4233
    %v4985 = vunpack.c.l.b16 %v4234
    %v4986 = vunpack.c.h.b16 %v4234
    %v4987 = vunpack.c.l.b16 %v4235
    %v4988 = vunpack.c.h.b16 %v4235
    %v4989 = vunpack.c.l.b16 %v4236
    %v4990 = vunpack.c.h.b16 %v4236
    %v4991 = vunpack.c.l.b16 %v4237
    %v4992 = vunpack.c.h.b16 %v4237
    %v4993 = vunpack.c.l.b16 %v4238
    %v4994 = vunpack.c.h.b16 %v4238
    %v4995 = vunpack.c.l.b16 %v4239
    %v4996 = vunpack.c.h.b16 %v4239
    %v4997 = vunpack.c.l.b16 %v4240
    %v4998 = vunpack.c.h.b16 %v4240
    %v4999 = vunpack.c.l.b16 %v4241
    %v5000 = vunpack.c.h.b16 %v4241
    %v5001 = vunpack.c.l.b16 %v4242
    %v5002 = vunpack.c.h.b16 %v4242
    %v5003 = vunpack.c.l.b16 %v4243
    %v5004 = vunpack.c.h.b16 %v4243
    %v5005 = vunpack.c.l.b16 %v4244
    %v5006 = vunpack.c.h.b16 %v4244
    %v5007 = vunpack.c.l.b16 %v4245
    %v5008 = vunpack.c.h.b16 %v4245
    %v5009 = vunpack.c.l.b16 %v4246
    %v5010 = vunpack.c.h.b16 %v4246
    %v5011 = vunpack.c.l.b16 %v4247
    %v5012 = vunpack.c.h.b16 %v4247
    %v5013 = vunpack.c.l.b16 %v4248
    %v5014 = vunpack.c.h.b16 %v4248
    %v5015 = vunpack.c.l.b16 %v4249
    %v5016 = vunpack.c.h.b16 %v4249
    %v5017 = vunpack.c.l.b16 %v4250
    %v5018 = vunpack.c.h.b16 %v4250
    %v5019 = vunpack.c.l.b16 %v4251
    %v5020 = vunpack.c.h.b16 %v4251
    %v5021 = vunpack.c.l.b16 %v4252
    %v5022 = vunpack.c.h.b16 %v4252
    %v5023 = vunpack.c.l.b16 %v4253
    %v5024 = vunpack.c.h.b16 %v4253
    %v5025 = vunpack.c.l.b16 %v4254
    %v5026 = vunpack.c.h.b16 %v4254
    %v5027 = vunpack.c.l.b16 %v4255
    %v5028 = vunpack.c.h.b16 %v4255
    %v5029 = vunpack.c.l.b16 %v4256
    %v5030 = vunpack.c.h.b16 %v4256
    %v5031 = vunpack.c.l.b16 %v4257
    %v5032 = vunpack.c.h.b16 %v4257
    %v5033 = vunpack.c.l.b16 %v4258
    %v5034 = vunpack.c.h.b16 %v4258
    %v5035 = vunpack.c.l.b16 %v4259
    %v5036 = vunpack.c.h.b16 %v4259
    %v5037 = vunpack.c.l.b16 %v4260
    %v5038 = vunpack.c.h.b16 %v4260
    %v5039 = vunpack.c.l.b16 %v4261
    %v5040 = vunpack.c.h.b16 %v4261
    %v5041 = vunpack.c.l.b16 %v4262
    %v5042 = vunpack.c.h.b16 %v4262
    %v5043 = vunpack.c.l.b16 %v4263
    %v5044 = vunpack.c.h.b16 %v4263
    %v5045 = vunpack.c.l.b16 %v4264
    %v5046 = vunpack.c.h.b16 %v4264
    %v5047 = vunpack.c.l.b16 %v4265
    %v5048 = vunpack.c.h.b16 %v4265
    %v5049 = vunpack.c.l.b16 %v4266
    %v5050 = vunpack.c.h.b16 %v4266
    %v5051 = vunpack.c.l.b16 %v4267
    %v5052 = vunpack.c.h.b16 %v4267
    %v5053 = vunpack.c.l.b16 %v4268
    %v5054 = vunpack.c.h.b16 %v4268
    %v5055 = vunpack.c.l.b16 %v4269
    %v5056 = vunpack.c.h.b16 %v4269
    %v5057 = vunpack.c.l.b16 %v4270
    %v5058 = vunpack.c.h.b16 %v4270
    %v5059 = vunpack.c.l.b16 %v4271
    %v5060 = vunpack.c.h.b16 %v4271
    %v5061 = vunpack.c.l.b16 %v4272
    %v5062 = vunpack.c.h.b16 %v4272
    %v5063 = vpack.c.b16 %v4555, %v4551
    %v5064 = vpack.c.b16 %v4556, %v4552
    %v5065 = vpack.c.b16 %v4557, %v4553
    %v5066 = vpack.c.b16 %v4558, %v4554
    %v5067 = vpack.c.b16 %v4563, %v4559
    %v5068 = vpack.c.b16 %v4564, %v4560
    %v5069 = vpack.c.b16 %v4565, %v4561
    %v5070 = vpack.c.b16 %v4566, %v4562
    %v5071 = vpack.c.b16 %v4571, %v4567
    %v5072 = vpack.c.b16 %v4572, %v4568
    %v5073 = vpack.c.b16 %v4573, %v4569
    %v5074 = vpack.c.b16 %v4574, %v4570
    %v5075 = vpack.c.b16 %v4579, %v4575
    %v5076 = vpack.c.b16 %v4580, %v4576
    %v5077 = vpack.c.b16 %v4581, %v4577
    %v5078 = vpack.c.b16 %v4582, %v4578
    %v5079 = vpack.c.b16 %v4587, %v4583
    %v5080 = vpack.c.b16 %v4588, %v4584
    %v5081 = vpack.c.b16 %v4589, %v4585
    %v5082 = vpack.c.b16 %v4590, %v4586
    %v5083 = vpack.c.b16 %v4595, %v4591
    %v5084 = vpack.c.b16 %v4596, %v4592
    %v5085 = vpack.c.b16 %v4597, %v4593
    %v5086 = vpack.c.b16 %v4598, %v4594
    %v5087 = vpack.c.b16 %v4603, %v4599
    %v5088 = vpack.c.b16 %v4604, %v4600
    %v5089 = vpack.c.b16 %v4605, %v4601
    %v5090 = vpack.c.b16 %v4606, %v4602
    %v5091 = vpack.c.b16 %v4611, %v4607
    %v5092 = vpack.c.b16 %v4612, %v4608
    %v5093 = vpack.c.b16 %v4613, %v4609
    %v5094 = vpack.c.b16 %v4614, %v4610
    %v5095 = vpack.c.b16 %v4619, %v4615
    %v5096 = vpack.c.b16 %v4620, %v4616
    %v5097 = vpack.c.b16 %v4621, %v4617
    %v5098 = vpack.c.b16 %v4622, %v4618
    %v5099 = vpack.c.b16 %v4627, %v4623
    %v5100 = vpack.c.b16 %v4628, %v4624
    %v5101 = vpack.c.b16 %v4629, %v4625
    %v5102 = vpack.c.b16 %v4630, %v4626
    %v5103 = vpack.c.b16 %v4635, %v4631
    %v5104 = vpack.c.b16 %v4636, %v4632
    %v5105 = vpack.c.b16 %v4637, %v4633
    %v5106 = vpack.c.b16 %v4638, %v4634
    %v5107 = vpack.c.b16 %v4643, %v4639
    %v5108 = vpack.c.b16 %v4644, %v4640
    %v5109 = vpack.c.b16 %v4645, %v4641
    %v5110 = vpack.c.b16 %v4646, %v4642
    %v5111 = vpack.c.b16 %v4651, %v4647
    %v5112 = vpack.c.b16 %v4652, %v4648
    %v5113 = vpack.c.b16 %v4653, %v4649
    %v5114 = vpack.c.b16 %v4654, %v4650
    %v5115 = vpack.c.b16 %v4659, %v4655
    %v5116 = vpack.c.b16 %v4660, %v4656
    %v5117 = vpack.c.b16 %v4661, %v4657
    %v5118 = vpack.c.b16 %v4662, %v4658
    %v5119 = vpack.c.b16 %v4667, %v4663
    %v5120 = vpack.c.b16 %v4668, %v4664
    %v5121 = vpack.c.b16 %v4669, %v4665
    %v5122 = vpack.c.b16 %v4670, %v4666
    %v5123 = vpack.c.b16 %v4675, %v4671
    %v5124 = vpack.c.b16 %v4676, %v4672
    %v5125 = vpack.c.b16 %v4677, %v4673
    %v5126 = vpack.c.b16 %v4678, %v4674
    %v5127 = vpack.c.b16 %v4683, %v4679
    %v5128 = vpack.c.b16 %v4684, %v4680
    %v5129 = vpack.c.b16 %v4685, %v4681
    %v5130 = vpack.c.b16 %v4686, %v4682
    %v5131 = vpack.c.b16 %v4691, %v4687
    %v5132 = vpack.c.b16 %v4692, %v4688
    %v5133 = vpack.c.b16 %v4693, %v4689
    %v5134 = vpack.c.b16 %v4694, %v4690
    %v5135 = vpack.c.b16 %v4699, %v4695
    %v5136 = vpack.c.b16 %v4700, %v4696
    %v5137 = vpack.c.b16 %v4701, %v4697
    %v5138 = vpack.c.b16 %v4702, %v4698
    %v5139 = vpack.c.b16 %v4707, %v4703
    %v5140 = vpack.c.b16 %v4708, %v4704
    %v5141 = vpack.c.b16 %v4709, %v4705
    %v5142 = vpack.c.b16 %v4710, %v4706
    %v5143 = vpack.c.b16 %v4715, %v4711
    %v5144 = vpack.c.b16 %v4716, %v4712
    %v5145 = vpack.c.b16 %v4717, %v4713
    %v5146 = vpack.c.b16 %v4718, %v4714
    %v5147 = vpack.c.b16 %v4723, %v4719
    %v5148 = vpack.c.b16 %v4724, %v4720
    %v5149 = vpack.c.b16 %v4725, %v4721
    %v5150 = vpack.c.b16 %v4726, %v4722
    %v5151 = vpack.c.b16 %v4731, %v4727
    %v5152 = vpack.c.b16 %v4732, %v4728
    %v5153 = vpack.c.b16 %v4733, %v4729
    %v5154 = vpack.c.b16 %v4734, %v4730
    %v5155 = vpack.c.b16 %v4739, %v4735
    %v5156 = vpack.c.b16 %v4740, %v4736
    %v5157 = vpack.c.b16 %v4741, %v4737
    %v5158 = vpack.c.b16 %v4742, %v4738
    %v5159 = vpack.c.b16 %v4747, %v4743
    %v5160 = vpack.c.b16 %v4748, %v4744
    %v5161 = vpack.c.b16 %v4749, %v4745
    %v5162 = vpack.c.b16 %v4750, %v4746
    %v5163 = vpack.c.b16 %v4755, %v4751
    %v5164 = vpack.c.b16 %v4756, %v4752
    %v5165 = vpack.c.b16 %v4757, %v4753
    %v5166 = vpack.c.b16 %v4758, %v4754
    %v5167 = vpack.c.b16 %v4763, %v4759
    %v5168 = vpack.c.b16 %v4764, %v4760
    %v5169 = vpack.c.b16 %v4765, %v4761
    %v5170 = vpack.c.b16 %v4766, %v4762
    %v5171 = vpack.c.b16 %v4771, %v4767
    %v5172 = vpack.c.b16 %v4772, %v4768
    %v5173 = vpack.c.b16 %v4773, %v4769
    %v5174 = vpack.c.b16 %v4774, %v4770
    %v5175 = vpack.c.b16 %v4779, %v4775
    %v5176 = vpack.c.b16 %v4780, %v4776
    %v5177 = vpack.c.b16 %v4781, %v4777
    %v5178 = vpack.c.b16 %v4782, %v4778
    %v5179 = vpack.c.b16 %v4787, %v4783
    %v5180 = vpack.c.b16 %v4788, %v4784
    %v5181 = vpack.c.b16 %v4789, %v4785
    %v5182 = vpack.c.b16 %v4790, %v4786
    %v5183 = vpack.c.b16 %v4795, %v4791
    %v5184 = vpack.c.b16 %v4796, %v4792
    %v5185 = vpack.c.b16 %v4797, %v4793
    %v5186 = vpack.c.b16 %v4798, %v4794
    %v5187 = vpack.c.b16 %v4803, %v4799
    %v5188 = vpack.c.b16 %v4804, %v4800
    %v5189 = vpack.c.b16 %v4805, %v4801
    %v5190 = vpack.c.b16 %v4806, %v4802
    %v5191 = vpack.c.b16 %v4811, %v4807
    %v5192 = vpack.c.b16 %v4812, %v4808
    %v5193 = vpack.c.b16 %v4813, %v4809
    %v5194 = vpack.c.b16 %v4814, %v4810
    %v5195 = vpack.c.b16 %v4819, %v4815
    %v5196 = vpack.c.b16 %v4820, %v4816
    %v5197 = vpack.c.b16 %v4821, %v4817
    %v5198 = vpack.c.b16 %v4822, %v4818
    %v5199 = vpack.c.b16 %v4827, %v4823
    %v5200 = vpack.c.b16 %v4828, %v4824
    %v5201 = vpack.c.b16 %v4829, %v4825
    %v5202 = vpack.c.b16 %v4830, %v4826
    %v5203 = vpack.c.b16 %v4835, %v4831
    %v5204 = vpack.c.b16 %v4836, %v4832
    %v5205 = vpack.c.b16 %v4837, %v4833
    %v5206 = vpack.c.b16 %v4838, %v4834
    %v5207 = vpack.c.b16 %v4843, %v4839
    %v5208 = vpack.c.b16 %v4844, %v4840
    %v5209 = vpack.c.b16 %v4845, %v4841
    %v5210 = vpack.c.b16 %v4846, %v4842
    %v5211 = vpack.c.b16 %v4851, %v4847
    %v5212 = vpack.c.b16 %v4852, %v4848
    %v5213 = vpack.c.b16 %v4853, %v4849
    %v5214 = vpack.c.b16 %v4854, %v4850
    %v5215 = vpack.c.b16 %v4859, %v4855
    %v5216 = vpack.c.b16 %v4860, %v4856
    %v5217 = vpack.c.b16 %v4861, %v4857
    %v5218 = vpack.c.b16 %v4862, %v4858
    %v5219 = vpack.c.b16 %v4867, %v4863
    %v5220 = vpack.c.b16 %v4868, %v4864
    %v5221 = vpack.c.b16 %v4869, %v4865
    %v5222 = vpack.c.b16 %v4870, %v4866
    %v5223 = vpack.c.b16 %v4875, %v4871
    %v5224 = vpack.c.b16 %v4876, %v4872
    %v5225 = vpack.c.b16 %v4877, %v4873
    %v5226 = vpack.c.b16 %v4878, %v4874
    %v5227 = vpack.c.b16 %v4883, %v4879
    %v5228 = vpack.c.b16 %v4884, %v4880
    %v5229 = vpack.c.b16 %v4885, %v4881
    %v5230 = vpack.c.b16 %v4886, %v4882
    %v5231 = vpack.c.b16 %v4891, %v4887
    %v5232 = vpack.c.b16 %v4892, %v4888
    %v5233 = vpack.c.b16 %v4893, %v4889
    %v5234 = vpack.c.b16 %v4894, %v4890
    %v5235 = vpack.c.b16 %v4899, %v4895
    %v5236 = vpack.c.b16 %v4900, %v4896
    %v5237 = vpack.c.b16 %v4901, %v4897
    %v5238 = vpack.c.b16 %v4902, %v4898
    %v5239 = vpack.c.b16 %v4907, %v4903
    %v5240 = vpack.c.b16 %v4908, %v4904
    %v5241 = vpack.c.b16 %v4909, %v4905
    %v5242 = vpack.c.b16 %v4910, %v4906
    %v5243 = vpack.c.b16 %v4915, %v4911
    %v5244 = vpack.c.b16 %v4916, %v4912
    %v5245 = vpack.c.b16 %v4917, %v4913
    %v5246 = vpack.c.b16 %v4918, %v4914
    %v5247 = vpack.c.b16 %v4923, %v4919
    %v5248 = vpack.c.b16 %v4924, %v4920
    %v5249 = vpack.c.b16 %v4925, %v4921
    %v5250 = vpack.c.b16 %v4926, %v4922
    %v5251 = vpack.c.b16 %v4931, %v4927
    %v5252 = vpack.c.b16 %v4932, %v4928
    %v5253 = vpack.c.b16 %v4933, %v4929
    %v5254 = vpack.c.b16 %v4934, %v4930
    %v5255 = vpack.c.b16 %v4939, %v4935
    %v5256 = vpack.c.b16 %v4940, %v4936
    %v5257 = vpack.c.b16 %v4941, %v4937
    %v5258 = vpack.c.b16 %v4942, %v4938
    %v5259 = vpack.c.b16 %v4947, %v4943
    %v5260 = vpack.c.b16 %v4948, %v4944
    %v5261 = vpack.c.b16 %v4949, %v4945
    %v5262 = vpack.c.b16 %v4950, %v4946
    %v5263 = vpack.c.b16 %v4955, %v4951
    %v5264 = vpack.c.b16 %v4956, %v4952
    %v5265 = vpack.c.b16 %v4957, %v4953
    %v5266 = vpack.c.b16 %v4958, %v4954
    %v5267 = vpack.c.b16 %v4963, %v4959
    %v5268 = vpack.c.b16 %v4964, %v4960
    %v5269 = vpack.c.b16 %v4965, %v4961
    %v5270 = vpack.c.b16 %v4966, %v4962
    %v5271 = vpack.c.b16 %v4971, %v4967
    %v5272 = vpack.c.b16 %v4972, %v4968
    %v5273 = vpack.c.b16 %v4973, %v4969
    %v5274 = vpack.c.b16 %v4974, %v4970
    %v5275 = vpack.c.b16 %v4979, %v4975
    %v5276 = vpack.c.b16 %v4980, %v4976
    %v5277 = vpack.c.b16 %v4981, %v4977
    %v5278 = vpack.c.b16 %v4982, %v4978
    %v5279 = vpack.c.b16 %v4987, %v4983
    %v5280 = vpack.c.b16 %v4988, %v4984
    %v5281 = vpack.c.b16 %v4989, %v4985
    %v5282 = vpack.c.b16 %v4990, %v4986
    %v5283 = vpack.c.b16 %v4995, %v4991
    %v5284 = vpack.c.b16 %v4996, %v4992
    %v5285 = vpack.c.b16 %v4997, %v4993
    %v5286 = vpack.c.b16 %v4998, %v4994
    %v5287 = vpack.c.b16 %v5003, %v4999
    %v5288 = vpack.c.b16 %v5004, %v5000
    %v5289 = vpack.c.b16 %v5005, %v5001
    %v5290 = vpack.c.b16 %v5006, %v5002
    %v5291 = vpack.c.b16 %v5011, %v5007
    %v5292 = vpack.c.b16 %v5012, %v5008
    %v5293 = vpack.c.b16 %v5013, %v5009
    %v5294 = vpack.c.b16 %v5014, %v5010
    %v5295 = vpack.c.b16 %v5019, %v5015
    %v5296 = vpack.c.b16 %v5020, %v5016
    %v5297 = vpack.c.b16 %v5021, %v5017
    %v5298 = vpack.c.b16 %v5022, %v5018
    %v5299 = vpack.c.b16 %v5027, %v5023
    %v5300 = vpack.c.b16 %v5028, %v5024
    %v5301 = vpack.c.b16 %v5029, %v5025
    %v5302 = vpack.c.b16 %v5030, %v5026
    %v5303 = vpack.c.b16 %v5035, %v5031
    %v5304 = vpack.c.b16 %v5036, %v5032
    %v5305 = vpack.c.b16 %v5037, %v5033
    %v5306 = vpack.c.b16 %v5038, %v5034
    %v5307 = vpack.c.b16 %v5043, %v5039
    %v5308 = vpack.c.b16 %v5044, %v5040
    %v5309 = vpack.c.b16 %v5045, %v5041
    %v5310 = vpack.c.b16 %v5046, %v5042
    %v5311 = vpack.c.b16 %v5051, %v5047
    %v5312 = vpack.c.b16 %v5052, %v5048
    %v5313 = vpack.c.b16 %v5053, %v5049
    %v5314 = vpack.c.b16 %v5054, %v5050
    %v5315 = vpack.c.b16 %v5059, %v5055
    %v5316 = vpack.c.b16 %v5060, %v5056
    %v5317 = vpack.c.b16 %v5061, %v5057
    %v5318 = vpack.c.b16 %v5062, %v5058
    %5575 = vmatprep.subr.bf16.mxu0 %v5064
    %5576 = vmatpush1.bf16.msra.mxu0 %v5063
    %5577 = vmatprep.subr.bf16.mxu0 %v5068
    %5578 = vmatpush1.bf16.msra.mxu0 %v5067
    %5579 = vmatprep.subr.bf16.mxu0 %v5072
    %5580 = vmatpush1.bf16.msra.mxu0 %v5071
    %5581 = vmatprep.subr.bf16.mxu0 %v5076
    %5582 = vmatpush1.bf16.msra.mxu0 %v5075
    %5583 = vmatprep.subr.bf16.mxu0 %v5080
    %5584 = vmatpush1.bf16.msra.mxu0 %v5079
    %5585 = vmatprep.subr.bf16.mxu0 %v5084
    %5586 = vmatpush1.bf16.msra.mxu0 %v5083
    %5587 = vmatprep.subr.bf16.mxu0 %v5088
    %5588 = vmatpush1.bf16.msra.mxu0 %v5087
    %5589 = vmatprep.subr.bf16.mxu0 %v5092
    %5590 = vmatpush1.bf16.msra.mxu0 %v5091
    %5591 = vmatprep.subr.bf16.mxu0 %v5096
    %5592 = vmatpush1.bf16.msra.mxu0 %v5095
    %5593 = vmatprep.subr.bf16.mxu0 %v5100
    %5594 = vmatpush1.bf16.msra.mxu0 %v5099
    %5595 = vmatprep.subr.bf16.mxu0 %v5104
    %5596 = vmatpush1.bf16.msra.mxu0 %v5103
    %5597 = vmatprep.subr.bf16.mxu0 %v5108
    %5598 = vmatpush1.bf16.msra.mxu0 %v5107
    %5599 = vmatprep.subr.bf16.mxu0 %v5112
    %5600 = vmatpush1.bf16.msra.mxu0 %v5111
    %5601 = vmatprep.subr.bf16.mxu0 %v5116
    %5602 = vmatpush1.bf16.msra.mxu0 %v5115
    %5603 = vmatprep.subr.bf16.mxu0 %v5120
    %5604 = vmatpush1.bf16.msra.mxu0 %v5119
    %5605 = vmatprep.subr.bf16.mxu0 %v5124
    %5606 = vmatpush1.bf16.msra.mxu0 %v5123
    %5607 = vmatprep.mubr.bf16.mxu0 %v4010
    %5608 = vmatmul.mubr.bf16.gmra.mrb[0].mxu0 %v4009
    %v5609 = vpop.f32.mrb[0].mxu0
    %v5610 = vadd.f32 %v4278, %v5609
    %v5611 = vpop.f32.mrb[0].mxu0
    %v5612 = vadd.f32 %v4282, %v5611
    %v5613 = vpop.f32.mrb[0].mxu0
    %v5614 = vadd.f32 %v4278, %v5613
    %v5615 = vpop.f32.mrb[0].mxu0
    %v5616 = vadd.f32 %v4282, %v5615
    %5617 = vdwg.mxu0
    %5618 = vmatprep.subr.bf16.mxu0 %v5128
    %5619 = vmatpush1.bf16.msra.mxu0 %v5127
    %5620 = vmatprep.subr.bf16.mxu0 %v5132
    %5621 = vmatpush1.bf16.msra.mxu0 %v5131
    %5622 = vmatprep.subr.bf16.mxu0 %v5136
    %5623 = vmatpush1.bf16.msra.mxu0 %v5135
    %5624 = vmatprep.subr.bf16.mxu0 %v5140
    %5625 = vmatpush1.bf16.msra.mxu0 %v5139
    %5626 = vmatprep.subr.bf16.mxu0 %v5144
    %5627 = vmatpush1.bf16.msra.mxu0 %v5143
    %5628 = vmatprep.subr.bf16.mxu0 %v5148
    %5629 = vmatpush1.bf16.msra.mxu0 %v5147
    %5630 = vmatprep.subr.bf16.mxu0 %v5152
    %5631 = vmatpush1.bf16.msra.mxu0 %v5151
    %5632 = vmatprep.subr.bf16.mxu0 %v5156
    %5633 = vmatpush1.bf16.msra.mxu0 %v5155
    %5634 = vmatprep.subr.bf16.mxu0 %v5160
    %5635 = vmatpush1.bf16.msra.mxu0 %v5159
    %5636 = vmatprep.subr.bf16.mxu0 %v5164
    %5637 = vmatpush1.bf16.msra.mxu0 %v5163
    %5638 = vmatprep.subr.bf16.mxu0 %v5168
    %5639 = vmatpush1.bf16.msra.mxu0 %v5167
    %5640 = vmatprep.subr.bf16.mxu0 %v5172
    %5641 = vmatpush1.bf16.msra.mxu0 %v5171
    %5642 = vmatprep.subr.bf16.mxu0 %v5176
    %5643 = vmatpush1.bf16.msra.mxu0 %v5175
    %5644 = vmatprep.subr.bf16.mxu0 %v5180
    %5645 = vmatpush1.bf16.msra.mxu0 %v5179
    %5646 = vmatprep.subr.bf16.mxu0 %v5184
    %5647 = vmatpush1.bf16.msra.mxu0 %v5183
    %5648 = vmatprep.subr.bf16.mxu0 %v5188
    %5649 = vmatpush1.bf16.msra.mxu0 %v5187
    %5650 = vmatprep.mubr.bf16.mxu0 %v4012
    %5651 = vmatmul.mubr.bf16.gmra.mrb[0].mxu0 %v4011
    %v5652 = vpop.f32.mrb[0].mxu0
    %v5653 = vadd.f32 %v5610, %v5652
    %v5654 = vpop.f32.mrb[0].mxu0
    %v5655 = vadd.f32 %v5612, %v5654
    %v5656 = vpop.f32.mrb[0].mxu0
    %v5657 = vadd.f32 %v5614, %v5656
    %v5658 = vpop.f32.mrb[0].mxu0
    %v5659 = vadd.f32 %v5616, %v5658
    %5660 = vdwg.mxu0
    %5661 = vmatprep.subr.bf16.mxu0 %v5192
    %5662 = vmatpush1.bf16.msra.mxu0 %v5191
    %5663 = vmatprep.subr.bf16.mxu0 %v5196
    %5664 = vmatpush1.bf16.msra.mxu0 %v5195
    %5665 = vmatprep.subr.bf16.mxu0 %v5200
    %5666 = vmatpush1.bf16.msra.mxu0 %v5199
    %5667 = vmatprep.subr.bf16.mxu0 %v5204
    %5668 = vmatpush1.bf16.msra.mxu0 %v5203
    %5669 = vmatprep.subr.bf16.mxu0 %v5208
    %5670 = vmatpush1.bf16.msra.mxu0 %v5207
    %5671 = vmatprep.subr.bf16.mxu0 %v5212
    %5672 = vmatpush1.bf16.msra.mxu0 %v5211
    %5673 = vmatprep.subr.bf16.mxu0 %v5216
    %5674 = vmatpush1.bf16.msra.mxu0 %v5215
    %5675 = vmatprep.subr.bf16.mxu0 %v5220
    %5676 = vmatpush1.bf16.msra.mxu0 %v5219
    %5677 = vmatprep.subr.bf16.mxu0 %v5224
    %5678 = vmatpush1.bf16.msra.mxu0 %v5223
    %5679 = vmatprep.subr.bf16.mxu0 %v5228
    %5680 = vmatpush1.bf16.msra.mxu0 %v5227
    %5681 = vmatprep.subr.bf16.mxu0 %v5232
    %5682 = vmatpush1.bf16.msra.mxu0 %v5231
    %5683 = vmatprep.subr.bf16.mxu0 %v5236
    %5684 = vmatpush1.bf16.msra.mxu0 %v5235
    %5685 = vmatprep.subr.bf16.mxu0 %v5240
    %5686 = vmatpush1.bf16.msra.mxu0 %v5239
    %5687 = vmatprep.subr.bf16.mxu0 %v5244
    %5688 = vmatpush1.bf16.msra.mxu0 %v5243
    %5689 = vmatprep.subr.bf16.mxu0 %v5248
    %5690 = vmatpush1.bf16.msra.mxu0 %v5247
    %5691 = vmatprep.subr.bf16.mxu0 %v5252
    %5692 = vmatpush1.bf16.msra.mxu0 %v5251
    %5693 = vmatprep.mubr.bf16.mxu0 %v4014
    %5694 = vmatmul.mubr.bf16.gmra.mrb[0].mxu0 %v4013
    %v5695 = vpop.f32.mrb[0].mxu0
    %v5696 = vadd.f32 %v5653, %v5695
    %v5697 = vpop.f32.mrb[0].mxu0
    %v5698 = vadd.f32 %v5655, %v5697
    %v5699 = vpop.f32.mrb[0].mxu0
    %v5700 = vadd.f32 %v5657, %v5699
    %v5701 = vpop.f32.mrb[0].mxu0
    %v5702 = vadd.f32 %v5659, %v5701
    %5703 = vdwg.mxu0
    %5704 = vmatprep.subr.bf16.mxu0 %v5256
    %5705 = vmatpush1.bf16.msra.mxu0 %v5255
    %5706 = vmatprep.subr.bf16.mxu0 %v5260
    %5707 = vmatpush1.bf16.msra.mxu0 %v5259
    %5708 = vmatprep.subr.bf16.mxu0 %v5264
    %5709 = vmatpush1.bf16.msra.mxu0 %v5263
    %5710 = vmatprep.subr.bf16.mxu0 %v5268
    %5711 = vmatpush1.bf16.msra.mxu0 %v5267
    %5712 = vmatprep.subr.bf16.mxu0 %v5272
    %5713 = vmatpush1.bf16.msra.mxu0 %v5271
    %5714 = vmatprep.subr.bf16.mxu0 %v5276
    %5715 = vmatpush1.bf16.msra.mxu0 %v5275
    %5716 = vmatprep.subr.bf16.mxu0 %v5280
    %5717 = vmatpush1.bf16.msra.mxu0 %v5279
    %5718 = vmatprep.subr.bf16.mxu0 %v5284
    %5719 = vmatpush1.bf16.msra.mxu0 %v5283
    %5720 = vmatprep.subr.bf16.mxu0 %v5288
    %5721 = vmatpush1.bf16.msra.mxu0 %v5287
    %5722 = vmatprep.subr.bf16.mxu0 %v5292
    %5723 = vmatpush1.bf16.msra.mxu0 %v5291
    %5724 = vmatprep.subr.bf16.mxu0 %v5296
    %5725 = vmatpush1.bf16.msra.mxu0 %v5295
    %5726 = vmatprep.subr.bf16.mxu0 %v5300
    %5727 = vmatpush1.bf16.msra.mxu0 %v5299
    %5728 = vmatprep.subr.bf16.mxu0 %v5304
    %5729 = vmatpush1.bf16.msra.mxu0 %v5303
    %5730 = vmatprep.subr.bf16.mxu0 %v5308
    %5731 = vmatpush1.bf16.msra.mxu0 %v5307
    %5732 = vmatprep.subr.bf16.mxu0 %v5312
    %5733 = vmatpush1.bf16.msra.mxu0 %v5311
    %5734 = vmatprep.subr.bf16.mxu0 %v5316
    %5735 = vmatpush1.bf16.msra.mxu0 %v5315
    %5736 = vmatprep.mubr.bf16.mxu0 %v4016
    %5737 = vmatmul.mubr.bf16.gmra.mrb[0].mxu0 %v4015
    %v5738 = vpop.f32.mrb[0].mxu0
    %v5739 = vadd.f32 %v5696, %v5738
    %v5740 = vpop.f32.mrb[0].mxu0
    %v5741 = vadd.f32 %v5698, %v5740
    %v5742 = vpop.f32.mrb[0].mxu0
    %v5743 = vadd.f32 %v5700, %v5742
    %v5744 = vpop.f32.mrb[0].mxu0
    %v5745 = vadd.f32 %v5702, %v5744
    %5746 = vdwg.mxu0
    %5747 = vmatprep.subr.bf16.mxu0 %v5066
    %5748 = vmatpush1.bf16.msra.mxu0 %v5065
    %5749 = vmatprep.subr.bf16.mxu0 %v5070
    %5750 = vmatpush1.bf16.msra.mxu0 %v5069
    %5751 = vmatprep.subr.bf16.mxu0 %v5074
    %5752 = vmatpush1.bf16.msra.mxu0 %v5073
    %5753 = vmatprep.subr.bf16.mxu0 %v5078
    %5754 = vmatpush1.bf16.msra.mxu0 %v5077
    %5755 = vmatprep.subr.bf16.mxu0 %v5082
    %5756 = vmatpush1.bf16.msra.mxu0 %v5081
    %5757 = vmatprep.subr.bf16.mxu0 %v5086
    %5758 = vmatpush1.bf16.msra.mxu0 %v5085
    %5759 = vmatprep.subr.bf16.mxu0 %v5090
    %5760 = vmatpush1.bf16.msra.mxu0 %v5089
    %5761 = vmatprep.subr.bf16.mxu0 %v5094
    %5762 = vmatpush1.bf16.msra.mxu0 %v5093
    %5763 = vmatprep.subr.bf16.mxu0 %v5098
    %5764 = vmatpush1.bf16.msra.mxu0 %v5097
    %5765 = vmatprep.subr.bf16.mxu0 %v5102
    %5766 = vmatpush1.bf16.msra.mxu0 %v5101
    %5767 = vmatprep.subr.bf16.mxu0 %v5106
    %5768 = vmatpush1.bf16.msra.mxu0 %v5105
    %5769 = vmatprep.subr.bf16.mxu0 %v5110
    %5770 = vmatpush1.bf16.msra.mxu0 %v5109
    %5771 = vmatprep.subr.bf16.mxu0 %v5114
    %5772 = vmatpush1.bf16.msra.mxu0 %v5113
    %5773 = vmatprep.subr.bf16.mxu0 %v5118
    %5774 = vmatpush1.bf16.msra.mxu0 %v5117
    %5775 = vmatprep.subr.bf16.mxu0 %v5122
    %5776 = vmatpush1.bf16.msra.mxu0 %v5121
    %5777 = vmatprep.subr.bf16.mxu0 %v5126
    %5778 = vmatpush1.bf16.msra.mxu0 %v5125
    %5779 = vmatprep.mubr.bf16.mxu0 %v4010
    %5780 = vmatmul.mubr.bf16.gmra.mrb[0].mxu0 %v4009
    %v5781 = vpop.f32.mrb[0].mxu0
    %v5782 = vadd.f32 %v4286, %v5781
    %v5783 = vpop.f32.mrb[0].mxu0
    %v5784 = vadd.f32 %v4290, %v5783
    %v5785 = vpop.f32.mrb[0].mxu0
    %v5786 = vadd.f32 %v4286, %v5785
    %v5787 = vpop.f32.mrb[0].mxu0
    %v5788 = vadd.f32 %v4290, %v5787
    %5789 = vdwg.mxu0
    %5790 = vmatprep.subr.bf16.mxu0 %v5130
    %5791 = vmatpush1.bf16.msra.mxu0 %v5129
    %5792 = vmatprep.subr.bf16.mxu0 %v5134
    %5793 = vmatpush1.bf16.msra.mxu0 %v5133
    %5794 = vmatprep.subr.bf16.mxu0 %v5138
    %5795 = vmatpush1.bf16.msra.mxu0 %v5137
    %5796 = vmatprep.subr.bf16.mxu0 %v5142
    %5797 = vmatpush1.bf16.msra.mxu0 %v5141
    %5798 = vmatprep.subr.bf16.mxu0 %v5146
    %5799 = vmatpush1.bf16.msra.mxu0 %v5145
    %5800 = vmatprep.subr.bf16.mxu0 %v5150
    %5801 = vmatpush1.bf16.msra.mxu0 %v5149
    %5802 = vmatprep.subr.bf16.mxu0 %v5154
    %5803 = vmatpush1.bf16.msra.mxu0 %v5153
    %5804 = vmatprep.subr.bf16.mxu0 %v5158
    %5805 = vmatpush1.bf16.msra.mxu0 %v5157
    %5806 = vmatprep.subr.bf16.mxu0 %v5162
    %5807 = vmatpush1.bf16.msra.mxu0 %v5161
    %5808 = vmatprep.subr.bf16.mxu0 %v5166
    %5809 = vmatpush1.bf16.msra.mxu0 %v5165
    %5810 = vmatprep.subr.bf16.mxu0 %v5170
    %5811 = vmatpush1.bf16.msra.mxu0 %v5169
    %5812 = vmatprep.subr.bf16.mxu0 %v5174
    %5813 = vmatpush1.bf16.msra.mxu0 %v5173
    %5814 = vmatprep.subr.bf16.mxu0 %v5178
    %5815 = vmatpush1.bf16.msra.mxu0 %v5177
    %5816 = vmatprep.subr.bf16.mxu0 %v5182
    %5817 = vmatpush1.bf16.msra.mxu0 %v5181
    %5818 = vmatprep.subr.bf16.mxu0 %v5186
    %5819 = vmatpush1.bf16.msra.mxu0 %v5185
    %5820 = vmatprep.subr.bf16.mxu0 %v5190
    %5821 = vmatpush1.bf16.msra.mxu0 %v5189
    %5822 = vmatprep.mubr.bf16.mxu0 %v4012
    %5823 = vmatmul.mubr.bf16.gmra.mrb[0].mxu0 %v4011
    %v5824 = vpop.f32.mrb[0].mxu0
    %v5825 = vadd.f32 %v5782, %v5824
    %v5826 = vpop.f32.mrb[0].mxu0
    %v5827 = vadd.f32 %v5784, %v5826
    %v5828 = vpop.f32.mrb[0].mxu0
    %v5829 = vadd.f32 %v5786, %v5828
    %v5830 = vpop.f32.mrb[0].mxu0
    %v5831 = vadd.f32 %v5788, %v5830
    %5832 = vdwg.mxu0
    %5833 = vmatprep.subr.bf16.mxu0 %v5194
    %5834 = vmatpush1.bf16.msra.mxu0 %v5193
    %5835 = vmatprep.subr.bf16.mxu0 %v5198
    %5836 = vmatpush1.bf16.msra.mxu0 %v5197
    %5837 = vmatprep.subr.bf16.mxu0 %v5202
    %5838 = vmatpush1.bf16.msra.mxu0 %v5201
    %5839 = vmatprep.subr.bf16.mxu0 %v5206
    %5840 = vmatpush1.bf16.msra.mxu0 %v5205
    %5841 = vmatprep.subr.bf16.mxu0 %v5210
    %5842 = vmatpush1.bf16.msra.mxu0 %v5209
    %5843 = vmatprep.subr.bf16.mxu0 %v5214
    %5844 = vmatpush1.bf16.msra.mxu0 %v5213
    %5845 = vmatprep.subr.bf16.mxu0 %v5218
    %5846 = vmatpush1.bf16.msra.mxu0 %v5217
    %5847 = vmatprep.subr.bf16.mxu0 %v5222
    %5848 = vmatpush1.bf16.msra.mxu0 %v5221
    %5849 = vmatprep.subr.bf16.mxu0 %v5226
    %5850 = vmatpush1.bf16.msra.mxu0 %v5225
    %5851 = vmatprep.subr.bf16.mxu0 %v5230
    %5852 = vmatpush1.bf16.msra.mxu0 %v5229
    %5853 = vmatprep.subr.bf16.mxu0 %v5234
    %5854 = vmatpush1.bf16.msra.mxu0 %v5233
    %5855 = vmatprep.subr.bf16.mxu0 %v5238
    %5856 = vmatpush1.bf16.msra.mxu0 %v5237
    %5857 = vmatprep.subr.bf16.mxu0 %v5242
    %5858 = vmatpush1.bf16.msra.mxu0 %v5241
    %5859 = vmatprep.subr.bf16.mxu0 %v5246
    %5860 = vmatpush1.bf16.msra.mxu0 %v5245
    %5861 = vmatprep.subr.bf16.mxu0 %v5250
    %5862 = vmatpush1.bf16.msra.mxu0 %v5249
    %5863 = vmatprep.subr.bf16.mxu0 %v5254
    %5864 = vmatpush1.bf16.msra.mxu0 %v5253
    %5865 = vmatprep.mubr.bf16.mxu0 %v4014
    %5866 = vmatmul.mubr.bf16.gmra.mrb[0].mxu0 %v4013
    %v5867 = vpop.f32.mrb[0].mxu0
    %v5868 = vadd.f32 %v5825, %v5867
    %v5869 = vpop.f32.mrb[0].mxu0
    %v5870 = vadd.f32 %v5827, %v5869
    %v5871 = vpop.f32.mrb[0].mxu0
    %v5872 = vadd.f32 %v5829, %v5871
    %v5873 = vpop.f32.mrb[0].mxu0
    %v5874 = vadd.f32 %v5831, %v5873
    %5875 = vdwg.mxu0
    %5876 = vmatprep.subr.bf16.mxu0 %v5258
    %5877 = vmatpush1.bf16.msra.mxu0 %v5257
    %5878 = vmatprep.subr.bf16.mxu0 %v5262
    %5879 = vmatpush1.bf16.msra.mxu0 %v5261
    %5880 = vmatprep.subr.bf16.mxu0 %v5266
    %5881 = vmatpush1.bf16.msra.mxu0 %v5265
    %5882 = vmatprep.subr.bf16.mxu0 %v5270
    %5883 = vmatpush1.bf16.msra.mxu0 %v5269
    %5884 = vmatprep.subr.bf16.mxu0 %v5274
    %5885 = vmatpush1.bf16.msra.mxu0 %v5273
    %5886 = vmatprep.subr.bf16.mxu0 %v5278
    %5887 = vmatpush1.bf16.msra.mxu0 %v5277
    %5888 = vmatprep.subr.bf16.mxu0 %v5282
    %5889 = vmatpush1.bf16.msra.mxu0 %v5281
    %5890 = vmatprep.subr.bf16.mxu0 %v5286
    %5891 = vmatpush1.bf16.msra.mxu0 %v5285
    %5892 = vmatprep.subr.bf16.mxu0 %v5290
    %5893 = vmatpush1.bf16.msra.mxu0 %v5289
    %5894 = vmatprep.subr.bf16.mxu0 %v5294
    %5895 = vmatpush1.bf16.msra.mxu0 %v5293
    %5896 = vmatprep.subr.bf16.mxu0 %v5298
    %5897 = vmatpush1.bf16.msra.mxu0 %v5297
    %5898 = vmatprep.subr.bf16.mxu0 %v5302
    %5899 = vmatpush1.bf16.msra.mxu0 %v5301
    %5900 = vmatprep.subr.bf16.mxu0 %v5306
    %5901 = vmatpush1.bf16.msra.mxu0 %v5305
    %5902 = vmatprep.subr.bf16.mxu0 %v5310
    %5903 = vmatpush1.bf16.msra.mxu0 %v5309
    %5904 = vmatprep.subr.bf16.mxu0 %v5314
    %5905 = vmatpush1.bf16.msra.mxu0 %v5313
    %5906 = vmatprep.subr.bf16.mxu0 %v5318
    %5907 = vmatpush1.bf16.msra.mxu0 %v5317
    %5908 = vmatprep.mubr.bf16.mxu0 %v4016
    %5909 = vmatmul.mubr.bf16.gmra.mrb[0].mxu0 %v4015
    %v5910 = vpop.f32.mrb[0].mxu0
    %v5911 = vadd.f32 %v5868, %v5910
    %v5912 = vpop.f32.mrb[0].mxu0
    %v5913 = vadd.f32 %v5870, %v5912
    %v5914 = vpop.f32.mrb[0].mxu0
    %v5915 = vadd.f32 %v5872, %v5914
    %v5916 = vpop.f32.mrb[0].mxu0
    %v5917 = vadd.f32 %v5874, %v5916
    %5918 = vdwg.mxu0
    %vm5919 = vcmp.gt.f32.partialorder %v5739, 0.0
    %vm5920 = vcmp.gt.f32.partialorder %v5741, 0.0
    %vm5921 = vcmp.gt.f32.partialorder %v5911, 0.0
    %vm5922 = vcmp.gt.f32.partialorder %v5913, 0.0
    %vm5923 = vcmp.gt.f32.partialorder %v5743, 0.0
    %vm5924 = vcmp.gt.f32.partialorder %v5745, 0.0
    %vm5925 = vcmp.gt.f32.partialorder %v5915, 0.0
    %vm5926 = vcmp.gt.f32.partialorder %v5917, 0.0
    %v5927 = vmul.f32 %v5739, 0.2
    %v5928 = vmul.f32 %v5741, 0.2
    %v5929 = vmul.f32 %v5911, 0.2
    %v5930 = vmul.f32 %v5913, 0.2
    %v5931 = vmul.f32 %v5743, 0.2
    %v5932 = vmul.f32 %v5745, 0.2
    %v5933 = vmul.f32 %v5915, 0.2
    %v5934 = vmul.f32 %v5917, 0.2
    %v5935 = vsel %vm5919, %v5739, %v5927
    %v5936 = vsel %vm5920, %v5741, %v5928
    %v5937 = vsel %vm5921, %v5911, %v5929
    %v5938 = vsel %vm5922, %v5913, %v5930
    %v5939 = vsel %vm5923, %v5743, %v5931
    %v5940 = vsel %vm5924, %v5745, %v5932
    %v5941 = vsel %vm5925, %v5915, %v5933
    %v5942 = vsel %vm5926, %v5917, %v5934
    %v5943 = vpack.c.bf16 %v5939, %v5935
    %v5944 = vpack.c.bf16 %v5940, %v5936
    %v5945 = vpack.c.bf16 %v5941, %v5937
    %v5946 = vpack.c.bf16 %v5942, %v5938
    %v5947 = vld [vmem:[#allocation11] sm:$0xff]
    %v5948 = vld [vmem:[#allocation11 + $0x8] sm:$0xff]
    %v5949 = vld [vmem:[#allocation11 + $0x10] sm:$0xff]
    %v5950 = vld [vmem:[#allocation11 + $0x18] sm:$0xff]
    %v5951 = vld [vmem:[#allocation11 + $0x20] sm:$0xff]
    %v5952 = vld [vmem:[#allocation11 + $0x28] sm:$0xff]
    %v5953 = vld [vmem:[#allocation11 + $0x30] sm:$0xff]
    %v5954 = vld [vmem:[#allocation11 + $0x38] sm:$0xff]
    %v5955 = vld [vmem:[#allocation11 + $0x40] sm:$0xff]
    %v5956 = vld [vmem:[#allocation11 + $0x48] sm:$0xff]
    %v5957 = vld [vmem:[#allocation11 + $0x50] sm:$0xff]
    %v5958 = vld [vmem:[#allocation11 + $0x58] sm:$0xff]
    %v5959 = vld [vmem:[#allocation11 + $0x60] sm:$0xff]
    %v5960 = vld [vmem:[#allocation11 + $0x68] sm:$0xff]
    %v5961 = vld [vmem:[#allocation11 + $0x70] sm:$0xff]
    %v5962 = vld [vmem:[#allocation11 + $0x78] sm:$0xff]
    %v5963 = vld [vmem:[#allocation11 + $0x80] sm:$0xff]
    %v5964 = vld [vmem:[#allocation11 + $0x88] sm:$0xff]
    %v5965 = vld [vmem:[#allocation11 + $0x90] sm:$0xff]
    %v5966 = vld [vmem:[#allocation11 + $0x98] sm:$0xff]
    %v5967 = vld [vmem:[#allocation11 + $0xa0] sm:$0xff]
    %v5968 = vld [vmem:[#allocation11 + $0xa8] sm:$0xff]
    %v5969 = vld [vmem:[#allocation11 + $0xb0] sm:$0xff]
    %v5970 = vld [vmem:[#allocation11 + $0xb8] sm:$0xff]
    %v5971 = vld [vmem:[#allocation11 + $0xc0] sm:$0xff]
    %v5972 = vld [vmem:[#allocation11 + $0xc8] sm:$0xff]
    %v5973 = vld [vmem:[#allocation11 + $0xd0] sm:$0xff]
    %v5974 = vld [vmem:[#allocation11 + $0xd8] sm:$0xff]
    %v5975 = vld [vmem:[#allocation11 + $0xe0] sm:$0xff]
    %v5976 = vld [vmem:[#allocation11 + $0xe8] sm:$0xff]
    %v5977 = vld [vmem:[#allocation11 + $0xf0] sm:$0xff]
    %v5978 = vld [vmem:[#allocation11 + $0xf8] sm:$0xff]
    %v5979 = vld [vmem:[#allocation11 + $0x100] sm:$0xff]
    %v5980 = vld [vmem:[#allocation11 + $0x108] sm:$0xff]
    %v5981 = vld [vmem:[#allocation11 + $0x110] sm:$0xff]
    %v5982 = vld [vmem:[#allocation11 + $0x118] sm:$0xff]
    %v5983 = vld [vmem:[#allocation11 + $0x120] sm:$0xff]
    %v5984 = vld [vmem:[#allocation11 + $0x128] sm:$0xff]
    %v5985 = vld [vmem:[#allocation11 + $0x130] sm:$0xff]
    %v5986 = vld [vmem:[#allocation11 + $0x138] sm:$0xff]
    %v5987 = vld [vmem:[#allocation11 + $0x140] sm:$0xff]
    %v5988 = vld [vmem:[#allocation11 + $0x148] sm:$0xff]
    %v5989 = vld [vmem:[#allocation11 + $0x150] sm:$0xff]
    %v5990 = vld [vmem:[#allocation11 + $0x158] sm:$0xff]
    %v5991 = vld [vmem:[#allocation11 + $0x160] sm:$0xff]
    %v5992 = vld [vmem:[#allocation11 + $0x168] sm:$0xff]
    %v5993 = vld [vmem:[#allocation11 + $0x170] sm:$0xff]
    %v5994 = vld [vmem:[#allocation11 + $0x178] sm:$0xff]
    %v5995 = vld [vmem:[#allocation11 + $0x180] sm:$0xff]
    %v5996 = vld [vmem:[#allocation11 + $0x188] sm:$0xff]
    %v5997 = vld [vmem:[#allocation11 + $0x190] sm:$0xff]
    %v5998 = vld [vmem:[#allocation11 + $0x198] sm:$0xff]
    %v5999 = vld [vmem:[#allocation11 + $0x1a0] sm:$0xff]
    %v6000 = vld [vmem:[#allocation11 + $0x1a8] sm:$0xff]
    %v6001 = vld [vmem:[#allocation11 + $0x1b0] sm:$0xff]
    %v6002 = vld [vmem:[#allocation11 + $0x1b8] sm:$0xff]
    %v6003 = vld [vmem:[#allocation11 + $0x1c0] sm:$0xff]
    %v6004 = vld [vmem:[#allocation11 + $0x1c8] sm:$0xff]
    %v6005 = vld [vmem:[#allocation11 + $0x1d0] sm:$0xff]
    %v6006 = vld [vmem:[#allocation11 + $0x1d8] sm:$0xff]
    %v6007 = vld [vmem:[#allocation11 + $0x1e0] sm:$0xff]
    %v6008 = vld [vmem:[#allocation11 + $0x1e8] sm:$0xff]
    %v6009 = vld [vmem:[#allocation11 + $0x1f0] sm:$0xff]
    %v6010 = vld [vmem:[#allocation11 + $0x1f8] sm:$0xff]
    %v6011 = vld [vmem:[#allocation13] sm:$0x3]
    %v6013 = vlaneseq
    %v6014 = vshrl.u32 %v6013, 7
    %v6015 = vsub.s32 0, %v6014
    %v6016 = vrot.slane %v6011, %v6015
    %v6017 = vlaneseq
    %v6018 = vshrl.u32 %v6017, 7
    %v6019 = vsub.s32 1, %v6018
    %v6020 = vrot.slane %v6011, %v6019
    %v6087 = vunpack.c.l.b16 %v5947
    %v6088 = vunpack.c.h.b16 %v5947
    %v6089 = vunpack.c.l.b16 %v5948
    %v6090 = vunpack.c.h.b16 %v5948
    %v6091 = vunpack.c.l.b16 %v5949
    %v6092 = vunpack.c.h.b16 %v5949
    %v6093 = vunpack.c.l.b16 %v5950
    %v6094 = vunpack.c.h.b16 %v5950
    %v6095 = vunpack.c.l.b16 %v5951
    %v6096 = vunpack.c.h.b16 %v5951
    %v6097 = vunpack.c.l.b16 %v5952
    %v6098 = vunpack.c.h.b16 %v5952
    %v6099 = vunpack.c.l.b16 %v5953
    %v6100 = vunpack.c.h.b16 %v5953
    %v6101 = vunpack.c.l.b16 %v5954
    %v6102 = vunpack.c.h.b16 %v5954
    %v6103 = vunpack.c.l.b16 %v5955
    %v6104 = vunpack.c.h.b16 %v5955
    %v6105 = vunpack.c.l.b16 %v5956
    %v6106 = vunpack.c.h.b16 %v5956
    %v6107 = vunpack.c.l.b16 %v5957
    %v6108 = vunpack.c.h.b16 %v5957
    %v6109 = vunpack.c.l.b16 %v5958
    %v6110 = vunpack.c.h.b16 %v5958
    %v6111 = vunpack.c.l.b16 %v5959
    %v6112 = vunpack.c.h.b16 %v5959
    %v6113 = vunpack.c.l.b16 %v5960
    %v6114 = vunpack.c.h.b16 %v5960
    %v6115 = vunpack.c.l.b16 %v5961
    %v6116 = vunpack.c.h.b16 %v5961
    %v6117 = vunpack.c.l.b16 %v5962
    %v6118 = vunpack.c.h.b16 %v5962
    %v6119 = vunpack.c.l.b16 %v5963
    %v6120 = vunpack.c.h.b16 %v5963
    %v6121 = vunpack.c.l.b16 %v5964
    %v6122 = vunpack.c.h.b16 %v5964
    %v6123 = vunpack.c.l.b16 %v5965
    %v6124 = vunpack.c.h.b16 %v5965
    %v6125 = vunpack.c.l.b16 %v5966
    %v6126 = vunpack.c.h.b16 %v5966
    %v6127 = vunpack.c.l.b16 %v5967
    %v6128 = vunpack.c.h.b16 %v5967
    %v6129 = vunpack.c.l.b16 %v5968
    %v6130 = vunpack.c.h.b16 %v5968
    %v6131 = vunpack.c.l.b16 %v5969
    %v6132 = vunpack.c.h.b16 %v5969
    %v6133 = vunpack.c.l.b16 %v5970
    %v6134 = vunpack.c.h.b16 %v5970
    %v6135 = vunpack.c.l.b16 %v5971
    %v6136 = vunpack.c.h.b16 %v5971
    %v6137 = vunpack.c.l.b16 %v5972
    %v6138 = vunpack.c.h.b16 %v5972
    %v6139 = vunpack.c.l.b16 %v5973
    %v6140 = vunpack.c.h.b16 %v5973
    %v6141 = vunpack.c.l.b16 %v5974
    %v6142 = vunpack.c.h.b16 %v5974
    %v6143 = vunpack.c.l.b16 %v5975
    %v6144 = vunpack.c.h.b16 %v5975
    %v6145 = vunpack.c.l.b16 %v5976
    %v6146 = vunpack.c.h.b16 %v5976
    %v6147 = vunpack.c.l.b16 %v5977
    %v6148 = vunpack.c.h.b16 %v5977
    %v6149 = vunpack.c.l.b16 %v5978
    %v6150 = vunpack.c.h.b16 %v5978
    %v6151 = vunpack.c.l.b16 %v5979
    %v6152 = vunpack.c.h.b16 %v5979
    %v6153 = vunpack.c.l.b16 %v5980
    %v6154 = vunpack.c.h.b16 %v5980
    %v6155 = vunpack.c.l.b16 %v5981
    %v6156 = vunpack.c.h.b16 %v5981
    %v6157 = vunpack.c.l.b16 %v5982
    %v6158 = vunpack.c.h.b16 %v5982
    %v6159 = vunpack.c.l.b16 %v5983
    %v6160 = vunpack.c.h.b16 %v5983
    %v6161 = vunpack.c.l.b16 %v5984
    %v6162 = vunpack.c.h.b16 %v5984
    %v6163 = vunpack.c.l.b16 %v5985
    %v6164 = vunpack.c.h.b16 %v5985
    %v6165 = vunpack.c.l.b16 %v5986
    %v6166 = vunpack.c.h.b16 %v5986
    %v6167 = vunpack.c.l.b16 %v5987
    %v6168 = vunpack.c.h.b16 %v5987
    %v6169 = vunpack.c.l.b16 %v5988
    %v6170 = vunpack.c.h.b16 %v5988
    %v6171 = vunpack.c.l.b16 %v5989
    %v6172 = vunpack.c.h.b16 %v5989
    %v6173 = vunpack.c.l.b16 %v5990
    %v6174 = vunpack.c.h.b16 %v5990
    %v6175 = vunpack.c.l.b16 %v5991
    %v6176 = vunpack.c.h.b16 %v5991
    %v6177 = vunpack.c.l.b16 %v5992
    %v6178 = vunpack.c.h.b16 %v5992
    %v6179 = vunpack.c.l.b16 %v5993
    %v6180 = vunpack.c.h.b16 %v5993
    %v6181 = vunpack.c.l.b16 %v5994
    %v6182 = vunpack.c.h.b16 %v5994
    %v6183 = vunpack.c.l.b16 %v5995
    %v6184 = vunpack.c.h.b16 %v5995
    %v6185 = vunpack.c.l.b16 %v5996
    %v6186 = vunpack.c.h.b16 %v5996
    %v6187 = vunpack.c.l.b16 %v5997
    %v6188 = vunpack.c.h.b16 %v5997
    %v6189 = vunpack.c.l.b16 %v5998
    %v6190 = vunpack.c.h.b16 %v5998
    %v6191 = vunpack.c.l.b16 %v5999
    %v6192 = vunpack.c.h.b16 %v5999
    %v6193 = vunpack.c.l.b16 %v6000
    %v6194 = vunpack.c.h.b16 %v6000
    %v6195 = vunpack.c.l.b16 %v6001
    %v6196 = vunpack.c.h.b16 %v6001
    %v6197 = vunpack.c.l.b16 %v6002
    %v6198 = vunpack.c.h.b16 %v6002
    %v6199 = vunpack.c.l.b16 %v6003
    %v6200 = vunpack.c.h.b16 %v6003
    %v6201 = vunpack.c.l.b16 %v6004
    %v6202 = vunpack.c.h.b16 %v6004
    %v6203 = vunpack.c.l.b16 %v6005
    %v6204 = vunpack.c.h.b16 %v6005
    %v6205 = vunpack.c.l.b16 %v6006
    %v6206 = vunpack.c.h.b16 %v6006
    %v6207 = vunpack.c.l.b16 %v6007
    %v6208 = vunpack.c.h.b16 %v6007
    %v6209 = vunpack.c.l.b16 %v6008
    %v6210 = vunpack.c.h.b16 %v6008
    %v6211 = vunpack.c.l.b16 %v6009
    %v6212 = vunpack.c.h.b16 %v6009
    %v6213 = vunpack.c.l.b16 %v6010
    %v6214 = vunpack.c.h.b16 %v6010
    %v6215 = vpack.c.b16 %v6089, %v6087
    %v6216 = vpack.c.b16 %v6090, %v6088
    %v6217 = vpack.c.b16 %v6093, %v6091
    %v6218 = vpack.c.b16 %v6094, %v6092
    %v6219 = vpack.c.b16 %v6097, %v6095
    %v6220 = vpack.c.b16 %v6098, %v6096
    %v6221 = vpack.c.b16 %v6101, %v6099
    %v6222 = vpack.c.b16 %v6102, %v6100
    %v6223 = vpack.c.b16 %v6105, %v6103
    %v6224 = vpack.c.b16 %v6106, %v6104
    %v6225 = vpack.c.b16 %v6109, %v6107
    %v6226 = vpack.c.b16 %v6110, %v6108
    %v6227 = vpack.c.b16 %v6113, %v6111
    %v6228 = vpack.c.b16 %v6114, %v6112
    %v6229 = vpack.c.b16 %v6117, %v6115
    %v6230 = vpack.c.b16 %v6118, %v6116
    %v6231 = vpack.c.b16 %v6121, %v6119
    %v6232 = vpack.c.b16 %v6122, %v6120
    %v6233 = vpack.c.b16 %v6125, %v6123
    %v6234 = vpack.c.b16 %v6126, %v6124
    %v6235 = vpack.c.b16 %v6129, %v6127
    %v6236 = vpack.c.b16 %v6130, %v6128
    %v6237 = vpack.c.b16 %v6133, %v6131
    %v6238 = vpack.c.b16 %v6134, %v6132
    %v6239 = vpack.c.b16 %v6137, %v6135
    %v6240 = vpack.c.b16 %v6138, %v6136
    %v6241 = vpack.c.b16 %v6141, %v6139
    %v6242 = vpack.c.b16 %v6142, %v6140
    %v6243 = vpack.c.b16 %v6145, %v6143
    %v6244 = vpack.c.b16 %v6146, %v6144
    %v6245 = vpack.c.b16 %v6149, %v6147
    %v6246 = vpack.c.b16 %v6150, %v6148
    %v6247 = vpack.c.b16 %v6153, %v6151
    %v6248 = vpack.c.b16 %v6154, %v6152
    %v6249 = vpack.c.b16 %v6157, %v6155
    %v6250 = vpack.c.b16 %v6158, %v6156
    %v6251 = vpack.c.b16 %v6161, %v6159
    %v6252 = vpack.c.b16 %v6162, %v6160
    %v6253 = vpack.c.b16 %v6165, %v6163
    %v6254 = vpack.c.b16 %v6166, %v6164
    %v6255 = vpack.c.b16 %v6169, %v6167
    %v6256 = vpack.c.b16 %v6170, %v6168
    %v6257 = vpack.c.b16 %v6173, %v6171
    %v6258 = vpack.c.b16 %v6174, %v6172
    %v6259 = vpack.c.b16 %v6177, %v6175
    %v6260 = vpack.c.b16 %v6178, %v6176
    %v6261 = vpack.c.b16 %v6181, %v6179
    %v6262 = vpack.c.b16 %v6182, %v6180
    %v6263 = vpack.c.b16 %v6185, %v6183
    %v6264 = vpack.c.b16 %v6186, %v6184
    %v6265 = vpack.c.b16 %v6189, %v6187
    %v6266 = vpack.c.b16 %v6190, %v6188
    %v6267 = vpack.c.b16 %v6193, %v6191
    %v6268 = vpack.c.b16 %v6194, %v6192
    %v6269 = vpack.c.b16 %v6197, %v6195
    %v6270 = vpack.c.b16 %v6198, %v6196
    %v6271 = vpack.c.b16 %v6201, %v6199
    %v6272 = vpack.c.b16 %v6202, %v6200
    %v6273 = vpack.c.b16 %v6205, %v6203
    %v6274 = vpack.c.b16 %v6206, %v6204
    %v6275 = vpack.c.b16 %v6209, %v6207
    %v6276 = vpack.c.b16 %v6210, %v6208
    %v6277 = vpack.c.b16 %v6213, %v6211
    %v6278 = vpack.c.b16 %v6214, %v6212
    %6343 = vmatprep.subr.bf16.mxu0 %v6216
    %6344 = vmatpush1.bf16.msra.mxu0 %v6215
    %6345 = vmatprep.subr.bf16.mxu0 %v6218
    %6346 = vmatpush1.bf16.msra.mxu0 %v6217
    %6347 = vmatprep.subr.bf16.mxu0 %v6220
    %6348 = vmatpush1.bf16.msra.mxu0 %v6219
    %6349 = vmatprep.subr.bf16.mxu0 %v6222
    %6350 = vmatpush1.bf16.msra.mxu0 %v6221
    %6351 = vmatprep.subr.bf16.mxu0 %v6224
    %6352 = vmatpush1.bf16.msra.mxu0 %v6223
    %6353 = vmatprep.subr.bf16.mxu0 %v6226
    %6354 = vmatpush1.bf16.msra.mxu0 %v6225
    %6355 = vmatprep.subr.bf16.mxu0 %v6228
    %6356 = vmatpush1.bf16.msra.mxu0 %v6227
    %6357 = vmatprep.subr.bf16.mxu0 %v6230
    %6358 = vmatpush1.bf16.msra.mxu0 %v6229
    %6359 = vmatprep.subr.bf16.mxu0 %v6232
    %6360 = vmatpush1.bf16.msra.mxu0 %v6231
    %6361 = vmatprep.subr.bf16.mxu0 %v6234
    %6362 = vmatpush1.bf16.msra.mxu0 %v6233
    %6363 = vmatprep.subr.bf16.mxu0 %v6236
    %6364 = vmatpush1.bf16.msra.mxu0 %v6235
    %6365 = vmatprep.subr.bf16.mxu0 %v6238
    %6366 = vmatpush1.bf16.msra.mxu0 %v6237
    %6367 = vmatprep.subr.bf16.mxu0 %v6240
    %6368 = vmatpush1.bf16.msra.mxu0 %v6239
    %6369 = vmatprep.subr.bf16.mxu0 %v6242
    %6370 = vmatpush1.bf16.msra.mxu0 %v6241
    %6371 = vmatprep.subr.bf16.mxu0 %v6244
    %6372 = vmatpush1.bf16.msra.mxu0 %v6243
    %6373 = vmatprep.subr.bf16.mxu0 %v6246
    %6374 = vmatpush1.bf16.msra.mxu0 %v6245
    %6375 = vmatprep.mubr.bf16.mxu0 %v5944
    %6376 = vmatmul.mubr.bf16.gmra.mrb[0].mxu0 %v5943
    %v6377 = vpop.f32.mrb[0].mxu0
    %v6378 = vadd.f32 %v6016, %v6377
    %v6379 = vpop.f32.mrb[0].mxu0
    %v6380 = vadd.f32 %v6020, %v6379
    %v6381 = vpop.f32.mrb[0].mxu0
    %v6382 = vadd.f32 %v6016, %v6381
    %v6383 = vpop.f32.mrb[0].mxu0
    %v6384 = vadd.f32 %v6020, %v6383
    %6385 = vdwg.mxu0
    %6386 = vmatprep.subr.bf16.mxu0 %v6248
    %6387 = vmatpush1.bf16.msra.mxu0 %v6247
    %6388 = vmatprep.subr.bf16.mxu0 %v6250
    %6389 = vmatpush1.bf16.msra.mxu0 %v6249
    %6390 = vmatprep.subr.bf16.mxu0 %v6252
    %6391 = vmatpush1.bf16.msra.mxu0 %v6251
    %6392 = vmatprep.subr.bf16.mxu0 %v6254
    %6393 = vmatpush1.bf16.msra.mxu0 %v6253
    %6394 = vmatprep.subr.bf16.mxu0 %v6256
    %6395 = vmatpush1.bf16.msra.mxu0 %v6255
    %6396 = vmatprep.subr.bf16.mxu0 %v6258
    %6397 = vmatpush1.bf16.msra.mxu0 %v6257
    %6398 = vmatprep.subr.bf16.mxu0 %v6260
    %6399 = vmatpush1.bf16.msra.mxu0 %v6259
    %6400 = vmatprep.subr.bf16.mxu0 %v6262
    %6401 = vmatpush1.bf16.msra.mxu0 %v6261
    %6402 = vmatprep.subr.bf16.mxu0 %v6264
    %6403 = vmatpush1.bf16.msra.mxu0 %v6263
    %6404 = vmatprep.subr.bf16.mxu0 %v6266
    %6405 = vmatpush1.bf16.msra.mxu0 %v6265
    %6406 = vmatprep.subr.bf16.mxu0 %v6268
    %6407 = vmatpush1.bf16.msra.mxu0 %v6267
    %6408 = vmatprep.subr.bf16.mxu0 %v6270
    %6409 = vmatpush1.bf16.msra.mxu0 %v6269
    %6410 = vmatprep.subr.bf16.mxu0 %v6272
    %6411 = vmatpush1.bf16.msra.mxu0 %v6271
    %6412 = vmatprep.subr.bf16.mxu0 %v6274
    %6413 = vmatpush1.bf16.msra.mxu0 %v6273
    %6414 = vmatprep.subr.bf16.mxu0 %v6276
    %6415 = vmatpush1.bf16.msra.mxu0 %v6275
    %6416 = vmatprep.subr.bf16.mxu0 %v6278
    %6417 = vmatpush1.bf16.msra.mxu0 %v6277
    %6418 = vmatprep.mubr.bf16.mxu0 %v5946
    %6419 = vmatmul.mubr.bf16.gmra.mrb[0].mxu0 %v5945
    %v6420 = vpop.f32.mrb[0].mxu0
    %v6421 = vadd.f32 %v6378, %v6420
    %v6422 = vpop.f32.mrb[0].mxu0
    %v6423 = vadd.f32 %v6380, %v6422
    %v6424 = vpop.f32.mrb[0].mxu0
    %v6425 = vadd.f32 %v6382, %v6424
    %v6426 = vpop.f32.mrb[0].mxu0
    %v6427 = vadd.f32 %v6384, %v6426
    %6428 = vdwg.mxu0
    %vm6429 = vcmp.gt.f32.partialorder %v6421, 0.0
    %vm6430 = vcmp.gt.f32.partialorder %v6423, 0.0
    %vm6431 = vcmp.gt.f32.partialorder %v6425, 0.0
    %vm6432 = vcmp.gt.f32.partialorder %v6427, 0.0
    %v6433 = vmul.f32 %v6421, 0.2
    %v6434 = vmul.f32 %v6423, 0.2
    %v6435 = vmul.f32 %v6425, 0.2
    %v6436 = vmul.f32 %v6427, 0.2
    %v6437 = vsel %vm6429, %v6421, %v6433
    %v6438 = vsel %vm6430, %v6423, %v6434
    %v6439 = vsel %vm6431, %v6425, %v6435
    %v6440 = vsel %vm6432, %v6427, %v6436
    %v6441 = vld [vmem:[#allocation14] sm:$0x3]
    %v6443 = vlaneseq
    %v6444 = vshrl.u32 %v6443, 7
    %v6445 = vsub.s32 0, %v6444
    %v6446 = vrot.slane %v6441, %v6445
    %v6447 = vlaneseq
    %v6448 = vshrl.u32 %v6447, 7
    %v6449 = vsub.s32 1, %v6448
    %v6450 = vrot.slane %v6441, %v6449
    %v6453 = vmul.f32 %v6437, %v6446
    %v6454 = vmul.f32 %v6438, %v6450
    %v6455 = vmul.f32 %v6439, %v6446
    %v6456 = vmul.f32 %v6440, %v6450
    %v6457 = vadd.f32 %v6453, %v6454
    %6458 = vadd.xlane.f32.xlu0 %v6457
    %v6459 = vpop.xlane.xlu0 %6458
    %v6460 = vadd.f32 %v6455, %v6456
    %6461 = vadd.xlane.f32.xlu0 %v6460
    %v6462 = vpop.xlane.xlu0 %6461
    %v6463 = vld [vmem:[#allocation2] sm:$0x1]
    %v6465 = vlaneseq
    %v6466 = vshrl.u32 %v6465, 7
    %v6467 = vsub.s32 0, %v6466
    %v6468 = vrot.slane %v6463, %v6467
    %v6470 = vadd.f32 %v6459, %v6468
    %v6471 = vadd.f32 %v6462, %v6468
    %vm6472 = vcmask 7168
    %6473 = vst.msk [vmem:[%s9] sm:$0xff] %vm6472, %v6470
    %6474 = vst.msk [vmem:[%s9 + $0x8] sm:$0xff] %vm6472, %v6471
    // Predicated region
    $region70: #{tpu_custom_call.1} parent=1 // pred_check
      _
    $region71: #{tpu_custom_call.1} parent=1 // pred_check_branch
      %6476 = sbr.rel (0) target = $region73
    $region72: #{tpu_custom_call.1} parent=1 // pred_region
      _
    $region73: #{tpu_custom_call.1} parent=1 // pred_fallthru
      _
    // Predicated region
    $region74: #{tpu_custom_call.1} parent=1 // pred_check
      _
    $region75: #{tpu_custom_call.1} parent=1 // pred_check_branch
      %6478 = sbr.rel (0) target = $region77
    $region76: #{tpu_custom_call.1} parent=1 // pred_region
      _
    $region77: #{tpu_custom_call.1} parent=1 // pred_fallthru
      _
    %6479 = vsyncpa [#allocation4], 1
    %6480 = vsyncpa [#allocation6], 1
    %6481 = vsyncpa [#allocation9], 1
    %6482 = vsyncpa [#allocation12], 1
    %6483 = vsyncpa [#allocation15], 1

</llo_original>
